<compile_context>
chip_gen: v7x
topology: tpu7x:2x2x1
jax: 0.10.0
libtpu: 0.0.40
codegen_flags: <defaults>
</compile_context>

<pallas_src>
import functools
import math

import jax
import jax.numpy as jnp
from jax.experimental import pallas as pl
from jax.experimental.pallas import tpu as pltpu


def _layernorm(x, gamma, beta, eps=1e-5):
    mu = jnp.mean(x, axis=-1, keepdims=True)
    var = jnp.mean((x - mu) ** 2, axis=-1, keepdims=True)
    return (x - mu) * jax.lax.rsqrt(var + eps) * gamma + beta


# ----------------------------------------------------------------------------
# Fused per-batch-block kernel.
#   activations v/k/q : (B_blk, S, E) bf16
#   wv/wk/wq          : (E, E)  bf16 block-diagonal (W.T per head); wq pre-scaled
#   wo                : (E, E)  bf16 (fc_out weight, pre-transposed)
#   w1 / w2           : (E, Hf) / (Hf, E) bf16 (FFN weights, pre-transposed)
#   biases / gamma / beta : (1, E) or (1, Hf) f32
#   optional mask bias    : (S, S) f32 additive (-1e20*scale on masked entries)
#   scratch attn_scr      : (B_blk, S, E) f32
# ----------------------------------------------------------------------------
def _fused_tblock_kernel(*refs, heads, head_dim, b_blk, seq, have_mask):
    if have_mask:
        (v_ref, k_ref, q_ref, maskb_ref,
         wv_ref, wk_ref, wq_ref,
         wo_ref, bo_ref, g1_ref, be1_ref,
         w1_ref, b1_ref, w2_ref, b2_ref,
         g2_ref, be2_ref, o_ref, attn_scr) = refs
    else:
        (v_ref, k_ref, q_ref,
         wv_ref, wk_ref, wq_ref,
         wo_ref, bo_ref, g1_ref, be1_ref,
         w1_ref, b1_ref, w2_ref, b2_ref,
         g2_ref, be2_ref, o_ref, attn_scr) = refs
        maskb_ref = None

    f32, bf16 = jnp.float32, jnp.bfloat16
    E = heads * head_dim
    M = b_blk * seq

    # Flatten (B_blk, S, E) -> (B_blk*S, E): fills the MXU M dimension.
    q2 = q_ref[...].reshape(M, E)          # bf16
    k2 = k_ref[...].reshape(M, E)
    v2 = v_ref[...].reshape(M, E)

    def mm(a, w):                          # bf16 MXU matmul, f32 accumulation
        return jnp.dot(a, w, preferred_element_type=f32)

    # Per-head q/k/v projections as lane-dense block-diagonal matmuls
    # (softmax 1/sqrt(E) scale pre-folded into wq in the wrapper).
    qp = mm(q2, wq_ref[...]).astype(bf16).reshape(b_blk, seq, E)
    kp = mm(k2, wk_ref[...]).astype(bf16).reshape(b_blk, seq, E)
    vp = mm(v2, wv_ref[...]).astype(bf16).reshape(b_blk, seq, E)

    # Attention: static loop over heads, batched over B_blk inside each einsum.
    # Each head writes straight into its lane slice of the VMEM scratch.
    for h in range(heads):
        lo = h * head_dim
        qh = qp[:, :, lo:lo + head_dim]                      # (B_blk, S, Dh) bf16
        kh = kp[:, :, lo:lo + head_dim]
        vh = vp[:, :, lo:lo + head_dim]

        s = jnp.einsum('bqd,bkd->bqk', qh, kh,
                       preferred_element_type=f32)           # (B_blk, S, S) f32
        if have_mask:
            s = s + maskb_ref[...]
        # numerically-stable softmax in f32; divide goes to the EUP slot
        s = s - jnp.max(s, axis=-1, keepdims=True)
        e = jnp.exp(s)
        p = e * pl.reciprocal(jnp.sum(e, axis=-1, keepdims=True), approx=True)
        attn_scr[:, :, lo:lo + head_dim] = jnp.einsum(
            'bqk,bkd->bqd', p.astype(bf16), vh, preferred_element_type=f32)

    # fc_out + residual + LayerNorm1 (residual path upcast to f32 once).
    attn2 = attn_scr[...].reshape(M, E).astype(bf16)
    a = mm(attn2, wo_ref[...]) + bo_ref[...]                 # (M, E) f32
    x = _layernorm(a + q2.astype(f32), g1_ref[...], be1_ref[...])
    # TODO(synk): dropout(p=0.1) is identity (eval-mode forward).

    # feed_forward: Linear -> ReLU -> Linear, then residual + LayerNorm2.
    h1 = jnp.maximum(mm(x.astype(bf16), w1_ref[...]) + b1_ref[...], 0.0)   # (M, Hf)
    ff = mm(h1.astype(bf16), w2_ref[...]) + b2_ref[...]                    # (M, E)
    out = _layernorm(ff + x, g2_ref[...], be2_ref[...])
    o_ref[...] = out.reshape(b_blk, seq, E)


# ----------------------------------------------------------------------------
# Wrapper
# ----------------------------------------------------------------------------
def _pick_batch_block(n, s, target_rows=128):
    """Largest divisor of n with b*s <= target_rows (fills an MXU M tile)."""
    best = 1
    for b in range(1, n + 1):
        if n % b == 0 and b * s <= target_rows:
            best = b
    return best


def transformer_block(value, key, query, mask, params, *, embed_size, heads):
    N, S, E = query.shape
    assert E == embed_size
    Dh = embed_size // heads
    Hf = params["w1"].shape[0]               # forward_expansion * embed_size
    scale = 1.0 / math.sqrt(float(embed_size))
    B_blk = _pick_batch_block(N, S)

    # --- one-time weight preprocessing (XLA, outside the kernel) -------------
    eyeH = jnp.eye(heads, dtype=jnp.float32)

    def block_diag_t(w):                      # (Dh, Dh) PyTorch weight -> blockdiag(W.T)
        return jnp.kron(eyeH, w.T)

    wq_bd = (block_diag_t(params["wq"]) * scale).astype(jnp.bfloat16)  # scale folded
    wk_bd = block_diag_t(params["wk"]).astype(jnp.bfloat16)
    wv_bd = block_diag_t(params["wv"]).astype(jnp.bfloat16)
    wo_t = params["wo"].T.astype(jnp.bfloat16)                          # (E, E)
    w1_t = params["w1"].T.astype(jnp.bfloat16)                          # (E, Hf)
    w2_t = params["w2"].T.astype(jnp.bfloat16)                          # (Hf, E)

    have_mask = mask is not None
    # bf16 activations: halves HBM->VMEM DMA bytes (f32 residual upcast in-kernel).
    inputs = [value.astype(jnp.bfloat16), key.astype(jnp.bfloat16),
              query.astype(jnp.bfloat16)]
    if have_mask:
        # Additive bias: -1e20*scale on masked positions (matches masked_fill then
        # /sqrt(E) up to softmax precision); safe because scores are held in f32.
        # TODO(synk): per-batch / per-head masks are collapsed to one (S, S).
        m = mask.astype(jnp.float32).reshape(S, S)
        maskb = jnp.where(m == 0.0, jnp.float32(-1e20) * scale, jnp.float32(0.0))
        inputs.append(maskb)
    inputs += [wv_bd, wk_bd, wq_bd,
               wo_t, params["bo"], params["g1"], params["be1"],
               w1_t, params["b1"], w2_t, params["b2"],
               params["g2"], params["be2"]]

    # --- BlockSpecs ----------------------------------------------------------
    act_spec = pl.BlockSpec((B_blk, S, E), lambda n: (n, 0, 0))

    def const_spec(shape):
        # TODO(synk): on v7x with production-sized weights, single-buffer these
        # grid-invariant specs (pipeline_mode=pl.Buffered(1)) to halve VMEM use.
        return pl.BlockSpec(shape, lambda n: (0, 0))

    in_specs = [act_spec, act_spec, act_spec]
    if have_mask:
        in_specs.append(const_spec((S, S)))
    in_specs += [const_spec((E, E)), const_spec((E, E)), const_spec((E, E)),   # wv, wk, wq
                 const_spec((E, E)), const_spec((1, E)),                       # wo, bo
                 const_spec((1, E)), const_spec((1, E)),                       # g1, be1
                 const_spec((E, Hf)), const_spec((1, Hf)),                     # w1, b1
                 const_spec((Hf, E)), const_spec((1, E)),                      # w2, b2
                 const_spec((1, E)), const_spec((1, E))]                       # g2, be2

    kernel = functools.partial(_fused_tblock_kernel, heads=heads, head_dim=Dh,
                               b_blk=B_blk, seq=S, have_mask=have_mask)

    out = pl.pallas_call(
        kernel,
        out_shape=jax.ShapeDtypeStruct((N, S, E), jnp.float32),
        grid=(N // B_blk,),
        in_specs=in_specs,
        out_specs=act_spec,
        scratch_shapes=[pltpu.VMEM((B_blk, S, E), jnp.float32)],
        compiler_params=pltpu.CompilerParams(
            dimension_semantics=("parallel",)),   # batch-block axis -> both TCs
    )(*inputs)

    return out


# ----------------------------------------------------------------------------
# Deterministic parameter init (PyTorch-like uniform ranges, fixed seed)
# ----------------------------------------------------------------------------
def init_params(rng, embed_size, heads, forward_expansion):
    Dh = embed_size // heads
    Hf = forward_expansion * embed_size
    ks = jax.random.split(rng, 10)

    def lin_w(k, out_f, in_f):
        bound = 1.0 / math.sqrt(in_f)
        return jax.random.uniform(k, (out_f, in_f), jnp.float32, -bound, bound)

    def lin_b(k, out_f, in_f):
        bound = 1.0 / math.sqrt(in_f)
        return jax.random.uniform(k, (1, out_f), jnp.float32, -bound, bound)

    return {
        # SelfAttention projections (head_dim -> head_dim, no bias)
        "wq": lin_w(ks[0], Dh, Dh),
        "wk": lin_w(ks[1], Dh, Dh),
        "wv": lin_w(ks[2], Dh, Dh),
        # fc_out (embed -> embed, with bias)
        "wo": lin_w(ks[3], embed_size, embed_size),
        "bo": lin_b(ks[4], embed_size, embed_size),
        # LayerNorm1 / LayerNorm2 (PyTorch default init: gamma=1, beta=0)
        "g1": jnp.ones((1, embed_size), jnp.float32),
        "be1": jnp.zeros((1, embed_size), jnp.float32),
        "g2": jnp.ones((1, embed_size), jnp.float32),
        "be2": jnp.zeros((1, embed_size), jnp.float32),
        # feed_forward
        "w1": lin_w(ks[5], Hf, embed_size),
        "b1": lin_b(ks[6], Hf, embed_size),
        "w2": lin_w(ks[7], embed_size, Hf),
        "b2": lin_b(ks[8], embed_size, Hf),
    }


if __name__ == "__main__":
    embed_size = 32
    heads = 4
    forward_expansion = 4
    N, S = 64, 8            # B_blk=16 -> M=128 MXU rows, grid=(4,)

    root = jax.random.PRNGKey(0)
    k_v, k_k, k_q, k_p = jax.random.split(root, 4)

    value = jax.random.normal(k_v, (N, S, embed_size), jnp.float32)
    key = jax.random.normal(k_k, (N, S, embed_size), jnp.float32)
    query = jax.random.normal(k_q, (N, S, embed_size), jnp.float32)
    params = init_params(k_p, embed_size, heads, forward_expansion)

    out = transformer_block(value, key, query, None, params,
                            embed_size=embed_size, heads=heads)
    out = jax.block_until_ready(out)
    assert out.shape == (N, S, embed_size) and out.dtype == jnp.float32
    print("KERNEL_OK")
</pallas_src>

<mosaic_0001>
module attributes {stable_mosaic.version = 11 : i64} {
  func.func @_fused_tblock_kernel(%arg0: i32, %arg1: memref<16x8x32xbf16, #tpu.memory_space<vmem>>, %arg2: memref<16x8x32xbf16, #tpu.memory_space<vmem>>, %arg3: memref<16x8x32xbf16, #tpu.memory_space<vmem>>, %arg4: memref<32x32xbf16, #tpu.memory_space<vmem>>, %arg5: memref<32x32xbf16, #tpu.memory_space<vmem>>, %arg6: memref<32x32xbf16, #tpu.memory_space<vmem>>, %arg7: memref<32x32xbf16, #tpu.memory_space<vmem>>, %arg8: memref<1x32xf32, #tpu.memory_space<vmem>>, %arg9: memref<1x32xf32, #tpu.memory_space<vmem>>, %arg10: memref<1x32xf32, #tpu.memory_space<vmem>>, %arg11: memref<32x128xbf16, #tpu.memory_space<vmem>>, %arg12: memref<1x128xf32, #tpu.memory_space<vmem>>, %arg13: memref<128x32xbf16, #tpu.memory_space<vmem>>, %arg14: memref<1x32xf32, #tpu.memory_space<vmem>>, %arg15: memref<1x32xf32, #tpu.memory_space<vmem>>, %arg16: memref<1x32xf32, #tpu.memory_space<vmem>>, %arg17: memref<16x8x32xf32, #tpu.memory_space<vmem>>, %arg18: memref<16x8x32xf32, #tpu.memory_space<vmem>>) attributes {dimension_semantics = [#tpu.dimension_semantics<parallel>], iteration_bounds = array<i64: 4>, scalar_prefetch = 0 : i64, scratch_operands = 1 : i64, tpu.core_type = #tpu.core_type<tc>, window_params = [{transform_indices = @transform_0, window_bounds = array<i64: 16, 8, 32>}, {transform_indices = @transform_1, window_bounds = array<i64: 16, 8, 32>}, {transform_indices = @transform_2, window_bounds = array<i64: 16, 8, 32>}, {pipeline_mode = #tpu.pipeline_mode<synchronous>, transform_indices = @transform_3, window_bounds = array<i64: 32, 32>}, {pipeline_mode = #tpu.pipeline_mode<synchronous>, transform_indices = @transform_4, window_bounds = array<i64: 32, 32>}, {pipeline_mode = #tpu.pipeline_mode<synchronous>, transform_indices = @transform_5, window_bounds = array<i64: 32, 32>}, {pipeline_mode = #tpu.pipeline_mode<synchronous>, transform_indices = @transform_6, window_bounds = array<i64: 32, 32>}, {pipeline_mode = #tpu.pipeline_mode<synchronous>, transform_indices = @transform_7, window_bounds = array<i64: 1, 32>}, {pipeline_mode = #tpu.pipeline_mode<synchronous>, transform_indices = @transform_8, window_bounds = array<i64: 1, 32>}, {pipeline_mode = #tpu.pipeline_mode<synchronous>, transform_indices = @transform_9, window_bounds = array<i64: 1, 32>}, {pipeline_mode = #tpu.pipeline_mode<synchronous>, transform_indices = @transform_10, window_bounds = array<i64: 32, 128>}, {pipeline_mode = #tpu.pipeline_mode<synchronous>, transform_indices = @transform_11, window_bounds = array<i64: 1, 128>}, {pipeline_mode = #tpu.pipeline_mode<synchronous>, transform_indices = @transform_12, window_bounds = array<i64: 128, 32>}, {pipeline_mode = #tpu.pipeline_mode<synchronous>, transform_indices = @transform_13, window_bounds = array<i64: 1, 32>}, {pipeline_mode = #tpu.pipeline_mode<synchronous>, transform_indices = @transform_14, window_bounds = array<i64: 1, 32>}, {pipeline_mode = #tpu.pipeline_mode<synchronous>, transform_indices = @transform_15, window_bounds = array<i64: 1, 32>}, {transform_indices = @transform_16, window_bounds = array<i64: 16, 8, 32>}]} {
    %c0 = arith.constant 0 : index
    %c0_0 = arith.constant 0 : index
    %c0_1 = arith.constant 0 : index
    %0 = vector.load %arg3[%c0, %c0_0, %c0_1] : memref<16x8x32xbf16, #tpu.memory_space<vmem>>, vector<16x8x32xbf16>
    %1 = vector.shape_cast %0 : vector<16x8x32xbf16> to vector<128x32xbf16>
    %c0_2 = arith.constant 0 : index
    %c0_3 = arith.constant 0 : index
    %c0_4 = arith.constant 0 : index
    %2 = vector.load %arg2[%c0_2, %c0_3, %c0_4] : memref<16x8x32xbf16, #tpu.memory_space<vmem>>, vector<16x8x32xbf16>
    %3 = vector.shape_cast %2 : vector<16x8x32xbf16> to vector<128x32xbf16>
    %c0_5 = arith.constant 0 : index
    %c0_6 = arith.constant 0 : index
    %c0_7 = arith.constant 0 : index
    %4 = vector.load %arg1[%c0_5, %c0_6, %c0_7] : memref<16x8x32xbf16, #tpu.memory_space<vmem>>, vector<16x8x32xbf16>
    %5 = vector.shape_cast %4 : vector<16x8x32xbf16> to vector<128x32xbf16>
    %c0_8 = arith.constant 0 : index
    %c0_9 = arith.constant 0 : index
    %6 = vector.load %arg6[%c0_8, %c0_9] : memref<32x32xbf16, #tpu.memory_space<vmem>>, vector<32x32xbf16>
    %cst = arith.constant dense<0.000000e+00> : vector<128x32xf32>
    %7 = tpu.matmul %1, %6, %cst {dimension_numbers = #tpu.dot_dimension_numbers<[1], [0], [0], [1], [0, 0, 1, 1], [], []>} : vector<128x32xbf16>, vector<32x32xbf16>, vector<128x32xf32> -> vector<128x32xf32>
    %8 = arith.truncf %7 : vector<128x32xf32> to vector<128x32xbf16>
    %9 = vector.shape_cast %8 : vector<128x32xbf16> to vector<16x8x32xbf16>
    %c0_10 = arith.constant 0 : index
    %c0_11 = arith.constant 0 : index
    %10 = vector.load %arg5[%c0_10, %c0_11] : memref<32x32xbf16, #tpu.memory_space<vmem>>, vector<32x32xbf16>
    %cst_12 = arith.constant dense<0.000000e+00> : vector<128x32xf32>
    %11 = tpu.matmul %3, %10, %cst_12 {dimension_numbers = #tpu.dot_dimension_numbers<[1], [0], [0], [1], [0, 0, 1, 1], [], []>} : vector<128x32xbf16>, vector<32x32xbf16>, vector<128x32xf32> -> vector<128x32xf32>
    %12 = arith.truncf %11 : vector<128x32xf32> to vector<128x32xbf16>
    %13 = vector.shape_cast %12 : vector<128x32xbf16> to vector<16x8x32xbf16>
    %c0_13 = arith.constant 0 : index
    %c0_14 = arith.constant 0 : index
    %14 = vector.load %arg4[%c0_13, %c0_14] : memref<32x32xbf16, #tpu.memory_space<vmem>>, vector<32x32xbf16>
    %cst_15 = arith.constant dense<0.000000e+00> : vector<128x32xf32>
    %15 = tpu.matmul %5, %14, %cst_15 {dimension_numbers = #tpu.dot_dimension_numbers<[1], [0], [0], [1], [0, 0, 1, 1], [], []>} : vector<128x32xbf16>, vector<32x32xbf16>, vector<128x32xf32> -> vector<128x32xf32>
    %16 = arith.truncf %15 : vector<128x32xf32> to vector<128x32xbf16>
    %17 = vector.shape_cast %16 : vector<128x32xbf16> to vector<16x8x32xbf16>
    %18 = vector.extract_strided_slice %9 {offsets = [0, 0, 0], sizes = [16, 8, 8], strides = [1, 1, 1]} : vector<16x8x32xbf16> to vector<16x8x8xbf16>
    %19 = vector.extract_strided_slice %13 {offsets = [0, 0, 0], sizes = [16, 8, 8], strides = [1, 1, 1]} : vector<16x8x32xbf16> to vector<16x8x8xbf16>
    %20 = vector.extract_strided_slice %17 {offsets = [0, 0, 0], sizes = [16, 8, 8], strides = [1, 1, 1]} : vector<16x8x32xbf16> to vector<16x8x8xbf16>
    "tpu.trace_start"() <{level = 10 : i32, message = "bqd,bkd->bqk"}> : () -> ()
    %cst_16 = arith.constant dense<0.000000e+00> : vector<16x8x8xf32>
    %21 = tpu.matmul %18, %19, %cst_16 {dimension_numbers = #tpu.dot_dimension_numbers<[2], [2], [1], [1], [0, 0, 0, 1, 1, 1], [0], [0]>} : vector<16x8x8xbf16>, vector<16x8x8xbf16>, vector<16x8x8xf32> -> vector<16x8x8xf32>
    "tpu.trace_stop"() : () -> ()
    %cst_17 = arith.constant dense<0xFF800000> : vector<16x8xf32>
    %22 = vector.multi_reduction <maximumf>, %21, %cst_17 [2] : vector<16x8x8xf32> to vector<16x8xf32>
    %23 = vector.shape_cast %22 : vector<16x8xf32> to vector<16x8x1xf32>
    %24 = vector.broadcast %23 : vector<16x8x1xf32> to vector<16x8x8xf32>
    %25 = arith.subf %21, %24 : vector<16x8x8xf32>
    %26 = math.exp %25 : vector<16x8x8xf32>
    %cst_18 = arith.constant dense<0.000000e+00> : vector<16x8xf32>
    %27 = vector.multi_reduction <add>, %26, %cst_18 [2] : vector<16x8x8xf32> to vector<16x8xf32>
    %28 = vector.shape_cast %27 : vector<16x8xf32> to vector<16x8x1xf32>
    %29 = tpu.reciprocal %28 {approx = true} : vector<16x8x1xf32> -> vector<16x8x1xf32>
    %30 = vector.broadcast %29 : vector<16x8x1xf32> to vector<16x8x8xf32>
    %31 = arith.mulf %26, %30 : vector<16x8x8xf32>
    %32 = arith.truncf %31 : vector<16x8x8xf32> to vector<16x8x8xbf16>
    "tpu.trace_start"() <{level = 10 : i32, message = "bqk,bkd->bqd"}> : () -> ()
    %cst_19 = arith.constant dense<0.000000e+00> : vector<16x8x8xf32>
    %33 = tpu.matmul %32, %20, %cst_19 {dimension_numbers = #tpu.dot_dimension_numbers<[2], [1], [1], [2], [0, 0, 0, 1, 1, 2], [0], [0]>} : vector<16x8x8xbf16>, vector<16x8x8xbf16>, vector<16x8x8xf32> -> vector<16x8x8xf32>
    "tpu.trace_stop"() : () -> ()
    %c0_20 = arith.constant 0 : index
    %c0_21 = arith.constant 0 : index
    %c0_22 = arith.constant 0 : index
    %34 = vector.load %arg18[%c0_20, %c0_21, %c0_22] : memref<16x8x32xf32, #tpu.memory_space<vmem>>, vector<16x8x8xf32>
    tpu.vector_store %arg18[%c0_20, %c0_21, %c0_22], %33 {strides = array<i32>} : memref<16x8x32xf32, #tpu.memory_space<vmem>>, vector<16x8x8xf32>,
    %35 = vector.extract_strided_slice %9 {offsets = [0, 0, 8], sizes = [16, 8, 8], strides = [1, 1, 1]} : vector<16x8x32xbf16> to vector<16x8x8xbf16>
    %36 = vector.extract_strided_slice %13 {offsets = [0, 0, 8], sizes = [16, 8, 8], strides = [1, 1, 1]} : vector<16x8x32xbf16> to vector<16x8x8xbf16>
    %37 = vector.extract_strided_slice %17 {offsets = [0, 0, 8], sizes = [16, 8, 8], strides = [1, 1, 1]} : vector<16x8x32xbf16> to vector<16x8x8xbf16>
    "tpu.trace_start"() <{level = 10 : i32, message = "bqd,bkd->bqk"}> : () -> ()
    %cst_23 = arith.constant dense<0.000000e+00> : vector<16x8x8xf32>
    %38 = tpu.matmul %35, %36, %cst_23 {dimension_numbers = #tpu.dot_dimension_numbers<[2], [2], [1], [1], [0, 0, 0, 1, 1, 1], [0], [0]>} : vector<16x8x8xbf16>, vector<16x8x8xbf16>, vector<16x8x8xf32> -> vector<16x8x8xf32>
    "tpu.trace_stop"() : () -> ()
    %cst_24 = arith.constant dense<0xFF800000> : vector<16x8xf32>
    %39 = vector.multi_reduction <maximumf>, %38, %cst_24 [2] : vector<16x8x8xf32> to vector<16x8xf32>
    %40 = vector.shape_cast %39 : vector<16x8xf32> to vector<16x8x1xf32>
    %41 = vector.broadcast %40 : vector<16x8x1xf32> to vector<16x8x8xf32>
    %42 = arith.subf %38, %41 : vector<16x8x8xf32>
    %43 = math.exp %42 : vector<16x8x8xf32>
    %cst_25 = arith.constant dense<0.000000e+00> : vector<16x8xf32>
    %44 = vector.multi_reduction <add>, %43, %cst_25 [2] : vector<16x8x8xf32> to vector<16x8xf32>
    %45 = vector.shape_cast %44 : vector<16x8xf32> to vector<16x8x1xf32>
    %46 = tpu.reciprocal %45 {approx = true} : vector<16x8x1xf32> -> vector<16x8x1xf32>
    %47 = vector.broadcast %46 : vector<16x8x1xf32> to vector<16x8x8xf32>
    %48 = arith.mulf %43, %47 : vector<16x8x8xf32>
    %49 = arith.truncf %48 : vector<16x8x8xf32> to vector<16x8x8xbf16>
    "tpu.trace_start"() <{level = 10 : i32, message = "bqk,bkd->bqd"}> : () -> ()
    %cst_26 = arith.constant dense<0.000000e+00> : vector<16x8x8xf32>
    %50 = tpu.matmul %49, %37, %cst_26 {dimension_numbers = #tpu.dot_dimension_numbers<[2], [1], [1], [2], [0, 0, 0, 1, 1, 2], [0], [0]>} : vector<16x8x8xbf16>, vector<16x8x8xbf16>, vector<16x8x8xf32> -> vector<16x8x8xf32>
    "tpu.trace_stop"() : () -> ()
    %c0_27 = arith.constant 0 : index
    %c0_28 = arith.constant 0 : index
    %c8 = arith.constant 8 : index
    %51 = vector.load %arg18[%c0_27, %c0_28, %c8] : memref<16x8x32xf32, #tpu.memory_space<vmem>>, vector<16x8x8xf32>
    tpu.vector_store %arg18[%c0_27, %c0_28, %c8], %50 {strides = array<i32>} : memref<16x8x32xf32, #tpu.memory_space<vmem>>, vector<16x8x8xf32>,
    %52 = vector.extract_strided_slice %9 {offsets = [0, 0, 16], sizes = [16, 8, 8], strides = [1, 1, 1]} : vector<16x8x32xbf16> to vector<16x8x8xbf16>
    %53 = vector.extract_strided_slice %13 {offsets = [0, 0, 16], sizes = [16, 8, 8], strides = [1, 1, 1]} : vector<16x8x32xbf16> to vector<16x8x8xbf16>
    %54 = vector.extract_strided_slice %17 {offsets = [0, 0, 16], sizes = [16, 8, 8], strides = [1, 1, 1]} : vector<16x8x32xbf16> to vector<16x8x8xbf16>
    "tpu.trace_start"() <{level = 10 : i32, message = "bqd,bkd->bqk"}> : () -> ()
    %cst_29 = arith.constant dense<0.000000e+00> : vector<16x8x8xf32>
    %55 = tpu.matmul %52, %53, %cst_29 {dimension_numbers = #tpu.dot_dimension_numbers<[2], [2], [1], [1], [0, 0, 0, 1, 1, 1], [0], [0]>} : vector<16x8x8xbf16>, vector<16x8x8xbf16>, vector<16x8x8xf32> -> vector<16x8x8xf32>
    "tpu.trace_stop"() : () -> ()
    %cst_30 = arith.constant dense<0xFF800000> : vector<16x8xf32>
    %56 = vector.multi_reduction <maximumf>, %55, %cst_30 [2] : vector<16x8x8xf32> to vector<16x8xf32>
    %57 = vector.shape_cast %56 : vector<16x8xf32> to vector<16x8x1xf32>
    %58 = vector.broadcast %57 : vector<16x8x1xf32> to vector<16x8x8xf32>
    %59 = arith.subf %55, %58 : vector<16x8x8xf32>
    %60 = math.exp %59 : vector<16x8x8xf32>
    %cst_31 = arith.constant dense<0.000000e+00> : vector<16x8xf32>
    %61 = vector.multi_reduction <add>, %60, %cst_31 [2] : vector<16x8x8xf32> to vector<16x8xf32>
    %62 = vector.shape_cast %61 : vector<16x8xf32> to vector<16x8x1xf32>
    %63 = tpu.reciprocal %62 {approx = true} : vector<16x8x1xf32> -> vector<16x8x1xf32>
    %64 = vector.broadcast %63 : vector<16x8x1xf32> to vector<16x8x8xf32>
    %65 = arith.mulf %60, %64 : vector<16x8x8xf32>
    %66 = arith.truncf %65 : vector<16x8x8xf32> to vector<16x8x8xbf16>
    "tpu.trace_start"() <{level = 10 : i32, message = "bqk,bkd->bqd"}> : () -> ()
    %cst_32 = arith.constant dense<0.000000e+00> : vector<16x8x8xf32>
    %67 = tpu.matmul %66, %54, %cst_32 {dimension_numbers = #tpu.dot_dimension_numbers<[2], [1], [1], [2], [0, 0, 0, 1, 1, 2], [0], [0]>} : vector<16x8x8xbf16>, vector<16x8x8xbf16>, vector<16x8x8xf32> -> vector<16x8x8xf32>
    "tpu.trace_stop"() : () -> ()
    %c0_33 = arith.constant 0 : index
    %c0_34 = arith.constant 0 : index
    %c16 = arith.constant 16 : index
    %68 = vector.load %arg18[%c0_33, %c0_34, %c16] : memref<16x8x32xf32, #tpu.memory_space<vmem>>, vector<16x8x8xf32>
    tpu.vector_store %arg18[%c0_33, %c0_34, %c16], %67 {strides = array<i32>} : memref<16x8x32xf32, #tpu.memory_space<vmem>>, vector<16x8x8xf32>,
    %69 = vector.extract_strided_slice %9 {offsets = [0, 0, 24], sizes = [16, 8, 8], strides = [1, 1, 1]} : vector<16x8x32xbf16> to vector<16x8x8xbf16>
    %70 = vector.extract_strided_slice %13 {offsets = [0, 0, 24], sizes = [16, 8, 8], strides = [1, 1, 1]} : vector<16x8x32xbf16> to vector<16x8x8xbf16>
    %71 = vector.extract_strided_slice %17 {offsets = [0, 0, 24], sizes = [16, 8, 8], strides = [1, 1, 1]} : vector<16x8x32xbf16> to vector<16x8x8xbf16>
    "tpu.trace_start"() <{level = 10 : i32, message = "bqd,bkd->bqk"}> : () -> ()
    %cst_35 = arith.constant dense<0.000000e+00> : vector<16x8x8xf32>
    %72 = tpu.matmul %69, %70, %cst_35 {dimension_numbers = #tpu.dot_dimension_numbers<[2], [2], [1], [1], [0, 0, 0, 1, 1, 1], [0], [0]>} : vector<16x8x8xbf16>, vector<16x8x8xbf16>, vector<16x8x8xf32> -> vector<16x8x8xf32>
    "tpu.trace_stop"() : () -> ()
    %cst_36 = arith.constant dense<0xFF800000> : vector<16x8xf32>
    %73 = vector.multi_reduction <maximumf>, %72, %cst_36 [2] : vector<16x8x8xf32> to vector<16x8xf32>
    %74 = vector.shape_cast %73 : vector<16x8xf32> to vector<16x8x1xf32>
    %75 = vector.broadcast %74 : vector<16x8x1xf32> to vector<16x8x8xf32>
    %76 = arith.subf %72, %75 : vector<16x8x8xf32>
    %77 = math.exp %76 : vector<16x8x8xf32>
    %cst_37 = arith.constant dense<0.000000e+00> : vector<16x8xf32>
    %78 = vector.multi_reduction <add>, %77, %cst_37 [2] : vector<16x8x8xf32> to vector<16x8xf32>
    %79 = vector.shape_cast %78 : vector<16x8xf32> to vector<16x8x1xf32>
    %80 = tpu.reciprocal %79 {approx = true} : vector<16x8x1xf32> -> vector<16x8x1xf32>
    %81 = vector.broadcast %80 : vector<16x8x1xf32> to vector<16x8x8xf32>
    %82 = arith.mulf %77, %81 : vector<16x8x8xf32>
    %83 = arith.truncf %82 : vector<16x8x8xf32> to vector<16x8x8xbf16>
    "tpu.trace_start"() <{level = 10 : i32, message = "bqk,bkd->bqd"}> : () -> ()
    %cst_38 = arith.constant dense<0.000000e+00> : vector<16x8x8xf32>
    %84 = tpu.matmul %83, %71, %cst_38 {dimension_numbers = #tpu.dot_dimension_numbers<[2], [1], [1], [2], [0, 0, 0, 1, 1, 2], [0], [0]>} : vector<16x8x8xbf16>, vector<16x8x8xbf16>, vector<16x8x8xf32> -> vector<16x8x8xf32>
    "tpu.trace_stop"() : () -> ()
    %c0_39 = arith.constant 0 : index
    %c0_40 = arith.constant 0 : index
    %c24 = arith.constant 24 : index
    %85 = vector.load %arg18[%c0_39, %c0_40, %c24] : memref<16x8x32xf32, #tpu.memory_space<vmem>>, vector<16x8x8xf32>
    tpu.vector_store %arg18[%c0_39, %c0_40, %c24], %84 {strides = array<i32>} : memref<16x8x32xf32, #tpu.memory_space<vmem>>, vector<16x8x8xf32>,
    %c0_41 = arith.constant 0 : index
    %c0_42 = arith.constant 0 : index
    %c0_43 = arith.constant 0 : index
    %86 = vector.load %arg18[%c0_41, %c0_42, %c0_43] : memref<16x8x32xf32, #tpu.memory_space<vmem>>, vector<16x8x32xf32>
    %87 = vector.shape_cast %86 : vector<16x8x32xf32> to vector<128x32xf32>
    %88 = arith.truncf %87 : vector<128x32xf32> to vector<128x32xbf16>
    %c0_44 = arith.constant 0 : index
    %c0_45 = arith.constant 0 : index
    %89 = vector.load %arg7[%c0_44, %c0_45] : memref<32x32xbf16, #tpu.memory_space<vmem>>, vector<32x32xbf16>
    %cst_46 = arith.constant dense<0.000000e+00> : vector<128x32xf32>
    %90 = tpu.matmul %88, %89, %cst_46 {dimension_numbers = #tpu.dot_dimension_numbers<[1], [0], [0], [1], [0, 0, 1, 1], [], []>} : vector<128x32xbf16>, vector<32x32xbf16>, vector<128x32xf32> -> vector<128x32xf32>
    %c0_47 = arith.constant 0 : index
    %c0_48 = arith.constant 0 : index
    %91 = vector.load %arg8[%c0_47, %c0_48] : memref<1x32xf32, #tpu.memory_space<vmem>>, vector<1x32xf32>
    %92 = vector.broadcast %91 : vector<1x32xf32> to vector<128x32xf32>
    %93 = arith.addf %90, %92 : vector<128x32xf32>
    %94 = arith.extf %1 : vector<128x32xbf16> to vector<128x32xf32>
    %95 = arith.addf %93, %94 : vector<128x32xf32>
    %c0_49 = arith.constant 0 : index
    %c0_50 = arith.constant 0 : index
    %96 = vector.load %arg9[%c0_49, %c0_50] : memref<1x32xf32, #tpu.memory_space<vmem>>, vector<1x32xf32>
    %c0_51 = arith.constant 0 : index
    %c0_52 = arith.constant 0 : index
    %97 = vector.load %arg10[%c0_51, %c0_52] : memref<1x32xf32, #tpu.memory_space<vmem>>, vector<1x32xf32>
    %cst_53 = arith.constant dense<0.000000e+00> : vector<128xf32>
    %98 = vector.multi_reduction <add>, %95, %cst_53 [1] : vector<128x32xf32> to vector<128xf32>
    %99 = vector.shape_cast %98 : vector<128xf32> to vector<128x1xf32>
    %cst_54 = arith.constant 3.200000e+01 : f32
    %100 = vector.broadcast %cst_54 : f32 to vector<128x1xf32>
    %101 = arith.divf %99, %100 : vector<128x1xf32>
    %102 = vector.broadcast %101 : vector<128x1xf32> to vector<128x32xf32>
    %103 = arith.subf %95, %102 : vector<128x32xf32>
    %104 = arith.mulf %103, %103 : vector<128x32xf32>
    %cst_55 = arith.constant dense<0.000000e+00> : vector<128xf32>
    %105 = vector.multi_reduction <add>, %104, %cst_55 [1] : vector<128x32xf32> to vector<128xf32>
    %106 = vector.shape_cast %105 : vector<128xf32> to vector<128x1xf32>
    %cst_56 = arith.constant 3.200000e+01 : f32
    %107 = vector.broadcast %cst_56 : f32 to vector<128x1xf32>
    %108 = arith.divf %106, %107 : vector<128x1xf32>
    %109 = vector.broadcast %101 : vector<128x1xf32> to vector<128x32xf32>
    %110 = arith.subf %95, %109 : vector<128x32xf32>
    %cst_57 = arith.constant 9.99999974E-6 : f32
    %111 = vector.broadcast %cst_57 : f32 to vector<128x1xf32>
    %112 = arith.addf %108, %111 : vector<128x1xf32>
    %113 = math.rsqrt %112 : vector<128x1xf32>
    %114 = vector.broadcast %113 : vector<128x1xf32> to vector<128x32xf32>
    %115 = arith.mulf %110, %114 : vector<128x32xf32>
    %116 = vector.broadcast %96 : vector<1x32xf32> to vector<128x32xf32>
    %117 = arith.mulf %115, %116 : vector<128x32xf32>
    %118 = vector.broadcast %97 : vector<1x32xf32> to vector<128x32xf32>
    %119 = arith.addf %117, %118 : vector<128x32xf32>
    %120 = arith.truncf %119 : vector<128x32xf32> to vector<128x32xbf16>
    %c0_58 = arith.constant 0 : index
    %c0_59 = arith.constant 0 : index
    %121 = vector.load %arg11[%c0_58, %c0_59] : memref<32x128xbf16, #tpu.memory_space<vmem>>, vector<32x128xbf16>
    %cst_60 = arith.constant dense<0.000000e+00> : vector<128x128xf32>
    %122 = tpu.matmul %120, %121, %cst_60 {dimension_numbers = #tpu.dot_dimension_numbers<[1], [0], [0], [1], [0, 0, 1, 1], [], []>} : vector<128x32xbf16>, vector<32x128xbf16>, vector<128x128xf32> -> vector<128x128xf32>
    %c0_61 = arith.constant 0 : index
    %c0_62 = arith.constant 0 : index
    %123 = vector.load %arg12[%c0_61, %c0_62] : memref<1x128xf32, #tpu.memory_space<vmem>>, vector<1x128xf32>
    %124 = vector.broadcast %123 : vector<1x128xf32> to vector<128x128xf32>
    %125 = arith.addf %122, %124 : vector<128x128xf32>
    %cst_63 = arith.constant 0.000000e+00 : f32
    %126 = vector.broadcast %cst_63 : f32 to vector<128x128xf32>
    %127 = arith.maximumf %125, %126 : vector<128x128xf32>
    %128 = arith.truncf %127 : vector<128x128xf32> to vector<128x128xbf16>
    %c0_64 = arith.constant 0 : index
    %c0_65 = arith.constant 0 : index
    %129 = vector.load %arg13[%c0_64, %c0_65] : memref<128x32xbf16, #tpu.memory_space<vmem>>, vector<128x32xbf16>
    %cst_66 = arith.constant dense<0.000000e+00> : vector<128x32xf32>
    %130 = tpu.matmul %128, %129, %cst_66 {dimension_numbers = #tpu.dot_dimension_numbers<[1], [0], [0], [1], [0, 0, 1, 1], [], []>} : vector<128x128xbf16>, vector<128x32xbf16>, vector<128x32xf32> -> vector<128x32xf32>
    %c0_67 = arith.constant 0 : index
    %c0_68 = arith.constant 0 : index
    %131 = vector.load %arg14[%c0_67, %c0_68] : memref<1x32xf32, #tpu.memory_space<vmem>>, vector<1x32xf32>
    %132 = vector.broadcast %131 : vector<1x32xf32> to vector<128x32xf32>
    %133 = arith.addf %130, %132 : vector<128x32xf32>
    %134 = arith.addf %133, %119 : vector<128x32xf32>
    %c0_69 = arith.constant 0 : index
    %c0_70 = arith.constant 0 : index
    %135 = vector.load %arg15[%c0_69, %c0_70] : memref<1x32xf32, #tpu.memory_space<vmem>>, vector<1x32xf32>
    %c0_71 = arith.constant 0 : index
    %c0_72 = arith.constant 0 : index
    %136 = vector.load %arg16[%c0_71, %c0_72] : memref<1x32xf32, #tpu.memory_space<vmem>>, vector<1x32xf32>
    %cst_73 = arith.constant dense<0.000000e+00> : vector<128xf32>
    %137 = vector.multi_reduction <add>, %134, %cst_73 [1] : vector<128x32xf32> to vector<128xf32>
    %138 = vector.shape_cast %137 : vector<128xf32> to vector<128x1xf32>
    %cst_74 = arith.constant 3.200000e+01 : f32
    %139 = vector.broadcast %cst_74 : f32 to vector<128x1xf32>
    %140 = arith.divf %138, %139 : vector<128x1xf32>
    %141 = vector.broadcast %140 : vector<128x1xf32> to vector<128x32xf32>
    %142 = arith.subf %134, %141 : vector<128x32xf32>
    %143 = arith.mulf %142, %142 : vector<128x32xf32>
    %cst_75 = arith.constant dense<0.000000e+00> : vector<128xf32>
    %144 = vector.multi_reduction <add>, %143, %cst_75 [1] : vector<128x32xf32> to vector<128xf32>
    %145 = vector.shape_cast %144 : vector<128xf32> to vector<128x1xf32>
    %cst_76 = arith.constant 3.200000e+01 : f32
    %146 = vector.broadcast %cst_76 : f32 to vector<128x1xf32>
    %147 = arith.divf %145, %146 : vector<128x1xf32>
    %148 = vector.broadcast %140 : vector<128x1xf32> to vector<128x32xf32>
    %149 = arith.subf %134, %148 : vector<128x32xf32>
    %cst_77 = arith.constant 9.99999974E-6 : f32
    %150 = vector.broadcast %cst_77 : f32 to vector<128x1xf32>
    %151 = arith.addf %147, %150 : vector<128x1xf32>
    %152 = math.rsqrt %151 : vector<128x1xf32>
    %153 = vector.broadcast %152 : vector<128x1xf32> to vector<128x32xf32>
    %154 = arith.mulf %149, %153 : vector<128x32xf32>
    %155 = vector.broadcast %135 : vector<1x32xf32> to vector<128x32xf32>
    %156 = arith.mulf %154, %155 : vector<128x32xf32>
    %157 = vector.broadcast %136 : vector<1x32xf32> to vector<128x32xf32>
    %158 = arith.addf %156, %157 : vector<128x32xf32>
    %159 = vector.shape_cast %158 : vector<128x32xf32> to vector<16x8x32xf32>
    %c0_78 = arith.constant 0 : index
    %c0_79 = arith.constant 0 : index
    %c0_80 = arith.constant 0 : index
    %160 = vector.load %arg17[%c0_78, %c0_79, %c0_80] : memref<16x8x32xf32, #tpu.memory_space<vmem>>, vector<16x8x32xf32>
    tpu.vector_store %arg17[%c0_78, %c0_79, %c0_80], %159 {strides = array<i32>} : memref<16x8x32xf32, #tpu.memory_space<vmem>>, vector<16x8x32xf32>,
    return
  }
  func.func @transform_0(%arg0: i32) -> (i32, i32, i32) {
    %c0_i32 = arith.constant 0 : i32
    %c0_i32_0 = arith.constant 0 : i32
    %c0_i32_1 = arith.constant 0 : i32
    return %arg0, %c0_i32, %c0_i32_0 : i32, i32, i32
  }
  func.func @transform_1(%arg0: i32) -> (i32, i32, i32) {
    %c0_i32 = arith.constant 0 : i32
    %c0_i32_0 = arith.constant 0 : i32
    %c0_i32_1 = arith.constant 0 : i32
    return %arg0, %c0_i32, %c0_i32_0 : i32, i32, i32
  }
  func.func @transform_2(%arg0: i32) -> (i32, i32, i32) {
    %c0_i32 = arith.constant 0 : i32
    %c0_i32_0 = arith.constant 0 : i32
    %c0_i32_1 = arith.constant 0 : i32
    return %arg0, %c0_i32, %c0_i32_0 : i32, i32, i32
  }
  func.func @transform_3(%arg0: i32) -> (i32, i32) {
    %c0_i32 = arith.constant 0 : i32
    %c0_i32_0 = arith.constant 0 : i32
    %c0_i32_1 = arith.constant 0 : i32
    return %c0_i32, %c0_i32_0 : i32, i32
  }
  func.func @transform_4(%arg0: i32) -> (i32, i32) {
    %c0_i32 = arith.constant 0 : i32
    %c0_i32_0 = arith.constant 0 : i32
    %c0_i32_1 = arith.constant 0 : i32
    return %c0_i32, %c0_i32_0 : i32, i32
  }
  func.func @transform_5(%arg0: i32) -> (i32, i32) {
    %c0_i32 = arith.constant 0 : i32
    %c0_i32_0 = arith.constant 0 : i32
    %c0_i32_1 = arith.constant 0 : i32
    return %c0_i32, %c0_i32_0 : i32, i32
  }
  func.func @transform_6(%arg0: i32) -> (i32, i32) {
    %c0_i32 = arith.constant 0 : i32
    %c0_i32_0 = arith.constant 0 : i32
    %c0_i32_1 = arith.constant 0 : i32
    return %c0_i32, %c0_i32_0 : i32, i32
  }
  func.func @transform_7(%arg0: i32) -> (i32, i32) {
    %c0_i32 = arith.constant 0 : i32
    %c0_i32_0 = arith.constant 0 : i32
    %c0_i32_1 = arith.constant 0 : i32
    return %c0_i32, %c0_i32_0 : i32, i32
  }
  func.func @transform_8(%arg0: i32) -> (i32, i32) {
    %c0_i32 = arith.constant 0 : i32
    %c0_i32_0 = arith.constant 0 : i32
    %c0_i32_1 = arith.constant 0 : i32
    return %c0_i32, %c0_i32_0 : i32, i32
  }
  func.func @transform_9(%arg0: i32) -> (i32, i32) {
    %c0_i32 = arith.constant 0 : i32
    %c0_i32_0 = arith.constant 0 : i32
    %c0_i32_1 = arith.constant 0 : i32
    return %c0_i32, %c0_i32_0 : i32, i32
  }
  func.func @transform_10(%arg0: i32) -> (i32, i32) {
    %c0_i32 = arith.constant 0 : i32
    %c0_i32_0 = arith.constant 0 : i32
    %c0_i32_1 = arith.constant 0 : i32
    return %c0_i32, %c0_i32_0 : i32, i32
  }
  func.func @transform_11(%arg0: i32) -> (i32, i32) {
    %c0_i32 = arith.constant 0 : i32
    %c0_i32_0 = arith.constant 0 : i32
    %c0_i32_1 = arith.constant 0 : i32
    return %c0_i32, %c0_i32_0 : i32, i32
  }
  func.func @transform_12(%arg0: i32) -> (i32, i32) {
    %c0_i32 = arith.constant 0 : i32
    %c0_i32_0 = arith.constant 0 : i32
    %c0_i32_1 = arith.constant 0 : i32
    return %c0_i32, %c0_i32_0 : i32, i32
  }
  func.func @transform_13(%arg0: i32) -> (i32, i32) {
    %c0_i32 = arith.constant 0 : i32
    %c0_i32_0 = arith.constant 0 : i32
    %c0_i32_1 = arith.constant 0 : i32
    return %c0_i32, %c0_i32_0 : i32, i32
  }
  func.func @transform_14(%arg0: i32) -> (i32, i32) {
    %c0_i32 = arith.constant 0 : i32
    %c0_i32_0 = arith.constant 0 : i32
    %c0_i32_1 = arith.constant 0 : i32
    return %c0_i32, %c0_i32_0 : i32, i32
  }
  func.func @transform_15(%arg0: i32) -> (i32, i32) {
    %c0_i32 = arith.constant 0 : i32
    %c0_i32_0 = arith.constant 0 : i32
    %c0_i32_1 = arith.constant 0 : i32
    return %c0_i32, %c0_i32_0 : i32, i32
  }
  func.func @transform_16(%arg0: i32) -> (i32, i32, i32) {
    %c0_i32 = arith.constant 0 : i32
    %c0_i32_0 = arith.constant 0 : i32
    %c0_i32_1 = arith.constant 0 : i32
    return %arg0, %c0_i32, %c0_i32_0 : i32, i32, i32
  }
}

</mosaic_0001>

<llo_original>
// kernel: tpu_custom_call.1
$region0: #{tpu_custom_call.1}
  #allocation0 [shape = 'u32[]', space=smem, size = 0x4, offset = 0x4, fixed_abs, tag = 'smem constant byte address 0x4 - core index']
  #allocation1 [shape = 'u32[144,128]{1,0:T(1,128)}', space=vmem, size = 0x12000, scoped, tag = 'internal scratch']
  #allocation2 [shape = 'f32[16,8,32]{2,1,0:T(8,128)}', space=vmem, size = 0x10000, scoped, tag = 'scratch operand']
  %s0 = inlined_call_operand.vmem [shape: bf16[64,8,32], index: 0, kind: input, shape index: {}]
  %s1 = inlined_call_operand.vmem [shape: bf16[64,8,32], index: 1, kind: input, shape index: {}]
  %s2 = inlined_call_operand.vmem [shape: bf16[64,8,32], index: 2, kind: input, shape index: {}]
  %s3 = inlined_call_operand.vmem [shape: bf16[32,32], index: 3, kind: input, shape index: {}]
  %s4 = inlined_call_operand.vmem [shape: bf16[32,32], index: 4, kind: input, shape index: {}]
  %s5 = inlined_call_operand.vmem [shape: bf16[32,32], index: 5, kind: input, shape index: {}]
  %s6 = inlined_call_operand.vmem [shape: bf16[32,32], index: 6, kind: input, shape index: {}]
  %s7 = inlined_call_operand.vmem [shape: f32[1,32], index: 7, kind: input, shape index: {}]
  %s8 = inlined_call_operand.vmem [shape: f32[1,32], index: 8, kind: input, shape index: {}]
  %s9 = inlined_call_operand.vmem [shape: f32[1,32], index: 9, kind: input, shape index: {}]
  %s10 = inlined_call_operand.vmem [shape: bf16[32,128], index: 10, kind: input, shape index: {}]
  %s11 = inlined_call_operand.vmem [shape: f32[1,128], index: 11, kind: input, shape index: {}]
  %s12 = inlined_call_operand.vmem [shape: bf16[128,32], index: 12, kind: input, shape index: {}]
  %s13 = inlined_call_operand.vmem [shape: f32[1,32], index: 13, kind: input, shape index: {}]
  %s14 = inlined_call_operand.vmem [shape: f32[1,32], index: 14, kind: input, shape index: {}]
  %s15 = inlined_call_operand.vmem [shape: f32[1,32], index: 15, kind: input, shape index: {}]
  %s16 = inlined_call_operand.vmem [shape: f32[64,8,32], index: 16, kind: output, shape index: {}]
  %s17 = sld [smem:[#allocation0]]
  $region97: #{tpu_custom_call.1} parent=0
    _
  %s19 = ssub.s32 1, %s17
  %s20 = scalar_select 0, %s19, %s17
  loop: start=0, step=1, limit=6
  $region2: #{tpu_custom_call.1} parent=0 // loop_pre_header
    _
  $region3: #{tpu_custom_call.1} parent=0 // loop_header
    %s22 = sphi 0, %s26
    %p23 = scmp.ge.s32.totalorder %s22, 6
    %s32 = sphi 0, %s34
    %s35 = sphi 0, %s32
    %s36 = sphi 0, %s35
    %s52 = sphi 0, %s36
    %s58 = sphi 0, %s60
    %s61 = sphi 0, %s58
    %s62 = sphi 0, %s61
    %s78 = sphi 0, %s62
    %s84 = sphi 0, %s86
    %s87 = sphi 0, %s84
    %s88 = sphi 0, %s87
    %s104 = sphi 0, %s88
    %s108 = sphi 0, %s108
    %s110 = sphi 0, %s108
    %s111 = sphi 0, %s110
    %s125 = sphi 0, %s111
    %s129 = sphi 0, %s129
    %s131 = sphi 0, %s129
    %s132 = sphi 0, %s131
    %s146 = sphi 0, %s132
    %s150 = sphi 0, %s150
    %s152 = sphi 0, %s150
    %s153 = sphi 0, %s152
    %s167 = sphi 0, %s153
    %s171 = sphi 0, %s171
    %s173 = sphi 0, %s171
    %s174 = sphi 0, %s173
    %s188 = sphi 0, %s174
    %s192 = sphi 0, %s192
    %s194 = sphi 0, %s192
    %s195 = sphi 0, %s194
    %s209 = sphi 0, %s195
    %s213 = sphi 0, %s213
    %s215 = sphi 0, %s213
    %s216 = sphi 0, %s215
    %s230 = sphi 0, %s216
    %s234 = sphi 0, %s234
    %s236 = sphi 0, %s234
    %s237 = sphi 0, %s236
    %s251 = sphi 0, %s237
    %s255 = sphi 0, %s255
    %s257 = sphi 0, %s255
    %s258 = sphi 0, %s257
    %s272 = sphi 0, %s258
    %s276 = sphi 0, %s276
    %s278 = sphi 0, %s276
    %s279 = sphi 0, %s278
    %s293 = sphi 0, %s279
    %s297 = sphi 0, %s297
    %s299 = sphi 0, %s297
    %s300 = sphi 0, %s299
    %s314 = sphi 0, %s300
    %s318 = sphi 0, %s318
    %s320 = sphi 0, %s318
    %s321 = sphi 0, %s320
    %s335 = sphi 0, %s321
    %s339 = sphi 0, %s339
    %s341 = sphi 0, %s339
    %s342 = sphi 0, %s341
    %s356 = sphi 0, %s342
    %s360 = sphi 0, %s360
    %s362 = sphi 0, %s360
    %s363 = sphi 0, %s362
    %s377 = sphi 0, %s363
    %s383 = sphi 0, %s385
    %s386 = sphi 0, %s383
    %s387 = sphi 0, %s386
    %s403 = sphi 0, %s387
  $region4: #{tpu_custom_call.1} parent=0 // loop_header_branch
    %25 = sbr.rel (%p23) target = $region8
  $region5: #{tpu_custom_call.1} parent=0 // loop_body
    %s27 = ssub.s32 %s22, 1
    %s28 = ssub.s32 %s22, 2
    %s29 = sadd.s32 %s22, 1
    %s30 = ssub.s32 %s22, %s29
    %p31 = scmp.eq.s32.totalorder %s30, 0
    %s33 = sadd.s32 %s32, 1
    %s34 = scalar_select %p31, %s32, %s33
    %p37 = pneg %p31
    %p38 = scmp.eq.s32.totalorder %s22, 3
    %p39 = por %p37, %p38
    %p40 = scmp.ne.s32.totalorder %s32, %s35
    %p41 = scmp.eq.s32.totalorder %s22, 0
    %p42 = por %p40, %p41
    %p43 = scmp.ne.s32.totalorder %s32, %s35
    %p44 = scmp.eq.s32.totalorder %s27, 3
    %p45 = por %p43, %p44
    %p46 = scmp.ne.s32.totalorder %s35, %s36
    %p47 = scmp.eq.s32.totalorder %s27, 0
    %p48 = por %p46, %p47
    %p49 = scmp.ne.s32.totalorder %s35, %s36
    %p50 = scmp.eq.s32.totalorder %s28, 3
    %p51 = por %p49, %p50
    %p53 = scmp.ne.s32.totalorder %s36, %s52
    %p54 = scmp.eq.s32.totalorder %s28, 0
    %p55 = por %p53, %p54
    %s56 = ssub.s32 %s22, %s29
    %p57 = scmp.eq.s32.totalorder %s56, 0
    %s59 = sadd.s32 %s58, 1
    %s60 = scalar_select %p57, %s58, %s59
    %p63 = pneg %p57
    %p64 = scmp.eq.s32.totalorder %s22, 3
    %p65 = por %p63, %p64
    %p66 = scmp.ne.s32.totalorder %s58, %s61
    %p67 = scmp.eq.s32.totalorder %s22, 0
    %p68 = por %p66, %p67
    %p69 = scmp.ne.s32.totalorder %s58, %s61
    %p70 = scmp.eq.s32.totalorder %s27, 3
    %p71 = por %p69, %p70
    %p72 = scmp.ne.s32.totalorder %s61, %s62
    %p73 = scmp.eq.s32.totalorder %s27, 0
    %p74 = por %p72, %p73
    %p75 = scmp.ne.s32.totalorder %s61, %s62
    %p76 = scmp.eq.s32.totalorder %s28, 3
    %p77 = por %p75, %p76
    %p79 = scmp.ne.s32.totalorder %s62, %s78
    %p80 = scmp.eq.s32.totalorder %s28, 0
    %p81 = por %p79, %p80
    %s82 = ssub.s32 %s22, %s29
    %p83 = scmp.eq.s32.totalorder %s82, 0
    %s85 = sadd.s32 %s84, 1
    %s86 = scalar_select %p83, %s84, %s85
    %p89 = pneg %p83
    %p90 = scmp.eq.s32.totalorder %s22, 3
    %p91 = por %p89, %p90
    %p92 = scmp.ne.s32.totalorder %s84, %s87
    %p93 = scmp.eq.s32.totalorder %s22, 0
    %p94 = por %p92, %p93
    %p95 = scmp.ne.s32.totalorder %s84, %s87
    %p96 = scmp.eq.s32.totalorder %s27, 3
    %p97 = por %p95, %p96
    %p98 = scmp.ne.s32.totalorder %s87, %s88
    %p99 = scmp.eq.s32.totalorder %s27, 0
    %p100 = por %p98, %p99
    %p101 = scmp.ne.s32.totalorder %s87, %s88
    %p102 = scmp.eq.s32.totalorder %s28, 3
    %p103 = por %p101, %p102
    %p105 = scmp.ne.s32.totalorder %s88, %s104
    %p106 = scmp.eq.s32.totalorder %s28, 0
    %p107 = por %p105, %p106
    %s109 = sadd.s32 %s108, 1
    %p112 = scmp.eq.s32.totalorder %s22, 3
    %p113 = scmp.ne.s32.totalorder %s108, %s110
    %p114 = scmp.eq.s32.totalorder %s22, 0
    %p115 = por %p113, %p114
    %p116 = scmp.ne.s32.totalorder %s108, %s110
    %p117 = scmp.eq.s32.totalorder %s27, 3
    %p118 = por %p116, %p117
    %p119 = scmp.ne.s32.totalorder %s110, %s111
    %p120 = scmp.eq.s32.totalorder %s27, 0
    %p121 = por %p119, %p120
    %p122 = scmp.ne.s32.totalorder %s110, %s111
    %p123 = scmp.eq.s32.totalorder %s28, 3
    %p124 = por %p122, %p123
    %p126 = scmp.ne.s32.totalorder %s111, %s125
    %p127 = scmp.eq.s32.totalorder %s28, 0
    %p128 = por %p126, %p127
    %s130 = sadd.s32 %s129, 1
    %p133 = scmp.eq.s32.totalorder %s22, 3
    %p134 = scmp.ne.s32.totalorder %s129, %s131
    %p135 = scmp.eq.s32.totalorder %s22, 0
    %p136 = por %p134, %p135
    %p137 = scmp.ne.s32.totalorder %s129, %s131
    %p138 = scmp.eq.s32.totalorder %s27, 3
    %p139 = por %p137, %p138
    %p140 = scmp.ne.s32.totalorder %s131, %s132
    %p141 = scmp.eq.s32.totalorder %s27, 0
    %p142 = por %p140, %p141
    %p143 = scmp.ne.s32.totalorder %s131, %s132
    %p144 = scmp.eq.s32.totalorder %s28, 3
    %p145 = por %p143, %p144
    %p147 = scmp.ne.s32.totalorder %s132, %s146
    %p148 = scmp.eq.s32.totalorder %s28, 0
    %p149 = por %p147, %p148
    %s151 = sadd.s32 %s150, 1
    %p154 = scmp.eq.s32.totalorder %s22, 3
    %p155 = scmp.ne.s32.totalorder %s150, %s152
    %p156 = scmp.eq.s32.totalorder %s22, 0
    %p157 = por %p155, %p156
    %p158 = scmp.ne.s32.totalorder %s150, %s152
    %p159 = scmp.eq.s32.totalorder %s27, 3
    %p160 = por %p158, %p159
    %p161 = scmp.ne.s32.totalorder %s152, %s153
    %p162 = scmp.eq.s32.totalorder %s27, 0
    %p163 = por %p161, %p162
    %p164 = scmp.ne.s32.totalorder %s152, %s153
    %p165 = scmp.eq.s32.totalorder %s28, 3
    %p166 = por %p164, %p165
    %p168 = scmp.ne.s32.totalorder %s153, %s167
    %p169 = scmp.eq.s32.totalorder %s28, 0
    %p170 = por %p168, %p169
    %s172 = sadd.s32 %s171, 1
    %p175 = scmp.eq.s32.totalorder %s22, 3
    %p176 = scmp.ne.s32.totalorder %s171, %s173
    %p177 = scmp.eq.s32.totalorder %s22, 0
    %p178 = por %p176, %p177
    %p179 = scmp.ne.s32.totalorder %s171, %s173
    %p180 = scmp.eq.s32.totalorder %s27, 3
    %p181 = por %p179, %p180
    %p182 = scmp.ne.s32.totalorder %s173, %s174
    %p183 = scmp.eq.s32.totalorder %s27, 0
    %p184 = por %p182, %p183
    %p185 = scmp.ne.s32.totalorder %s173, %s174
    %p186 = scmp.eq.s32.totalorder %s28, 3
    %p187 = por %p185, %p186
    %p189 = scmp.ne.s32.totalorder %s174, %s188
    %p190 = scmp.eq.s32.totalorder %s28, 0
    %p191 = por %p189, %p190
    %s193 = sadd.s32 %s192, 1
    %p196 = scmp.eq.s32.totalorder %s22, 3
    %p197 = scmp.ne.s32.totalorder %s192, %s194
    %p198 = scmp.eq.s32.totalorder %s22, 0
    %p199 = por %p197, %p198
    %p200 = scmp.ne.s32.totalorder %s192, %s194
    %p201 = scmp.eq.s32.totalorder %s27, 3
    %p202 = por %p200, %p201
    %p203 = scmp.ne.s32.totalorder %s194, %s195
    %p204 = scmp.eq.s32.totalorder %s27, 0
    %p205 = por %p203, %p204
    %p206 = scmp.ne.s32.totalorder %s194, %s195
    %p207 = scmp.eq.s32.totalorder %s28, 3
    %p208 = por %p206, %p207
    %p210 = scmp.ne.s32.totalorder %s195, %s209
    %p211 = scmp.eq.s32.totalorder %s28, 0
    %p212 = por %p210, %p211
    %s214 = sadd.s32 %s213, 1
    %p217 = scmp.eq.s32.totalorder %s22, 3
    %p218 = scmp.ne.s32.totalorder %s213, %s215
    %p219 = scmp.eq.s32.totalorder %s22, 0
    %p220 = por %p218, %p219
    %p221 = scmp.ne.s32.totalorder %s213, %s215
    %p222 = scmp.eq.s32.totalorder %s27, 3
    %p223 = por %p221, %p222
    %p224 = scmp.ne.s32.totalorder %s215, %s216
    %p225 = scmp.eq.s32.totalorder %s27, 0
    %p226 = por %p224, %p225
    %p227 = scmp.ne.s32.totalorder %s215, %s216
    %p228 = scmp.eq.s32.totalorder %s28, 3
    %p229 = por %p227, %p228
    %p231 = scmp.ne.s32.totalorder %s216, %s230
    %p232 = scmp.eq.s32.totalorder %s28, 0
    %p233 = por %p231, %p232
    %s235 = sadd.s32 %s234, 1
    %p238 = scmp.eq.s32.totalorder %s22, 3
    %p239 = scmp.ne.s32.totalorder %s234, %s236
    %p240 = scmp.eq.s32.totalorder %s22, 0
    %p241 = por %p239, %p240
    %p242 = scmp.ne.s32.totalorder %s234, %s236
    %p243 = scmp.eq.s32.totalorder %s27, 3
    %p244 = por %p242, %p243
    %p245 = scmp.ne.s32.totalorder %s236, %s237
    %p246 = scmp.eq.s32.totalorder %s27, 0
    %p247 = por %p245, %p246
    %p248 = scmp.ne.s32.totalorder %s236, %s237
    %p249 = scmp.eq.s32.totalorder %s28, 3
    %p250 = por %p248, %p249
    %p252 = scmp.ne.s32.totalorder %s237, %s251
    %p253 = scmp.eq.s32.totalorder %s28, 0
    %p254 = por %p252, %p253
    %s256 = sadd.s32 %s255, 1
    %p259 = scmp.eq.s32.totalorder %s22, 3
    %p260 = scmp.ne.s32.totalorder %s255, %s257
    %p261 = scmp.eq.s32.totalorder %s22, 0
    %p262 = por %p260, %p261
    %p263 = scmp.ne.s32.totalorder %s255, %s257
    %p264 = scmp.eq.s32.totalorder %s27, 3
    %p265 = por %p263, %p264
    %p266 = scmp.ne.s32.totalorder %s257, %s258
    %p267 = scmp.eq.s32.totalorder %s27, 0
    %p268 = por %p266, %p267
    %p269 = scmp.ne.s32.totalorder %s257, %s258
    %p270 = scmp.eq.s32.totalorder %s28, 3
    %p271 = por %p269, %p270
    %p273 = scmp.ne.s32.totalorder %s258, %s272
    %p274 = scmp.eq.s32.totalorder %s28, 0
    %p275 = por %p273, %p274
    %s277 = sadd.s32 %s276, 1
    %p280 = scmp.eq.s32.totalorder %s22, 3
    %p281 = scmp.ne.s32.totalorder %s276, %s278
    %p282 = scmp.eq.s32.totalorder %s22, 0
    %p283 = por %p281, %p282
    %p284 = scmp.ne.s32.totalorder %s276, %s278
    %p285 = scmp.eq.s32.totalorder %s27, 3
    %p286 = por %p284, %p285
    %p287 = scmp.ne.s32.totalorder %s278, %s279
    %p288 = scmp.eq.s32.totalorder %s27, 0
    %p289 = por %p287, %p288
    %p290 = scmp.ne.s32.totalorder %s278, %s279
    %p291 = scmp.eq.s32.totalorder %s28, 3
    %p292 = por %p290, %p291
    %p294 = scmp.ne.s32.totalorder %s279, %s293
    %p295 = scmp.eq.s32.totalorder %s28, 0
    %p296 = por %p294, %p295
    %s298 = sadd.s32 %s297, 1
    %p301 = scmp.eq.s32.totalorder %s22, 3
    %p302 = scmp.ne.s32.totalorder %s297, %s299
    %p303 = scmp.eq.s32.totalorder %s22, 0
    %p304 = por %p302, %p303
    %p305 = scmp.ne.s32.totalorder %s297, %s299
    %p306 = scmp.eq.s32.totalorder %s27, 3
    %p307 = por %p305, %p306
    %p308 = scmp.ne.s32.totalorder %s299, %s300
    %p309 = scmp.eq.s32.totalorder %s27, 0
    %p310 = por %p308, %p309
    %p311 = scmp.ne.s32.totalorder %s299, %s300
    %p312 = scmp.eq.s32.totalorder %s28, 3
    %p313 = por %p311, %p312
    %p315 = scmp.ne.s32.totalorder %s300, %s314
    %p316 = scmp.eq.s32.totalorder %s28, 0
    %p317 = por %p315, %p316
    %s319 = sadd.s32 %s318, 1
    %p322 = scmp.eq.s32.totalorder %s22, 3
    %p323 = scmp.ne.s32.totalorder %s318, %s320
    %p324 = scmp.eq.s32.totalorder %s22, 0
    %p325 = por %p323, %p324
    %p326 = scmp.ne.s32.totalorder %s318, %s320
    %p327 = scmp.eq.s32.totalorder %s27, 3
    %p328 = por %p326, %p327
    %p329 = scmp.ne.s32.totalorder %s320, %s321
    %p330 = scmp.eq.s32.totalorder %s27, 0
    %p331 = por %p329, %p330
    %p332 = scmp.ne.s32.totalorder %s320, %s321
    %p333 = scmp.eq.s32.totalorder %s28, 3
    %p334 = por %p332, %p333
    %p336 = scmp.ne.s32.totalorder %s321, %s335
    %p337 = scmp.eq.s32.totalorder %s28, 0
    %p338 = por %p336, %p337
    %s340 = sadd.s32 %s339, 1
    %p343 = scmp.eq.s32.totalorder %s22, 3
    %p344 = scmp.ne.s32.totalorder %s339, %s341
    %p345 = scmp.eq.s32.totalorder %s22, 0
    %p346 = por %p344, %p345
    %p347 = scmp.ne.s32.totalorder %s339, %s341
    %p348 = scmp.eq.s32.totalorder %s27, 3
    %p349 = por %p347, %p348
    %p350 = scmp.ne.s32.totalorder %s341, %s342
    %p351 = scmp.eq.s32.totalorder %s27, 0
    %p352 = por %p350, %p351
    %p353 = scmp.ne.s32.totalorder %s341, %s342
    %p354 = scmp.eq.s32.totalorder %s28, 3
    %p355 = por %p353, %p354
    %p357 = scmp.ne.s32.totalorder %s342, %s356
    %p358 = scmp.eq.s32.totalorder %s28, 0
    %p359 = por %p357, %p358
    %s361 = sadd.s32 %s360, 1
    %p364 = scmp.eq.s32.totalorder %s22, 3
    %p365 = scmp.ne.s32.totalorder %s360, %s362
    %p366 = scmp.eq.s32.totalorder %s22, 0
    %p367 = por %p365, %p366
    %p368 = scmp.ne.s32.totalorder %s360, %s362
    %p369 = scmp.eq.s32.totalorder %s27, 3
    %p370 = por %p368, %p369
    %p371 = scmp.ne.s32.totalorder %s362, %s363
    %p372 = scmp.eq.s32.totalorder %s27, 0
    %p373 = por %p371, %p372
    %p374 = scmp.ne.s32.totalorder %s362, %s363
    %p375 = scmp.eq.s32.totalorder %s28, 3
    %p376 = por %p374, %p375
    %p378 = scmp.ne.s32.totalorder %s363, %s377
    %p379 = scmp.eq.s32.totalorder %s28, 0
    %p380 = por %p378, %p379
    %s381 = ssub.s32 %s22, %s29
    %p382 = scmp.eq.s32.totalorder %s381, 0
    %s384 = sadd.s32 %s383, 1
    %s385 = scalar_select %p382, %s383, %s384
    %p388 = pneg %p382
    %p389 = scmp.eq.s32.totalorder %s22, 3
    %p390 = por %p388, %p389
    %p391 = scmp.ne.s32.totalorder %s383, %s386
    %p392 = scmp.eq.s32.totalorder %s22, 0
    %p393 = por %p391, %p392
    %p394 = scmp.ne.s32.totalorder %s383, %s386
    %p395 = scmp.eq.s32.totalorder %s27, 3
    %p396 = por %p394, %p395
    %p397 = scmp.ne.s32.totalorder %s386, %s387
    %p398 = scmp.eq.s32.totalorder %s27, 0
    %p399 = por %p397, %p398
    %p400 = scmp.ne.s32.totalorder %s386, %s387
    %p401 = scmp.eq.s32.totalorder %s28, 3
    %p402 = por %p400, %p401
    %p404 = scmp.ne.s32.totalorder %s387, %s403
    %p405 = scmp.eq.s32.totalorder %s28, 0
    %p406 = por %p404, %p405
    %p407 = scmp.le.s32.totalorder 1, %s22
    %p408 = scmp.lt.s32.totalorder %s22, 5
    %p409 = pnand %p407, %p408
    %p410 = pneg %p409
    // Predicated region
    $region9: #{tpu_custom_call.1} parent=5 // pred_check
      _
    $region10: #{tpu_custom_call.1} parent=5 // pred_check_branch
      %412 = sbr.rel (%p409) target = $region12
    $region11: #{tpu_custom_call.1} parent=5 // pred_region
      %s413 = ssub.s32 %s22, 1
      // Predicated region
      $region13: #{tpu_custom_call.1} parent=11 // pred_check
        %p414 = pneg %p121
      $region14: #{tpu_custom_call.1} parent=11 // pred_check_branch
        %416 = sbr.rel (%p414) target = $region16
      $region15: #{tpu_custom_call.1} parent=11 // pred_region
        _
      $region16: #{tpu_custom_call.1} parent=11 // pred_fallthru
        _
      // Predicated region
      $region17: #{tpu_custom_call.1} parent=11 // pred_check
        %p417 = pneg %p142
      $region18: #{tpu_custom_call.1} parent=11 // pred_check_branch
        %419 = sbr.rel (%p417) target = $region20
      $region19: #{tpu_custom_call.1} parent=11 // pred_region
        _
      $region20: #{tpu_custom_call.1} parent=11 // pred_fallthru
        _
      // Predicated region
      $region21: #{tpu_custom_call.1} parent=11 // pred_check
        %p420 = pneg %p163
      $region22: #{tpu_custom_call.1} parent=11 // pred_check_branch
        %422 = sbr.rel (%p420) target = $region24
      $region23: #{tpu_custom_call.1} parent=11 // pred_region
        _
      $region24: #{tpu_custom_call.1} parent=11 // pred_fallthru
        _
      // Predicated region
      $region25: #{tpu_custom_call.1} parent=11 // pred_check
        %p423 = pneg %p184
      $region26: #{tpu_custom_call.1} parent=11 // pred_check_branch
        %425 = sbr.rel (%p423) target = $region28
      $region27: #{tpu_custom_call.1} parent=11 // pred_region
        _
      $region28: #{tpu_custom_call.1} parent=11 // pred_fallthru
        _
      // Predicated region
      $region29: #{tpu_custom_call.1} parent=11 // pred_check
        %p426 = pneg %p205
      $region30: #{tpu_custom_call.1} parent=11 // pred_check_branch
        %428 = sbr.rel (%p426) target = $region32
      $region31: #{tpu_custom_call.1} parent=11 // pred_region
        _
      $region32: #{tpu_custom_call.1} parent=11 // pred_fallthru
        _
      // Predicated region
      $region33: #{tpu_custom_call.1} parent=11 // pred_check
        %p429 = pneg %p226
      $region34: #{tpu_custom_call.1} parent=11 // pred_check_branch
        %431 = sbr.rel (%p429) target = $region36
      $region35: #{tpu_custom_call.1} parent=11 // pred_region
        _
      $region36: #{tpu_custom_call.1} parent=11 // pred_fallthru
        _
      // Predicated region
      $region37: #{tpu_custom_call.1} parent=11 // pred_check
        %p432 = pneg %p247
      $region38: #{tpu_custom_call.1} parent=11 // pred_check_branch
        %434 = sbr.rel (%p432) target = $region40
      $region39: #{tpu_custom_call.1} parent=11 // pred_region
        _
      $region40: #{tpu_custom_call.1} parent=11 // pred_fallthru
        _
      // Predicated region
      $region41: #{tpu_custom_call.1} parent=11 // pred_check
        %p435 = pneg %p268
      $region42: #{tpu_custom_call.1} parent=11 // pred_check_branch
        %437 = sbr.rel (%p435) target = $region44
      $region43: #{tpu_custom_call.1} parent=11 // pred_region
        _
      $region44: #{tpu_custom_call.1} parent=11 // pred_fallthru
        _
      // Predicated region
      $region45: #{tpu_custom_call.1} parent=11 // pred_check
        %p438 = pneg %p289
      $region46: #{tpu_custom_call.1} parent=11 // pred_check_branch
        %440 = sbr.rel (%p438) target = $region48
      $region47: #{tpu_custom_call.1} parent=11 // pred_region
        _
      $region48: #{tpu_custom_call.1} parent=11 // pred_fallthru
        _
      // Predicated region
      $region49: #{tpu_custom_call.1} parent=11 // pred_check
        %p441 = pneg %p310
      $region50: #{tpu_custom_call.1} parent=11 // pred_check_branch
        %443 = sbr.rel (%p441) target = $region52
      $region51: #{tpu_custom_call.1} parent=11 // pred_region
        _
      $region52: #{tpu_custom_call.1} parent=11 // pred_fallthru
        _
      // Predicated region
      $region53: #{tpu_custom_call.1} parent=11 // pred_check
        %p444 = pneg %p331
      $region54: #{tpu_custom_call.1} parent=11 // pred_check_branch
        %446 = sbr.rel (%p444) target = $region56
      $region55: #{tpu_custom_call.1} parent=11 // pred_region
        _
      $region56: #{tpu_custom_call.1} parent=11 // pred_fallthru
        _
      // Predicated region
      $region57: #{tpu_custom_call.1} parent=11 // pred_check
        %p447 = pneg %p352
      $region58: #{tpu_custom_call.1} parent=11 // pred_check_branch
        %449 = sbr.rel (%p447) target = $region60
      $region59: #{tpu_custom_call.1} parent=11 // pred_region
        _
      $region60: #{tpu_custom_call.1} parent=11 // pred_fallthru
        _
      // Predicated region
      $region61: #{tpu_custom_call.1} parent=11 // pred_check
        %p450 = pneg %p373
      $region62: #{tpu_custom_call.1} parent=11 // pred_check_branch
        %452 = sbr.rel (%p450) target = $region64
      $region63: #{tpu_custom_call.1} parent=11 // pred_region
        _
      $region64: #{tpu_custom_call.1} parent=11 // pred_fallthru
        _
    $region12: #{tpu_custom_call.1} parent=5 // pred_fallthru
      _
    %p453 = scmp.lt.s32.totalorder %s22, 4
    // Predicated region
    $region65: #{tpu_custom_call.1} parent=5 // pred_check
      %p454 = pneg %p453
    $region66: #{tpu_custom_call.1} parent=5 // pred_check_branch
      %456 = sbr.rel (%p454) target = $region68
    $region67: #{tpu_custom_call.1} parent=5 // pred_region
      // Predicated region
      $region69: #{tpu_custom_call.1} parent=67 // pred_check
        %p457 = pneg %p42
      $region70: #{tpu_custom_call.1} parent=67 // pred_check_branch
        %459 = sbr.rel (%p457) target = $region72
      $region71: #{tpu_custom_call.1} parent=67 // pred_region
        %s460 = smul.u32 16, %s22
        %p461 = scmp.lt.s32.totalorder %s460, 63
        %s462 = scalar_select %p461, %s460, 63
        %s463 = smul.addr %s462, 4
        %s464 = scalar_lea.vmem %s0, %s463
        %s465 = smul.u32 16, %s22
      $region72: #{tpu_custom_call.1} parent=67 // pred_fallthru
        _
      // Predicated region
      $region73: #{tpu_custom_call.1} parent=67 // pred_check
        %p466 = pneg %p68
      $region74: #{tpu_custom_call.1} parent=67 // pred_check_branch
        %468 = sbr.rel (%p466) target = $region76
      $region75: #{tpu_custom_call.1} parent=67 // pred_region
        %s469 = smul.u32 16, %s22
        %p470 = scmp.lt.s32.totalorder %s469, 63
        %s471 = scalar_select %p470, %s469, 63
        %s472 = smul.addr %s471, 4
        %s473 = scalar_lea.vmem %s1, %s472
        %s474 = smul.u32 16, %s22
      $region76: #{tpu_custom_call.1} parent=67 // pred_fallthru
        _
      // Predicated region
      $region77: #{tpu_custom_call.1} parent=67 // pred_check
        %p475 = pneg %p94
      $region78: #{tpu_custom_call.1} parent=67 // pred_check_branch
        %477 = sbr.rel (%p475) target = $region80
      $region79: #{tpu_custom_call.1} parent=67 // pred_region
        %s478 = smul.u32 16, %s22
        %p479 = scmp.lt.s32.totalorder %s478, 63
        %s480 = scalar_select %p479, %s478, 63
        %s481 = smul.addr %s480, 4
        %s482 = scalar_lea.vmem %s2, %s481
        %s483 = smul.u32 16, %s22
      $region80: #{tpu_custom_call.1} parent=67 // pred_fallthru
        _
    $region68: #{tpu_custom_call.1} parent=5 // pred_fallthru
      _
    %p484 = scmp.le.s32.totalorder 1, %s22
    %p485 = scmp.lt.s32.totalorder %s22, 5
    %p486 = pnand %p484, %p485
    %p487 = pneg %p486
    // Predicated region
    $region81: #{tpu_custom_call.1} parent=5 // pred_check
      _
    $region82: #{tpu_custom_call.1} parent=5 // pred_check_branch
      %489 = sbr.rel (%p486) target = $region84
    $region83: #{tpu_custom_call.1} parent=5 // pred_region
      %s490 = ssub.s32 %s22, 1
      %s491 = smul.u32 16, %s27
      %p492 = scmp.lt.s32.totalorder %s491, 63
      %s493 = scalar_select %p492, %s491, 63
      %s494 = smul.addr %s493, 4
      %s495 = scalar_lea.vmem %s0, %s494
      %p496 = pneg %p48
      %p497 = pneg %p45
      %s498 = smul.u32 16, %s27
      %p499 = scmp.lt.s32.totalorder %s498, 63
      %s500 = scalar_select %p499, %s498, 63
      %s501 = smul.addr %s500, 4
      %s502 = scalar_lea.vmem %s1, %s501
      %p503 = pneg %p74
      %p504 = pneg %p71
      %s505 = smul.u32 16, %s27
      %p506 = scmp.lt.s32.totalorder %s505, 63
      %s507 = scalar_select %p506, %s505, 63
      %s508 = smul.addr %s507, 4
      %s509 = scalar_lea.vmem %s2, %s508
      %p510 = pneg %p100
      %p511 = pneg %p97
      %p512 = pneg %p121
      %p513 = pneg %p118
      %p514 = pneg %p142
      %p515 = pneg %p139
      %p516 = pneg %p163
      %p517 = pneg %p160
      %p518 = pneg %p184
      %p519 = pneg %p181
      %p520 = pneg %p205
      %p521 = pneg %p202
      %p522 = pneg %p226
      %p523 = pneg %p223
      %p524 = pneg %p247
      %p525 = pneg %p244
      %p526 = pneg %p268
      %p527 = pneg %p265
      %p528 = pneg %p289
      %p529 = pneg %p286
      %p530 = pneg %p310
      %p531 = pneg %p307
      %p532 = pneg %p331
      %p533 = pneg %p328
      %p534 = pneg %p352
      %p535 = pneg %p349
      %p536 = pneg %p373
      %p537 = pneg %p370
      %p538 = pneg %p399
      %p539 = pneg %p396
      %s540 = smul.u32 16, %s27
      %p541 = scmp.lt.s32.totalorder %s540, 63
      %s542 = scalar_select %p541, %s540, 63
      %s543 = smul.addr %s542, 8
      %s544 = scalar_lea.vmem %s16, %s543
      %s545 = smul.u32 16, %s27
      %p546 = scmp.lt.s32.totalorder %s545, 63
      %s547 = scalar_select %p546, %s545, 63
      %s548 = smul.addr %s547, 4
      %s549 = scalar_lea.vmem %s0, %s548
      %s550 = smul.u32 16, %s27
      %s551 = smul.u32 16, %s27
      %p552 = scmp.lt.s32.totalorder %s551, 63
      %s553 = scalar_select %p552, %s551, 63
      %s554 = smul.addr %s553, 4
      %s555 = scalar_lea.vmem %s1, %s554
      %s556 = smul.u32 16, %s27
      %s557 = smul.u32 16, %s27
      %p558 = scmp.lt.s32.totalorder %s557, 63
      %s559 = scalar_select %p558, %s557, 63
      %s560 = smul.addr %s559, 4
      %s561 = scalar_lea.vmem %s2, %s560
      %s562 = smul.u32 16, %s27
      %s563 = smul.u32 16, %s27
      %p564 = scmp.lt.s32.totalorder %s563, 63
      %s565 = scalar_select %p564, %s563, 63
      %s566 = smul.addr %s565, 8
      %s567 = scalar_lea.vmem %s16, %s566
      %s568 = smul.u32 16, %s27
      %v570 = vld [vmem:[%s561] sm:$0xf]
      %v571 = vld [vmem:[%s561 + $0x4] sm:$0xf]
      %v572 = vld [vmem:[%s561 + $0x8] sm:$0xf]
      %v573 = vld [vmem:[%s561 + $0xc] sm:$0xf]
      %v574 = vld [vmem:[%s561 + $0x10] sm:$0xf]
      %v575 = vld [vmem:[%s561 + $0x14] sm:$0xf]
      %v576 = vld [vmem:[%s561 + $0x18] sm:$0xf]
      %v577 = vld [vmem:[%s561 + $0x1c] sm:$0xf]
      %v578 = vld [vmem:[%s561 + $0x20] sm:$0xf]
      %v579 = vld [vmem:[%s561 + $0x24] sm:$0xf]
      %v580 = vld [vmem:[%s561 + $0x28] sm:$0xf]
      %v581 = vld [vmem:[%s561 + $0x2c] sm:$0xf]
      %v582 = vld [vmem:[%s561 + $0x30] sm:$0xf]
      %v583 = vld [vmem:[%s561 + $0x34] sm:$0xf]
      %v584 = vld [vmem:[%s561 + $0x38] sm:$0xf]
      %v585 = vld [vmem:[%s561 + $0x3c] sm:$0xf]
      %v586 = vld [vmem:[%s555] sm:$0xf]
      %v587 = vld [vmem:[%s555 + $0x4] sm:$0xf]
      %v588 = vld [vmem:[%s555 + $0x8] sm:$0xf]
      %v589 = vld [vmem:[%s555 + $0xc] sm:$0xf]
      %v590 = vld [vmem:[%s555 + $0x10] sm:$0xf]
      %v591 = vld [vmem:[%s555 + $0x14] sm:$0xf]
      %v592 = vld [vmem:[%s555 + $0x18] sm:$0xf]
      %v593 = vld [vmem:[%s555 + $0x1c] sm:$0xf]
      %v594 = vld [vmem:[%s555 + $0x20] sm:$0xf]
      %v595 = vld [vmem:[%s555 + $0x24] sm:$0xf]
      %v596 = vld [vmem:[%s555 + $0x28] sm:$0xf]
      %v597 = vld [vmem:[%s555 + $0x2c] sm:$0xf]
      %v598 = vld [vmem:[%s555 + $0x30] sm:$0xf]
      %v599 = vld [vmem:[%s555 + $0x34] sm:$0xf]
      %v600 = vld [vmem:[%s555 + $0x38] sm:$0xf]
      %v601 = vld [vmem:[%s555 + $0x3c] sm:$0xf]
      %v602 = vld [vmem:[%s549] sm:$0xf]
      %v603 = vld [vmem:[%s549 + $0x4] sm:$0xf]
      %v604 = vld [vmem:[%s549 + $0x8] sm:$0xf]
      %v605 = vld [vmem:[%s549 + $0xc] sm:$0xf]
      %v606 = vld [vmem:[%s549 + $0x10] sm:$0xf]
      %v607 = vld [vmem:[%s549 + $0x14] sm:$0xf]
      %v608 = vld [vmem:[%s549 + $0x18] sm:$0xf]
      %v609 = vld [vmem:[%s549 + $0x1c] sm:$0xf]
      %v610 = vld [vmem:[%s549 + $0x20] sm:$0xf]
      %v611 = vld [vmem:[%s549 + $0x24] sm:$0xf]
      %v612 = vld [vmem:[%s549 + $0x28] sm:$0xf]
      %v613 = vld [vmem:[%s549 + $0x2c] sm:$0xf]
      %v614 = vld [vmem:[%s549 + $0x30] sm:$0xf]
      %v615 = vld [vmem:[%s549 + $0x34] sm:$0xf]
      %v616 = vld [vmem:[%s549 + $0x38] sm:$0xf]
      %v617 = vld [vmem:[%s549 + $0x3c] sm:$0xf]
      %v618 = vld [vmem:[%s5] sm:$0xf]
      %v619 = vld [vmem:[%s5 + $0x4] sm:$0xf]
      %v620 = vld [vmem:[%s5 + $0x8] sm:$0xf]
      %v621 = vld [vmem:[%s5 + $0xc] sm:$0xf]
      %v638 = vunpack.c.l.b16 %v570
      %v639 = vunpack.c.l.b16 %v571
      %v640 = vunpack.c.l.b16 %v572
      %v641 = vunpack.c.l.b16 %v573
      %v642 = vunpack.c.l.b16 %v574
      %v643 = vunpack.c.l.b16 %v575
      %v644 = vunpack.c.l.b16 %v576
      %v645 = vunpack.c.l.b16 %v577
      %v646 = vunpack.c.l.b16 %v578
      %v647 = vunpack.c.l.b16 %v579
      %v648 = vunpack.c.l.b16 %v580
      %v649 = vunpack.c.l.b16 %v581
      %v650 = vunpack.c.l.b16 %v582
      %v651 = vunpack.c.l.b16 %v583
      %v652 = vunpack.c.l.b16 %v584
      %v653 = vunpack.c.l.b16 %v585
      %v654 = vpack.c.b16 %v639, %v638
      %v655 = vpack.c.b16 %v641, %v640
      %v656 = vpack.c.b16 %v643, %v642
      %v657 = vpack.c.b16 %v645, %v644
      %v658 = vpack.c.b16 %v647, %v646
      %v659 = vpack.c.b16 %v649, %v648
      %v660 = vpack.c.b16 %v651, %v650
      %v661 = vpack.c.b16 %v653, %v652
      %v666 = vunpack.c.l.b16 %v618
      %v667 = vunpack.c.l.b16 %v619
      %v668 = vunpack.c.l.b16 %v620
      %v669 = vunpack.c.l.b16 %v621
      %v670 = vpack.c.b16 %v667, %v666
      %v671 = vpack.c.b16 %v669, %v668
      %vm674 = vcmask 261120
      %v676 = vsel %vm674, %v654, 0
      %v679 = vsel %vm674, %v655, 0
      %v682 = vsel %vm674, %v656, 0
      %v685 = vsel %vm674, %v657, 0
      %v688 = vsel %vm674, %v658, 0
      %v691 = vsel %vm674, %v659, 0
      %v694 = vsel %vm674, %v660, 0
      %v697 = vsel %vm674, %v661, 0
      %699 = vmatprep.subr.bf16.mxu0 0
      %700 = vmatpush1.bf16.msra.mxu0 %v670
      %701 = vmatprep.subr.bf16.mxu0 0
      %702 = vmatpush1.bf16.msra.mxu0 %v671
      %703 = vmatprep.subr.bf16.mxu0 0
      %704 = vmatpush1.bf16.msra.mxu0 0
      %705 = vmatprep.subr.bf16.mxu0 0
      %706 = vmatpush1.bf16.msra.mxu0 0
      %707 = vmatprep.subr.bf16.mxu0 0
      %708 = vmatpush1.bf16.msra.mxu0 0
      %709 = vmatprep.subr.bf16.mxu0 0
      %710 = vmatpush1.bf16.msra.mxu0 0
      %711 = vmatprep.subr.bf16.mxu0 0
      %712 = vmatpush1.bf16.msra.mxu0 0
      %713 = vmatprep.subr.bf16.mxu0 0
      %714 = vmatpush1.bf16.msra.mxu0 0
      %715 = vmatprep.subr.bf16.mxu0 0
      %716 = vmatpush1.bf16.msra.mxu0 0
      %717 = vmatprep.subr.bf16.mxu0 0
      %718 = vmatpush1.bf16.msra.mxu0 0
      %719 = vmatprep.subr.bf16.mxu0 0
      %720 = vmatpush1.bf16.msra.mxu0 0
      %721 = vmatprep.subr.bf16.mxu0 0
      %722 = vmatpush1.bf16.msra.mxu0 0
      %723 = vmatprep.subr.bf16.mxu0 0
      %724 = vmatpush1.bf16.msra.mxu0 0
      %725 = vmatprep.subr.bf16.mxu0 0
      %726 = vmatpush1.bf16.msra.mxu0 0
      %727 = vmatprep.subr.bf16.mxu0 0
      %728 = vmatpush1.bf16.msra.mxu0 0
      %729 = vmatprep.subr.bf16.mxu0 0
      %730 = vmatpush1.bf16.msra.mxu0 0
      %731 = vmatprep.mubr.bf16.mxu0 0
      %732 = vmatmul.mubr.bf16.gmra.mrb[0].mxu0 %v676
      %v733 = vpop.f32.mrb[0].mxu0
      %v734 = vadd.f32 0.0, %v733
      %v735 = vpop.f32.mrb[0].mxu0
      %v736 = vpop.f32.mrb[0].mxu0
      %v737 = vadd.f32 0.0, %v736
      %v738 = vpop.f32.mrb[0].mxu0
      %739 = vmatprep.mubr.bf16.mxu0 0
      %740 = vmatmul.mubr.bf16.gmra.mrb[0].mxu0 %v679
      %v741 = vpop.f32.mrb[0].mxu0
      %v742 = vadd.f32 0.0, %v741
      %v743 = vpop.f32.mrb[0].mxu0
      %v744 = vpop.f32.mrb[0].mxu0
      %v745 = vadd.f32 0.0, %v744
      %v746 = vpop.f32.mrb[0].mxu0
      %747 = vmatprep.mubr.bf16.mxu0 0
      %748 = vmatmul.mubr.bf16.gmra.mrb[0].mxu0 %v682
      %v749 = vpop.f32.mrb[0].mxu0
      %v750 = vadd.f32 0.0, %v749
      %v751 = vpop.f32.mrb[0].mxu0
      %v752 = vpop.f32.mrb[0].mxu0
      %v753 = vadd.f32 0.0, %v752
      %v754 = vpop.f32.mrb[0].mxu0
      %755 = vmatprep.mubr.bf16.mxu0 0
      %756 = vmatmul.mubr.bf16.gmra.mrb[0].mxu0 %v685
      %v757 = vpop.f32.mrb[0].mxu0
      %v758 = vadd.f32 0.0, %v757
      %v759 = vpop.f32.mrb[0].mxu0
      %v760 = vpop.f32.mrb[0].mxu0
      %v761 = vadd.f32 0.0, %v760
      %v762 = vpop.f32.mrb[0].mxu0
      %763 = vmatprep.mubr.bf16.mxu0 0
      %764 = vmatmul.mubr.bf16.gmra.mrb[0].mxu0 %v688
      %v765 = vpop.f32.mrb[0].mxu0
      %v766 = vadd.f32 0.0, %v765
      %v767 = vpop.f32.mrb[0].mxu0
      %v768 = vpop.f32.mrb[0].mxu0
      %v769 = vadd.f32 0.0, %v768
      %v770 = vpop.f32.mrb[0].mxu0
      %771 = vmatprep.mubr.bf16.mxu0 0
      %772 = vmatmul.mubr.bf16.gmra.mrb[0].mxu0 %v691
      %v773 = vpop.f32.mrb[0].mxu0
      %v774 = vadd.f32 0.0, %v773
      %v775 = vpop.f32.mrb[0].mxu0
      %v776 = vpop.f32.mrb[0].mxu0
      %v777 = vadd.f32 0.0, %v776
      %v778 = vpop.f32.mrb[0].mxu0
      %779 = vmatprep.mubr.bf16.mxu0 0
      %780 = vmatmul.mubr.bf16.gmra.mrb[0].mxu0 %v694
      %v781 = vpop.f32.mrb[0].mxu0
      %v782 = vadd.f32 0.0, %v781
      %v783 = vpop.f32.mrb[0].mxu0
      %v784 = vpop.f32.mrb[0].mxu0
      %v785 = vadd.f32 0.0, %v784
      %v786 = vpop.f32.mrb[0].mxu0
      %787 = vmatprep.mubr.bf16.mxu0 0
      %788 = vmatmul.mubr.bf16.gmra.mrb[0].mxu0 %v697
      %v789 = vpop.f32.mrb[0].mxu0
      %v790 = vadd.f32 0.0, %v789
      %v791 = vpop.f32.mrb[0].mxu0
      %v792 = vpop.f32.mrb[0].mxu0
      %v793 = vadd.f32 0.0, %v792
      %v794 = vpop.f32.mrb[0].mxu0
      %795 = vdwg.mxu0
      %v796 = vpack.c.bf16 %v737, %v734
      %v797 = vpack.c.bf16 %v745, %v742
      %v798 = vpack.c.bf16 %v753, %v750
      %v799 = vpack.c.bf16 %v761, %v758
      %v800 = vpack.c.bf16 %v769, %v766
      %v801 = vpack.c.bf16 %v777, %v774
      %v802 = vpack.c.bf16 %v785, %v782
      %v803 = vpack.c.bf16 %v793, %v790
      %v812 = vunpack.c.l.b16 %v796
      %v813 = vunpack.c.h.b16 %v796
      %v814 = vunpack.c.l.b16 %v797
      %v815 = vunpack.c.h.b16 %v797
      %v816 = vunpack.c.l.b16 %v798
      %v817 = vunpack.c.h.b16 %v798
      %v818 = vunpack.c.l.b16 %v799
      %v819 = vunpack.c.h.b16 %v799
      %v820 = vunpack.c.l.b16 %v800
      %v821 = vunpack.c.h.b16 %v800
      %v822 = vunpack.c.l.b16 %v801
      %v823 = vunpack.c.h.b16 %v801
      %v824 = vunpack.c.l.b16 %v802
      %v825 = vunpack.c.h.b16 %v802
      %v826 = vunpack.c.l.b16 %v803
      %v827 = vunpack.c.h.b16 %v803
      %v828 = vpack.c.b16 %v812, %v812
      %v829 = vpack.c.b16 %v813, %v813
      %v830 = vpack.c.b16 %v814, %v814
      %v831 = vpack.c.b16 %v815, %v815
      %v832 = vpack.c.b16 %v816, %v816
      %v833 = vpack.c.b16 %v817, %v817
      %v834 = vpack.c.b16 %v818, %v818
      %v835 = vpack.c.b16 %v819, %v819
      %v836 = vpack.c.b16 %v820, %v820
      %v837 = vpack.c.b16 %v821, %v821
      %v838 = vpack.c.b16 %v822, %v822
      %v839 = vpack.c.b16 %v823, %v823
      %v840 = vpack.c.b16 %v824, %v824
      %v841 = vpack.c.b16 %v825, %v825
      %v842 = vpack.c.b16 %v826, %v826
      %v843 = vpack.c.b16 %v827, %v827
      %v844 = vld [vmem:[%s4] sm:$0xf]
      %v845 = vld [vmem:[%s4 + $0x4] sm:$0xf]
      %v846 = vld [vmem:[%s4 + $0x8] sm:$0xf]
      %v847 = vld [vmem:[%s4 + $0xc] sm:$0xf]
      %v864 = vunpack.c.l.b16 %v586
      %v865 = vunpack.c.l.b16 %v587
      %v866 = vunpack.c.l.b16 %v588
      %v867 = vunpack.c.l.b16 %v589
      %v868 = vunpack.c.l.b16 %v590
      %v869 = vunpack.c.l.b16 %v591
      %v870 = vunpack.c.l.b16 %v592
      %v871 = vunpack.c.l.b16 %v593
      %v872 = vunpack.c.l.b16 %v594
      %v873 = vunpack.c.l.b16 %v595
      %v874 = vunpack.c.l.b16 %v596
      %v875 = vunpack.c.l.b16 %v597
      %v876 = vunpack.c.l.b16 %v598
      %v877 = vunpack.c.l.b16 %v599
      %v878 = vunpack.c.l.b16 %v600
      %v879 = vunpack.c.l.b16 %v601
      %v880 = vpack.c.b16 %v865, %v864
      %v881 = vpack.c.b16 %v867, %v866
      %v882 = vpack.c.b16 %v869, %v868
      %v883 = vpack.c.b16 %v871, %v870
      %v884 = vpack.c.b16 %v873, %v872
      %v885 = vpack.c.b16 %v875, %v874
      %v886 = vpack.c.b16 %v877, %v876
      %v887 = vpack.c.b16 %v879, %v878
      %v892 = vunpack.c.l.b16 %v844
      %v893 = vunpack.c.l.b16 %v845
      %v894 = vunpack.c.l.b16 %v846
      %v895 = vunpack.c.l.b16 %v847
      %v896 = vpack.c.b16 %v893, %v892
      %v897 = vpack.c.b16 %v895, %v894
      %v901 = vsel %vm674, %v880, 0
      %v904 = vsel %vm674, %v881, 0
      %v907 = vsel %vm674, %v882, 0
      %v910 = vsel %vm674, %v883, 0
      %v913 = vsel %vm674, %v884, 0
      %v916 = vsel %vm674, %v885, 0
      %v919 = vsel %vm674, %v886, 0
      %v922 = vsel %vm674, %v887, 0
      %924 = vmatprep.subr.bf16.mxu0 0
      %925 = vmatpush1.bf16.msra.mxu0 %v896
      %926 = vmatprep.subr.bf16.mxu0 0
      %927 = vmatpush1.bf16.msra.mxu0 %v897
      %928 = vmatprep.subr.bf16.mxu0 0
      %929 = vmatpush1.bf16.msra.mxu0 0
      %930 = vmatprep.subr.bf16.mxu0 0
      %931 = vmatpush1.bf16.msra.mxu0 0
      %932 = vmatprep.subr.bf16.mxu0 0
      %933 = vmatpush1.bf16.msra.mxu0 0
      %934 = vmatprep.subr.bf16.mxu0 0
      %935 = vmatpush1.bf16.msra.mxu0 0
      %936 = vmatprep.subr.bf16.mxu0 0
      %937 = vmatpush1.bf16.msra.mxu0 0
      %938 = vmatprep.subr.bf16.mxu0 0
      %939 = vmatpush1.bf16.msra.mxu0 0
      %940 = vmatprep.subr.bf16.mxu0 0
      %941 = vmatpush1.bf16.msra.mxu0 0
      %942 = vmatprep.subr.bf16.mxu0 0
      %943 = vmatpush1.bf16.msra.mxu0 0
      %944 = vmatprep.subr.bf16.mxu0 0
      %945 = vmatpush1.bf16.msra.mxu0 0
      %946 = vmatprep.subr.bf16.mxu0 0
      %947 = vmatpush1.bf16.msra.mxu0 0
      %948 = vmatprep.subr.bf16.mxu0 0
      %949 = vmatpush1.bf16.msra.mxu0 0
      %950 = vmatprep.subr.bf16.mxu0 0
      %951 = vmatpush1.bf16.msra.mxu0 0
      %952 = vmatprep.subr.bf16.mxu0 0
      %953 = vmatpush1.bf16.msra.mxu0 0
      %954 = vmatprep.subr.bf16.mxu0 0
      %955 = vmatpush1.bf16.msra.mxu0 0
      %956 = vmatprep.mubr.bf16.mxu0 0
      %957 = vmatmul.mubr.bf16.gmra.mrb[0].mxu0 %v901
      %v958 = vpop.f32.mrb[0].mxu0
      %v959 = vadd.f32 0.0, %v958
      %v960 = vpop.f32.mrb[0].mxu0
      %v961 = vpop.f32.mrb[0].mxu0
      %v962 = vadd.f32 0.0, %v961
      %v963 = vpop.f32.mrb[0].mxu0
      %964 = vmatprep.mubr.bf16.mxu0 0
      %965 = vmatmul.mubr.bf16.gmra.mrb[0].mxu0 %v904
      %v966 = vpop.f32.mrb[0].mxu0
      %v967 = vadd.f32 0.0, %v966
      %v968 = vpop.f32.mrb[0].mxu0
      %v969 = vpop.f32.mrb[0].mxu0
      %v970 = vadd.f32 0.0, %v969
      %v971 = vpop.f32.mrb[0].mxu0
      %972 = vmatprep.mubr.bf16.mxu0 0
      %973 = vmatmul.mubr.bf16.gmra.mrb[0].mxu0 %v907
      %v974 = vpop.f32.mrb[0].mxu0
      %v975 = vadd.f32 0.0, %v974
      %v976 = vpop.f32.mrb[0].mxu0
      %v977 = vpop.f32.mrb[0].mxu0
      %v978 = vadd.f32 0.0, %v977
      %v979 = vpop.f32.mrb[0].mxu0
      %980 = vmatprep.mubr.bf16.mxu0 0
      %981 = vmatmul.mubr.bf16.gmra.mrb[0].mxu0 %v910
      %v982 = vpop.f32.mrb[0].mxu0
      %v983 = vadd.f32 0.0, %v982
      %v984 = vpop.f32.mrb[0].mxu0
      %v985 = vpop.f32.mrb[0].mxu0
      %v986 = vadd.f32 0.0, %v985
      %v987 = vpop.f32.mrb[0].mxu0
      %988 = vmatprep.mubr.bf16.mxu0 0
      %989 = vmatmul.mubr.bf16.gmra.mrb[0].mxu0 %v913
      %v990 = vpop.f32.mrb[0].mxu0
      %v991 = vadd.f32 0.0, %v990
      %v992 = vpop.f32.mrb[0].mxu0
      %v993 = vpop.f32.mrb[0].mxu0
      %v994 = vadd.f32 0.0, %v993
      %v995 = vpop.f32.mrb[0].mxu0
      %996 = vmatprep.mubr.bf16.mxu0 0
      %997 = vmatmul.mubr.bf16.gmra.mrb[0].mxu0 %v916
      %v998 = vpop.f32.mrb[0].mxu0
      %v999 = vadd.f32 0.0, %v998
      %v1000 = vpop.f32.mrb[0].mxu0
      %v1001 = vpop.f32.mrb[0].mxu0
      %v1002 = vadd.f32 0.0, %v1001
      %v1003 = vpop.f32.mrb[0].mxu0
      %1004 = vmatprep.mubr.bf16.mxu0 0
      %1005 = vmatmul.mubr.bf16.gmra.mrb[0].mxu0 %v919
      %v1006 = vpop.f32.mrb[0].mxu0
      %v1007 = vadd.f32 0.0, %v1006
      %v1008 = vpop.f32.mrb[0].mxu0
      %v1009 = vpop.f32.mrb[0].mxu0
      %v1010 = vadd.f32 0.0, %v1009
      %v1011 = vpop.f32.mrb[0].mxu0
      %1012 = vmatprep.mubr.bf16.mxu0 0
      %1013 = vmatmul.mubr.bf16.gmra.mrb[0].mxu0 %v922
      %v1014 = vpop.f32.mrb[0].mxu0
      %v1015 = vadd.f32 0.0, %v1014
      %v1016 = vpop.f32.mrb[0].mxu0
      %v1017 = vpop.f32.mrb[0].mxu0
      %v1018 = vadd.f32 0.0, %v1017
      %v1019 = vpop.f32.mrb[0].mxu0
      %1020 = vdwg.mxu0
      %v1021 = vpack.c.bf16 %v962, %v959
      %v1022 = vpack.c.bf16 %v970, %v967
      %v1023 = vpack.c.bf16 %v978, %v975
      %v1024 = vpack.c.bf16 %v986, %v983
      %v1025 = vpack.c.bf16 %v994, %v991
      %v1026 = vpack.c.bf16 %v1002, %v999
      %v1027 = vpack.c.bf16 %v1010, %v1007
      %v1028 = vpack.c.bf16 %v1018, %v1015
      %v1037 = vunpack.c.l.b16 %v1021
      %v1038 = vunpack.c.h.b16 %v1021
      %v1039 = vunpack.c.l.b16 %v1022
      %v1040 = vunpack.c.h.b16 %v1022
      %v1041 = vunpack.c.l.b16 %v1023
      %v1042 = vunpack.c.h.b16 %v1023
      %v1043 = vunpack.c.l.b16 %v1024
      %v1044 = vunpack.c.h.b16 %v1024
      %v1045 = vunpack.c.l.b16 %v1025
      %v1046 = vunpack.c.h.b16 %v1025
      %v1047 = vunpack.c.l.b16 %v1026
      %v1048 = vunpack.c.h.b16 %v1026
      %v1049 = vunpack.c.l.b16 %v1027
      %v1050 = vunpack.c.h.b16 %v1027
      %v1051 = vunpack.c.l.b16 %v1028
      %v1052 = vunpack.c.h.b16 %v1028
      %v1053 = vpack.c.b16 %v1037, %v1037
      %v1054 = vpack.c.b16 %v1038, %v1038
      %v1055 = vpack.c.b16 %v1039, %v1039
      %v1056 = vpack.c.b16 %v1040, %v1040
      %v1057 = vpack.c.b16 %v1041, %v1041
      %v1058 = vpack.c.b16 %v1042, %v1042
      %v1059 = vpack.c.b16 %v1043, %v1043
      %v1060 = vpack.c.b16 %v1044, %v1044
      %v1061 = vpack.c.b16 %v1045, %v1045
      %v1062 = vpack.c.b16 %v1046, %v1046
      %v1063 = vpack.c.b16 %v1047, %v1047
      %v1064 = vpack.c.b16 %v1048, %v1048
      %v1065 = vpack.c.b16 %v1049, %v1049
      %v1066 = vpack.c.b16 %v1050, %v1050
      %v1067 = vpack.c.b16 %v1051, %v1051
      %v1068 = vpack.c.b16 %v1052, %v1052
      %v1069 = vld [vmem:[%s3] sm:$0xf]
      %v1070 = vld [vmem:[%s3 + $0x4] sm:$0xf]
      %v1071 = vld [vmem:[%s3 + $0x8] sm:$0xf]
      %v1072 = vld [vmem:[%s3 + $0xc] sm:$0xf]
      %v1089 = vunpack.c.l.b16 %v602
      %v1090 = vunpack.c.l.b16 %v603
      %v1091 = vunpack.c.l.b16 %v604
      %v1092 = vunpack.c.l.b16 %v605
      %v1093 = vunpack.c.l.b16 %v606
      %v1094 = vunpack.c.l.b16 %v607
      %v1095 = vunpack.c.l.b16 %v608
      %v1096 = vunpack.c.l.b16 %v609
      %v1097 = vunpack.c.l.b16 %v610
      %v1098 = vunpack.c.l.b16 %v611
      %v1099 = vunpack.c.l.b16 %v612
      %v1100 = vunpack.c.l.b16 %v613
      %v1101 = vunpack.c.l.b16 %v614
      %v1102 = vunpack.c.l.b16 %v615
      %v1103 = vunpack.c.l.b16 %v616
      %v1104 = vunpack.c.l.b16 %v617
      %v1105 = vpack.c.b16 %v1090, %v1089
      %v1106 = vpack.c.b16 %v1092, %v1091
      %v1107 = vpack.c.b16 %v1094, %v1093
      %v1108 = vpack.c.b16 %v1096, %v1095
      %v1109 = vpack.c.b16 %v1098, %v1097
      %v1110 = vpack.c.b16 %v1100, %v1099
      %v1111 = vpack.c.b16 %v1102, %v1101
      %v1112 = vpack.c.b16 %v1104, %v1103
      %v1117 = vunpack.c.l.b16 %v1069
      %v1118 = vunpack.c.l.b16 %v1070
      %v1119 = vunpack.c.l.b16 %v1071
      %v1120 = vunpack.c.l.b16 %v1072
      %v1121 = vpack.c.b16 %v1118, %v1117
      %v1122 = vpack.c.b16 %v1120, %v1119
      %v1126 = vsel %vm674, %v1105, 0
      %v1129 = vsel %vm674, %v1106, 0
      %v1132 = vsel %vm674, %v1107, 0
      %v1135 = vsel %vm674, %v1108, 0
      %v1138 = vsel %vm674, %v1109, 0
      %v1141 = vsel %vm674, %v1110, 0
      %v1144 = vsel %vm674, %v1111, 0
      %v1147 = vsel %vm674, %v1112, 0
      %1149 = vmatprep.subr.bf16.mxu0 0
      %1150 = vmatpush1.bf16.msra.mxu0 %v1121
      %1151 = vmatprep.subr.bf16.mxu0 0
      %1152 = vmatpush1.bf16.msra.mxu0 %v1122
      %1153 = vmatprep.subr.bf16.mxu0 0
      %1154 = vmatpush1.bf16.msra.mxu0 0
      %1155 = vmatprep.subr.bf16.mxu0 0
      %1156 = vmatpush1.bf16.msra.mxu0 0
      %1157 = vmatprep.subr.bf16.mxu0 0
      %1158 = vmatpush1.bf16.msra.mxu0 0
      %1159 = vmatprep.subr.bf16.mxu0 0
      %1160 = vmatpush1.bf16.msra.mxu0 0
      %1161 = vmatprep.subr.bf16.mxu0 0
      %1162 = vmatpush1.bf16.msra.mxu0 0
      %1163 = vmatprep.subr.bf16.mxu0 0
      %1164 = vmatpush1.bf16.msra.mxu0 0
      %1165 = vmatprep.subr.bf16.mxu0 0
      %1166 = vmatpush1.bf16.msra.mxu0 0
      %1167 = vmatprep.subr.bf16.mxu0 0
      %1168 = vmatpush1.bf16.msra.mxu0 0
      %1169 = vmatprep.subr.bf16.mxu0 0
      %1170 = vmatpush1.bf16.msra.mxu0 0
      %1171 = vmatprep.subr.bf16.mxu0 0
      %1172 = vmatpush1.bf16.msra.mxu0 0
      %1173 = vmatprep.subr.bf16.mxu0 0
      %1174 = vmatpush1.bf16.msra.mxu0 0
      %1175 = vmatprep.subr.bf16.mxu0 0
      %1176 = vmatpush1.bf16.msra.mxu0 0
      %1177 = vmatprep.subr.bf16.mxu0 0
      %1178 = vmatpush1.bf16.msra.mxu0 0
      %1179 = vmatprep.subr.bf16.mxu0 0
      %1180 = vmatpush1.bf16.msra.mxu0 0
      %1181 = vmatprep.mubr.bf16.mxu0 0
      %1182 = vmatmul.mubr.bf16.gmra.mrb[0].mxu0 %v1126
      %v1183 = vpop.f32.mrb[0].mxu0
      %v1184 = vadd.f32 0.0, %v1183
      %v1185 = vpop.f32.mrb[0].mxu0
      %v1186 = vpop.f32.mrb[0].mxu0
      %v1187 = vadd.f32 0.0, %v1186
      %v1188 = vpop.f32.mrb[0].mxu0
      %1189 = vmatprep.mubr.bf16.mxu0 0
      %1190 = vmatmul.mubr.bf16.gmra.mrb[0].mxu0 %v1129
      %v1191 = vpop.f32.mrb[0].mxu0
      %v1192 = vadd.f32 0.0, %v1191
      %v1193 = vpop.f32.mrb[0].mxu0
      %v1194 = vpop.f32.mrb[0].mxu0
      %v1195 = vadd.f32 0.0, %v1194
      %v1196 = vpop.f32.mrb[0].mxu0
      %1197 = vmatprep.mubr.bf16.mxu0 0
      %1198 = vmatmul.mubr.bf16.gmra.mrb[0].mxu0 %v1132
      %v1199 = vpop.f32.mrb[0].mxu0
      %v1200 = vadd.f32 0.0, %v1199
      %v1201 = vpop.f32.mrb[0].mxu0
      %v1202 = vpop.f32.mrb[0].mxu0
      %v1203 = vadd.f32 0.0, %v1202
      %v1204 = vpop.f32.mrb[0].mxu0
      %1205 = vmatprep.mubr.bf16.mxu0 0
      %1206 = vmatmul.mubr.bf16.gmra.mrb[0].mxu0 %v1135
      %v1207 = vpop.f32.mrb[0].mxu0
      %v1208 = vadd.f32 0.0, %v1207
      %v1209 = vpop.f32.mrb[0].mxu0
      %v1210 = vpop.f32.mrb[0].mxu0
      %v1211 = vadd.f32 0.0, %v1210
      %v1212 = vpop.f32.mrb[0].mxu0
      %1213 = vmatprep.mubr.bf16.mxu0 0
      %1214 = vmatmul.mubr.bf16.gmra.mrb[0].mxu0 %v1138
      %v1215 = vpop.f32.mrb[0].mxu0
      %v1216 = vadd.f32 0.0, %v1215
      %v1217 = vpop.f32.mrb[0].mxu0
      %v1218 = vpop.f32.mrb[0].mxu0
      %v1219 = vadd.f32 0.0, %v1218
      %v1220 = vpop.f32.mrb[0].mxu0
      %1221 = vmatprep.mubr.bf16.mxu0 0
      %1222 = vmatmul.mubr.bf16.gmra.mrb[0].mxu0 %v1141
      %v1223 = vpop.f32.mrb[0].mxu0
      %v1224 = vadd.f32 0.0, %v1223
      %v1225 = vpop.f32.mrb[0].mxu0
      %v1226 = vpop.f32.mrb[0].mxu0
      %v1227 = vadd.f32 0.0, %v1226
      %v1228 = vpop.f32.mrb[0].mxu0
      %1229 = vmatprep.mubr.bf16.mxu0 0
      %1230 = vmatmul.mubr.bf16.gmra.mrb[0].mxu0 %v1144
      %v1231 = vpop.f32.mrb[0].mxu0
      %v1232 = vadd.f32 0.0, %v1231
      %v1233 = vpop.f32.mrb[0].mxu0
      %v1234 = vpop.f32.mrb[0].mxu0
      %v1235 = vadd.f32 0.0, %v1234
      %v1236 = vpop.f32.mrb[0].mxu0
      %1237 = vmatprep.mubr.bf16.mxu0 0
      %1238 = vmatmul.mubr.bf16.gmra.mrb[0].mxu0 %v1147
      %v1239 = vpop.f32.mrb[0].mxu0
      %v1240 = vadd.f32 0.0, %v1239
      %v1241 = vpop.f32.mrb[0].mxu0
      %v1242 = vpop.f32.mrb[0].mxu0
      %v1243 = vadd.f32 0.0, %v1242
      %v1244 = vpop.f32.mrb[0].mxu0
      %1245 = vdwg.mxu0
      %v1246 = vpack.c.bf16 %v1187, %v1184
      %v1247 = vpack.c.bf16 %v1195, %v1192
      %v1248 = vpack.c.bf16 %v1203, %v1200
      %v1249 = vpack.c.bf16 %v1211, %v1208
      %v1250 = vpack.c.bf16 %v1219, %v1216
      %v1251 = vpack.c.bf16 %v1227, %v1224
      %v1252 = vpack.c.bf16 %v1235, %v1232
      %v1253 = vpack.c.bf16 %v1243, %v1240
      %v1262 = vunpack.c.l.b16 %v1246
      %v1263 = vunpack.c.h.b16 %v1246
      %v1264 = vunpack.c.l.b16 %v1247
      %v1265 = vunpack.c.h.b16 %v1247
      %v1266 = vunpack.c.l.b16 %v1248
      %v1267 = vunpack.c.h.b16 %v1248
      %v1268 = vunpack.c.l.b16 %v1249
      %v1269 = vunpack.c.h.b16 %v1249
      %v1270 = vunpack.c.l.b16 %v1250
      %v1271 = vunpack.c.h.b16 %v1250
      %v1272 = vunpack.c.l.b16 %v1251
      %v1273 = vunpack.c.h.b16 %v1251
      %v1274 = vunpack.c.l.b16 %v1252
      %v1275 = vunpack.c.h.b16 %v1252
      %v1276 = vunpack.c.l.b16 %v1253
      %v1277 = vunpack.c.h.b16 %v1253
      %v1278 = vpack.c.b16 %v1262, %v1262
      %v1279 = vpack.c.b16 %v1263, %v1263
      %v1280 = vpack.c.b16 %v1264, %v1264
      %v1281 = vpack.c.b16 %v1265, %v1265
      %v1282 = vpack.c.b16 %v1266, %v1266
      %v1283 = vpack.c.b16 %v1267, %v1267
      %v1284 = vpack.c.b16 %v1268, %v1268
      %v1285 = vpack.c.b16 %v1269, %v1269
      %v1286 = vpack.c.b16 %v1270, %v1270
      %v1287 = vpack.c.b16 %v1271, %v1271
      %v1288 = vpack.c.b16 %v1272, %v1272
      %v1289 = vpack.c.b16 %v1273, %v1273
      %v1290 = vpack.c.b16 %v1274, %v1274
      %v1291 = vpack.c.b16 %v1275, %v1275
      %v1292 = vpack.c.b16 %v1276, %v1276
      %v1293 = vpack.c.b16 %v1277, %v1277
      %vm1294 = vcmask 64512
      %v1296 = vsel %vm1294, %v828, 0
      %v1299 = vsel %vm1294, %v1053, 0
      %1301 = vmatprep.subr.bf16.mxu0 0
      %1302 = vmatpush1.bf16.xpose.msra.mxu0 %v1299
      %1303 = vmatprep.subr.bf16.mxu0 0
      %1304 = vmatpush1.bf16.xpose.msra.mxu0 0
      %1305 = vmatprep.subr.bf16.mxu0 0
      %1306 = vmatpush1.bf16.xpose.msra.mxu0 0
      %1307 = vmatprep.subr.bf16.mxu0 0
      %1308 = vmatpush1.bf16.xpose.msra.mxu0 0
      %1309 = vmatprep.subr.bf16.mxu0 0
      %1310 = vmatpush1.bf16.xpose.msra.mxu0 0
      %1311 = vmatprep.subr.bf16.mxu0 0
      %1312 = vmatpush1.bf16.xpose.msra.mxu0 0
      %1313 = vmatprep.subr.bf16.mxu0 0
      %1314 = vmatpush1.bf16.xpose.msra.mxu0 0
      %1315 = vmatprep.subr.bf16.mxu0 0
      %1316 = vmatpush1.bf16.xpose.msra.mxu0 0
      %1317 = vmatprep.subr.bf16.mxu0 0
      %1318 = vmatpush1.bf16.xpose.msra.mxu0 0
      %1319 = vmatprep.subr.bf16.mxu0 0
      %1320 = vmatpush1.bf16.xpose.msra.mxu0 0
      %1321 = vmatprep.subr.bf16.mxu0 0
      %1322 = vmatpush1.bf16.xpose.msra.mxu0 0
      %1323 = vmatprep.subr.bf16.mxu0 0
      %1324 = vmatpush1.bf16.xpose.msra.mxu0 0
      %1325 = vmatprep.subr.bf16.mxu0 0
      %1326 = vmatpush1.bf16.xpose.msra.mxu0 0
      %1327 = vmatprep.subr.bf16.mxu0 0
      %1328 = vmatpush1.bf16.xpose.msra.mxu0 0
      %1329 = vmatprep.subr.bf16.mxu0 0
      %1330 = vmatpush1.bf16.xpose.msra.mxu0 0
      %1331 = vmatprep.subr.bf16.mxu0 0
      %1332 = vmatpush1.bf16.xpose.msra.mxu0 0
      %1333 = vmatprep.mubr.bf16.mxu0 0
      %1334 = vmatmul.mubr.bf16.gmra.mrb[0].mxu0 %v1296
      %v1335 = vpop.f32.mrb[0].mxu0
      %v1336 = vadd.f32 0.0, %v1335
      %v1337 = vpop.f32.mrb[0].mxu0
      %v1338 = vpop.f32.mrb[0].mxu0
      %v1339 = vpop.f32.mrb[0].mxu0
      %1340 = vdwg.mxu0
      %v1342 = vsel %vm1294, %v829, 0
      %v1345 = vsel %vm1294, %v1054, 0
      %1347 = vmatprep.subr.bf16.mxu0 0
      %1348 = vmatpush1.bf16.xpose.msra.mxu0 %v1345
      %1349 = vmatprep.subr.bf16.mxu0 0
      %1350 = vmatpush1.bf16.xpose.msra.mxu0 0
      %1351 = vmatprep.subr.bf16.mxu0 0
      %1352 = vmatpush1.bf16.xpose.msra.mxu0 0
      %1353 = vmatprep.subr.bf16.mxu0 0
      %1354 = vmatpush1.bf16.xpose.msra.mxu0 0
      %1355 = vmatprep.subr.bf16.mxu0 0
      %1356 = vmatpush1.bf16.xpose.msra.mxu0 0
      %1357 = vmatprep.subr.bf16.mxu0 0
      %1358 = vmatpush1.bf16.xpose.msra.mxu0 0
      %1359 = vmatprep.subr.bf16.mxu0 0
      %1360 = vmatpush1.bf16.xpose.msra.mxu0 0
      %1361 = vmatprep.subr.bf16.mxu0 0
      %1362 = vmatpush1.bf16.xpose.msra.mxu0 0
      %1363 = vmatprep.subr.bf16.mxu0 0
      %1364 = vmatpush1.bf16.xpose.msra.mxu0 0
      %1365 = vmatprep.subr.bf16.mxu0 0
      %1366 = vmatpush1.bf16.xpose.msra.mxu0 0
      %1367 = vmatprep.subr.bf16.mxu0 0
      %1368 = vmatpush1.bf16.xpose.msra.mxu0 0
      %1369 = vmatprep.subr.bf16.mxu0 0
      %1370 = vmatpush1.bf16.xpose.msra.mxu0 0
      %1371 = vmatprep.subr.bf16.mxu0 0
      %1372 = vmatpush1.bf16.xpose.msra.mxu0 0
      %1373 = vmatprep.subr.bf16.mxu0 0
      %1374 = vmatpush1.bf16.xpose.msra.mxu0 0
      %1375 = vmatprep.subr.bf16.mxu0 0
      %1376 = vmatpush1.bf16.xpose.msra.mxu0 0
      %1377 = vmatprep.subr.bf16.mxu0 0
      %1378 = vmatpush1.bf16.xpose.msra.mxu0 0
      %1379 = vmatprep.mubr.bf16.mxu0 0
      %1380 = vmatmul.mubr.bf16.gmra.mrb[0].mxu0 %v1342
      %v1381 = vpop.f32.mrb[0].mxu0
      %v1382 = vadd.f32 0.0, %v1381
      %v1383 = vpop.f32.mrb[0].mxu0
      %v1384 = vpop.f32.mrb[0].mxu0
      %v1385 = vpop.f32.mrb[0].mxu0
      %1386 = vdwg.mxu0
      %v1388 = vsel %vm1294, %v830, 0
      %v1391 = vsel %vm1294, %v1055, 0
      %1393 = vmatprep.subr.bf16.mxu0 0
      %1394 = vmatpush1.bf16.xpose.msra.mxu0 %v1391
      %1395 = vmatprep.subr.bf16.mxu0 0
      %1396 = vmatpush1.bf16.xpose.msra.mxu0 0
      %1397 = vmatprep.subr.bf16.mxu0 0
      %1398 = vmatpush1.bf16.xpose.msra.mxu0 0
      %1399 = vmatprep.subr.bf16.mxu0 0
      %1400 = vmatpush1.bf16.xpose.msra.mxu0 0
      %1401 = vmatprep.subr.bf16.mxu0 0
      %1402 = vmatpush1.bf16.xpose.msra.mxu0 0
      %1403 = vmatprep.subr.bf16.mxu0 0
      %1404 = vmatpush1.bf16.xpose.msra.mxu0 0
      %1405 = vmatprep.subr.bf16.mxu0 0
      %1406 = vmatpush1.bf16.xpose.msra.mxu0 0
      %1407 = vmatprep.subr.bf16.mxu0 0
      %1408 = vmatpush1.bf16.xpose.msra.mxu0 0
      %1409 = vmatprep.subr.bf16.mxu0 0
      %1410 = vmatpush1.bf16.xpose.msra.mxu0 0
      %1411 = vmatprep.subr.bf16.mxu0 0
      %1412 = vmatpush1.bf16.xpose.msra.mxu0 0
      %1413 = vmatprep.subr.bf16.mxu0 0
      %1414 = vmatpush1.bf16.xpose.msra.mxu0 0
      %1415 = vmatprep.subr.bf16.mxu0 0
      %1416 = vmatpush1.bf16.xpose.msra.mxu0 0
      %1417 = vmatprep.subr.bf16.mxu0 0
      %1418 = vmatpush1.bf16.xpose.msra.mxu0 0
      %1419 = vmatprep.subr.bf16.mxu0 0
      %1420 = vmatpush1.bf16.xpose.msra.mxu0 0
      %1421 = vmatprep.subr.bf16.mxu0 0
      %1422 = vmatpush1.bf16.xpose.msra.mxu0 0
      %1423 = vmatprep.subr.bf16.mxu0 0
      %1424 = vmatpush1.bf16.xpose.msra.mxu0 0
      %1425 = vmatprep.mubr.bf16.mxu0 0
      %1426 = vmatmul.mubr.bf16.gmra.mrb[0].mxu0 %v1388
      %v1427 = vpop.f32.mrb[0].mxu0
      %v1428 = vadd.f32 0.0, %v1427
      %v1429 = vpop.f32.mrb[0].mxu0
      %v1430 = vpop.f32.mrb[0].mxu0
      %v1431 = vpop.f32.mrb[0].mxu0
      %1432 = vdwg.mxu0
      %v1434 = vsel %vm1294, %v831, 0
      %v1437 = vsel %vm1294, %v1056, 0
      %1439 = vmatprep.subr.bf16.mxu0 0
      %1440 = vmatpush1.bf16.xpose.msra.mxu0 %v1437
      %1441 = vmatprep.subr.bf16.mxu0 0
      %1442 = vmatpush1.bf16.xpose.msra.mxu0 0
      %1443 = vmatprep.subr.bf16.mxu0 0
      %1444 = vmatpush1.bf16.xpose.msra.mxu0 0
      %1445 = vmatprep.subr.bf16.mxu0 0
      %1446 = vmatpush1.bf16.xpose.msra.mxu0 0
      %1447 = vmatprep.subr.bf16.mxu0 0
      %1448 = vmatpush1.bf16.xpose.msra.mxu0 0
      %1449 = vmatprep.subr.bf16.mxu0 0
      %1450 = vmatpush1.bf16.xpose.msra.mxu0 0
      %1451 = vmatprep.subr.bf16.mxu0 0
      %1452 = vmatpush1.bf16.xpose.msra.mxu0 0
      %1453 = vmatprep.subr.bf16.mxu0 0
      %1454 = vmatpush1.bf16.xpose.msra.mxu0 0
      %1455 = vmatprep.subr.bf16.mxu0 0
      %1456 = vmatpush1.bf16.xpose.msra.mxu0 0
      %1457 = vmatprep.subr.bf16.mxu0 0
      %1458 = vmatpush1.bf16.xpose.msra.mxu0 0
      %1459 = vmatprep.subr.bf16.mxu0 0
      %1460 = vmatpush1.bf16.xpose.msra.mxu0 0
      %1461 = vmatprep.subr.bf16.mxu0 0
      %1462 = vmatpush1.bf16.xpose.msra.mxu0 0
      %1463 = vmatprep.subr.bf16.mxu0 0
      %1464 = vmatpush1.bf16.xpose.msra.mxu0 0
      %1465 = vmatprep.subr.bf16.mxu0 0
      %1466 = vmatpush1.bf16.xpose.msra.mxu0 0
      %1467 = vmatprep.subr.bf16.mxu0 0
      %1468 = vmatpush1.bf16.xpose.msra.mxu0 0
      %1469 = vmatprep.subr.bf16.mxu0 0
      %1470 = vmatpush1.bf16.xpose.msra.mxu0 0
      %1471 = vmatprep.mubr.bf16.mxu0 0
      %1472 = vmatmul.mubr.bf16.gmra.mrb[0].mxu0 %v1434
      %v1473 = vpop.f32.mrb[0].mxu0
      %v1474 = vadd.f32 0.0, %v1473
      %v1475 = vpop.f32.mrb[0].mxu0
      %v1476 = vpop.f32.mrb[0].mxu0
      %v1477 = vpop.f32.mrb[0].mxu0
      %1478 = vdwg.mxu0
      %v1480 = vsel %vm1294, %v832, 0
      %v1483 = vsel %vm1294, %v1057, 0
      %1485 = vmatprep.subr.bf16.mxu0 0
      %1486 = vmatpush1.bf16.xpose.msra.mxu0 %v1483
      %1487 = vmatprep.subr.bf16.mxu0 0
      %1488 = vmatpush1.bf16.xpose.msra.mxu0 0
      %1489 = vmatprep.subr.bf16.mxu0 0
      %1490 = vmatpush1.bf16.xpose.msra.mxu0 0
      %1491 = vmatprep.subr.bf16.mxu0 0
      %1492 = vmatpush1.bf16.xpose.msra.mxu0 0
      %1493 = vmatprep.subr.bf16.mxu0 0
      %1494 = vmatpush1.bf16.xpose.msra.mxu0 0
      %1495 = vmatprep.subr.bf16.mxu0 0
      %1496 = vmatpush1.bf16.xpose.msra.mxu0 0
      %1497 = vmatprep.subr.bf16.mxu0 0
      %1498 = vmatpush1.bf16.xpose.msra.mxu0 0
      %1499 = vmatprep.subr.bf16.mxu0 0
      %1500 = vmatpush1.bf16.xpose.msra.mxu0 0
      %1501 = vmatprep.subr.bf16.mxu0 0
      %1502 = vmatpush1.bf16.xpose.msra.mxu0 0
      %1503 = vmatprep.subr.bf16.mxu0 0
      %1504 = vmatpush1.bf16.xpose.msra.mxu0 0
      %1505 = vmatprep.subr.bf16.mxu0 0
      %1506 = vmatpush1.bf16.xpose.msra.mxu0 0
      %1507 = vmatprep.subr.bf16.mxu0 0
      %1508 = vmatpush1.bf16.xpose.msra.mxu0 0
      %1509 = vmatprep.subr.bf16.mxu0 0
      %1510 = vmatpush1.bf16.xpose.msra.mxu0 0
      %1511 = vmatprep.subr.bf16.mxu0 0
      %1512 = vmatpush1.bf16.xpose.msra.mxu0 0
      %1513 = vmatprep.subr.bf16.mxu0 0
      %1514 = vmatpush1.bf16.xpose.msra.mxu0 0
      %1515 = vmatprep.subr.bf16.mxu0 0
      %1516 = vmatpush1.bf16.xpose.msra.mxu0 0
      %1517 = vmatprep.mubr.bf16.mxu0 0
      %1518 = vmatmul.mubr.bf16.gmra.mrb[0].mxu0 %v1480
      %v1519 = vpop.f32.mrb[0].mxu0
      %v1520 = vadd.f32 0.0, %v1519
      %v1521 = vpop.f32.mrb[0].mxu0
      %v1522 = vpop.f32.mrb[0].mxu0
      %v1523 = vpop.f32.mrb[0].mxu0
      %1524 = vdwg.mxu0
      %v1526 = vsel %vm1294, %v833, 0
      %v1529 = vsel %vm1294, %v1058, 0
      %1531 = vmatprep.subr.bf16.mxu0 0
      %1532 = vmatpush1.bf16.xpose.msra.mxu0 %v1529
      %1533 = vmatprep.subr.bf16.mxu0 0
      %1534 = vmatpush1.bf16.xpose.msra.mxu0 0
      %1535 = vmatprep.subr.bf16.mxu0 0
      %1536 = vmatpush1.bf16.xpose.msra.mxu0 0
      %1537 = vmatprep.subr.bf16.mxu0 0
      %1538 = vmatpush1.bf16.xpose.msra.mxu0 0
      %1539 = vmatprep.subr.bf16.mxu0 0
      %1540 = vmatpush1.bf16.xpose.msra.mxu0 0
      %1541 = vmatprep.subr.bf16.mxu0 0
      %1542 = vmatpush1.bf16.xpose.msra.mxu0 0
      %1543 = vmatprep.subr.bf16.mxu0 0
      %1544 = vmatpush1.bf16.xpose.msra.mxu0 0
      %1545 = vmatprep.subr.bf16.mxu0 0
      %1546 = vmatpush1.bf16.xpose.msra.mxu0 0
      %1547 = vmatprep.subr.bf16.mxu0 0
      %1548 = vmatpush1.bf16.xpose.msra.mxu0 0
      %1549 = vmatprep.subr.bf16.mxu0 0
      %1550 = vmatpush1.bf16.xpose.msra.mxu0 0
      %1551 = vmatprep.subr.bf16.mxu0 0
      %1552 = vmatpush1.bf16.xpose.msra.mxu0 0
      %1553 = vmatprep.subr.bf16.mxu0 0
      %1554 = vmatpush1.bf16.xpose.msra.mxu0 0
      %1555 = vmatprep.subr.bf16.mxu0 0
      %1556 = vmatpush1.bf16.xpose.msra.mxu0 0
      %1557 = vmatprep.subr.bf16.mxu0 0
      %1558 = vmatpush1.bf16.xpose.msra.mxu0 0
      %1559 = vmatprep.subr.bf16.mxu0 0
      %1560 = vmatpush1.bf16.xpose.msra.mxu0 0
      %1561 = vmatprep.subr.bf16.mxu0 0
      %1562 = vmatpush1.bf16.xpose.msra.mxu0 0
      %1563 = vmatprep.mubr.bf16.mxu0 0
      %1564 = vmatmul.mubr.bf16.gmra.mrb[0].mxu0 %v1526
      %v1565 = vpop.f32.mrb[0].mxu0
      %v1566 = vadd.f32 0.0, %v1565
      %v1567 = vpop.f32.mrb[0].mxu0
      %v1568 = vpop.f32.mrb[0].mxu0
      %v1569 = vpop.f32.mrb[0].mxu0
      %1570 = vdwg.mxu0
      %v1572 = vsel %vm1294, %v834, 0
      %v1575 = vsel %vm1294, %v1059, 0
      %1577 = vmatprep.subr.bf16.mxu0 0
      %1578 = vmatpush1.bf16.xpose.msra.mxu0 %v1575
      %1579 = vmatprep.subr.bf16.mxu0 0
      %1580 = vmatpush1.bf16.xpose.msra.mxu0 0
      %1581 = vmatprep.subr.bf16.mxu0 0
      %1582 = vmatpush1.bf16.xpose.msra.mxu0 0
      %1583 = vmatprep.subr.bf16.mxu0 0
      %1584 = vmatpush1.bf16.xpose.msra.mxu0 0
      %1585 = vmatprep.subr.bf16.mxu0 0
      %1586 = vmatpush1.bf16.xpose.msra.mxu0 0
      %1587 = vmatprep.subr.bf16.mxu0 0
      %1588 = vmatpush1.bf16.xpose.msra.mxu0 0
      %1589 = vmatprep.subr.bf16.mxu0 0
      %1590 = vmatpush1.bf16.xpose.msra.mxu0 0
      %1591 = vmatprep.subr.bf16.mxu0 0
      %1592 = vmatpush1.bf16.xpose.msra.mxu0 0
      %1593 = vmatprep.subr.bf16.mxu0 0
      %1594 = vmatpush1.bf16.xpose.msra.mxu0 0
      %1595 = vmatprep.subr.bf16.mxu0 0
      %1596 = vmatpush1.bf16.xpose.msra.mxu0 0
      %1597 = vmatprep.subr.bf16.mxu0 0
      %1598 = vmatpush1.bf16.xpose.msra.mxu0 0
      %1599 = vmatprep.subr.bf16.mxu0 0
      %1600 = vmatpush1.bf16.xpose.msra.mxu0 0
      %1601 = vmatprep.subr.bf16.mxu0 0
      %1602 = vmatpush1.bf16.xpose.msra.mxu0 0
      %1603 = vmatprep.subr.bf16.mxu0 0
      %1604 = vmatpush1.bf16.xpose.msra.mxu0 0
      %1605 = vmatprep.subr.bf16.mxu0 0
      %1606 = vmatpush1.bf16.xpose.msra.mxu0 0
      %1607 = vmatprep.subr.bf16.mxu0 0
      %1608 = vmatpush1.bf16.xpose.msra.mxu0 0
      %1609 = vmatprep.mubr.bf16.mxu0 0
      %1610 = vmatmul.mubr.bf16.gmra.mrb[0].mxu0 %v1572
      %v1611 = vpop.f32.mrb[0].mxu0
      %v1612 = vadd.f32 0.0, %v1611
      %v1613 = vpop.f32.mrb[0].mxu0
      %v1614 = vpop.f32.mrb[0].mxu0
      %v1615 = vpop.f32.mrb[0].mxu0
      %1616 = vdwg.mxu0
      %v1618 = vsel %vm1294, %v835, 0
      %v1621 = vsel %vm1294, %v1060, 0
      %1623 = vmatprep.subr.bf16.mxu0 0
      %1624 = vmatpush1.bf16.xpose.msra.mxu0 %v1621
      %1625 = vmatprep.subr.bf16.mxu0 0
      %1626 = vmatpush1.bf16.xpose.msra.mxu0 0
      %1627 = vmatprep.subr.bf16.mxu0 0
      %1628 = vmatpush1.bf16.xpose.msra.mxu0 0
      %1629 = vmatprep.subr.bf16.mxu0 0
      %1630 = vmatpush1.bf16.xpose.msra.mxu0 0
      %1631 = vmatprep.subr.bf16.mxu0 0
      %1632 = vmatpush1.bf16.xpose.msra.mxu0 0
      %1633 = vmatprep.subr.bf16.mxu0 0
      %1634 = vmatpush1.bf16.xpose.msra.mxu0 0
      %1635 = vmatprep.subr.bf16.mxu0 0
      %1636 = vmatpush1.bf16.xpose.msra.mxu0 0
      %1637 = vmatprep.subr.bf16.mxu0 0
      %1638 = vmatpush1.bf16.xpose.msra.mxu0 0
      %1639 = vmatprep.subr.bf16.mxu0 0
      %1640 = vmatpush1.bf16.xpose.msra.mxu0 0
      %1641 = vmatprep.subr.bf16.mxu0 0
      %1642 = vmatpush1.bf16.xpose.msra.mxu0 0
      %1643 = vmatprep.subr.bf16.mxu0 0
      %1644 = vmatpush1.bf16.xpose.msra.mxu0 0
      %1645 = vmatprep.subr.bf16.mxu0 0
      %1646 = vmatpush1.bf16.xpose.msra.mxu0 0
      %1647 = vmatprep.subr.bf16.mxu0 0
      %1648 = vmatpush1.bf16.xpose.msra.mxu0 0
      %1649 = vmatprep.subr.bf16.mxu0 0
      %1650 = vmatpush1.bf16.xpose.msra.mxu0 0
      %1651 = vmatprep.subr.bf16.mxu0 0
      %1652 = vmatpush1.bf16.xpose.msra.mxu0 0
      %1653 = vmatprep.subr.bf16.mxu0 0
      %1654 = vmatpush1.bf16.xpose.msra.mxu0 0
      %1655 = vmatprep.mubr.bf16.mxu0 0
      %1656 = vmatmul.mubr.bf16.gmra.mrb[0].mxu0 %v1618
      %v1657 = vpop.f32.mrb[0].mxu0
      %v1658 = vadd.f32 0.0, %v1657
      %v1659 = vpop.f32.mrb[0].mxu0
      %v1660 = vpop.f32.mrb[0].mxu0
      %v1661 = vpop.f32.mrb[0].mxu0
      %1662 = vdwg.mxu0
      %v1664 = vsel %vm1294, %v836, 0
      %v1667 = vsel %vm1294, %v1061, 0
      %1669 = vmatprep.subr.bf16.mxu0 0
      %1670 = vmatpush1.bf16.xpose.msra.mxu0 %v1667
      %1671 = vmatprep.subr.bf16.mxu0 0
      %1672 = vmatpush1.bf16.xpose.msra.mxu0 0
      %1673 = vmatprep.subr.bf16.mxu0 0
      %1674 = vmatpush1.bf16.xpose.msra.mxu0 0
      %1675 = vmatprep.subr.bf16.mxu0 0
      %1676 = vmatpush1.bf16.xpose.msra.mxu0 0
      %1677 = vmatprep.subr.bf16.mxu0 0
      %1678 = vmatpush1.bf16.xpose.msra.mxu0 0
      %1679 = vmatprep.subr.bf16.mxu0 0
      %1680 = vmatpush1.bf16.xpose.msra.mxu0 0
      %1681 = vmatprep.subr.bf16.mxu0 0
      %1682 = vmatpush1.bf16.xpose.msra.mxu0 0
      %1683 = vmatprep.subr.bf16.mxu0 0
      %1684 = vmatpush1.bf16.xpose.msra.mxu0 0
      %1685 = vmatprep.subr.bf16.mxu0 0
      %1686 = vmatpush1.bf16.xpose.msra.mxu0 0
      %1687 = vmatprep.subr.bf16.mxu0 0
      %1688 = vmatpush1.bf16.xpose.msra.mxu0 0
      %1689 = vmatprep.subr.bf16.mxu0 0
      %1690 = vmatpush1.bf16.xpose.msra.mxu0 0
      %1691 = vmatprep.subr.bf16.mxu0 0
      %1692 = vmatpush1.bf16.xpose.msra.mxu0 0
      %1693 = vmatprep.subr.bf16.mxu0 0
      %1694 = vmatpush1.bf16.xpose.msra.mxu0 0
      %1695 = vmatprep.subr.bf16.mxu0 0
      %1696 = vmatpush1.bf16.xpose.msra.mxu0 0
      %1697 = vmatprep.subr.bf16.mxu0 0
      %1698 = vmatpush1.bf16.xpose.msra.mxu0 0
      %1699 = vmatprep.subr.bf16.mxu0 0
      %1700 = vmatpush1.bf16.xpose.msra.mxu0 0
      %1701 = vmatprep.mubr.bf16.mxu0 0
      %1702 = vmatmul.mubr.bf16.gmra.mrb[0].mxu0 %v1664
      %v1703 = vpop.f32.mrb[0].mxu0
      %v1704 = vadd.f32 0.0, %v1703
      %v1705 = vpop.f32.mrb[0].mxu0
      %v1706 = vpop.f32.mrb[0].mxu0
      %v1707 = vpop.f32.mrb[0].mxu0
      %1708 = vdwg.mxu0
      %v1710 = vsel %vm1294, %v837, 0
      %v1713 = vsel %vm1294, %v1062, 0
      %1715 = vmatprep.subr.bf16.mxu0 0
      %1716 = vmatpush1.bf16.xpose.msra.mxu0 %v1713
      %1717 = vmatprep.subr.bf16.mxu0 0
      %1718 = vmatpush1.bf16.xpose.msra.mxu0 0
      %1719 = vmatprep.subr.bf16.mxu0 0
      %1720 = vmatpush1.bf16.xpose.msra.mxu0 0
      %1721 = vmatprep.subr.bf16.mxu0 0
      %1722 = vmatpush1.bf16.xpose.msra.mxu0 0
      %1723 = vmatprep.subr.bf16.mxu0 0
      %1724 = vmatpush1.bf16.xpose.msra.mxu0 0
      %1725 = vmatprep.subr.bf16.mxu0 0
      %1726 = vmatpush1.bf16.xpose.msra.mxu0 0
      %1727 = vmatprep.subr.bf16.mxu0 0
      %1728 = vmatpush1.bf16.xpose.msra.mxu0 0
      %1729 = vmatprep.subr.bf16.mxu0 0
      %1730 = vmatpush1.bf16.xpose.msra.mxu0 0
      %1731 = vmatprep.subr.bf16.mxu0 0
      %1732 = vmatpush1.bf16.xpose.msra.mxu0 0
      %1733 = vmatprep.subr.bf16.mxu0 0
      %1734 = vmatpush1.bf16.xpose.msra.mxu0 0
      %1735 = vmatprep.subr.bf16.mxu0 0
      %1736 = vmatpush1.bf16.xpose.msra.mxu0 0
      %1737 = vmatprep.subr.bf16.mxu0 0
      %1738 = vmatpush1.bf16.xpose.msra.mxu0 0
      %1739 = vmatprep.subr.bf16.mxu0 0
      %1740 = vmatpush1.bf16.xpose.msra.mxu0 0
      %1741 = vmatprep.subr.bf16.mxu0 0
      %1742 = vmatpush1.bf16.xpose.msra.mxu0 0
      %1743 = vmatprep.subr.bf16.mxu0 0
      %1744 = vmatpush1.bf16.xpose.msra.mxu0 0
      %1745 = vmatprep.subr.bf16.mxu0 0
      %1746 = vmatpush1.bf16.xpose.msra.mxu0 0
      %1747 = vmatprep.mubr.bf16.mxu0 0
      %1748 = vmatmul.mubr.bf16.gmra.mrb[0].mxu0 %v1710
      %v1749 = vpop.f32.mrb[0].mxu0
      %v1750 = vadd.f32 0.0, %v1749
      %v1751 = vpop.f32.mrb[0].mxu0
      %v1752 = vpop.f32.mrb[0].mxu0
      %v1753 = vpop.f32.mrb[0].mxu0
      %1754 = vdwg.mxu0
      %v1756 = vsel %vm1294, %v838, 0
      %v1759 = vsel %vm1294, %v1063, 0
      %1761 = vmatprep.subr.bf16.mxu0 0
      %1762 = vmatpush1.bf16.xpose.msra.mxu0 %v1759
      %1763 = vmatprep.subr.bf16.mxu0 0
      %1764 = vmatpush1.bf16.xpose.msra.mxu0 0
      %1765 = vmatprep.subr.bf16.mxu0 0
      %1766 = vmatpush1.bf16.xpose.msra.mxu0 0
      %1767 = vmatprep.subr.bf16.mxu0 0
      %1768 = vmatpush1.bf16.xpose.msra.mxu0 0
      %1769 = vmatprep.subr.bf16.mxu0 0
      %1770 = vmatpush1.bf16.xpose.msra.mxu0 0
      %1771 = vmatprep.subr.bf16.mxu0 0
      %1772 = vmatpush1.bf16.xpose.msra.mxu0 0
      %1773 = vmatprep.subr.bf16.mxu0 0
      %1774 = vmatpush1.bf16.xpose.msra.mxu0 0
      %1775 = vmatprep.subr.bf16.mxu0 0
      %1776 = vmatpush1.bf16.xpose.msra.mxu0 0
      %1777 = vmatprep.subr.bf16.mxu0 0
      %1778 = vmatpush1.bf16.xpose.msra.mxu0 0
      %1779 = vmatprep.subr.bf16.mxu0 0
      %1780 = vmatpush1.bf16.xpose.msra.mxu0 0
      %1781 = vmatprep.subr.bf16.mxu0 0
      %1782 = vmatpush1.bf16.xpose.msra.mxu0 0
      %1783 = vmatprep.subr.bf16.mxu0 0
      %1784 = vmatpush1.bf16.xpose.msra.mxu0 0
      %1785 = vmatprep.subr.bf16.mxu0 0
      %1786 = vmatpush1.bf16.xpose.msra.mxu0 0
      %1787 = vmatprep.subr.bf16.mxu0 0
      %1788 = vmatpush1.bf16.xpose.msra.mxu0 0
      %1789 = vmatprep.subr.bf16.mxu0 0
      %1790 = vmatpush1.bf16.xpose.msra.mxu0 0
      %1791 = vmatprep.subr.bf16.mxu0 0
      %1792 = vmatpush1.bf16.xpose.msra.mxu0 0
      %1793 = vmatprep.mubr.bf16.mxu0 0
      %1794 = vmatmul.mubr.bf16.gmra.mrb[0].mxu0 %v1756
      %v1795 = vpop.f32.mrb[0].mxu0
      %v1796 = vadd.f32 0.0, %v1795
      %v1797 = vpop.f32.mrb[0].mxu0
      %v1798 = vpop.f32.mrb[0].mxu0
      %v1799 = vpop.f32.mrb[0].mxu0
      %1800 = vdwg.mxu0
      %v1802 = vsel %vm1294, %v839, 0
      %v1805 = vsel %vm1294, %v1064, 0
      %1807 = vmatprep.subr.bf16.mxu0 0
      %1808 = vmatpush1.bf16.xpose.msra.mxu0 %v1805
      %1809 = vmatprep.subr.bf16.mxu0 0
      %1810 = vmatpush1.bf16.xpose.msra.mxu0 0
      %1811 = vmatprep.subr.bf16.mxu0 0
      %1812 = vmatpush1.bf16.xpose.msra.mxu0 0
      %1813 = vmatprep.subr.bf16.mxu0 0
      %1814 = vmatpush1.bf16.xpose.msra.mxu0 0
      %1815 = vmatprep.subr.bf16.mxu0 0
      %1816 = vmatpush1.bf16.xpose.msra.mxu0 0
      %1817 = vmatprep.subr.bf16.mxu0 0
      %1818 = vmatpush1.bf16.xpose.msra.mxu0 0
      %1819 = vmatprep.subr.bf16.mxu0 0
      %1820 = vmatpush1.bf16.xpose.msra.mxu0 0
      %1821 = vmatprep.subr.bf16.mxu0 0
      %1822 = vmatpush1.bf16.xpose.msra.mxu0 0
      %1823 = vmatprep.subr.bf16.mxu0 0
      %1824 = vmatpush1.bf16.xpose.msra.mxu0 0
      %1825 = vmatprep.subr.bf16.mxu0 0
      %1826 = vmatpush1.bf16.xpose.msra.mxu0 0
      %1827 = vmatprep.subr.bf16.mxu0 0
      %1828 = vmatpush1.bf16.xpose.msra.mxu0 0
      %1829 = vmatprep.subr.bf16.mxu0 0
      %1830 = vmatpush1.bf16.xpose.msra.mxu0 0
      %1831 = vmatprep.subr.bf16.mxu0 0
      %1832 = vmatpush1.bf16.xpose.msra.mxu0 0
      %1833 = vmatprep.subr.bf16.mxu0 0
      %1834 = vmatpush1.bf16.xpose.msra.mxu0 0
      %1835 = vmatprep.subr.bf16.mxu0 0
      %1836 = vmatpush1.bf16.xpose.msra.mxu0 0
      %1837 = vmatprep.subr.bf16.mxu0 0
      %1838 = vmatpush1.bf16.xpose.msra.mxu0 0
      %1839 = vmatprep.mubr.bf16.mxu0 0
      %1840 = vmatmul.mubr.bf16.gmra.mrb[0].mxu0 %v1802
      %v1841 = vpop.f32.mrb[0].mxu0
      %v1842 = vadd.f32 0.0, %v1841
      %v1843 = vpop.f32.mrb[0].mxu0
      %v1844 = vpop.f32.mrb[0].mxu0
      %v1845 = vpop.f32.mrb[0].mxu0
      %1846 = vdwg.mxu0
      %v1848 = vsel %vm1294, %v840, 0
      %v1851 = vsel %vm1294, %v1065, 0
      %1853 = vmatprep.subr.bf16.mxu0 0
      %1854 = vmatpush1.bf16.xpose.msra.mxu0 %v1851
      %1855 = vmatprep.subr.bf16.mxu0 0
      %1856 = vmatpush1.bf16.xpose.msra.mxu0 0
      %1857 = vmatprep.subr.bf16.mxu0 0
      %1858 = vmatpush1.bf16.xpose.msra.mxu0 0
      %1859 = vmatprep.subr.bf16.mxu0 0
      %1860 = vmatpush1.bf16.xpose.msra.mxu0 0
      %1861 = vmatprep.subr.bf16.mxu0 0
      %1862 = vmatpush1.bf16.xpose.msra.mxu0 0
      %1863 = vmatprep.subr.bf16.mxu0 0
      %1864 = vmatpush1.bf16.xpose.msra.mxu0 0
      %1865 = vmatprep.subr.bf16.mxu0 0
      %1866 = vmatpush1.bf16.xpose.msra.mxu0 0
      %1867 = vmatprep.subr.bf16.mxu0 0
      %1868 = vmatpush1.bf16.xpose.msra.mxu0 0
      %1869 = vmatprep.subr.bf16.mxu0 0
      %1870 = vmatpush1.bf16.xpose.msra.mxu0 0
      %1871 = vmatprep.subr.bf16.mxu0 0
      %1872 = vmatpush1.bf16.xpose.msra.mxu0 0
      %1873 = vmatprep.subr.bf16.mxu0 0
      %1874 = vmatpush1.bf16.xpose.msra.mxu0 0
      %1875 = vmatprep.subr.bf16.mxu0 0
      %1876 = vmatpush1.bf16.xpose.msra.mxu0 0
      %1877 = vmatprep.subr.bf16.mxu0 0
      %1878 = vmatpush1.bf16.xpose.msra.mxu0 0
      %1879 = vmatprep.subr.bf16.mxu0 0
      %1880 = vmatpush1.bf16.xpose.msra.mxu0 0
      %1881 = vmatprep.subr.bf16.mxu0 0
      %1882 = vmatpush1.bf16.xpose.msra.mxu0 0
      %1883 = vmatprep.subr.bf16.mxu0 0
      %1884 = vmatpush1.bf16.xpose.msra.mxu0 0
      %1885 = vmatprep.mubr.bf16.mxu0 0
      %1886 = vmatmul.mubr.bf16.gmra.mrb[0].mxu0 %v1848
      %v1887 = vpop.f32.mrb[0].mxu0
      %v1888 = vadd.f32 0.0, %v1887
      %v1889 = vpop.f32.mrb[0].mxu0
      %v1890 = vpop.f32.mrb[0].mxu0
      %v1891 = vpop.f32.mrb[0].mxu0
      %1892 = vdwg.mxu0
      %v1894 = vsel %vm1294, %v841, 0
      %v1897 = vsel %vm1294, %v1066, 0
      %1899 = vmatprep.subr.bf16.mxu0 0
      %1900 = vmatpush1.bf16.xpose.msra.mxu0 %v1897
      %1901 = vmatprep.subr.bf16.mxu0 0
      %1902 = vmatpush1.bf16.xpose.msra.mxu0 0
      %1903 = vmatprep.subr.bf16.mxu0 0
      %1904 = vmatpush1.bf16.xpose.msra.mxu0 0
      %1905 = vmatprep.subr.bf16.mxu0 0
      %1906 = vmatpush1.bf16.xpose.msra.mxu0 0
      %1907 = vmatprep.subr.bf16.mxu0 0
      %1908 = vmatpush1.bf16.xpose.msra.mxu0 0
      %1909 = vmatprep.subr.bf16.mxu0 0
      %1910 = vmatpush1.bf16.xpose.msra.mxu0 0
      %1911 = vmatprep.subr.bf16.mxu0 0
      %1912 = vmatpush1.bf16.xpose.msra.mxu0 0
      %1913 = vmatprep.subr.bf16.mxu0 0
      %1914 = vmatpush1.bf16.xpose.msra.mxu0 0
      %1915 = vmatprep.subr.bf16.mxu0 0
      %1916 = vmatpush1.bf16.xpose.msra.mxu0 0
      %1917 = vmatprep.subr.bf16.mxu0 0
      %1918 = vmatpush1.bf16.xpose.msra.mxu0 0
      %1919 = vmatprep.subr.bf16.mxu0 0
      %1920 = vmatpush1.bf16.xpose.msra.mxu0 0
      %1921 = vmatprep.subr.bf16.mxu0 0
      %1922 = vmatpush1.bf16.xpose.msra.mxu0 0
      %1923 = vmatprep.subr.bf16.mxu0 0
      %1924 = vmatpush1.bf16.xpose.msra.mxu0 0
      %1925 = vmatprep.subr.bf16.mxu0 0
      %1926 = vmatpush1.bf16.xpose.msra.mxu0 0
      %1927 = vmatprep.subr.bf16.mxu0 0
      %1928 = vmatpush1.bf16.xpose.msra.mxu0 0
      %1929 = vmatprep.subr.bf16.mxu0 0
      %1930 = vmatpush1.bf16.xpose.msra.mxu0 0
      %1931 = vmatprep.mubr.bf16.mxu0 0
      %1932 = vmatmul.mubr.bf16.gmra.mrb[0].mxu0 %v1894
      %v1933 = vpop.f32.mrb[0].mxu0
      %v1934 = vadd.f32 0.0, %v1933
      %v1935 = vpop.f32.mrb[0].mxu0
      %v1936 = vpop.f32.mrb[0].mxu0
      %v1937 = vpop.f32.mrb[0].mxu0
      %1938 = vdwg.mxu0
      %v1940 = vsel %vm1294, %v842, 0
      %v1943 = vsel %vm1294, %v1067, 0
      %1945 = vmatprep.subr.bf16.mxu0 0
      %1946 = vmatpush1.bf16.xpose.msra.mxu0 %v1943
      %1947 = vmatprep.subr.bf16.mxu0 0
      %1948 = vmatpush1.bf16.xpose.msra.mxu0 0
      %1949 = vmatprep.subr.bf16.mxu0 0
      %1950 = vmatpush1.bf16.xpose.msra.mxu0 0
      %1951 = vmatprep.subr.bf16.mxu0 0
      %1952 = vmatpush1.bf16.xpose.msra.mxu0 0
      %1953 = vmatprep.subr.bf16.mxu0 0
      %1954 = vmatpush1.bf16.xpose.msra.mxu0 0
      %1955 = vmatprep.subr.bf16.mxu0 0
      %1956 = vmatpush1.bf16.xpose.msra.mxu0 0
      %1957 = vmatprep.subr.bf16.mxu0 0
      %1958 = vmatpush1.bf16.xpose.msra.mxu0 0
      %1959 = vmatprep.subr.bf16.mxu0 0
      %1960 = vmatpush1.bf16.xpose.msra.mxu0 0
      %1961 = vmatprep.subr.bf16.mxu0 0
      %1962 = vmatpush1.bf16.xpose.msra.mxu0 0
      %1963 = vmatprep.subr.bf16.mxu0 0
      %1964 = vmatpush1.bf16.xpose.msra.mxu0 0
      %1965 = vmatprep.subr.bf16.mxu0 0
      %1966 = vmatpush1.bf16.xpose.msra.mxu0 0
      %1967 = vmatprep.subr.bf16.mxu0 0
      %1968 = vmatpush1.bf16.xpose.msra.mxu0 0
      %1969 = vmatprep.subr.bf16.mxu0 0
      %1970 = vmatpush1.bf16.xpose.msra.mxu0 0
      %1971 = vmatprep.subr.bf16.mxu0 0
      %1972 = vmatpush1.bf16.xpose.msra.mxu0 0
      %1973 = vmatprep.subr.bf16.mxu0 0
      %1974 = vmatpush1.bf16.xpose.msra.mxu0 0
      %1975 = vmatprep.subr.bf16.mxu0 0
      %1976 = vmatpush1.bf16.xpose.msra.mxu0 0
      %1977 = vmatprep.mubr.bf16.mxu0 0
      %1978 = vmatmul.mubr.bf16.gmra.mrb[0].mxu0 %v1940
      %v1979 = vpop.f32.mrb[0].mxu0
      %v1980 = vadd.f32 0.0, %v1979
      %v1981 = vpop.f32.mrb[0].mxu0
      %v1982 = vpop.f32.mrb[0].mxu0
      %v1983 = vpop.f32.mrb[0].mxu0
      %1984 = vdwg.mxu0
      %v1986 = vsel %vm1294, %v843, 0
      %v1989 = vsel %vm1294, %v1068, 0
      %1991 = vmatprep.subr.bf16.mxu0 0
      %1992 = vmatpush1.bf16.xpose.msra.mxu0 %v1989
      %1993 = vmatprep.subr.bf16.mxu0 0
      %1994 = vmatpush1.bf16.xpose.msra.mxu0 0
      %1995 = vmatprep.subr.bf16.mxu0 0
      %1996 = vmatpush1.bf16.xpose.msra.mxu0 0
      %1997 = vmatprep.subr.bf16.mxu0 0
      %1998 = vmatpush1.bf16.xpose.msra.mxu0 0
      %1999 = vmatprep.subr.bf16.mxu0 0
      %2000 = vmatpush1.bf16.xpose.msra.mxu0 0
      %2001 = vmatprep.subr.bf16.mxu0 0
      %2002 = vmatpush1.bf16.xpose.msra.mxu0 0
      %2003 = vmatprep.subr.bf16.mxu0 0
      %2004 = vmatpush1.bf16.xpose.msra.mxu0 0
      %2005 = vmatprep.subr.bf16.mxu0 0
      %2006 = vmatpush1.bf16.xpose.msra.mxu0 0
      %2007 = vmatprep.subr.bf16.mxu0 0
      %2008 = vmatpush1.bf16.xpose.msra.mxu0 0
      %2009 = vmatprep.subr.bf16.mxu0 0
      %2010 = vmatpush1.bf16.xpose.msra.mxu0 0
      %2011 = vmatprep.subr.bf16.mxu0 0
      %2012 = vmatpush1.bf16.xpose.msra.mxu0 0
      %2013 = vmatprep.subr.bf16.mxu0 0
      %2014 = vmatpush1.bf16.xpose.msra.mxu0 0
      %2015 = vmatprep.subr.bf16.mxu0 0
      %2016 = vmatpush1.bf16.xpose.msra.mxu0 0
      %2017 = vmatprep.subr.bf16.mxu0 0
      %2018 = vmatpush1.bf16.xpose.msra.mxu0 0
      %2019 = vmatprep.subr.bf16.mxu0 0
      %2020 = vmatpush1.bf16.xpose.msra.mxu0 0
      %2021 = vmatprep.subr.bf16.mxu0 0
      %2022 = vmatpush1.bf16.xpose.msra.mxu0 0
      %2023 = vmatprep.mubr.bf16.mxu0 0
      %2024 = vmatmul.mubr.bf16.gmra.mrb[0].mxu0 %v1986
      %v2025 = vpop.f32.mrb[0].mxu0
      %v2026 = vadd.f32 0.0, %v2025
      %v2027 = vpop.f32.mrb[0].mxu0
      %v2028 = vpop.f32.mrb[0].mxu0
      %v2029 = vpop.f32.mrb[0].mxu0
      %2030 = vdwg.mxu0
      %v2031 = vsel %vm1294, %v1336, -inf
      %2032 = vmax.xlane.f32.xlu0 %v2031
      %v2033 = vpop.xlane.xlu0 %2032
      %v2034 = vsel %vm1294, %v1382, -inf
      %2035 = vmax.xlane.f32.xlu0 %v2034
      %v2036 = vpop.xlane.xlu0 %2035
      %v2037 = vsel %vm1294, %v1428, -inf
      %2038 = vmax.xlane.f32.xlu0 %v2037
      %v2039 = vpop.xlane.xlu0 %2038
      %v2040 = vsel %vm1294, %v1474, -inf
      %2041 = vmax.xlane.f32.xlu0 %v2040
      %v2042 = vpop.xlane.xlu0 %2041
      %v2043 = vsel %vm1294, %v1520, -inf
      %2044 = vmax.xlane.f32.xlu0 %v2043
      %v2045 = vpop.xlane.xlu0 %2044
      %v2046 = vsel %vm1294, %v1566, -inf
      %2047 = vmax.xlane.f32.xlu0 %v2046
      %v2048 = vpop.xlane.xlu0 %2047
      %v2049 = vsel %vm1294, %v1612, -inf
      %2050 = vmax.xlane.f32.xlu0 %v2049
      %v2051 = vpop.xlane.xlu0 %2050
      %v2052 = vsel %vm1294, %v1658, -inf
      %2053 = vmax.xlane.f32.xlu0 %v2052
      %v2054 = vpop.xlane.xlu0 %2053
      %v2055 = vsel %vm1294, %v1704, -inf
      %2056 = vmax.xlane.f32.xlu0 %v2055
      %v2057 = vpop.xlane.xlu0 %2056
      %v2058 = vsel %vm1294, %v1750, -inf
      %2059 = vmax.xlane.f32.xlu0 %v2058
      %v2060 = vpop.xlane.xlu0 %2059
      %v2061 = vsel %vm1294, %v1796, -inf
      %2062 = vmax.xlane.f32.xlu0 %v2061
      %v2063 = vpop.xlane.xlu0 %2062
      %v2064 = vsel %vm1294, %v1842, -inf
      %2065 = vmax.xlane.f32.xlu0 %v2064
      %v2066 = vpop.xlane.xlu0 %2065
      %v2067 = vsel %vm1294, %v1888, -inf
      %2068 = vmax.xlane.f32.xlu0 %v2067
      %v2069 = vpop.xlane.xlu0 %2068
      %v2070 = vsel %vm1294, %v1934, -inf
      %2071 = vmax.xlane.f32.xlu0 %v2070
      %v2072 = vpop.xlane.xlu0 %2071
      %v2073 = vsel %vm1294, %v1980, -inf
      %2074 = vmax.xlane.f32.xlu0 %v2073
      %v2075 = vpop.xlane.xlu0 %2074
      %v2076 = vsel %vm1294, %v2026, -inf
      %2077 = vmax.xlane.f32.xlu0 %v2076
      %v2078 = vpop.xlane.xlu0 %2077
      %v2079 = vsub.f32 %v1336, %v2033
      %v2080 = vsub.f32 %v1382, %v2036
      %v2081 = vsub.f32 %v1428, %v2039
      %v2082 = vsub.f32 %v1474, %v2042
      %v2083 = vsub.f32 %v1520, %v2045
      %v2084 = vsub.f32 %v1566, %v2048
      %v2085 = vsub.f32 %v1612, %v2051
      %v2086 = vsub.f32 %v1658, %v2054
      %v2087 = vsub.f32 %v1704, %v2057
      %v2088 = vsub.f32 %v1750, %v2060
      %v2089 = vsub.f32 %v1796, %v2063
      %v2090 = vsub.f32 %v1842, %v2066
      %v2091 = vsub.f32 %v1888, %v2069
      %v2092 = vsub.f32 %v1934, %v2072
      %v2093 = vsub.f32 %v1980, %v2075
      %v2094 = vsub.f32 %v2026, %v2078
      %v2095 = vmul.f32 %v2079, 1.442695
      %v2096 = vpow.pop %v2095
      %v2097 = vmul.f32 %v2080, 1.442695
      %v2098 = vpow.pop %v2097
      %v2099 = vmul.f32 %v2081, 1.442695
      %v2100 = vpow.pop %v2099
      %v2101 = vmul.f32 %v2082, 1.442695
      %v2102 = vpow.pop %v2101
      %v2103 = vmul.f32 %v2083, 1.442695
      %v2104 = vpow.pop %v2103
      %v2105 = vmul.f32 %v2084, 1.442695
      %v2106 = vpow.pop %v2105
      %v2107 = vmul.f32 %v2085, 1.442695
      %v2108 = vpow.pop %v2107
      %v2109 = vmul.f32 %v2086, 1.442695
      %v2110 = vpow.pop %v2109
      %v2111 = vmul.f32 %v2087, 1.442695
      %v2112 = vpow.pop %v2111
      %v2113 = vmul.f32 %v2088, 1.442695
      %v2114 = vpow.pop %v2113
      %v2115 = vmul.f32 %v2089, 1.442695
      %v2116 = vpow.pop %v2115
      %v2117 = vmul.f32 %v2090, 1.442695
      %v2118 = vpow.pop %v2117
      %v2119 = vmul.f32 %v2091, 1.442695
      %v2120 = vpow.pop %v2119
      %v2121 = vmul.f32 %v2092, 1.442695
      %v2122 = vpow.pop %v2121
      %v2123 = vmul.f32 %v2093, 1.442695
      %v2124 = vpow.pop %v2123
      %v2125 = vmul.f32 %v2094, 1.442695
      %v2126 = vpow.pop %v2125
      %v2127 = vsel %vm1294, %v2096, 0.0
      %2128 = vadd.xlane.f32.xlu0 %v2127
      %v2129 = vpop.xlane.xlu0 %2128
      %v2130 = vsel %vm1294, %v2098, 0.0
      %2131 = vadd.xlane.f32.xlu0 %v2130
      %v2132 = vpop.xlane.xlu0 %2131
      %v2133 = vsel %vm1294, %v2100, 0.0
      %2134 = vadd.xlane.f32.xlu0 %v2133
      %v2135 = vpop.xlane.xlu0 %2134
      %v2136 = vsel %vm1294, %v2102, 0.0
      %2137 = vadd.xlane.f32.xlu0 %v2136
      %v2138 = vpop.xlane.xlu0 %2137
      %v2139 = vsel %vm1294, %v2104, 0.0
      %2140 = vadd.xlane.f32.xlu0 %v2139
      %v2141 = vpop.xlane.xlu0 %2140
      %v2142 = vsel %vm1294, %v2106, 0.0
      %2143 = vadd.xlane.f32.xlu0 %v2142
      %v2144 = vpop.xlane.xlu0 %2143
      %v2145 = vsel %vm1294, %v2108, 0.0
      %2146 = vadd.xlane.f32.xlu0 %v2145
      %v2147 = vpop.xlane.xlu0 %2146
      %v2148 = vsel %vm1294, %v2110, 0.0
      %2149 = vadd.xlane.f32.xlu0 %v2148
      %v2150 = vpop.xlane.xlu0 %2149
      %v2151 = vsel %vm1294, %v2112, 0.0
      %2152 = vadd.xlane.f32.xlu0 %v2151
      %v2153 = vpop.xlane.xlu0 %2152
      %v2154 = vsel %vm1294, %v2114, 0.0
      %2155 = vadd.xlane.f32.xlu0 %v2154
      %v2156 = vpop.xlane.xlu0 %2155
      %v2157 = vsel %vm1294, %v2116, 0.0
      %2158 = vadd.xlane.f32.xlu0 %v2157
      %v2159 = vpop.xlane.xlu0 %2158
      %v2160 = vsel %vm1294, %v2118, 0.0
      %2161 = vadd.xlane.f32.xlu0 %v2160
      %v2162 = vpop.xlane.xlu0 %2161
      %v2163 = vsel %vm1294, %v2120, 0.0
      %2164 = vadd.xlane.f32.xlu0 %v2163
      %v2165 = vpop.xlane.xlu0 %2164
      %v2166 = vsel %vm1294, %v2122, 0.0
      %2167 = vadd.xlane.f32.xlu0 %v2166
      %v2168 = vpop.xlane.xlu0 %2167
      %v2169 = vsel %vm1294, %v2124, 0.0
      %2170 = vadd.xlane.f32.xlu0 %v2169
      %v2171 = vpop.xlane.xlu0 %2170
      %v2172 = vsel %vm1294, %v2126, 0.0
      %2173 = vadd.xlane.f32.xlu0 %v2172
      %v2174 = vpop.xlane.xlu0 %2173
      %v2175 = vrcp.pop %v2129
      %v2176 = vrcp.pop %v2132
      %v2177 = vrcp.pop %v2135
      %v2178 = vrcp.pop %v2138
      %v2179 = vrcp.pop %v2141
      %v2180 = vrcp.pop %v2144
      %v2181 = vrcp.pop %v2147
      %v2182 = vrcp.pop %v2150
      %v2183 = vrcp.pop %v2153
      %v2184 = vrcp.pop %v2156
      %v2185 = vrcp.pop %v2159
      %v2186 = vrcp.pop %v2162
      %v2187 = vrcp.pop %v2165
      %v2188 = vrcp.pop %v2168
      %v2189 = vrcp.pop %v2171
      %v2190 = vrcp.pop %v2174
      %v2191 = vmul.f32 %v2096, %v2175
      %v2192 = vmul.f32 %v2098, %v2176
      %v2193 = vmul.f32 %v2100, %v2177
      %v2194 = vmul.f32 %v2102, %v2178
      %v2195 = vmul.f32 %v2104, %v2179
      %v2196 = vmul.f32 %v2106, %v2180
      %v2197 = vmul.f32 %v2108, %v2181
      %v2198 = vmul.f32 %v2110, %v2182
      %v2199 = vmul.f32 %v2112, %v2183
      %v2200 = vmul.f32 %v2114, %v2184
      %v2201 = vmul.f32 %v2116, %v2185
      %v2202 = vmul.f32 %v2118, %v2186
      %v2203 = vmul.f32 %v2120, %v2187
      %v2204 = vmul.f32 %v2122, %v2188
      %v2205 = vmul.f32 %v2124, %v2189
      %v2206 = vmul.f32 %v2126, %v2190
      %v2207 = vpack.c.bf16 %v2191, %v2191
      %v2208 = vpack.c.bf16 %v2192, %v2192
      %v2209 = vpack.c.bf16 %v2193, %v2193
      %v2210 = vpack.c.bf16 %v2194, %v2194
      %v2211 = vpack.c.bf16 %v2195, %v2195
      %v2212 = vpack.c.bf16 %v2196, %v2196
      %v2213 = vpack.c.bf16 %v2197, %v2197
      %v2214 = vpack.c.bf16 %v2198, %v2198
      %v2215 = vpack.c.bf16 %v2199, %v2199
      %v2216 = vpack.c.bf16 %v2200, %v2200
      %v2217 = vpack.c.bf16 %v2201, %v2201
      %v2218 = vpack.c.bf16 %v2202, %v2202
      %v2219 = vpack.c.bf16 %v2203, %v2203
      %v2220 = vpack.c.bf16 %v2204, %v2204
      %v2221 = vpack.c.bf16 %v2205, %v2205
      %v2222 = vpack.c.bf16 %v2206, %v2206
      %v2224 = vsel %vm1294, %v2207, 0
      %vm2226 = vcmask 1043456
      %v2228 = vsel %vm2226, %v1278, 0
      %2230 = vmatprep.subr.bf16.mxu0 0
      %2231 = vmatpush1.bf16.msra.mxu0 %v2228
      %2232 = vmatprep.subr.bf16.mxu0 0
      %2233 = vmatpush1.bf16.msra.mxu0 0
      %2234 = vmatprep.subr.bf16.mxu0 0
      %2235 = vmatpush1.bf16.msra.mxu0 0
      %2236 = vmatprep.subr.bf16.mxu0 0
      %2237 = vmatpush1.bf16.msra.mxu0 0
      %2238 = vmatprep.subr.bf16.mxu0 0
      %2239 = vmatpush1.bf16.msra.mxu0 0
      %2240 = vmatprep.subr.bf16.mxu0 0
      %2241 = vmatpush1.bf16.msra.mxu0 0
      %2242 = vmatprep.subr.bf16.mxu0 0
      %2243 = vmatpush1.bf16.msra.mxu0 0
      %2244 = vmatprep.subr.bf16.mxu0 0
      %2245 = vmatpush1.bf16.msra.mxu0 0
      %2246 = vmatprep.subr.bf16.mxu0 0
      %2247 = vmatpush1.bf16.msra.mxu0 0
      %2248 = vmatprep.subr.bf16.mxu0 0
      %2249 = vmatpush1.bf16.msra.mxu0 0
      %2250 = vmatprep.subr.bf16.mxu0 0
      %2251 = vmatpush1.bf16.msra.mxu0 0
      %2252 = vmatprep.subr.bf16.mxu0 0
      %2253 = vmatpush1.bf16.msra.mxu0 0
      %2254 = vmatprep.subr.bf16.mxu0 0
      %2255 = vmatpush1.bf16.msra.mxu0 0
      %2256 = vmatprep.subr.bf16.mxu0 0
      %2257 = vmatpush1.bf16.msra.mxu0 0
      %2258 = vmatprep.subr.bf16.mxu0 0
      %2259 = vmatpush1.bf16.msra.mxu0 0
      %2260 = vmatprep.subr.bf16.mxu0 0
      %2261 = vmatpush1.bf16.msra.mxu0 0
      %2262 = vmatprep.mubr.bf16.mxu0 0
      %2263 = vmatmul.mubr.bf16.gmra.mrb[0].mxu0 %v2224
      %v2264 = vpop.f32.mrb[0].mxu0
      %v2265 = vadd.f32 0.0, %v2264
      %v2266 = vpop.f32.mrb[0].mxu0
      %v2267 = vpop.f32.mrb[0].mxu0
      %v2268 = vpop.f32.mrb[0].mxu0
      %2269 = vdwg.mxu0
      %v2271 = vsel %vm1294, %v2208, 0
      %v2274 = vsel %vm2226, %v1279, 0
      %2276 = vmatprep.subr.bf16.mxu0 0
      %2277 = vmatpush1.bf16.msra.mxu0 %v2274
      %2278 = vmatprep.subr.bf16.mxu0 0
      %2279 = vmatpush1.bf16.msra.mxu0 0
      %2280 = vmatprep.subr.bf16.mxu0 0
      %2281 = vmatpush1.bf16.msra.mxu0 0
      %2282 = vmatprep.subr.bf16.mxu0 0
      %2283 = vmatpush1.bf16.msra.mxu0 0
      %2284 = vmatprep.subr.bf16.mxu0 0
      %2285 = vmatpush1.bf16.msra.mxu0 0
      %2286 = vmatprep.subr.bf16.mxu0 0
      %2287 = vmatpush1.bf16.msra.mxu0 0
      %2288 = vmatprep.subr.bf16.mxu0 0
      %2289 = vmatpush1.bf16.msra.mxu0 0
      %2290 = vmatprep.subr.bf16.mxu0 0
      %2291 = vmatpush1.bf16.msra.mxu0 0
      %2292 = vmatprep.subr.bf16.mxu0 0
      %2293 = vmatpush1.bf16.msra.mxu0 0
      %2294 = vmatprep.subr.bf16.mxu0 0
      %2295 = vmatpush1.bf16.msra.mxu0 0
      %2296 = vmatprep.subr.bf16.mxu0 0
      %2297 = vmatpush1.bf16.msra.mxu0 0
      %2298 = vmatprep.subr.bf16.mxu0 0
      %2299 = vmatpush1.bf16.msra.mxu0 0
      %2300 = vmatprep.subr.bf16.mxu0 0
      %2301 = vmatpush1.bf16.msra.mxu0 0
      %2302 = vmatprep.subr.bf16.mxu0 0
      %2303 = vmatpush1.bf16.msra.mxu0 0
      %2304 = vmatprep.subr.bf16.mxu0 0
      %2305 = vmatpush1.bf16.msra.mxu0 0
      %2306 = vmatprep.subr.bf16.mxu0 0
      %2307 = vmatpush1.bf16.msra.mxu0 0
      %2308 = vmatprep.mubr.bf16.mxu0 0
      %2309 = vmatmul.mubr.bf16.gmra.mrb[0].mxu0 %v2271
      %v2310 = vpop.f32.mrb[0].mxu0
      %v2311 = vadd.f32 0.0, %v2310
      %v2312 = vpop.f32.mrb[0].mxu0
      %v2313 = vpop.f32.mrb[0].mxu0
      %v2314 = vpop.f32.mrb[0].mxu0
      %2315 = vdwg.mxu0
      %v2317 = vsel %vm1294, %v2209, 0
      %v2320 = vsel %vm2226, %v1280, 0
      %2322 = vmatprep.subr.bf16.mxu0 0
      %2323 = vmatpush1.bf16.msra.mxu0 %v2320
      %2324 = vmatprep.subr.bf16.mxu0 0
      %2325 = vmatpush1.bf16.msra.mxu0 0
      %2326 = vmatprep.subr.bf16.mxu0 0
      %2327 = vmatpush1.bf16.msra.mxu0 0
      %2328 = vmatprep.subr.bf16.mxu0 0
      %2329 = vmatpush1.bf16.msra.mxu0 0
      %2330 = vmatprep.subr.bf16.mxu0 0
      %2331 = vmatpush1.bf16.msra.mxu0 0
      %2332 = vmatprep.subr.bf16.mxu0 0
      %2333 = vmatpush1.bf16.msra.mxu0 0
      %2334 = vmatprep.subr.bf16.mxu0 0
      %2335 = vmatpush1.bf16.msra.mxu0 0
      %2336 = vmatprep.subr.bf16.mxu0 0
      %2337 = vmatpush1.bf16.msra.mxu0 0
      %2338 = vmatprep.subr.bf16.mxu0 0
      %2339 = vmatpush1.bf16.msra.mxu0 0
      %2340 = vmatprep.subr.bf16.mxu0 0
      %2341 = vmatpush1.bf16.msra.mxu0 0
      %2342 = vmatprep.subr.bf16.mxu0 0
      %2343 = vmatpush1.bf16.msra.mxu0 0
      %2344 = vmatprep.subr.bf16.mxu0 0
      %2345 = vmatpush1.bf16.msra.mxu0 0
      %2346 = vmatprep.subr.bf16.mxu0 0
      %2347 = vmatpush1.bf16.msra.mxu0 0
      %2348 = vmatprep.subr.bf16.mxu0 0
      %2349 = vmatpush1.bf16.msra.mxu0 0
      %2350 = vmatprep.subr.bf16.mxu0 0
      %2351 = vmatpush1.bf16.msra.mxu0 0
      %2352 = vmatprep.subr.bf16.mxu0 0
      %2353 = vmatpush1.bf16.msra.mxu0 0
      %2354 = vmatprep.mubr.bf16.mxu0 0
      %2355 = vmatmul.mubr.bf16.gmra.mrb[0].mxu0 %v2317
      %v2356 = vpop.f32.mrb[0].mxu0
      %v2357 = vadd.f32 0.0, %v2356
      %v2358 = vpop.f32.mrb[0].mxu0
      %v2359 = vpop.f32.mrb[0].mxu0
      %v2360 = vpop.f32.mrb[0].mxu0
      %2361 = vdwg.mxu0
      %v2363 = vsel %vm1294, %v2210, 0
      %v2366 = vsel %vm2226, %v1281, 0
      %2368 = vmatprep.subr.bf16.mxu0 0
      %2369 = vmatpush1.bf16.msra.mxu0 %v2366
      %2370 = vmatprep.subr.bf16.mxu0 0
      %2371 = vmatpush1.bf16.msra.mxu0 0
      %2372 = vmatprep.subr.bf16.mxu0 0
      %2373 = vmatpush1.bf16.msra.mxu0 0
      %2374 = vmatprep.subr.bf16.mxu0 0
      %2375 = vmatpush1.bf16.msra.mxu0 0
      %2376 = vmatprep.subr.bf16.mxu0 0
      %2377 = vmatpush1.bf16.msra.mxu0 0
      %2378 = vmatprep.subr.bf16.mxu0 0
      %2379 = vmatpush1.bf16.msra.mxu0 0
      %2380 = vmatprep.subr.bf16.mxu0 0
      %2381 = vmatpush1.bf16.msra.mxu0 0
      %2382 = vmatprep.subr.bf16.mxu0 0
      %2383 = vmatpush1.bf16.msra.mxu0 0
      %2384 = vmatprep.subr.bf16.mxu0 0
      %2385 = vmatpush1.bf16.msra.mxu0 0
      %2386 = vmatprep.subr.bf16.mxu0 0
      %2387 = vmatpush1.bf16.msra.mxu0 0
      %2388 = vmatprep.subr.bf16.mxu0 0
      %2389 = vmatpush1.bf16.msra.mxu0 0
      %2390 = vmatprep.subr.bf16.mxu0 0
      %2391 = vmatpush1.bf16.msra.mxu0 0
      %2392 = vmatprep.subr.bf16.mxu0 0
      %2393 = vmatpush1.bf16.msra.mxu0 0
      %2394 = vmatprep.subr.bf16.mxu0 0
      %2395 = vmatpush1.bf16.msra.mxu0 0
      %2396 = vmatprep.subr.bf16.mxu0 0
      %2397 = vmatpush1.bf16.msra.mxu0 0
      %2398 = vmatprep.subr.bf16.mxu0 0
      %2399 = vmatpush1.bf16.msra.mxu0 0
      %2400 = vmatprep.mubr.bf16.mxu0 0
      %2401 = vmatmul.mubr.bf16.gmra.mrb[0].mxu0 %v2363
      %v2402 = vpop.f32.mrb[0].mxu0
      %v2403 = vadd.f32 0.0, %v2402
      %v2404 = vpop.f32.mrb[0].mxu0
      %v2405 = vpop.f32.mrb[0].mxu0
      %v2406 = vpop.f32.mrb[0].mxu0
      %2407 = vdwg.mxu0
      %v2409 = vsel %vm1294, %v2211, 0
      %v2412 = vsel %vm2226, %v1282, 0
      %2414 = vmatprep.subr.bf16.mxu0 0
      %2415 = vmatpush1.bf16.msra.mxu0 %v2412
      %2416 = vmatprep.subr.bf16.mxu0 0
      %2417 = vmatpush1.bf16.msra.mxu0 0
      %2418 = vmatprep.subr.bf16.mxu0 0
      %2419 = vmatpush1.bf16.msra.mxu0 0
      %2420 = vmatprep.subr.bf16.mxu0 0
      %2421 = vmatpush1.bf16.msra.mxu0 0
      %2422 = vmatprep.subr.bf16.mxu0 0
      %2423 = vmatpush1.bf16.msra.mxu0 0
      %2424 = vmatprep.subr.bf16.mxu0 0
      %2425 = vmatpush1.bf16.msra.mxu0 0
      %2426 = vmatprep.subr.bf16.mxu0 0
      %2427 = vmatpush1.bf16.msra.mxu0 0
      %2428 = vmatprep.subr.bf16.mxu0 0
      %2429 = vmatpush1.bf16.msra.mxu0 0
      %2430 = vmatprep.subr.bf16.mxu0 0
      %2431 = vmatpush1.bf16.msra.mxu0 0
      %2432 = vmatprep.subr.bf16.mxu0 0
      %2433 = vmatpush1.bf16.msra.mxu0 0
      %2434 = vmatprep.subr.bf16.mxu0 0
      %2435 = vmatpush1.bf16.msra.mxu0 0
      %2436 = vmatprep.subr.bf16.mxu0 0
      %2437 = vmatpush1.bf16.msra.mxu0 0
      %2438 = vmatprep.subr.bf16.mxu0 0
      %2439 = vmatpush1.bf16.msra.mxu0 0
      %2440 = vmatprep.subr.bf16.mxu0 0
      %2441 = vmatpush1.bf16.msra.mxu0 0
      %2442 = vmatprep.subr.bf16.mxu0 0
      %2443 = vmatpush1.bf16.msra.mxu0 0
      %2444 = vmatprep.subr.bf16.mxu0 0
      %2445 = vmatpush1.bf16.msra.mxu0 0
      %2446 = vmatprep.mubr.bf16.mxu0 0
      %2447 = vmatmul.mubr.bf16.gmra.mrb[0].mxu0 %v2409
      %v2448 = vpop.f32.mrb[0].mxu0
      %v2449 = vadd.f32 0.0, %v2448
      %v2450 = vpop.f32.mrb[0].mxu0
      %v2451 = vpop.f32.mrb[0].mxu0
      %v2452 = vpop.f32.mrb[0].mxu0
      %2453 = vdwg.mxu0
      %v2455 = vsel %vm1294, %v2212, 0
      %v2458 = vsel %vm2226, %v1283, 0
      %2460 = vmatprep.subr.bf16.mxu0 0
      %2461 = vmatpush1.bf16.msra.mxu0 %v2458
      %2462 = vmatprep.subr.bf16.mxu0 0
      %2463 = vmatpush1.bf16.msra.mxu0 0
      %2464 = vmatprep.subr.bf16.mxu0 0
      %2465 = vmatpush1.bf16.msra.mxu0 0
      %2466 = vmatprep.subr.bf16.mxu0 0
      %2467 = vmatpush1.bf16.msra.mxu0 0
      %2468 = vmatprep.subr.bf16.mxu0 0
      %2469 = vmatpush1.bf16.msra.mxu0 0
      %2470 = vmatprep.subr.bf16.mxu0 0
      %2471 = vmatpush1.bf16.msra.mxu0 0
      %2472 = vmatprep.subr.bf16.mxu0 0
      %2473 = vmatpush1.bf16.msra.mxu0 0
      %2474 = vmatprep.subr.bf16.mxu0 0
      %2475 = vmatpush1.bf16.msra.mxu0 0
      %2476 = vmatprep.subr.bf16.mxu0 0
      %2477 = vmatpush1.bf16.msra.mxu0 0
      %2478 = vmatprep.subr.bf16.mxu0 0
      %2479 = vmatpush1.bf16.msra.mxu0 0
      %2480 = vmatprep.subr.bf16.mxu0 0
      %2481 = vmatpush1.bf16.msra.mxu0 0
      %2482 = vmatprep.subr.bf16.mxu0 0
      %2483 = vmatpush1.bf16.msra.mxu0 0
      %2484 = vmatprep.subr.bf16.mxu0 0
      %2485 = vmatpush1.bf16.msra.mxu0 0
      %2486 = vmatprep.subr.bf16.mxu0 0
      %2487 = vmatpush1.bf16.msra.mxu0 0
      %2488 = vmatprep.subr.bf16.mxu0 0
      %2489 = vmatpush1.bf16.msra.mxu0 0
      %2490 = vmatprep.subr.bf16.mxu0 0
      %2491 = vmatpush1.bf16.msra.mxu0 0
      %2492 = vmatprep.mubr.bf16.mxu0 0
      %2493 = vmatmul.mubr.bf16.gmra.mrb[0].mxu0 %v2455
      %v2494 = vpop.f32.mrb[0].mxu0
      %v2495 = vadd.f32 0.0, %v2494
      %v2496 = vpop.f32.mrb[0].mxu0
      %v2497 = vpop.f32.mrb[0].mxu0
      %v2498 = vpop.f32.mrb[0].mxu0
      %2499 = vdwg.mxu0
      %v2501 = vsel %vm1294, %v2213, 0
      %v2504 = vsel %vm2226, %v1284, 0
      %2506 = vmatprep.subr.bf16.mxu0 0
      %2507 = vmatpush1.bf16.msra.mxu0 %v2504
      %2508 = vmatprep.subr.bf16.mxu0 0
      %2509 = vmatpush1.bf16.msra.mxu0 0
      %2510 = vmatprep.subr.bf16.mxu0 0
      %2511 = vmatpush1.bf16.msra.mxu0 0
      %2512 = vmatprep.subr.bf16.mxu0 0
      %2513 = vmatpush1.bf16.msra.mxu0 0
      %2514 = vmatprep.subr.bf16.mxu0 0
      %2515 = vmatpush1.bf16.msra.mxu0 0
      %2516 = vmatprep.subr.bf16.mxu0 0
      %2517 = vmatpush1.bf16.msra.mxu0 0
      %2518 = vmatprep.subr.bf16.mxu0 0
      %2519 = vmatpush1.bf16.msra.mxu0 0
      %2520 = vmatprep.subr.bf16.mxu0 0
      %2521 = vmatpush1.bf16.msra.mxu0 0
      %2522 = vmatprep.subr.bf16.mxu0 0
      %2523 = vmatpush1.bf16.msra.mxu0 0
      %2524 = vmatprep.subr.bf16.mxu0 0
      %2525 = vmatpush1.bf16.msra.mxu0 0
      %2526 = vmatprep.subr.bf16.mxu0 0
      %2527 = vmatpush1.bf16.msra.mxu0 0
      %2528 = vmatprep.subr.bf16.mxu0 0
      %2529 = vmatpush1.bf16.msra.mxu0 0
      %2530 = vmatprep.subr.bf16.mxu0 0
      %2531 = vmatpush1.bf16.msra.mxu0 0
      %2532 = vmatprep.subr.bf16.mxu0 0
      %2533 = vmatpush1.bf16.msra.mxu0 0
      %2534 = vmatprep.subr.bf16.mxu0 0
      %2535 = vmatpush1.bf16.msra.mxu0 0
      %2536 = vmatprep.subr.bf16.mxu0 0
      %2537 = vmatpush1.bf16.msra.mxu0 0
      %2538 = vmatprep.mubr.bf16.mxu0 0
      %2539 = vmatmul.mubr.bf16.gmra.mrb[0].mxu0 %v2501
      %v2540 = vpop.f32.mrb[0].mxu0
      %v2541 = vadd.f32 0.0, %v2540
      %v2542 = vpop.f32.mrb[0].mxu0
      %v2543 = vpop.f32.mrb[0].mxu0
      %v2544 = vpop.f32.mrb[0].mxu0
      %2545 = vdwg.mxu0
      %v2547 = vsel %vm1294, %v2214, 0
      %v2550 = vsel %vm2226, %v1285, 0
      %2552 = vmatprep.subr.bf16.mxu0 0
      %2553 = vmatpush1.bf16.msra.mxu0 %v2550
      %2554 = vmatprep.subr.bf16.mxu0 0
      %2555 = vmatpush1.bf16.msra.mxu0 0
      %2556 = vmatprep.subr.bf16.mxu0 0
      %2557 = vmatpush1.bf16.msra.mxu0 0
      %2558 = vmatprep.subr.bf16.mxu0 0
      %2559 = vmatpush1.bf16.msra.mxu0 0
      %2560 = vmatprep.subr.bf16.mxu0 0
      %2561 = vmatpush1.bf16.msra.mxu0 0
      %2562 = vmatprep.subr.bf16.mxu0 0
      %2563 = vmatpush1.bf16.msra.mxu0 0
      %2564 = vmatprep.subr.bf16.mxu0 0
      %2565 = vmatpush1.bf16.msra.mxu0 0
      %2566 = vmatprep.subr.bf16.mxu0 0
      %2567 = vmatpush1.bf16.msra.mxu0 0
      %2568 = vmatprep.subr.bf16.mxu0 0
      %2569 = vmatpush1.bf16.msra.mxu0 0
      %2570 = vmatprep.subr.bf16.mxu0 0
      %2571 = vmatpush1.bf16.msra.mxu0 0
      %2572 = vmatprep.subr.bf16.mxu0 0
      %2573 = vmatpush1.bf16.msra.mxu0 0
      %2574 = vmatprep.subr.bf16.mxu0 0
      %2575 = vmatpush1.bf16.msra.mxu0 0
      %2576 = vmatprep.subr.bf16.mxu0 0
      %2577 = vmatpush1.bf16.msra.mxu0 0
      %2578 = vmatprep.subr.bf16.mxu0 0
      %2579 = vmatpush1.bf16.msra.mxu0 0
      %2580 = vmatprep.subr.bf16.mxu0 0
      %2581 = vmatpush1.bf16.msra.mxu0 0
      %2582 = vmatprep.subr.bf16.mxu0 0
      %2583 = vmatpush1.bf16.msra.mxu0 0
      %2584 = vmatprep.mubr.bf16.mxu0 0
      %2585 = vmatmul.mubr.bf16.gmra.mrb[0].mxu0 %v2547
      %v2586 = vpop.f32.mrb[0].mxu0
      %v2587 = vadd.f32 0.0, %v2586
      %v2588 = vpop.f32.mrb[0].mxu0
      %v2589 = vpop.f32.mrb[0].mxu0
      %v2590 = vpop.f32.mrb[0].mxu0
      %2591 = vdwg.mxu0
      %v2593 = vsel %vm1294, %v2215, 0
      %v2596 = vsel %vm2226, %v1286, 0
      %2598 = vmatprep.subr.bf16.mxu0 0
      %2599 = vmatpush1.bf16.msra.mxu0 %v2596
      %2600 = vmatprep.subr.bf16.mxu0 0
      %2601 = vmatpush1.bf16.msra.mxu0 0
      %2602 = vmatprep.subr.bf16.mxu0 0
      %2603 = vmatpush1.bf16.msra.mxu0 0
      %2604 = vmatprep.subr.bf16.mxu0 0
      %2605 = vmatpush1.bf16.msra.mxu0 0
      %2606 = vmatprep.subr.bf16.mxu0 0
      %2607 = vmatpush1.bf16.msra.mxu0 0
      %2608 = vmatprep.subr.bf16.mxu0 0
      %2609 = vmatpush1.bf16.msra.mxu0 0
      %2610 = vmatprep.subr.bf16.mxu0 0
      %2611 = vmatpush1.bf16.msra.mxu0 0
      %2612 = vmatprep.subr.bf16.mxu0 0
      %2613 = vmatpush1.bf16.msra.mxu0 0
      %2614 = vmatprep.subr.bf16.mxu0 0
      %2615 = vmatpush1.bf16.msra.mxu0 0
      %2616 = vmatprep.subr.bf16.mxu0 0
      %2617 = vmatpush1.bf16.msra.mxu0 0
      %2618 = vmatprep.subr.bf16.mxu0 0
      %2619 = vmatpush1.bf16.msra.mxu0 0
      %2620 = vmatprep.subr.bf16.mxu0 0
      %2621 = vmatpush1.bf16.msra.mxu0 0
      %2622 = vmatprep.subr.bf16.mxu0 0
      %2623 = vmatpush1.bf16.msra.mxu0 0
      %2624 = vmatprep.subr.bf16.mxu0 0
      %2625 = vmatpush1.bf16.msra.mxu0 0
      %2626 = vmatprep.subr.bf16.mxu0 0
      %2627 = vmatpush1.bf16.msra.mxu0 0
      %2628 = vmatprep.subr.bf16.mxu0 0
      %2629 = vmatpush1.bf16.msra.mxu0 0
      %2630 = vmatprep.mubr.bf16.mxu0 0
      %2631 = vmatmul.mubr.bf16.gmra.mrb[0].mxu0 %v2593
      %v2632 = vpop.f32.mrb[0].mxu0
      %v2633 = vadd.f32 0.0, %v2632
      %v2634 = vpop.f32.mrb[0].mxu0
      %v2635 = vpop.f32.mrb[0].mxu0
      %v2636 = vpop.f32.mrb[0].mxu0
      %2637 = vdwg.mxu0
      %v2639 = vsel %vm1294, %v2216, 0
      %v2642 = vsel %vm2226, %v1287, 0
      %2644 = vmatprep.subr.bf16.mxu0 0
      %2645 = vmatpush1.bf16.msra.mxu0 %v2642
      %2646 = vmatprep.subr.bf16.mxu0 0
      %2647 = vmatpush1.bf16.msra.mxu0 0
      %2648 = vmatprep.subr.bf16.mxu0 0
      %2649 = vmatpush1.bf16.msra.mxu0 0
      %2650 = vmatprep.subr.bf16.mxu0 0
      %2651 = vmatpush1.bf16.msra.mxu0 0
      %2652 = vmatprep.subr.bf16.mxu0 0
      %2653 = vmatpush1.bf16.msra.mxu0 0
      %2654 = vmatprep.subr.bf16.mxu0 0
      %2655 = vmatpush1.bf16.msra.mxu0 0
      %2656 = vmatprep.subr.bf16.mxu0 0
      %2657 = vmatpush1.bf16.msra.mxu0 0
      %2658 = vmatprep.subr.bf16.mxu0 0
      %2659 = vmatpush1.bf16.msra.mxu0 0
      %2660 = vmatprep.subr.bf16.mxu0 0
      %2661 = vmatpush1.bf16.msra.mxu0 0
      %2662 = vmatprep.subr.bf16.mxu0 0
      %2663 = vmatpush1.bf16.msra.mxu0 0
      %2664 = vmatprep.subr.bf16.mxu0 0
      %2665 = vmatpush1.bf16.msra.mxu0 0
      %2666 = vmatprep.subr.bf16.mxu0 0
      %2667 = vmatpush1.bf16.msra.mxu0 0
      %2668 = vmatprep.subr.bf16.mxu0 0
      %2669 = vmatpush1.bf16.msra.mxu0 0
      %2670 = vmatprep.subr.bf16.mxu0 0
      %2671 = vmatpush1.bf16.msra.mxu0 0
      %2672 = vmatprep.subr.bf16.mxu0 0
      %2673 = vmatpush1.bf16.msra.mxu0 0
      %2674 = vmatprep.subr.bf16.mxu0 0
      %2675 = vmatpush1.bf16.msra.mxu0 0
      %2676 = vmatprep.mubr.bf16.mxu0 0
      %2677 = vmatmul.mubr.bf16.gmra.mrb[0].mxu0 %v2639
      %v2678 = vpop.f32.mrb[0].mxu0
      %v2679 = vadd.f32 0.0, %v2678
      %v2680 = vpop.f32.mrb[0].mxu0
      %v2681 = vpop.f32.mrb[0].mxu0
      %v2682 = vpop.f32.mrb[0].mxu0
      %2683 = vdwg.mxu0
      %v2685 = vsel %vm1294, %v2217, 0
      %v2688 = vsel %vm2226, %v1288, 0
      %2690 = vmatprep.subr.bf16.mxu0 0
      %2691 = vmatpush1.bf16.msra.mxu0 %v2688
      %2692 = vmatprep.subr.bf16.mxu0 0
      %2693 = vmatpush1.bf16.msra.mxu0 0
      %2694 = vmatprep.subr.bf16.mxu0 0
      %2695 = vmatpush1.bf16.msra.mxu0 0
      %2696 = vmatprep.subr.bf16.mxu0 0
      %2697 = vmatpush1.bf16.msra.mxu0 0
      %2698 = vmatprep.subr.bf16.mxu0 0
      %2699 = vmatpush1.bf16.msra.mxu0 0
      %2700 = vmatprep.subr.bf16.mxu0 0
      %2701 = vmatpush1.bf16.msra.mxu0 0
      %2702 = vmatprep.subr.bf16.mxu0 0
      %2703 = vmatpush1.bf16.msra.mxu0 0
      %2704 = vmatprep.subr.bf16.mxu0 0
      %2705 = vmatpush1.bf16.msra.mxu0 0
      %2706 = vmatprep.subr.bf16.mxu0 0
      %2707 = vmatpush1.bf16.msra.mxu0 0
      %2708 = vmatprep.subr.bf16.mxu0 0
      %2709 = vmatpush1.bf16.msra.mxu0 0
      %2710 = vmatprep.subr.bf16.mxu0 0
      %2711 = vmatpush1.bf16.msra.mxu0 0
      %2712 = vmatprep.subr.bf16.mxu0 0
      %2713 = vmatpush1.bf16.msra.mxu0 0
      %2714 = vmatprep.subr.bf16.mxu0 0
      %2715 = vmatpush1.bf16.msra.mxu0 0
      %2716 = vmatprep.subr.bf16.mxu0 0
      %2717 = vmatpush1.bf16.msra.mxu0 0
      %2718 = vmatprep.subr.bf16.mxu0 0
      %2719 = vmatpush1.bf16.msra.mxu0 0
      %2720 = vmatprep.subr.bf16.mxu0 0
      %2721 = vmatpush1.bf16.msra.mxu0 0
      %2722 = vmatprep.mubr.bf16.mxu0 0
      %2723 = vmatmul.mubr.bf16.gmra.mrb[0].mxu0 %v2685
      %v2724 = vpop.f32.mrb[0].mxu0
      %v2725 = vadd.f32 0.0, %v2724
      %v2726 = vpop.f32.mrb[0].mxu0
      %v2727 = vpop.f32.mrb[0].mxu0
      %v2728 = vpop.f32.mrb[0].mxu0
      %2729 = vdwg.mxu0
      %v2731 = vsel %vm1294, %v2218, 0
      %v2734 = vsel %vm2226, %v1289, 0
      %2736 = vmatprep.subr.bf16.mxu0 0
      %2737 = vmatpush1.bf16.msra.mxu0 %v2734
      %2738 = vmatprep.subr.bf16.mxu0 0
      %2739 = vmatpush1.bf16.msra.mxu0 0
      %2740 = vmatprep.subr.bf16.mxu0 0
      %2741 = vmatpush1.bf16.msra.mxu0 0
      %2742 = vmatprep.subr.bf16.mxu0 0
      %2743 = vmatpush1.bf16.msra.mxu0 0
      %2744 = vmatprep.subr.bf16.mxu0 0
      %2745 = vmatpush1.bf16.msra.mxu0 0
      %2746 = vmatprep.subr.bf16.mxu0 0
      %2747 = vmatpush1.bf16.msra.mxu0 0
      %2748 = vmatprep.subr.bf16.mxu0 0
      %2749 = vmatpush1.bf16.msra.mxu0 0
      %2750 = vmatprep.subr.bf16.mxu0 0
      %2751 = vmatpush1.bf16.msra.mxu0 0
      %2752 = vmatprep.subr.bf16.mxu0 0
      %2753 = vmatpush1.bf16.msra.mxu0 0
      %2754 = vmatprep.subr.bf16.mxu0 0
      %2755 = vmatpush1.bf16.msra.mxu0 0
      %2756 = vmatprep.subr.bf16.mxu0 0
      %2757 = vmatpush1.bf16.msra.mxu0 0
      %2758 = vmatprep.subr.bf16.mxu0 0
      %2759 = vmatpush1.bf16.msra.mxu0 0
      %2760 = vmatprep.subr.bf16.mxu0 0
      %2761 = vmatpush1.bf16.msra.mxu0 0
      %2762 = vmatprep.subr.bf16.mxu0 0
      %2763 = vmatpush1.bf16.msra.mxu0 0
      %2764 = vmatprep.subr.bf16.mxu0 0
      %2765 = vmatpush1.bf16.msra.mxu0 0
      %2766 = vmatprep.subr.bf16.mxu0 0
      %2767 = vmatpush1.bf16.msra.mxu0 0
      %2768 = vmatprep.mubr.bf16.mxu0 0
      %2769 = vmatmul.mubr.bf16.gmra.mrb[0].mxu0 %v2731
      %v2770 = vpop.f32.mrb[0].mxu0
      %v2771 = vadd.f32 0.0, %v2770
      %v2772 = vpop.f32.mrb[0].mxu0
      %v2773 = vpop.f32.mrb[0].mxu0
      %v2774 = vpop.f32.mrb[0].mxu0
      %2775 = vdwg.mxu0
      %v2777 = vsel %vm1294, %v2219, 0
      %v2780 = vsel %vm2226, %v1290, 0
      %2782 = vmatprep.subr.bf16.mxu0 0
      %2783 = vmatpush1.bf16.msra.mxu0 %v2780
      %2784 = vmatprep.subr.bf16.mxu0 0
      %2785 = vmatpush1.bf16.msra.mxu0 0
      %2786 = vmatprep.subr.bf16.mxu0 0
      %2787 = vmatpush1.bf16.msra.mxu0 0
      %2788 = vmatprep.subr.bf16.mxu0 0
      %2789 = vmatpush1.bf16.msra.mxu0 0
      %2790 = vmatprep.subr.bf16.mxu0 0
      %2791 = vmatpush1.bf16.msra.mxu0 0
      %2792 = vmatprep.subr.bf16.mxu0 0
      %2793 = vmatpush1.bf16.msra.mxu0 0
      %2794 = vmatprep.subr.bf16.mxu0 0
      %2795 = vmatpush1.bf16.msra.mxu0 0
      %2796 = vmatprep.subr.bf16.mxu0 0
      %2797 = vmatpush1.bf16.msra.mxu0 0
      %2798 = vmatprep.subr.bf16.mxu0 0
      %2799 = vmatpush1.bf16.msra.mxu0 0
      %2800 = vmatprep.subr.bf16.mxu0 0
      %2801 = vmatpush1.bf16.msra.mxu0 0
      %2802 = vmatprep.subr.bf16.mxu0 0
      %2803 = vmatpush1.bf16.msra.mxu0 0
      %2804 = vmatprep.subr.bf16.mxu0 0
      %2805 = vmatpush1.bf16.msra.mxu0 0
      %2806 = vmatprep.subr.bf16.mxu0 0
      %2807 = vmatpush1.bf16.msra.mxu0 0
      %2808 = vmatprep.subr.bf16.mxu0 0
      %2809 = vmatpush1.bf16.msra.mxu0 0
      %2810 = vmatprep.subr.bf16.mxu0 0
      %2811 = vmatpush1.bf16.msra.mxu0 0
      %2812 = vmatprep.subr.bf16.mxu0 0
      %2813 = vmatpush1.bf16.msra.mxu0 0
      %2814 = vmatprep.mubr.bf16.mxu0 0
      %2815 = vmatmul.mubr.bf16.gmra.mrb[0].mxu0 %v2777
      %v2816 = vpop.f32.mrb[0].mxu0
      %v2817 = vadd.f32 0.0, %v2816
      %v2818 = vpop.f32.mrb[0].mxu0
      %v2819 = vpop.f32.mrb[0].mxu0
      %v2820 = vpop.f32.mrb[0].mxu0
      %2821 = vdwg.mxu0
      %v2823 = vsel %vm1294, %v2220, 0
      %v2826 = vsel %vm2226, %v1291, 0
      %2828 = vmatprep.subr.bf16.mxu0 0
      %2829 = vmatpush1.bf16.msra.mxu0 %v2826
      %2830 = vmatprep.subr.bf16.mxu0 0
      %2831 = vmatpush1.bf16.msra.mxu0 0
      %2832 = vmatprep.subr.bf16.mxu0 0
      %2833 = vmatpush1.bf16.msra.mxu0 0
      %2834 = vmatprep.subr.bf16.mxu0 0
      %2835 = vmatpush1.bf16.msra.mxu0 0
      %2836 = vmatprep.subr.bf16.mxu0 0
      %2837 = vmatpush1.bf16.msra.mxu0 0
      %2838 = vmatprep.subr.bf16.mxu0 0
      %2839 = vmatpush1.bf16.msra.mxu0 0
      %2840 = vmatprep.subr.bf16.mxu0 0
      %2841 = vmatpush1.bf16.msra.mxu0 0
      %2842 = vmatprep.subr.bf16.mxu0 0
      %2843 = vmatpush1.bf16.msra.mxu0 0
      %2844 = vmatprep.subr.bf16.mxu0 0
      %2845 = vmatpush1.bf16.msra.mxu0 0
      %2846 = vmatprep.subr.bf16.mxu0 0
      %2847 = vmatpush1.bf16.msra.mxu0 0
      %2848 = vmatprep.subr.bf16.mxu0 0
      %2849 = vmatpush1.bf16.msra.mxu0 0
      %2850 = vmatprep.subr.bf16.mxu0 0
      %2851 = vmatpush1.bf16.msra.mxu0 0
      %2852 = vmatprep.subr.bf16.mxu0 0
      %2853 = vmatpush1.bf16.msra.mxu0 0
      %2854 = vmatprep.subr.bf16.mxu0 0
      %2855 = vmatpush1.bf16.msra.mxu0 0
      %2856 = vmatprep.subr.bf16.mxu0 0
      %2857 = vmatpush1.bf16.msra.mxu0 0
      %2858 = vmatprep.subr.bf16.mxu0 0
      %2859 = vmatpush1.bf16.msra.mxu0 0
      %2860 = vmatprep.mubr.bf16.mxu0 0
      %2861 = vmatmul.mubr.bf16.gmra.mrb[0].mxu0 %v2823
      %v2862 = vpop.f32.mrb[0].mxu0
      %v2863 = vadd.f32 0.0, %v2862
      %v2864 = vpop.f32.mrb[0].mxu0
      %v2865 = vpop.f32.mrb[0].mxu0
      %v2866 = vpop.f32.mrb[0].mxu0
      %2867 = vdwg.mxu0
      %v2869 = vsel %vm1294, %v2221, 0
      %v2872 = vsel %vm2226, %v1292, 0
      %2874 = vmatprep.subr.bf16.mxu0 0
      %2875 = vmatpush1.bf16.msra.mxu0 %v2872
      %2876 = vmatprep.subr.bf16.mxu0 0
      %2877 = vmatpush1.bf16.msra.mxu0 0
      %2878 = vmatprep.subr.bf16.mxu0 0
      %2879 = vmatpush1.bf16.msra.mxu0 0
      %2880 = vmatprep.subr.bf16.mxu0 0
      %2881 = vmatpush1.bf16.msra.mxu0 0
      %2882 = vmatprep.subr.bf16.mxu0 0
      %2883 = vmatpush1.bf16.msra.mxu0 0
      %2884 = vmatprep.subr.bf16.mxu0 0
      %2885 = vmatpush1.bf16.msra.mxu0 0
      %2886 = vmatprep.subr.bf16.mxu0 0
      %2887 = vmatpush1.bf16.msra.mxu0 0
      %2888 = vmatprep.subr.bf16.mxu0 0
      %2889 = vmatpush1.bf16.msra.mxu0 0
      %2890 = vmatprep.subr.bf16.mxu0 0
      %2891 = vmatpush1.bf16.msra.mxu0 0
      %2892 = vmatprep.subr.bf16.mxu0 0
      %2893 = vmatpush1.bf16.msra.mxu0 0
      %2894 = vmatprep.subr.bf16.mxu0 0
      %2895 = vmatpush1.bf16.msra.mxu0 0
      %2896 = vmatprep.subr.bf16.mxu0 0
      %2897 = vmatpush1.bf16.msra.mxu0 0
      %2898 = vmatprep.subr.bf16.mxu0 0
      %2899 = vmatpush1.bf16.msra.mxu0 0
      %2900 = vmatprep.subr.bf16.mxu0 0
      %2901 = vmatpush1.bf16.msra.mxu0 0
      %2902 = vmatprep.subr.bf16.mxu0 0
      %2903 = vmatpush1.bf16.msra.mxu0 0
      %2904 = vmatprep.subr.bf16.mxu0 0
      %2905 = vmatpush1.bf16.msra.mxu0 0
      %2906 = vmatprep.mubr.bf16.mxu0 0
      %2907 = vmatmul.mubr.bf16.gmra.mrb[0].mxu0 %v2869
      %v2908 = vpop.f32.mrb[0].mxu0
      %v2909 = vadd.f32 0.0, %v2908
      %v2910 = vpop.f32.mrb[0].mxu0
      %v2911 = vpop.f32.mrb[0].mxu0
      %v2912 = vpop.f32.mrb[0].mxu0
      %2913 = vdwg.mxu0
      %v2915 = vsel %vm1294, %v2222, 0
      %v2918 = vsel %vm2226, %v1293, 0
      %2920 = vmatprep.subr.bf16.mxu0 0
      %2921 = vmatpush1.bf16.msra.mxu0 %v2918
      %2922 = vmatprep.subr.bf16.mxu0 0
      %2923 = vmatpush1.bf16.msra.mxu0 0
      %2924 = vmatprep.subr.bf16.mxu0 0
      %2925 = vmatpush1.bf16.msra.mxu0 0
      %2926 = vmatprep.subr.bf16.mxu0 0
      %2927 = vmatpush1.bf16.msra.mxu0 0
      %2928 = vmatprep.subr.bf16.mxu0 0
      %2929 = vmatpush1.bf16.msra.mxu0 0
      %2930 = vmatprep.subr.bf16.mxu0 0
      %2931 = vmatpush1.bf16.msra.mxu0 0
      %2932 = vmatprep.subr.bf16.mxu0 0
      %2933 = vmatpush1.bf16.msra.mxu0 0
      %2934 = vmatprep.subr.bf16.mxu0 0
      %2935 = vmatpush1.bf16.msra.mxu0 0
      %2936 = vmatprep.subr.bf16.mxu0 0
      %2937 = vmatpush1.bf16.msra.mxu0 0
      %2938 = vmatprep.subr.bf16.mxu0 0
      %2939 = vmatpush1.bf16.msra.mxu0 0
      %2940 = vmatprep.subr.bf16.mxu0 0
      %2941 = vmatpush1.bf16.msra.mxu0 0
      %2942 = vmatprep.subr.bf16.mxu0 0
      %2943 = vmatpush1.bf16.msra.mxu0 0
      %2944 = vmatprep.subr.bf16.mxu0 0
      %2945 = vmatpush1.bf16.msra.mxu0 0
      %2946 = vmatprep.subr.bf16.mxu0 0
      %2947 = vmatpush1.bf16.msra.mxu0 0
      %2948 = vmatprep.subr.bf16.mxu0 0
      %2949 = vmatpush1.bf16.msra.mxu0 0
      %2950 = vmatprep.subr.bf16.mxu0 0
      %2951 = vmatpush1.bf16.msra.mxu0 0
      %2952 = vmatprep.mubr.bf16.mxu0 0
      %2953 = vmatmul.mubr.bf16.gmra.mrb[0].mxu0 %v2915
      %v2954 = vpop.f32.mrb[0].mxu0
      %v2955 = vadd.f32 0.0, %v2954
      %v2956 = vpop.f32.mrb[0].mxu0
      %v2957 = vpop.f32.mrb[0].mxu0
      %v2958 = vpop.f32.mrb[0].mxu0
      %2959 = vdwg.mxu0
      %2960 = vst.msk [vmem:[#allocation2] sm:$0xff] %vm1294, %v2265
      %2961 = vst.msk [vmem:[#allocation2 + $0x8] sm:$0xff] %vm1294, %v2311
      %2962 = vst.msk [vmem:[#allocation2 + $0x10] sm:$0xff] %vm1294, %v2357
      %2963 = vst.msk [vmem:[#allocation2 + $0x18] sm:$0xff] %vm1294, %v2403
      %2964 = vst.msk [vmem:[#allocation2 + $0x20] sm:$0xff] %vm1294, %v2449
      %2965 = vst.msk [vmem:[#allocation2 + $0x28] sm:$0xff] %vm1294, %v2495
      %2966 = vst.msk [vmem:[#allocation2 + $0x30] sm:$0xff] %vm1294, %v2541
      %2967 = vst.msk [vmem:[#allocation2 + $0x38] sm:$0xff] %vm1294, %v2587
      %2968 = vst.msk [vmem:[#allocation2 + $0x40] sm:$0xff] %vm1294, %v2633
      %2969 = vst.msk [vmem:[#allocation2 + $0x48] sm:$0xff] %vm1294, %v2679
      %2970 = vst.msk [vmem:[#allocation2 + $0x50] sm:$0xff] %vm1294, %v2725
      %2971 = vst.msk [vmem:[#allocation2 + $0x58] sm:$0xff] %vm1294, %v2771
      %2972 = vst.msk [vmem:[#allocation2 + $0x60] sm:$0xff] %vm1294, %v2817
      %2973 = vst.msk [vmem:[#allocation2 + $0x68] sm:$0xff] %vm1294, %v2863
      %2974 = vst.msk [vmem:[#allocation2 + $0x70] sm:$0xff] %vm1294, %v2909
      %2975 = vst.msk [vmem:[#allocation2 + $0x78] sm:$0xff] %vm1294, %v2955
      %2976 = vrot.lane.b32.xlu0 %v828, 120
      %v2977 = vpop.permute.xlu0 %2976
      %2978 = vrot.lane.b32.xlu0 %v1053, 120
      %v2979 = vpop.permute.xlu0 %2978
      %v2981 = vsel %vm1294, %v2977, 0
      %v2984 = vsel %vm1294, %v2979, 0
      %2986 = vmatprep.subr.bf16.mxu0 0
      %2987 = vmatpush1.bf16.xpose.msra.mxu0 %v2984
      %2988 = vmatprep.subr.bf16.mxu0 0
      %2989 = vmatpush1.bf16.xpose.msra.mxu0 0
      %2990 = vmatprep.subr.bf16.mxu0 0
      %2991 = vmatpush1.bf16.xpose.msra.mxu0 0
      %2992 = vmatprep.subr.bf16.mxu0 0
      %2993 = vmatpush1.bf16.xpose.msra.mxu0 0
      %2994 = vmatprep.subr.bf16.mxu0 0
      %2995 = vmatpush1.bf16.xpose.msra.mxu0 0
      %2996 = vmatprep.subr.bf16.mxu0 0
      %2997 = vmatpush1.bf16.xpose.msra.mxu0 0
      %2998 = vmatprep.subr.bf16.mxu0 0
      %2999 = vmatpush1.bf16.xpose.msra.mxu0 0
      %3000 = vmatprep.subr.bf16.mxu0 0
      %3001 = vmatpush1.bf16.xpose.msra.mxu0 0
      %3002 = vmatprep.subr.bf16.mxu0 0
      %3003 = vmatpush1.bf16.xpose.msra.mxu0 0
      %3004 = vmatprep.subr.bf16.mxu0 0
      %3005 = vmatpush1.bf16.xpose.msra.mxu0 0
      %3006 = vmatprep.subr.bf16.mxu0 0
      %3007 = vmatpush1.bf16.xpose.msra.mxu0 0
      %3008 = vmatprep.subr.bf16.mxu0 0
      %3009 = vmatpush1.bf16.xpose.msra.mxu0 0
      %3010 = vmatprep.subr.bf16.mxu0 0
      %3011 = vmatpush1.bf16.xpose.msra.mxu0 0
      %3012 = vmatprep.subr.bf16.mxu0 0
      %3013 = vmatpush1.bf16.xpose.msra.mxu0 0
      %3014 = vmatprep.subr.bf16.mxu0 0
      %3015 = vmatpush1.bf16.xpose.msra.mxu0 0
      %3016 = vmatprep.subr.bf16.mxu0 0
      %3017 = vmatpush1.bf16.xpose.msra.mxu0 0
      %3018 = vmatprep.mubr.bf16.mxu0 0
      %3019 = vmatmul.mubr.bf16.gmra.mrb[0].mxu0 %v2981
      %v3020 = vpop.f32.mrb[0].mxu0
      %v3021 = vadd.f32 0.0, %v3020
      %v3022 = vpop.f32.mrb[0].mxu0
      %v3023 = vpop.f32.mrb[0].mxu0
      %v3024 = vpop.f32.mrb[0].mxu0
      %3025 = vdwg.mxu0
      %3026 = vrot.lane.b32.xlu0 %v829, 120
      %v3027 = vpop.permute.xlu0 %3026
      %3028 = vrot.lane.b32.xlu0 %v1054, 120
      %v3029 = vpop.permute.xlu0 %3028
      %v3031 = vsel %vm1294, %v3027, 0
      %v3034 = vsel %vm1294, %v3029, 0
      %3036 = vmatprep.subr.bf16.mxu0 0
      %3037 = vmatpush1.bf16.xpose.msra.mxu0 %v3034
      %3038 = vmatprep.subr.bf16.mxu0 0
      %3039 = vmatpush1.bf16.xpose.msra.mxu0 0
      %3040 = vmatprep.subr.bf16.mxu0 0
      %3041 = vmatpush1.bf16.xpose.msra.mxu0 0
      %3042 = vmatprep.subr.bf16.mxu0 0
      %3043 = vmatpush1.bf16.xpose.msra.mxu0 0
      %3044 = vmatprep.subr.bf16.mxu0 0
      %3045 = vmatpush1.bf16.xpose.msra.mxu0 0
      %3046 = vmatprep.subr.bf16.mxu0 0
      %3047 = vmatpush1.bf16.xpose.msra.mxu0 0
      %3048 = vmatprep.subr.bf16.mxu0 0
      %3049 = vmatpush1.bf16.xpose.msra.mxu0 0
      %3050 = vmatprep.subr.bf16.mxu0 0
      %3051 = vmatpush1.bf16.xpose.msra.mxu0 0
      %3052 = vmatprep.subr.bf16.mxu0 0
      %3053 = vmatpush1.bf16.xpose.msra.mxu0 0
      %3054 = vmatprep.subr.bf16.mxu0 0
      %3055 = vmatpush1.bf16.xpose.msra.mxu0 0
      %3056 = vmatprep.subr.bf16.mxu0 0
      %3057 = vmatpush1.bf16.xpose.msra.mxu0 0
      %3058 = vmatprep.subr.bf16.mxu0 0
      %3059 = vmatpush1.bf16.xpose.msra.mxu0 0
      %3060 = vmatprep.subr.bf16.mxu0 0
      %3061 = vmatpush1.bf16.xpose.msra.mxu0 0
      %3062 = vmatprep.subr.bf16.mxu0 0
      %3063 = vmatpush1.bf16.xpose.msra.mxu0 0
      %3064 = vmatprep.subr.bf16.mxu0 0
      %3065 = vmatpush1.bf16.xpose.msra.mxu0 0
      %3066 = vmatprep.subr.bf16.mxu0 0
      %3067 = vmatpush1.bf16.xpose.msra.mxu0 0
      %3068 = vmatprep.mubr.bf16.mxu0 0
      %3069 = vmatmul.mubr.bf16.gmra.mrb[0].mxu0 %v3031
      %v3070 = vpop.f32.mrb[0].mxu0
      %v3071 = vadd.f32 0.0, %v3070
      %v3072 = vpop.f32.mrb[0].mxu0
      %v3073 = vpop.f32.mrb[0].mxu0
      %v3074 = vpop.f32.mrb[0].mxu0
      %3075 = vdwg.mxu0
      %3076 = vrot.lane.b32.xlu0 %v830, 120
      %v3077 = vpop.permute.xlu0 %3076
      %3078 = vrot.lane.b32.xlu0 %v1055, 120
      %v3079 = vpop.permute.xlu0 %3078
      %v3081 = vsel %vm1294, %v3077, 0
      %v3084 = vsel %vm1294, %v3079, 0
      %3086 = vmatprep.subr.bf16.mxu0 0
      %3087 = vmatpush1.bf16.xpose.msra.mxu0 %v3084
      %3088 = vmatprep.subr.bf16.mxu0 0
      %3089 = vmatpush1.bf16.xpose.msra.mxu0 0
      %3090 = vmatprep.subr.bf16.mxu0 0
      %3091 = vmatpush1.bf16.xpose.msra.mxu0 0
      %3092 = vmatprep.subr.bf16.mxu0 0
      %3093 = vmatpush1.bf16.xpose.msra.mxu0 0
      %3094 = vmatprep.subr.bf16.mxu0 0
      %3095 = vmatpush1.bf16.xpose.msra.mxu0 0
      %3096 = vmatprep.subr.bf16.mxu0 0
      %3097 = vmatpush1.bf16.xpose.msra.mxu0 0
      %3098 = vmatprep.subr.bf16.mxu0 0
      %3099 = vmatpush1.bf16.xpose.msra.mxu0 0
      %3100 = vmatprep.subr.bf16.mxu0 0
      %3101 = vmatpush1.bf16.xpose.msra.mxu0 0
      %3102 = vmatprep.subr.bf16.mxu0 0
      %3103 = vmatpush1.bf16.xpose.msra.mxu0 0
      %3104 = vmatprep.subr.bf16.mxu0 0
      %3105 = vmatpush1.bf16.xpose.msra.mxu0 0
      %3106 = vmatprep.subr.bf16.mxu0 0
      %3107 = vmatpush1.bf16.xpose.msra.mxu0 0
      %3108 = vmatprep.subr.bf16.mxu0 0
      %3109 = vmatpush1.bf16.xpose.msra.mxu0 0
      %3110 = vmatprep.subr.bf16.mxu0 0
      %3111 = vmatpush1.bf16.xpose.msra.mxu0 0
      %3112 = vmatprep.subr.bf16.mxu0 0
      %3113 = vmatpush1.bf16.xpose.msra.mxu0 0
      %3114 = vmatprep.subr.bf16.mxu0 0
      %3115 = vmatpush1.bf16.xpose.msra.mxu0 0
      %3116 = vmatprep.subr.bf16.mxu0 0
      %3117 = vmatpush1.bf16.xpose.msra.mxu0 0
      %3118 = vmatprep.mubr.bf16.mxu0 0
      %3119 = vmatmul.mubr.bf16.gmra.mrb[0].mxu0 %v3081
      %v3120 = vpop.f32.mrb[0].mxu0
      %v3121 = vadd.f32 0.0, %v3120
      %v3122 = vpop.f32.mrb[0].mxu0
      %v3123 = vpop.f32.mrb[0].mxu0
      %v3124 = vpop.f32.mrb[0].mxu0
      %3125 = vdwg.mxu0
      %3126 = vrot.lane.b32.xlu0 %v831, 120
      %v3127 = vpop.permute.xlu0 %3126
      %3128 = vrot.lane.b32.xlu0 %v1056, 120
      %v3129 = vpop.permute.xlu0 %3128
      %v3131 = vsel %vm1294, %v3127, 0
      %v3134 = vsel %vm1294, %v3129, 0
      %3136 = vmatprep.subr.bf16.mxu0 0
      %3137 = vmatpush1.bf16.xpose.msra.mxu0 %v3134
      %3138 = vmatprep.subr.bf16.mxu0 0
      %3139 = vmatpush1.bf16.xpose.msra.mxu0 0
      %3140 = vmatprep.subr.bf16.mxu0 0
      %3141 = vmatpush1.bf16.xpose.msra.mxu0 0
      %3142 = vmatprep.subr.bf16.mxu0 0
      %3143 = vmatpush1.bf16.xpose.msra.mxu0 0
      %3144 = vmatprep.subr.bf16.mxu0 0
      %3145 = vmatpush1.bf16.xpose.msra.mxu0 0
      %3146 = vmatprep.subr.bf16.mxu0 0
      %3147 = vmatpush1.bf16.xpose.msra.mxu0 0
      %3148 = vmatprep.subr.bf16.mxu0 0
      %3149 = vmatpush1.bf16.xpose.msra.mxu0 0
      %3150 = vmatprep.subr.bf16.mxu0 0
      %3151 = vmatpush1.bf16.xpose.msra.mxu0 0
      %3152 = vmatprep.subr.bf16.mxu0 0
      %3153 = vmatpush1.bf16.xpose.msra.mxu0 0
      %3154 = vmatprep.subr.bf16.mxu0 0
      %3155 = vmatpush1.bf16.xpose.msra.mxu0 0
      %3156 = vmatprep.subr.bf16.mxu0 0
      %3157 = vmatpush1.bf16.xpose.msra.mxu0 0
      %3158 = vmatprep.subr.bf16.mxu0 0
      %3159 = vmatpush1.bf16.xpose.msra.mxu0 0
      %3160 = vmatprep.subr.bf16.mxu0 0
      %3161 = vmatpush1.bf16.xpose.msra.mxu0 0
      %3162 = vmatprep.subr.bf16.mxu0 0
      %3163 = vmatpush1.bf16.xpose.msra.mxu0 0
      %3164 = vmatprep.subr.bf16.mxu0 0
      %3165 = vmatpush1.bf16.xpose.msra.mxu0 0
      %3166 = vmatprep.subr.bf16.mxu0 0
      %3167 = vmatpush1.bf16.xpose.msra.mxu0 0
      %3168 = vmatprep.mubr.bf16.mxu0 0
      %3169 = vmatmul.mubr.bf16.gmra.mrb[0].mxu0 %v3131
      %v3170 = vpop.f32.mrb[0].mxu0
      %v3171 = vadd.f32 0.0, %v3170
      %v3172 = vpop.f32.mrb[0].mxu0
      %v3173 = vpop.f32.mrb[0].mxu0
      %v3174 = vpop.f32.mrb[0].mxu0
      %3175 = vdwg.mxu0
      %3176 = vrot.lane.b32.xlu0 %v832, 120
      %v3177 = vpop.permute.xlu0 %3176
      %3178 = vrot.lane.b32.xlu0 %v1057, 120
      %v3179 = vpop.permute.xlu0 %3178
      %v3181 = vsel %vm1294, %v3177, 0
      %v3184 = vsel %vm1294, %v3179, 0
      %3186 = vmatprep.subr.bf16.mxu0 0
      %3187 = vmatpush1.bf16.xpose.msra.mxu0 %v3184
      %3188 = vmatprep.subr.bf16.mxu0 0
      %3189 = vmatpush1.bf16.xpose.msra.mxu0 0
      %3190 = vmatprep.subr.bf16.mxu0 0
      %3191 = vmatpush1.bf16.xpose.msra.mxu0 0
      %3192 = vmatprep.subr.bf16.mxu0 0
      %3193 = vmatpush1.bf16.xpose.msra.mxu0 0
      %3194 = vmatprep.subr.bf16.mxu0 0
      %3195 = vmatpush1.bf16.xpose.msra.mxu0 0
      %3196 = vmatprep.subr.bf16.mxu0 0
      %3197 = vmatpush1.bf16.xpose.msra.mxu0 0
      %3198 = vmatprep.subr.bf16.mxu0 0
      %3199 = vmatpush1.bf16.xpose.msra.mxu0 0
      %3200 = vmatprep.subr.bf16.mxu0 0
      %3201 = vmatpush1.bf16.xpose.msra.mxu0 0
      %3202 = vmatprep.subr.bf16.mxu0 0
      %3203 = vmatpush1.bf16.xpose.msra.mxu0 0
      %3204 = vmatprep.subr.bf16.mxu0 0
      %3205 = vmatpush1.bf16.xpose.msra.mxu0 0
      %3206 = vmatprep.subr.bf16.mxu0 0
      %3207 = vmatpush1.bf16.xpose.msra.mxu0 0
      %3208 = vmatprep.subr.bf16.mxu0 0
      %3209 = vmatpush1.bf16.xpose.msra.mxu0 0
      %3210 = vmatprep.subr.bf16.mxu0 0
      %3211 = vmatpush1.bf16.xpose.msra.mxu0 0
      %3212 = vmatprep.subr.bf16.mxu0 0
      %3213 = vmatpush1.bf16.xpose.msra.mxu0 0
      %3214 = vmatprep.subr.bf16.mxu0 0
      %3215 = vmatpush1.bf16.xpose.msra.mxu0 0
      %3216 = vmatprep.subr.bf16.mxu0 0
      %3217 = vmatpush1.bf16.xpose.msra.mxu0 0
      %3218 = vmatprep.mubr.bf16.mxu0 0
      %3219 = vmatmul.mubr.bf16.gmra.mrb[0].mxu0 %v3181
      %v3220 = vpop.f32.mrb[0].mxu0
      %v3221 = vadd.f32 0.0, %v3220
      %v3222 = vpop.f32.mrb[0].mxu0
      %v3223 = vpop.f32.mrb[0].mxu0
      %v3224 = vpop.f32.mrb[0].mxu0
      %3225 = vdwg.mxu0
      %3226 = vrot.lane.b32.xlu0 %v833, 120
      %v3227 = vpop.permute.xlu0 %3226
      %3228 = vrot.lane.b32.xlu0 %v1058, 120
      %v3229 = vpop.permute.xlu0 %3228
      %v3231 = vsel %vm1294, %v3227, 0
      %v3234 = vsel %vm1294, %v3229, 0
      %3236 = vmatprep.subr.bf16.mxu0 0
      %3237 = vmatpush1.bf16.xpose.msra.mxu0 %v3234
      %3238 = vmatprep.subr.bf16.mxu0 0
      %3239 = vmatpush1.bf16.xpose.msra.mxu0 0
      %3240 = vmatprep.subr.bf16.mxu0 0
      %3241 = vmatpush1.bf16.xpose.msra.mxu0 0
      %3242 = vmatprep.subr.bf16.mxu0 0
      %3243 = vmatpush1.bf16.xpose.msra.mxu0 0
      %3244 = vmatprep.subr.bf16.mxu0 0
      %3245 = vmatpush1.bf16.xpose.msra.mxu0 0
      %3246 = vmatprep.subr.bf16.mxu0 0
      %3247 = vmatpush1.bf16.xpose.msra.mxu0 0
      %3248 = vmatprep.subr.bf16.mxu0 0
      %3249 = vmatpush1.bf16.xpose.msra.mxu0 0
      %3250 = vmatprep.subr.bf16.mxu0 0
      %3251 = vmatpush1.bf16.xpose.msra.mxu0 0
      %3252 = vmatprep.subr.bf16.mxu0 0
      %3253 = vmatpush1.bf16.xpose.msra.mxu0 0
      %3254 = vmatprep.subr.bf16.mxu0 0
      %3255 = vmatpush1.bf16.xpose.msra.mxu0 0
      %3256 = vmatprep.subr.bf16.mxu0 0
      %3257 = vmatpush1.bf16.xpose.msra.mxu0 0
      %3258 = vmatprep.subr.bf16.mxu0 0
      %3259 = vmatpush1.bf16.xpose.msra.mxu0 0
      %3260 = vmatprep.subr.bf16.mxu0 0
      %3261 = vmatpush1.bf16.xpose.msra.mxu0 0
      %3262 = vmatprep.subr.bf16.mxu0 0
      %3263 = vmatpush1.bf16.xpose.msra.mxu0 0
      %3264 = vmatprep.subr.bf16.mxu0 0
      %3265 = vmatpush1.bf16.xpose.msra.mxu0 0
      %3266 = vmatprep.subr.bf16.mxu0 0
      %3267 = vmatpush1.bf16.xpose.msra.mxu0 0
      %3268 = vmatprep.mubr.bf16.mxu0 0
      %3269 = vmatmul.mubr.bf16.gmra.mrb[0].mxu0 %v3231
      %v3270 = vpop.f32.mrb[0].mxu0
      %v3271 = vadd.f32 0.0, %v3270
      %v3272 = vpop.f32.mrb[0].mxu0
      %v3273 = vpop.f32.mrb[0].mxu0
      %v3274 = vpop.f32.mrb[0].mxu0
      %3275 = vdwg.mxu0
      %3276 = vrot.lane.b32.xlu0 %v834, 120
      %v3277 = vpop.permute.xlu0 %3276
      %3278 = vrot.lane.b32.xlu0 %v1059, 120
      %v3279 = vpop.permute.xlu0 %3278
      %v3281 = vsel %vm1294, %v3277, 0
      %v3284 = vsel %vm1294, %v3279, 0
      %3286 = vmatprep.subr.bf16.mxu0 0
      %3287 = vmatpush1.bf16.xpose.msra.mxu0 %v3284
      %3288 = vmatprep.subr.bf16.mxu0 0
      %3289 = vmatpush1.bf16.xpose.msra.mxu0 0
      %3290 = vmatprep.subr.bf16.mxu0 0
      %3291 = vmatpush1.bf16.xpose.msra.mxu0 0
      %3292 = vmatprep.subr.bf16.mxu0 0
      %3293 = vmatpush1.bf16.xpose.msra.mxu0 0
      %3294 = vmatprep.subr.bf16.mxu0 0
      %3295 = vmatpush1.bf16.xpose.msra.mxu0 0
      %3296 = vmatprep.subr.bf16.mxu0 0
      %3297 = vmatpush1.bf16.xpose.msra.mxu0 0
      %3298 = vmatprep.subr.bf16.mxu0 0
      %3299 = vmatpush1.bf16.xpose.msra.mxu0 0
      %3300 = vmatprep.subr.bf16.mxu0 0
      %3301 = vmatpush1.bf16.xpose.msra.mxu0 0
      %3302 = vmatprep.subr.bf16.mxu0 0
      %3303 = vmatpush1.bf16.xpose.msra.mxu0 0
      %3304 = vmatprep.subr.bf16.mxu0 0
      %3305 = vmatpush1.bf16.xpose.msra.mxu0 0
      %3306 = vmatprep.subr.bf16.mxu0 0
      %3307 = vmatpush1.bf16.xpose.msra.mxu0 0
      %3308 = vmatprep.subr.bf16.mxu0 0
      %3309 = vmatpush1.bf16.xpose.msra.mxu0 0
      %3310 = vmatprep.subr.bf16.mxu0 0
      %3311 = vmatpush1.bf16.xpose.msra.mxu0 0
      %3312 = vmatprep.subr.bf16.mxu0 0
      %3313 = vmatpush1.bf16.xpose.msra.mxu0 0
      %3314 = vmatprep.subr.bf16.mxu0 0
      %3315 = vmatpush1.bf16.xpose.msra.mxu0 0
      %3316 = vmatprep.subr.bf16.mxu0 0
      %3317 = vmatpush1.bf16.xpose.msra.mxu0 0
      %3318 = vmatprep.mubr.bf16.mxu0 0
      %3319 = vmatmul.mubr.bf16.gmra.mrb[0].mxu0 %v3281
      %v3320 = vpop.f32.mrb[0].mxu0
      %v3321 = vadd.f32 0.0, %v3320
      %v3322 = vpop.f32.mrb[0].mxu0
      %v3323 = vpop.f32.mrb[0].mxu0
      %v3324 = vpop.f32.mrb[0].mxu0
      %3325 = vdwg.mxu0
      %3326 = vrot.lane.b32.xlu0 %v835, 120
      %v3327 = vpop.permute.xlu0 %3326
      %3328 = vrot.lane.b32.xlu0 %v1060, 120
      %v3329 = vpop.permute.xlu0 %3328
      %v3331 = vsel %vm1294, %v3327, 0
      %v3334 = vsel %vm1294, %v3329, 0
      %3336 = vmatprep.subr.bf16.mxu0 0
      %3337 = vmatpush1.bf16.xpose.msra.mxu0 %v3334
      %3338 = vmatprep.subr.bf16.mxu0 0
      %3339 = vmatpush1.bf16.xpose.msra.mxu0 0
      %3340 = vmatprep.subr.bf16.mxu0 0
      %3341 = vmatpush1.bf16.xpose.msra.mxu0 0
      %3342 = vmatprep.subr.bf16.mxu0 0
      %3343 = vmatpush1.bf16.xpose.msra.mxu0 0
      %3344 = vmatprep.subr.bf16.mxu0 0
      %3345 = vmatpush1.bf16.xpose.msra.mxu0 0
      %3346 = vmatprep.subr.bf16.mxu0 0
      %3347 = vmatpush1.bf16.xpose.msra.mxu0 0
      %3348 = vmatprep.subr.bf16.mxu0 0
      %3349 = vmatpush1.bf16.xpose.msra.mxu0 0
      %3350 = vmatprep.subr.bf16.mxu0 0
      %3351 = vmatpush1.bf16.xpose.msra.mxu0 0
      %3352 = vmatprep.subr.bf16.mxu0 0
      %3353 = vmatpush1.bf16.xpose.msra.mxu0 0
      %3354 = vmatprep.subr.bf16.mxu0 0
      %3355 = vmatpush1.bf16.xpose.msra.mxu0 0
      %3356 = vmatprep.subr.bf16.mxu0 0
      %3357 = vmatpush1.bf16.xpose.msra.mxu0 0
      %3358 = vmatprep.subr.bf16.mxu0 0
      %3359 = vmatpush1.bf16.xpose.msra.mxu0 0
      %3360 = vmatprep.subr.bf16.mxu0 0
      %3361 = vmatpush1.bf16.xpose.msra.mxu0 0
      %3362 = vmatprep.subr.bf16.mxu0 0
      %3363 = vmatpush1.bf16.xpose.msra.mxu0 0
      %3364 = vmatprep.subr.bf16.mxu0 0
      %3365 = vmatpush1.bf16.xpose.msra.mxu0 0
      %3366 = vmatprep.subr.bf16.mxu0 0
      %3367 = vmatpush1.bf16.xpose.msra.mxu0 0
      %3368 = vmatprep.mubr.bf16.mxu0 0
      %3369 = vmatmul.mubr.bf16.gmra.mrb[0].mxu0 %v3331
      %v3370 = vpop.f32.mrb[0].mxu0
      %v3371 = vadd.f32 0.0, %v3370
      %v3372 = vpop.f32.mrb[0].mxu0
      %v3373 = vpop.f32.mrb[0].mxu0
      %v3374 = vpop.f32.mrb[0].mxu0
      %3375 = vdwg.mxu0
      %3376 = vrot.lane.b32.xlu0 %v836, 120
      %v3377 = vpop.permute.xlu0 %3376
      %3378 = vrot.lane.b32.xlu0 %v1061, 120
      %v3379 = vpop.permute.xlu0 %3378
      %v3381 = vsel %vm1294, %v3377, 0
      %v3384 = vsel %vm1294, %v3379, 0
      %3386 = vmatprep.subr.bf16.mxu0 0
      %3387 = vmatpush1.bf16.xpose.msra.mxu0 %v3384
      %3388 = vmatprep.subr.bf16.mxu0 0
      %3389 = vmatpush1.bf16.xpose.msra.mxu0 0
      %3390 = vmatprep.subr.bf16.mxu0 0
      %3391 = vmatpush1.bf16.xpose.msra.mxu0 0
      %3392 = vmatprep.subr.bf16.mxu0 0
      %3393 = vmatpush1.bf16.xpose.msra.mxu0 0
      %3394 = vmatprep.subr.bf16.mxu0 0
      %3395 = vmatpush1.bf16.xpose.msra.mxu0 0
      %3396 = vmatprep.subr.bf16.mxu0 0
      %3397 = vmatpush1.bf16.xpose.msra.mxu0 0
      %3398 = vmatprep.subr.bf16.mxu0 0
      %3399 = vmatpush1.bf16.xpose.msra.mxu0 0
      %3400 = vmatprep.subr.bf16.mxu0 0
      %3401 = vmatpush1.bf16.xpose.msra.mxu0 0
      %3402 = vmatprep.subr.bf16.mxu0 0
      %3403 = vmatpush1.bf16.xpose.msra.mxu0 0
      %3404 = vmatprep.subr.bf16.mxu0 0
      %3405 = vmatpush1.bf16.xpose.msra.mxu0 0
      %3406 = vmatprep.subr.bf16.mxu0 0
      %3407 = vmatpush1.bf16.xpose.msra.mxu0 0
      %3408 = vmatprep.subr.bf16.mxu0 0
      %3409 = vmatpush1.bf16.xpose.msra.mxu0 0
      %3410 = vmatprep.subr.bf16.mxu0 0
      %3411 = vmatpush1.bf16.xpose.msra.mxu0 0
      %3412 = vmatprep.subr.bf16.mxu0 0
      %3413 = vmatpush1.bf16.xpose.msra.mxu0 0
      %3414 = vmatprep.subr.bf16.mxu0 0
      %3415 = vmatpush1.bf16.xpose.msra.mxu0 0
      %3416 = vmatprep.subr.bf16.mxu0 0
      %3417 = vmatpush1.bf16.xpose.msra.mxu0 0
      %3418 = vmatprep.mubr.bf16.mxu0 0
      %3419 = vmatmul.mubr.bf16.gmra.mrb[0].mxu0 %v3381
      %v3420 = vpop.f32.mrb[0].mxu0
      %v3421 = vadd.f32 0.0, %v3420
      %v3422 = vpop.f32.mrb[0].mxu0
      %v3423 = vpop.f32.mrb[0].mxu0
      %v3424 = vpop.f32.mrb[0].mxu0
      %3425 = vdwg.mxu0
      %3426 = vrot.lane.b32.xlu0 %v837, 120
      %v3427 = vpop.permute.xlu0 %3426
      %3428 = vrot.lane.b32.xlu0 %v1062, 120
      %v3429 = vpop.permute.xlu0 %3428
      %v3431 = vsel %vm1294, %v3427, 0
      %v3434 = vsel %vm1294, %v3429, 0
      %3436 = vmatprep.subr.bf16.mxu0 0
      %3437 = vmatpush1.bf16.xpose.msra.mxu0 %v3434
      %3438 = vmatprep.subr.bf16.mxu0 0
      %3439 = vmatpush1.bf16.xpose.msra.mxu0 0
      %3440 = vmatprep.subr.bf16.mxu0 0
      %3441 = vmatpush1.bf16.xpose.msra.mxu0 0
      %3442 = vmatprep.subr.bf16.mxu0 0
      %3443 = vmatpush1.bf16.xpose.msra.mxu0 0
      %3444 = vmatprep.subr.bf16.mxu0 0
      %3445 = vmatpush1.bf16.xpose.msra.mxu0 0
      %3446 = vmatprep.subr.bf16.mxu0 0
      %3447 = vmatpush1.bf16.xpose.msra.mxu0 0
      %3448 = vmatprep.subr.bf16.mxu0 0
      %3449 = vmatpush1.bf16.xpose.msra.mxu0 0
      %3450 = vmatprep.subr.bf16.mxu0 0
      %3451 = vmatpush1.bf16.xpose.msra.mxu0 0
      %3452 = vmatprep.subr.bf16.mxu0 0
      %3453 = vmatpush1.bf16.xpose.msra.mxu0 0
      %3454 = vmatprep.subr.bf16.mxu0 0
      %3455 = vmatpush1.bf16.xpose.msra.mxu0 0
      %3456 = vmatprep.subr.bf16.mxu0 0
      %3457 = vmatpush1.bf16.xpose.msra.mxu0 0
      %3458 = vmatprep.subr.bf16.mxu0 0
      %3459 = vmatpush1.bf16.xpose.msra.mxu0 0
      %3460 = vmatprep.subr.bf16.mxu0 0
      %3461 = vmatpush1.bf16.xpose.msra.mxu0 0
      %3462 = vmatprep.subr.bf16.mxu0 0
      %3463 = vmatpush1.bf16.xpose.msra.mxu0 0
      %3464 = vmatprep.subr.bf16.mxu0 0
      %3465 = vmatpush1.bf16.xpose.msra.mxu0 0
      %3466 = vmatprep.subr.bf16.mxu0 0
      %3467 = vmatpush1.bf16.xpose.msra.mxu0 0
      %3468 = vmatprep.mubr.bf16.mxu0 0
      %3469 = vmatmul.mubr.bf16.gmra.mrb[0].mxu0 %v3431
      %v3470 = vpop.f32.mrb[0].mxu0
      %v3471 = vadd.f32 0.0, %v3470
      %v3472 = vpop.f32.mrb[0].mxu0
      %v3473 = vpop.f32.mrb[0].mxu0
      %v3474 = vpop.f32.mrb[0].mxu0
      %3475 = vdwg.mxu0
      %3476 = vrot.lane.b32.xlu0 %v838, 120
      %v3477 = vpop.permute.xlu0 %3476
      %3478 = vrot.lane.b32.xlu0 %v1063, 120
      %v3479 = vpop.permute.xlu0 %3478
      %v3481 = vsel %vm1294, %v3477, 0
      %v3484 = vsel %vm1294, %v3479, 0
      %3486 = vmatprep.subr.bf16.mxu0 0
      %3487 = vmatpush1.bf16.xpose.msra.mxu0 %v3484
      %3488 = vmatprep.subr.bf16.mxu0 0
      %3489 = vmatpush1.bf16.xpose.msra.mxu0 0
      %3490 = vmatprep.subr.bf16.mxu0 0
      %3491 = vmatpush1.bf16.xpose.msra.mxu0 0
      %3492 = vmatprep.subr.bf16.mxu0 0
      %3493 = vmatpush1.bf16.xpose.msra.mxu0 0
      %3494 = vmatprep.subr.bf16.mxu0 0
      %3495 = vmatpush1.bf16.xpose.msra.mxu0 0
      %3496 = vmatprep.subr.bf16.mxu0 0
      %3497 = vmatpush1.bf16.xpose.msra.mxu0 0
      %3498 = vmatprep.subr.bf16.mxu0 0
      %3499 = vmatpush1.bf16.xpose.msra.mxu0 0
      %3500 = vmatprep.subr.bf16.mxu0 0
      %3501 = vmatpush1.bf16.xpose.msra.mxu0 0
      %3502 = vmatprep.subr.bf16.mxu0 0
      %3503 = vmatpush1.bf16.xpose.msra.mxu0 0
      %3504 = vmatprep.subr.bf16.mxu0 0
      %3505 = vmatpush1.bf16.xpose.msra.mxu0 0
      %3506 = vmatprep.subr.bf16.mxu0 0
      %3507 = vmatpush1.bf16.xpose.msra.mxu0 0
      %3508 = vmatprep.subr.bf16.mxu0 0
      %3509 = vmatpush1.bf16.xpose.msra.mxu0 0
      %3510 = vmatprep.subr.bf16.mxu0 0
      %3511 = vmatpush1.bf16.xpose.msra.mxu0 0
      %3512 = vmatprep.subr.bf16.mxu0 0
      %3513 = vmatpush1.bf16.xpose.msra.mxu0 0
      %3514 = vmatprep.subr.bf16.mxu0 0
      %3515 = vmatpush1.bf16.xpose.msra.mxu0 0
      %3516 = vmatprep.subr.bf16.mxu0 0
      %3517 = vmatpush1.bf16.xpose.msra.mxu0 0
      %3518 = vmatprep.mubr.bf16.mxu0 0
      %3519 = vmatmul.mubr.bf16.gmra.mrb[0].mxu0 %v3481
      %v3520 = vpop.f32.mrb[0].mxu0
      %v3521 = vadd.f32 0.0, %v3520
      %v3522 = vpop.f32.mrb[0].mxu0
      %v3523 = vpop.f32.mrb[0].mxu0
      %v3524 = vpop.f32.mrb[0].mxu0
      %3525 = vdwg.mxu0
      %3526 = vrot.lane.b32.xlu0 %v839, 120
      %v3527 = vpop.permute.xlu0 %3526
      %3528 = vrot.lane.b32.xlu0 %v1064, 120
      %v3529 = vpop.permute.xlu0 %3528
      %v3531 = vsel %vm1294, %v3527, 0
      %v3534 = vsel %vm1294, %v3529, 0
      %3536 = vmatprep.subr.bf16.mxu0 0
      %3537 = vmatpush1.bf16.xpose.msra.mxu0 %v3534
      %3538 = vmatprep.subr.bf16.mxu0 0
      %3539 = vmatpush1.bf16.xpose.msra.mxu0 0
      %3540 = vmatprep.subr.bf16.mxu0 0
      %3541 = vmatpush1.bf16.xpose.msra.mxu0 0
      %3542 = vmatprep.subr.bf16.mxu0 0
      %3543 = vmatpush1.bf16.xpose.msra.mxu0 0
      %3544 = vmatprep.subr.bf16.mxu0 0
      %3545 = vmatpush1.bf16.xpose.msra.mxu0 0
      %3546 = vmatprep.subr.bf16.mxu0 0
      %3547 = vmatpush1.bf16.xpose.msra.mxu0 0
      %3548 = vmatprep.subr.bf16.mxu0 0
      %3549 = vmatpush1.bf16.xpose.msra.mxu0 0
      %3550 = vmatprep.subr.bf16.mxu0 0
      %3551 = vmatpush1.bf16.xpose.msra.mxu0 0
      %3552 = vmatprep.subr.bf16.mxu0 0
      %3553 = vmatpush1.bf16.xpose.msra.mxu0 0
      %3554 = vmatprep.subr.bf16.mxu0 0
      %3555 = vmatpush1.bf16.xpose.msra.mxu0 0
      %3556 = vmatprep.subr.bf16.mxu0 0
      %3557 = vmatpush1.bf16.xpose.msra.mxu0 0
      %3558 = vmatprep.subr.bf16.mxu0 0
      %3559 = vmatpush1.bf16.xpose.msra.mxu0 0
      %3560 = vmatprep.subr.bf16.mxu0 0
      %3561 = vmatpush1.bf16.xpose.msra.mxu0 0
      %3562 = vmatprep.subr.bf16.mxu0 0
      %3563 = vmatpush1.bf16.xpose.msra.mxu0 0
      %3564 = vmatprep.subr.bf16.mxu0 0
      %3565 = vmatpush1.bf16.xpose.msra.mxu0 0
      %3566 = vmatprep.subr.bf16.mxu0 0
      %3567 = vmatpush1.bf16.xpose.msra.mxu0 0
      %3568 = vmatprep.mubr.bf16.mxu0 0
      %3569 = vmatmul.mubr.bf16.gmra.mrb[0].mxu0 %v3531
      %v3570 = vpop.f32.mrb[0].mxu0
      %v3571 = vadd.f32 0.0, %v3570
      %v3572 = vpop.f32.mrb[0].mxu0
      %v3573 = vpop.f32.mrb[0].mxu0
      %v3574 = vpop.f32.mrb[0].mxu0
      %3575 = vdwg.mxu0
      %3576 = vrot.lane.b32.xlu0 %v840, 120
      %v3577 = vpop.permute.xlu0 %3576
      %3578 = vrot.lane.b32.xlu0 %v1065, 120
      %v3579 = vpop.permute.xlu0 %3578
      %v3581 = vsel %vm1294, %v3577, 0
      %v3584 = vsel %vm1294, %v3579, 0
      %3586 = vmatprep.subr.bf16.mxu0 0
      %3587 = vmatpush1.bf16.xpose.msra.mxu0 %v3584
      %3588 = vmatprep.subr.bf16.mxu0 0
      %3589 = vmatpush1.bf16.xpose.msra.mxu0 0
      %3590 = vmatprep.subr.bf16.mxu0 0
      %3591 = vmatpush1.bf16.xpose.msra.mxu0 0
      %3592 = vmatprep.subr.bf16.mxu0 0
      %3593 = vmatpush1.bf16.xpose.msra.mxu0 0
      %3594 = vmatprep.subr.bf16.mxu0 0
      %3595 = vmatpush1.bf16.xpose.msra.mxu0 0
      %3596 = vmatprep.subr.bf16.mxu0 0
      %3597 = vmatpush1.bf16.xpose.msra.mxu0 0
      %3598 = vmatprep.subr.bf16.mxu0 0
      %3599 = vmatpush1.bf16.xpose.msra.mxu0 0
      %3600 = vmatprep.subr.bf16.mxu0 0
      %3601 = vmatpush1.bf16.xpose.msra.mxu0 0
      %3602 = vmatprep.subr.bf16.mxu0 0
      %3603 = vmatpush1.bf16.xpose.msra.mxu0 0
      %3604 = vmatprep.subr.bf16.mxu0 0
      %3605 = vmatpush1.bf16.xpose.msra.mxu0 0
      %3606 = vmatprep.subr.bf16.mxu0 0
      %3607 = vmatpush1.bf16.xpose.msra.mxu0 0
      %3608 = vmatprep.subr.bf16.mxu0 0
      %3609 = vmatpush1.bf16.xpose.msra.mxu0 0
      %3610 = vmatprep.subr.bf16.mxu0 0
      %3611 = vmatpush1.bf16.xpose.msra.mxu0 0
      %3612 = vmatprep.subr.bf16.mxu0 0
      %3613 = vmatpush1.bf16.xpose.msra.mxu0 0
      %3614 = vmatprep.subr.bf16.mxu0 0
      %3615 = vmatpush1.bf16.xpose.msra.mxu0 0
      %3616 = vmatprep.subr.bf16.mxu0 0
      %3617 = vmatpush1.bf16.xpose.msra.mxu0 0
      %3618 = vmatprep.mubr.bf16.mxu0 0
      %3619 = vmatmul.mubr.bf16.gmra.mrb[0].mxu0 %v3581
      %v3620 = vpop.f32.mrb[0].mxu0
      %v3621 = vadd.f32 0.0, %v3620
      %v3622 = vpop.f32.mrb[0].mxu0
      %v3623 = vpop.f32.mrb[0].mxu0
      %v3624 = vpop.f32.mrb[0].mxu0
      %3625 = vdwg.mxu0
      %3626 = vrot.lane.b32.xlu0 %v841, 120
      %v3627 = vpop.permute.xlu0 %3626
      %3628 = vrot.lane.b32.xlu0 %v1066, 120
      %v3629 = vpop.permute.xlu0 %3628
      %v3631 = vsel %vm1294, %v3627, 0
      %v3634 = vsel %vm1294, %v3629, 0
      %3636 = vmatprep.subr.bf16.mxu0 0
      %3637 = vmatpush1.bf16.xpose.msra.mxu0 %v3634
      %3638 = vmatprep.subr.bf16.mxu0 0
      %3639 = vmatpush1.bf16.xpose.msra.mxu0 0
      %3640 = vmatprep.subr.bf16.mxu0 0
      %3641 = vmatpush1.bf16.xpose.msra.mxu0 0
      %3642 = vmatprep.subr.bf16.mxu0 0
      %3643 = vmatpush1.bf16.xpose.msra.mxu0 0
      %3644 = vmatprep.subr.bf16.mxu0 0
      %3645 = vmatpush1.bf16.xpose.msra.mxu0 0
      %3646 = vmatprep.subr.bf16.mxu0 0
      %3647 = vmatpush1.bf16.xpose.msra.mxu0 0
      %3648 = vmatprep.subr.bf16.mxu0 0
      %3649 = vmatpush1.bf16.xpose.msra.mxu0 0
      %3650 = vmatprep.subr.bf16.mxu0 0
      %3651 = vmatpush1.bf16.xpose.msra.mxu0 0
      %3652 = vmatprep.subr.bf16.mxu0 0
      %3653 = vmatpush1.bf16.xpose.msra.mxu0 0
      %3654 = vmatprep.subr.bf16.mxu0 0
      %3655 = vmatpush1.bf16.xpose.msra.mxu0 0
      %3656 = vmatprep.subr.bf16.mxu0 0
      %3657 = vmatpush1.bf16.xpose.msra.mxu0 0
      %3658 = vmatprep.subr.bf16.mxu0 0
      %3659 = vmatpush1.bf16.xpose.msra.mxu0 0
      %3660 = vmatprep.subr.bf16.mxu0 0
      %3661 = vmatpush1.bf16.xpose.msra.mxu0 0
      %3662 = vmatprep.subr.bf16.mxu0 0
      %3663 = vmatpush1.bf16.xpose.msra.mxu0 0
      %3664 = vmatprep.subr.bf16.mxu0 0
      %3665 = vmatpush1.bf16.xpose.msra.mxu0 0
      %3666 = vmatprep.subr.bf16.mxu0 0
      %3667 = vmatpush1.bf16.xpose.msra.mxu0 0
      %3668 = vmatprep.mubr.bf16.mxu0 0
      %3669 = vmatmul.mubr.bf16.gmra.mrb[0].mxu0 %v3631
      %v3670 = vpop.f32.mrb[0].mxu0
      %v3671 = vadd.f32 0.0, %v3670
      %v3672 = vpop.f32.mrb[0].mxu0
      %v3673 = vpop.f32.mrb[0].mxu0
      %v3674 = vpop.f32.mrb[0].mxu0
      %3675 = vdwg.mxu0
      %3676 = vrot.lane.b32.xlu0 %v842, 120
      %v3677 = vpop.permute.xlu0 %3676
      %3678 = vrot.lane.b32.xlu0 %v1067, 120
      %v3679 = vpop.permute.xlu0 %3678
      %v3681 = vsel %vm1294, %v3677, 0
      %v3684 = vsel %vm1294, %v3679, 0
      %3686 = vmatprep.subr.bf16.mxu0 0
      %3687 = vmatpush1.bf16.xpose.msra.mxu0 %v3684
      %3688 = vmatprep.subr.bf16.mxu0 0
      %3689 = vmatpush1.bf16.xpose.msra.mxu0 0
      %3690 = vmatprep.subr.bf16.mxu0 0
      %3691 = vmatpush1.bf16.xpose.msra.mxu0 0
      %3692 = vmatprep.subr.bf16.mxu0 0
      %3693 = vmatpush1.bf16.xpose.msra.mxu0 0
      %3694 = vmatprep.subr.bf16.mxu0 0
      %3695 = vmatpush1.bf16.xpose.msra.mxu0 0
      %3696 = vmatprep.subr.bf16.mxu0 0
      %3697 = vmatpush1.bf16.xpose.msra.mxu0 0
      %3698 = vmatprep.subr.bf16.mxu0 0
      %3699 = vmatpush1.bf16.xpose.msra.mxu0 0
      %3700 = vmatprep.subr.bf16.mxu0 0
      %3701 = vmatpush1.bf16.xpose.msra.mxu0 0
      %3702 = vmatprep.subr.bf16.mxu0 0
      %3703 = vmatpush1.bf16.xpose.msra.mxu0 0
      %3704 = vmatprep.subr.bf16.mxu0 0
      %3705 = vmatpush1.bf16.xpose.msra.mxu0 0
      %3706 = vmatprep.subr.bf16.mxu0 0
      %3707 = vmatpush1.bf16.xpose.msra.mxu0 0
      %3708 = vmatprep.subr.bf16.mxu0 0
      %3709 = vmatpush1.bf16.xpose.msra.mxu0 0
      %3710 = vmatprep.subr.bf16.mxu0 0
      %3711 = vmatpush1.bf16.xpose.msra.mxu0 0
      %3712 = vmatprep.subr.bf16.mxu0 0
      %3713 = vmatpush1.bf16.xpose.msra.mxu0 0
      %3714 = vmatprep.subr.bf16.mxu0 0
      %3715 = vmatpush1.bf16.xpose.msra.mxu0 0
      %3716 = vmatprep.subr.bf16.mxu0 0
      %3717 = vmatpush1.bf16.xpose.msra.mxu0 0
      %3718 = vmatprep.mubr.bf16.mxu0 0
      %3719 = vmatmul.mubr.bf16.gmra.mrb[0].mxu0 %v3681
      %v3720 = vpop.f32.mrb[0].mxu0
      %v3721 = vadd.f32 0.0, %v3720
      %v3722 = vpop.f32.mrb[0].mxu0
      %v3723 = vpop.f32.mrb[0].mxu0
      %v3724 = vpop.f32.mrb[0].mxu0
      %3725 = vdwg.mxu0
      %3726 = vrot.lane.b32.xlu0 %v843, 120
      %v3727 = vpop.permute.xlu0 %3726
      %3728 = vrot.lane.b32.xlu0 %v1068, 120
      %v3729 = vpop.permute.xlu0 %3728
      %v3731 = vsel %vm1294, %v3727, 0
      %v3734 = vsel %vm1294, %v3729, 0
      %3736 = vmatprep.subr.bf16.mxu0 0
      %3737 = vmatpush1.bf16.xpose.msra.mxu0 %v3734
      %3738 = vmatprep.subr.bf16.mxu0 0
      %3739 = vmatpush1.bf16.xpose.msra.mxu0 0
      %3740 = vmatprep.subr.bf16.mxu0 0
      %3741 = vmatpush1.bf16.xpose.msra.mxu0 0
      %3742 = vmatprep.subr.bf16.mxu0 0
      %3743 = vmatpush1.bf16.xpose.msra.mxu0 0
      %3744 = vmatprep.subr.bf16.mxu0 0
      %3745 = vmatpush1.bf16.xpose.msra.mxu0 0
      %3746 = vmatprep.subr.bf16.mxu0 0
      %3747 = vmatpush1.bf16.xpose.msra.mxu0 0
      %3748 = vmatprep.subr.bf16.mxu0 0
      %3749 = vmatpush1.bf16.xpose.msra.mxu0 0
      %3750 = vmatprep.subr.bf16.mxu0 0
      %3751 = vmatpush1.bf16.xpose.msra.mxu0 0
      %3752 = vmatprep.subr.bf16.mxu0 0
      %3753 = vmatpush1.bf16.xpose.msra.mxu0 0
      %3754 = vmatprep.subr.bf16.mxu0 0
      %3755 = vmatpush1.bf16.xpose.msra.mxu0 0
      %3756 = vmatprep.subr.bf16.mxu0 0
      %3757 = vmatpush1.bf16.xpose.msra.mxu0 0
      %3758 = vmatprep.subr.bf16.mxu0 0
      %3759 = vmatpush1.bf16.xpose.msra.mxu0 0
      %3760 = vmatprep.subr.bf16.mxu0 0
      %3761 = vmatpush1.bf16.xpose.msra.mxu0 0
      %3762 = vmatprep.subr.bf16.mxu0 0
      %3763 = vmatpush1.bf16.xpose.msra.mxu0 0
      %3764 = vmatprep.subr.bf16.mxu0 0
      %3765 = vmatpush1.bf16.xpose.msra.mxu0 0
      %3766 = vmatprep.subr.bf16.mxu0 0
      %3767 = vmatpush1.bf16.xpose.msra.mxu0 0
      %3768 = vmatprep.mubr.bf16.mxu0 0
      %3769 = vmatmul.mubr.bf16.gmra.mrb[0].mxu0 %v3731
      %v3770 = vpop.f32.mrb[0].mxu0
      %v3771 = vadd.f32 0.0, %v3770
      %v3772 = vpop.f32.mrb[0].mxu0
      %v3773 = vpop.f32.mrb[0].mxu0
      %v3774 = vpop.f32.mrb[0].mxu0
      %3775 = vdwg.mxu0
      %v3776 = vsel %vm1294, %v3021, -inf
      %3777 = vmax.xlane.f32.xlu0 %v3776
      %v3778 = vpop.xlane.xlu0 %3777
      %v3779 = vsel %vm1294, %v3071, -inf
      %3780 = vmax.xlane.f32.xlu0 %v3779
      %v3781 = vpop.xlane.xlu0 %3780
      %v3782 = vsel %vm1294, %v3121, -inf
      %3783 = vmax.xlane.f32.xlu0 %v3782
      %v3784 = vpop.xlane.xlu0 %3783
      %v3785 = vsel %vm1294, %v3171, -inf
      %3786 = vmax.xlane.f32.xlu0 %v3785
      %v3787 = vpop.xlane.xlu0 %3786
      %v3788 = vsel %vm1294, %v3221, -inf
      %3789 = vmax.xlane.f32.xlu0 %v3788
      %v3790 = vpop.xlane.xlu0 %3789
      %v3791 = vsel %vm1294, %v3271, -inf
      %3792 = vmax.xlane.f32.xlu0 %v3791
      %v3793 = vpop.xlane.xlu0 %3792
      %v3794 = vsel %vm1294, %v3321, -inf
      %3795 = vmax.xlane.f32.xlu0 %v3794
      %v3796 = vpop.xlane.xlu0 %3795
      %v3797 = vsel %vm1294, %v3371, -inf
      %3798 = vmax.xlane.f32.xlu0 %v3797
      %v3799 = vpop.xlane.xlu0 %3798
      %v3800 = vsel %vm1294, %v3421, -inf
      %3801 = vmax.xlane.f32.xlu0 %v3800
      %v3802 = vpop.xlane.xlu0 %3801
      %v3803 = vsel %vm1294, %v3471, -inf
      %3804 = vmax.xlane.f32.xlu0 %v3803
      %v3805 = vpop.xlane.xlu0 %3804
      %v3806 = vsel %vm1294, %v3521, -inf
      %3807 = vmax.xlane.f32.xlu0 %v3806
      %v3808 = vpop.xlane.xlu0 %3807
      %v3809 = vsel %vm1294, %v3571, -inf
      %3810 = vmax.xlane.f32.xlu0 %v3809
      %v3811 = vpop.xlane.xlu0 %3810
      %v3812 = vsel %vm1294, %v3621, -inf
      %3813 = vmax.xlane.f32.xlu0 %v3812
      %v3814 = vpop.xlane.xlu0 %3813
      %v3815 = vsel %vm1294, %v3671, -inf
      %3816 = vmax.xlane.f32.xlu0 %v3815
      %v3817 = vpop.xlane.xlu0 %3816
      %v3818 = vsel %vm1294, %v3721, -inf
      %3819 = vmax.xlane.f32.xlu0 %v3818
      %v3820 = vpop.xlane.xlu0 %3819
      %v3821 = vsel %vm1294, %v3771, -inf
      %3822 = vmax.xlane.f32.xlu0 %v3821
      %v3823 = vpop.xlane.xlu0 %3822
      %v3824 = vsub.f32 %v3021, %v3778
      %v3825 = vsub.f32 %v3071, %v3781
      %v3826 = vsub.f32 %v3121, %v3784
      %v3827 = vsub.f32 %v3171, %v3787
      %v3828 = vsub.f32 %v3221, %v3790
      %v3829 = vsub.f32 %v3271, %v3793
      %v3830 = vsub.f32 %v3321, %v3796
      %v3831 = vsub.f32 %v3371, %v3799
      %v3832 = vsub.f32 %v3421, %v3802
      %v3833 = vsub.f32 %v3471, %v3805
      %v3834 = vsub.f32 %v3521, %v3808
      %v3835 = vsub.f32 %v3571, %v3811
      %v3836 = vsub.f32 %v3621, %v3814
      %v3837 = vsub.f32 %v3671, %v3817
      %v3838 = vsub.f32 %v3721, %v3820
      %v3839 = vsub.f32 %v3771, %v3823
      %v3840 = vmul.f32 %v3824, 1.442695
      %v3841 = vpow.pop %v3840
      %v3842 = vmul.f32 %v3825, 1.442695
      %v3843 = vpow.pop %v3842
      %v3844 = vmul.f32 %v3826, 1.442695
      %v3845 = vpow.pop %v3844
      %v3846 = vmul.f32 %v3827, 1.442695
      %v3847 = vpow.pop %v3846
      %v3848 = vmul.f32 %v3828, 1.442695
      %v3849 = vpow.pop %v3848
      %v3850 = vmul.f32 %v3829, 1.442695
      %v3851 = vpow.pop %v3850
      %v3852 = vmul.f32 %v3830, 1.442695
      %v3853 = vpow.pop %v3852
      %v3854 = vmul.f32 %v3831, 1.442695
      %v3855 = vpow.pop %v3854
      %v3856 = vmul.f32 %v3832, 1.442695
      %v3857 = vpow.pop %v3856
      %v3858 = vmul.f32 %v3833, 1.442695
      %v3859 = vpow.pop %v3858
      %v3860 = vmul.f32 %v3834, 1.442695
      %v3861 = vpow.pop %v3860
      %v3862 = vmul.f32 %v3835, 1.442695
      %v3863 = vpow.pop %v3862
      %v3864 = vmul.f32 %v3836, 1.442695
      %v3865 = vpow.pop %v3864
      %v3866 = vmul.f32 %v3837, 1.442695
      %v3867 = vpow.pop %v3866
      %v3868 = vmul.f32 %v3838, 1.442695
      %v3869 = vpow.pop %v3868
      %v3870 = vmul.f32 %v3839, 1.442695
      %v3871 = vpow.pop %v3870
      %v3872 = vsel %vm1294, %v3841, 0.0
      %3873 = vadd.xlane.f32.xlu0 %v3872
      %v3874 = vpop.xlane.xlu0 %3873
      %v3875 = vsel %vm1294, %v3843, 0.0
      %3876 = vadd.xlane.f32.xlu0 %v3875
      %v3877 = vpop.xlane.xlu0 %3876
      %v3878 = vsel %vm1294, %v3845, 0.0
      %3879 = vadd.xlane.f32.xlu0 %v3878
      %v3880 = vpop.xlane.xlu0 %3879
      %v3881 = vsel %vm1294, %v3847, 0.0
      %3882 = vadd.xlane.f32.xlu0 %v3881
      %v3883 = vpop.xlane.xlu0 %3882
      %v3884 = vsel %vm1294, %v3849, 0.0
      %3885 = vadd.xlane.f32.xlu0 %v3884
      %v3886 = vpop.xlane.xlu0 %3885
      %v3887 = vsel %vm1294, %v3851, 0.0
      %3888 = vadd.xlane.f32.xlu0 %v3887
      %v3889 = vpop.xlane.xlu0 %3888
      %v3890 = vsel %vm1294, %v3853, 0.0
      %3891 = vadd.xlane.f32.xlu0 %v3890
      %v3892 = vpop.xlane.xlu0 %3891
      %v3893 = vsel %vm1294, %v3855, 0.0
      %3894 = vadd.xlane.f32.xlu0 %v3893
      %v3895 = vpop.xlane.xlu0 %3894
      %v3896 = vsel %vm1294, %v3857, 0.0
      %3897 = vadd.xlane.f32.xlu0 %v3896
      %v3898 = vpop.xlane.xlu0 %3897
      %v3899 = vsel %vm1294, %v3859, 0.0
      %3900 = vadd.xlane.f32.xlu0 %v3899
      %v3901 = vpop.xlane.xlu0 %3900
      %v3902 = vsel %vm1294, %v3861, 0.0
      %3903 = vadd.xlane.f32.xlu0 %v3902
      %v3904 = vpop.xlane.xlu0 %3903
      %v3905 = vsel %vm1294, %v3863, 0.0
      %3906 = vadd.xlane.f32.xlu0 %v3905
      %v3907 = vpop.xlane.xlu0 %3906
      %v3908 = vsel %vm1294, %v3865, 0.0
      %3909 = vadd.xlane.f32.xlu0 %v3908
      %v3910 = vpop.xlane.xlu0 %3909
      %v3911 = vsel %vm1294, %v3867, 0.0
      %3912 = vadd.xlane.f32.xlu0 %v3911
      %v3913 = vpop.xlane.xlu0 %3912
      %v3914 = vsel %vm1294, %v3869, 0.0
      %3915 = vadd.xlane.f32.xlu0 %v3914
      %v3916 = vpop.xlane.xlu0 %3915
      %v3917 = vsel %vm1294, %v3871, 0.0
      %3918 = vadd.xlane.f32.xlu0 %v3917
      %v3919 = vpop.xlane.xlu0 %3918
      %v3920 = vrcp.pop %v3874
      %v3921 = vrcp.pop %v3877
      %v3922 = vrcp.pop %v3880
      %v3923 = vrcp.pop %v3883
      %v3924 = vrcp.pop %v3886
      %v3925 = vrcp.pop %v3889
      %v3926 = vrcp.pop %v3892
      %v3927 = vrcp.pop %v3895
      %v3928 = vrcp.pop %v3898
      %v3929 = vrcp.pop %v3901
      %v3930 = vrcp.pop %v3904
      %v3931 = vrcp.pop %v3907
      %v3932 = vrcp.pop %v3910
      %v3933 = vrcp.pop %v3913
      %v3934 = vrcp.pop %v3916
      %v3935 = vrcp.pop %v3919
      %v3936 = vmul.f32 %v3841, %v3920
      %v3937 = vmul.f32 %v3843, %v3921
      %v3938 = vmul.f32 %v3845, %v3922
      %v3939 = vmul.f32 %v3847, %v3923
      %v3940 = vmul.f32 %v3849, %v3924
      %v3941 = vmul.f32 %v3851, %v3925
      %v3942 = vmul.f32 %v3853, %v3926
      %v3943 = vmul.f32 %v3855, %v3927
      %v3944 = vmul.f32 %v3857, %v3928
      %v3945 = vmul.f32 %v3859, %v3929
      %v3946 = vmul.f32 %v3861, %v3930
      %v3947 = vmul.f32 %v3863, %v3931
      %v3948 = vmul.f32 %v3865, %v3932
      %v3949 = vmul.f32 %v3867, %v3933
      %v3950 = vmul.f32 %v3869, %v3934
      %v3951 = vmul.f32 %v3871, %v3935
      %v3952 = vpack.c.bf16 %v3936, %v3936
      %v3953 = vpack.c.bf16 %v3937, %v3937
      %v3954 = vpack.c.bf16 %v3938, %v3938
      %v3955 = vpack.c.bf16 %v3939, %v3939
      %v3956 = vpack.c.bf16 %v3940, %v3940
      %v3957 = vpack.c.bf16 %v3941, %v3941
      %v3958 = vpack.c.bf16 %v3942, %v3942
      %v3959 = vpack.c.bf16 %v3943, %v3943
      %v3960 = vpack.c.bf16 %v3944, %v3944
      %v3961 = vpack.c.bf16 %v3945, %v3945
      %v3962 = vpack.c.bf16 %v3946, %v3946
      %v3963 = vpack.c.bf16 %v3947, %v3947
      %v3964 = vpack.c.bf16 %v3948, %v3948
      %v3965 = vpack.c.bf16 %v3949, %v3949
      %v3966 = vpack.c.bf16 %v3950, %v3950
      %v3967 = vpack.c.bf16 %v3951, %v3951
      %3968 = vrot.lane.b32.xlu0 %v1278, 120
      %v3969 = vpop.permute.xlu0 %3968
      %v3971 = vsel %vm1294, %v3952, 0
      %v3974 = vsel %vm2226, %v3969, 0
      %3976 = vmatprep.subr.bf16.mxu0 0
      %3977 = vmatpush1.bf16.msra.mxu0 %v3974
      %3978 = vmatprep.subr.bf16.mxu0 0
      %3979 = vmatpush1.bf16.msra.mxu0 0
      %3980 = vmatprep.subr.bf16.mxu0 0
      %3981 = vmatpush1.bf16.msra.mxu0 0
      %3982 = vmatprep.subr.bf16.mxu0 0
      %3983 = vmatpush1.bf16.msra.mxu0 0
      %3984 = vmatprep.subr.bf16.mxu0 0
      %3985 = vmatpush1.bf16.msra.mxu0 0
      %3986 = vmatprep.subr.bf16.mxu0 0
      %3987 = vmatpush1.bf16.msra.mxu0 0
      %3988 = vmatprep.subr.bf16.mxu0 0
      %3989 = vmatpush1.bf16.msra.mxu0 0
      %3990 = vmatprep.subr.bf16.mxu0 0
      %3991 = vmatpush1.bf16.msra.mxu0 0
      %3992 = vmatprep.subr.bf16.mxu0 0
      %3993 = vmatpush1.bf16.msra.mxu0 0
      %3994 = vmatprep.subr.bf16.mxu0 0
      %3995 = vmatpush1.bf16.msra.mxu0 0
      %3996 = vmatprep.subr.bf16.mxu0 0
      %3997 = vmatpush1.bf16.msra.mxu0 0
      %3998 = vmatprep.subr.bf16.mxu0 0
      %3999 = vmatpush1.bf16.msra.mxu0 0
      %4000 = vmatprep.subr.bf16.mxu0 0
      %4001 = vmatpush1.bf16.msra.mxu0 0
      %4002 = vmatprep.subr.bf16.mxu0 0
      %4003 = vmatpush1.bf16.msra.mxu0 0
      %4004 = vmatprep.subr.bf16.mxu0 0
      %4005 = vmatpush1.bf16.msra.mxu0 0
      %4006 = vmatprep.subr.bf16.mxu0 0
      %4007 = vmatpush1.bf16.msra.mxu0 0
      %4008 = vmatprep.mubr.bf16.mxu0 0
      %4009 = vmatmul.mubr.bf16.gmra.mrb[0].mxu0 %v3971
      %v4010 = vpop.f32.mrb[0].mxu0
      %v4011 = vadd.f32 0.0, %v4010
      %v4012 = vpop.f32.mrb[0].mxu0
      %v4013 = vpop.f32.mrb[0].mxu0
      %v4014 = vpop.f32.mrb[0].mxu0
      %4015 = vdwg.mxu0
      %4016 = vrot.lane.b32.xlu0 %v1279, 120
      %v4017 = vpop.permute.xlu0 %4016
      %v4019 = vsel %vm1294, %v3953, 0
      %v4022 = vsel %vm2226, %v4017, 0
      %4024 = vmatprep.subr.bf16.mxu0 0
      %4025 = vmatpush1.bf16.msra.mxu0 %v4022
      %4026 = vmatprep.subr.bf16.mxu0 0
      %4027 = vmatpush1.bf16.msra.mxu0 0
      %4028 = vmatprep.subr.bf16.mxu0 0
      %4029 = vmatpush1.bf16.msra.mxu0 0
      %4030 = vmatprep.subr.bf16.mxu0 0
      %4031 = vmatpush1.bf16.msra.mxu0 0
      %4032 = vmatprep.subr.bf16.mxu0 0
      %4033 = vmatpush1.bf16.msra.mxu0 0
      %4034 = vmatprep.subr.bf16.mxu0 0
      %4035 = vmatpush1.bf16.msra.mxu0 0
      %4036 = vmatprep.subr.bf16.mxu0 0
      %4037 = vmatpush1.bf16.msra.mxu0 0
      %4038 = vmatprep.subr.bf16.mxu0 0
      %4039 = vmatpush1.bf16.msra.mxu0 0
      %4040 = vmatprep.subr.bf16.mxu0 0
      %4041 = vmatpush1.bf16.msra.mxu0 0
      %4042 = vmatprep.subr.bf16.mxu0 0
      %4043 = vmatpush1.bf16.msra.mxu0 0
      %4044 = vmatprep.subr.bf16.mxu0 0
      %4045 = vmatpush1.bf16.msra.mxu0 0
      %4046 = vmatprep.subr.bf16.mxu0 0
      %4047 = vmatpush1.bf16.msra.mxu0 0
      %4048 = vmatprep.subr.bf16.mxu0 0
      %4049 = vmatpush1.bf16.msra.mxu0 0
      %4050 = vmatprep.subr.bf16.mxu0 0
      %4051 = vmatpush1.bf16.msra.mxu0 0
      %4052 = vmatprep.subr.bf16.mxu0 0
      %4053 = vmatpush1.bf16.msra.mxu0 0
      %4054 = vmatprep.subr.bf16.mxu0 0
      %4055 = vmatpush1.bf16.msra.mxu0 0
      %4056 = vmatprep.mubr.bf16.mxu0 0
      %4057 = vmatmul.mubr.bf16.gmra.mrb[0].mxu0 %v4019
      %v4058 = vpop.f32.mrb[0].mxu0
      %v4059 = vadd.f32 0.0, %v4058
      %v4060 = vpop.f32.mrb[0].mxu0
      %v4061 = vpop.f32.mrb[0].mxu0
      %v4062 = vpop.f32.mrb[0].mxu0
      %4063 = vdwg.mxu0
      %4064 = vrot.lane.b32.xlu0 %v1280, 120
      %v4065 = vpop.permute.xlu0 %4064
      %v4067 = vsel %vm1294, %v3954, 0
      %v4070 = vsel %vm2226, %v4065, 0
      %4072 = vmatprep.subr.bf16.mxu0 0
      %4073 = vmatpush1.bf16.msra.mxu0 %v4070
      %4074 = vmatprep.subr.bf16.mxu0 0
      %4075 = vmatpush1.bf16.msra.mxu0 0
      %4076 = vmatprep.subr.bf16.mxu0 0
      %4077 = vmatpush1.bf16.msra.mxu0 0
      %4078 = vmatprep.subr.bf16.mxu0 0
      %4079 = vmatpush1.bf16.msra.mxu0 0
      %4080 = vmatprep.subr.bf16.mxu0 0
      %4081 = vmatpush1.bf16.msra.mxu0 0
      %4082 = vmatprep.subr.bf16.mxu0 0
      %4083 = vmatpush1.bf16.msra.mxu0 0
      %4084 = vmatprep.subr.bf16.mxu0 0
      %4085 = vmatpush1.bf16.msra.mxu0 0
      %4086 = vmatprep.subr.bf16.mxu0 0
      %4087 = vmatpush1.bf16.msra.mxu0 0
      %4088 = vmatprep.subr.bf16.mxu0 0
      %4089 = vmatpush1.bf16.msra.mxu0 0
      %4090 = vmatprep.subr.bf16.mxu0 0
      %4091 = vmatpush1.bf16.msra.mxu0 0
      %4092 = vmatprep.subr.bf16.mxu0 0
      %4093 = vmatpush1.bf16.msra.mxu0 0
      %4094 = vmatprep.subr.bf16.mxu0 0
      %4095 = vmatpush1.bf16.msra.mxu0 0
      %4096 = vmatprep.subr.bf16.mxu0 0
      %4097 = vmatpush1.bf16.msra.mxu0 0
      %4098 = vmatprep.subr.bf16.mxu0 0
      %4099 = vmatpush1.bf16.msra.mxu0 0
      %4100 = vmatprep.subr.bf16.mxu0 0
      %4101 = vmatpush1.bf16.msra.mxu0 0
      %4102 = vmatprep.subr.bf16.mxu0 0
      %4103 = vmatpush1.bf16.msra.mxu0 0
      %4104 = vmatprep.mubr.bf16.mxu0 0
      %4105 = vmatmul.mubr.bf16.gmra.mrb[0].mxu0 %v4067
      %v4106 = vpop.f32.mrb[0].mxu0
      %v4107 = vadd.f32 0.0, %v4106
      %v4108 = vpop.f32.mrb[0].mxu0
      %v4109 = vpop.f32.mrb[0].mxu0
      %v4110 = vpop.f32.mrb[0].mxu0
      %4111 = vdwg.mxu0
      %4112 = vrot.lane.b32.xlu0 %v1281, 120
      %v4113 = vpop.permute.xlu0 %4112
      %v4115 = vsel %vm1294, %v3955, 0
      %v4118 = vsel %vm2226, %v4113, 0
      %4120 = vmatprep.subr.bf16.mxu0 0
      %4121 = vmatpush1.bf16.msra.mxu0 %v4118
      %4122 = vmatprep.subr.bf16.mxu0 0
      %4123 = vmatpush1.bf16.msra.mxu0 0
      %4124 = vmatprep.subr.bf16.mxu0 0
      %4125 = vmatpush1.bf16.msra.mxu0 0
      %4126 = vmatprep.subr.bf16.mxu0 0
      %4127 = vmatpush1.bf16.msra.mxu0 0
      %4128 = vmatprep.subr.bf16.mxu0 0
      %4129 = vmatpush1.bf16.msra.mxu0 0
      %4130 = vmatprep.subr.bf16.mxu0 0
      %4131 = vmatpush1.bf16.msra.mxu0 0
      %4132 = vmatprep.subr.bf16.mxu0 0
      %4133 = vmatpush1.bf16.msra.mxu0 0
      %4134 = vmatprep.subr.bf16.mxu0 0
      %4135 = vmatpush1.bf16.msra.mxu0 0
      %4136 = vmatprep.subr.bf16.mxu0 0
      %4137 = vmatpush1.bf16.msra.mxu0 0
      %4138 = vmatprep.subr.bf16.mxu0 0
      %4139 = vmatpush1.bf16.msra.mxu0 0
      %4140 = vmatprep.subr.bf16.mxu0 0
      %4141 = vmatpush1.bf16.msra.mxu0 0
      %4142 = vmatprep.subr.bf16.mxu0 0
      %4143 = vmatpush1.bf16.msra.mxu0 0
      %4144 = vmatprep.subr.bf16.mxu0 0
      %4145 = vmatpush1.bf16.msra.mxu0 0
      %4146 = vmatprep.subr.bf16.mxu0 0
      %4147 = vmatpush1.bf16.msra.mxu0 0
      %4148 = vmatprep.subr.bf16.mxu0 0
      %4149 = vmatpush1.bf16.msra.mxu0 0
      %4150 = vmatprep.subr.bf16.mxu0 0
      %4151 = vmatpush1.bf16.msra.mxu0 0
      %4152 = vmatprep.mubr.bf16.mxu0 0
      %4153 = vmatmul.mubr.bf16.gmra.mrb[0].mxu0 %v4115
      %v4154 = vpop.f32.mrb[0].mxu0
      %v4155 = vadd.f32 0.0, %v4154
      %v4156 = vpop.f32.mrb[0].mxu0
      %v4157 = vpop.f32.mrb[0].mxu0
      %v4158 = vpop.f32.mrb[0].mxu0
      %4159 = vdwg.mxu0
      %4160 = vrot.lane.b32.xlu0 %v1282, 120
      %v4161 = vpop.permute.xlu0 %4160
      %v4163 = vsel %vm1294, %v3956, 0
      %v4166 = vsel %vm2226, %v4161, 0
      %4168 = vmatprep.subr.bf16.mxu0 0
      %4169 = vmatpush1.bf16.msra.mxu0 %v4166
      %4170 = vmatprep.subr.bf16.mxu0 0
      %4171 = vmatpush1.bf16.msra.mxu0 0
      %4172 = vmatprep.subr.bf16.mxu0 0
      %4173 = vmatpush1.bf16.msra.mxu0 0
      %4174 = vmatprep.subr.bf16.mxu0 0
      %4175 = vmatpush1.bf16.msra.mxu0 0
      %4176 = vmatprep.subr.bf16.mxu0 0
      %4177 = vmatpush1.bf16.msra.mxu0 0
      %4178 = vmatprep.subr.bf16.mxu0 0
      %4179 = vmatpush1.bf16.msra.mxu0 0
      %4180 = vmatprep.subr.bf16.mxu0 0
      %4181 = vmatpush1.bf16.msra.mxu0 0
      %4182 = vmatprep.subr.bf16.mxu0 0
      %4183 = vmatpush1.bf16.msra.mxu0 0
      %4184 = vmatprep.subr.bf16.mxu0 0
      %4185 = vmatpush1.bf16.msra.mxu0 0
      %4186 = vmatprep.subr.bf16.mxu0 0
      %4187 = vmatpush1.bf16.msra.mxu0 0
      %4188 = vmatprep.subr.bf16.mxu0 0
      %4189 = vmatpush1.bf16.msra.mxu0 0
      %4190 = vmatprep.subr.bf16.mxu0 0
      %4191 = vmatpush1.bf16.msra.mxu0 0
      %4192 = vmatprep.subr.bf16.mxu0 0
      %4193 = vmatpush1.bf16.msra.mxu0 0
      %4194 = vmatprep.subr.bf16.mxu0 0
      %4195 = vmatpush1.bf16.msra.mxu0 0
      %4196 = vmatprep.subr.bf16.mxu0 0
      %4197 = vmatpush1.bf16.msra.mxu0 0
      %4198 = vmatprep.subr.bf16.mxu0 0
      %4199 = vmatpush1.bf16.msra.mxu0 0
      %4200 = vmatprep.mubr.bf16.mxu0 0
      %4201 = vmatmul.mubr.bf16.gmra.mrb[0].mxu0 %v4163
      %v4202 = vpop.f32.mrb[0].mxu0
      %v4203 = vadd.f32 0.0, %v4202
      %v4204 = vpop.f32.mrb[0].mxu0
      %v4205 = vpop.f32.mrb[0].mxu0
      %v4206 = vpop.f32.mrb[0].mxu0
      %4207 = vdwg.mxu0
      %4208 = vrot.lane.b32.xlu0 %v1283, 120
      %v4209 = vpop.permute.xlu0 %4208
      %v4211 = vsel %vm1294, %v3957, 0
      %v4214 = vsel %vm2226, %v4209, 0
      %4216 = vmatprep.subr.bf16.mxu0 0
      %4217 = vmatpush1.bf16.msra.mxu0 %v4214
      %4218 = vmatprep.subr.bf16.mxu0 0
      %4219 = vmatpush1.bf16.msra.mxu0 0
      %4220 = vmatprep.subr.bf16.mxu0 0
      %4221 = vmatpush1.bf16.msra.mxu0 0
      %4222 = vmatprep.subr.bf16.mxu0 0
      %4223 = vmatpush1.bf16.msra.mxu0 0
      %4224 = vmatprep.subr.bf16.mxu0 0
      %4225 = vmatpush1.bf16.msra.mxu0 0
      %4226 = vmatprep.subr.bf16.mxu0 0
      %4227 = vmatpush1.bf16.msra.mxu0 0
      %4228 = vmatprep.subr.bf16.mxu0 0
      %4229 = vmatpush1.bf16.msra.mxu0 0
      %4230 = vmatprep.subr.bf16.mxu0 0
      %4231 = vmatpush1.bf16.msra.mxu0 0
      %4232 = vmatprep.subr.bf16.mxu0 0
      %4233 = vmatpush1.bf16.msra.mxu0 0
      %4234 = vmatprep.subr.bf16.mxu0 0
      %4235 = vmatpush1.bf16.msra.mxu0 0
      %4236 = vmatprep.subr.bf16.mxu0 0
      %4237 = vmatpush1.bf16.msra.mxu0 0
      %4238 = vmatprep.subr.bf16.mxu0 0
      %4239 = vmatpush1.bf16.msra.mxu0 0
      %4240 = vmatprep.subr.bf16.mxu0 0
      %4241 = vmatpush1.bf16.msra.mxu0 0
      %4242 = vmatprep.subr.bf16.mxu0 0
      %4243 = vmatpush1.bf16.msra.mxu0 0
      %4244 = vmatprep.subr.bf16.mxu0 0
      %4245 = vmatpush1.bf16.msra.mxu0 0
      %4246 = vmatprep.subr.bf16.mxu0 0
      %4247 = vmatpush1.bf16.msra.mxu0 0
      %4248 = vmatprep.mubr.bf16.mxu0 0
      %4249 = vmatmul.mubr.bf16.gmra.mrb[0].mxu0 %v4211
      %v4250 = vpop.f32.mrb[0].mxu0
      %v4251 = vadd.f32 0.0, %v4250
      %v4252 = vpop.f32.mrb[0].mxu0
      %v4253 = vpop.f32.mrb[0].mxu0
      %v4254 = vpop.f32.mrb[0].mxu0
      %4255 = vdwg.mxu0
      %4256 = vrot.lane.b32.xlu0 %v1284, 120
      %v4257 = vpop.permute.xlu0 %4256
      %v4259 = vsel %vm1294, %v3958, 0
      %v4262 = vsel %vm2226, %v4257, 0
      %4264 = vmatprep.subr.bf16.mxu0 0
      %4265 = vmatpush1.bf16.msra.mxu0 %v4262
      %4266 = vmatprep.subr.bf16.mxu0 0
      %4267 = vmatpush1.bf16.msra.mxu0 0
      %4268 = vmatprep.subr.bf16.mxu0 0
      %4269 = vmatpush1.bf16.msra.mxu0 0
      %4270 = vmatprep.subr.bf16.mxu0 0
      %4271 = vmatpush1.bf16.msra.mxu0 0
      %4272 = vmatprep.subr.bf16.mxu0 0
      %4273 = vmatpush1.bf16.msra.mxu0 0
      %4274 = vmatprep.subr.bf16.mxu0 0
      %4275 = vmatpush1.bf16.msra.mxu0 0
      %4276 = vmatprep.subr.bf16.mxu0 0
      %4277 = vmatpush1.bf16.msra.mxu0 0
      %4278 = vmatprep.subr.bf16.mxu0 0
      %4279 = vmatpush1.bf16.msra.mxu0 0
      %4280 = vmatprep.subr.bf16.mxu0 0
      %4281 = vmatpush1.bf16.msra.mxu0 0
      %4282 = vmatprep.subr.bf16.mxu0 0
      %4283 = vmatpush1.bf16.msra.mxu0 0
      %4284 = vmatprep.subr.bf16.mxu0 0
      %4285 = vmatpush1.bf16.msra.mxu0 0
      %4286 = vmatprep.subr.bf16.mxu0 0
      %4287 = vmatpush1.bf16.msra.mxu0 0
      %4288 = vmatprep.subr.bf16.mxu0 0
      %4289 = vmatpush1.bf16.msra.mxu0 0
      %4290 = vmatprep.subr.bf16.mxu0 0
      %4291 = vmatpush1.bf16.msra.mxu0 0
      %4292 = vmatprep.subr.bf16.mxu0 0
      %4293 = vmatpush1.bf16.msra.mxu0 0
      %4294 = vmatprep.subr.bf16.mxu0 0
      %4295 = vmatpush1.bf16.msra.mxu0 0
      %4296 = vmatprep.mubr.bf16.mxu0 0
      %4297 = vmatmul.mubr.bf16.gmra.mrb[0].mxu0 %v4259
      %v4298 = vpop.f32.mrb[0].mxu0
      %v4299 = vadd.f32 0.0, %v4298
      %v4300 = vpop.f32.mrb[0].mxu0
      %v4301 = vpop.f32.mrb[0].mxu0
      %v4302 = vpop.f32.mrb[0].mxu0
      %4303 = vdwg.mxu0
      %4304 = vrot.lane.b32.xlu0 %v1285, 120
      %v4305 = vpop.permute.xlu0 %4304
      %v4307 = vsel %vm1294, %v3959, 0
      %v4310 = vsel %vm2226, %v4305, 0
      %4312 = vmatprep.subr.bf16.mxu0 0
      %4313 = vmatpush1.bf16.msra.mxu0 %v4310
      %4314 = vmatprep.subr.bf16.mxu0 0
      %4315 = vmatpush1.bf16.msra.mxu0 0
      %4316 = vmatprep.subr.bf16.mxu0 0
      %4317 = vmatpush1.bf16.msra.mxu0 0
      %4318 = vmatprep.subr.bf16.mxu0 0
      %4319 = vmatpush1.bf16.msra.mxu0 0
      %4320 = vmatprep.subr.bf16.mxu0 0
      %4321 = vmatpush1.bf16.msra.mxu0 0
      %4322 = vmatprep.subr.bf16.mxu0 0
      %4323 = vmatpush1.bf16.msra.mxu0 0
      %4324 = vmatprep.subr.bf16.mxu0 0
      %4325 = vmatpush1.bf16.msra.mxu0 0
      %4326 = vmatprep.subr.bf16.mxu0 0
      %4327 = vmatpush1.bf16.msra.mxu0 0
      %4328 = vmatprep.subr.bf16.mxu0 0
      %4329 = vmatpush1.bf16.msra.mxu0 0
      %4330 = vmatprep.subr.bf16.mxu0 0
      %4331 = vmatpush1.bf16.msra.mxu0 0
      %4332 = vmatprep.subr.bf16.mxu0 0
      %4333 = vmatpush1.bf16.msra.mxu0 0
      %4334 = vmatprep.subr.bf16.mxu0 0
      %4335 = vmatpush1.bf16.msra.mxu0 0
      %4336 = vmatprep.subr.bf16.mxu0 0
      %4337 = vmatpush1.bf16.msra.mxu0 0
      %4338 = vmatprep.subr.bf16.mxu0 0
      %4339 = vmatpush1.bf16.msra.mxu0 0
      %4340 = vmatprep.subr.bf16.mxu0 0
      %4341 = vmatpush1.bf16.msra.mxu0 0
      %4342 = vmatprep.subr.bf16.mxu0 0
      %4343 = vmatpush1.bf16.msra.mxu0 0
      %4344 = vmatprep.mubr.bf16.mxu0 0
      %4345 = vmatmul.mubr.bf16.gmra.mrb[0].mxu0 %v4307
      %v4346 = vpop.f32.mrb[0].mxu0
      %v4347 = vadd.f32 0.0, %v4346
      %v4348 = vpop.f32.mrb[0].mxu0
      %v4349 = vpop.f32.mrb[0].mxu0
      %v4350 = vpop.f32.mrb[0].mxu0
      %4351 = vdwg.mxu0
      %4352 = vrot.lane.b32.xlu0 %v1286, 120
      %v4353 = vpop.permute.xlu0 %4352
      %v4355 = vsel %vm1294, %v3960, 0
      %v4358 = vsel %vm2226, %v4353, 0
      %4360 = vmatprep.subr.bf16.mxu0 0
      %4361 = vmatpush1.bf16.msra.mxu0 %v4358
      %4362 = vmatprep.subr.bf16.mxu0 0
      %4363 = vmatpush1.bf16.msra.mxu0 0
      %4364 = vmatprep.subr.bf16.mxu0 0
      %4365 = vmatpush1.bf16.msra.mxu0 0
      %4366 = vmatprep.subr.bf16.mxu0 0
      %4367 = vmatpush1.bf16.msra.mxu0 0
      %4368 = vmatprep.subr.bf16.mxu0 0
      %4369 = vmatpush1.bf16.msra.mxu0 0
      %4370 = vmatprep.subr.bf16.mxu0 0
      %4371 = vmatpush1.bf16.msra.mxu0 0
      %4372 = vmatprep.subr.bf16.mxu0 0
      %4373 = vmatpush1.bf16.msra.mxu0 0
      %4374 = vmatprep.subr.bf16.mxu0 0
      %4375 = vmatpush1.bf16.msra.mxu0 0
      %4376 = vmatprep.subr.bf16.mxu0 0
      %4377 = vmatpush1.bf16.msra.mxu0 0
      %4378 = vmatprep.subr.bf16.mxu0 0
      %4379 = vmatpush1.bf16.msra.mxu0 0
      %4380 = vmatprep.subr.bf16.mxu0 0
      %4381 = vmatpush1.bf16.msra.mxu0 0
      %4382 = vmatprep.subr.bf16.mxu0 0
      %4383 = vmatpush1.bf16.msra.mxu0 0
      %4384 = vmatprep.subr.bf16.mxu0 0
      %4385 = vmatpush1.bf16.msra.mxu0 0
      %4386 = vmatprep.subr.bf16.mxu0 0
      %4387 = vmatpush1.bf16.msra.mxu0 0
      %4388 = vmatprep.subr.bf16.mxu0 0
      %4389 = vmatpush1.bf16.msra.mxu0 0
      %4390 = vmatprep.subr.bf16.mxu0 0
      %4391 = vmatpush1.bf16.msra.mxu0 0
      %4392 = vmatprep.mubr.bf16.mxu0 0
      %4393 = vmatmul.mubr.bf16.gmra.mrb[0].mxu0 %v4355
      %v4394 = vpop.f32.mrb[0].mxu0
      %v4395 = vadd.f32 0.0, %v4394
      %v4396 = vpop.f32.mrb[0].mxu0
      %v4397 = vpop.f32.mrb[0].mxu0
      %v4398 = vpop.f32.mrb[0].mxu0
      %4399 = vdwg.mxu0
      %4400 = vrot.lane.b32.xlu0 %v1287, 120
      %v4401 = vpop.permute.xlu0 %4400
      %v4403 = vsel %vm1294, %v3961, 0
      %v4406 = vsel %vm2226, %v4401, 0
      %4408 = vmatprep.subr.bf16.mxu0 0
      %4409 = vmatpush1.bf16.msra.mxu0 %v4406
      %4410 = vmatprep.subr.bf16.mxu0 0
      %4411 = vmatpush1.bf16.msra.mxu0 0
      %4412 = vmatprep.subr.bf16.mxu0 0
      %4413 = vmatpush1.bf16.msra.mxu0 0
      %4414 = vmatprep.subr.bf16.mxu0 0
      %4415 = vmatpush1.bf16.msra.mxu0 0
      %4416 = vmatprep.subr.bf16.mxu0 0
      %4417 = vmatpush1.bf16.msra.mxu0 0
      %4418 = vmatprep.subr.bf16.mxu0 0
      %4419 = vmatpush1.bf16.msra.mxu0 0
      %4420 = vmatprep.subr.bf16.mxu0 0
      %4421 = vmatpush1.bf16.msra.mxu0 0
      %4422 = vmatprep.subr.bf16.mxu0 0
      %4423 = vmatpush1.bf16.msra.mxu0 0
      %4424 = vmatprep.subr.bf16.mxu0 0
      %4425 = vmatpush1.bf16.msra.mxu0 0
      %4426 = vmatprep.subr.bf16.mxu0 0
      %4427 = vmatpush1.bf16.msra.mxu0 0
      %4428 = vmatprep.subr.bf16.mxu0 0
      %4429 = vmatpush1.bf16.msra.mxu0 0
      %4430 = vmatprep.subr.bf16.mxu0 0
      %4431 = vmatpush1.bf16.msra.mxu0 0
      %4432 = vmatprep.subr.bf16.mxu0 0
      %4433 = vmatpush1.bf16.msra.mxu0 0
      %4434 = vmatprep.subr.bf16.mxu0 0
      %4435 = vmatpush1.bf16.msra.mxu0 0
      %4436 = vmatprep.subr.bf16.mxu0 0
      %4437 = vmatpush1.bf16.msra.mxu0 0
      %4438 = vmatprep.subr.bf16.mxu0 0
      %4439 = vmatpush1.bf16.msra.mxu0 0
      %4440 = vmatprep.mubr.bf16.mxu0 0
      %4441 = vmatmul.mubr.bf16.gmra.mrb[0].mxu0 %v4403
      %v4442 = vpop.f32.mrb[0].mxu0
      %v4443 = vadd.f32 0.0, %v4442
      %v4444 = vpop.f32.mrb[0].mxu0
      %v4445 = vpop.f32.mrb[0].mxu0
      %v4446 = vpop.f32.mrb[0].mxu0
      %4447 = vdwg.mxu0
      %4448 = vrot.lane.b32.xlu0 %v1288, 120
      %v4449 = vpop.permute.xlu0 %4448
      %v4451 = vsel %vm1294, %v3962, 0
      %v4454 = vsel %vm2226, %v4449, 0
      %4456 = vmatprep.subr.bf16.mxu0 0
      %4457 = vmatpush1.bf16.msra.mxu0 %v4454
      %4458 = vmatprep.subr.bf16.mxu0 0
      %4459 = vmatpush1.bf16.msra.mxu0 0
      %4460 = vmatprep.subr.bf16.mxu0 0
      %4461 = vmatpush1.bf16.msra.mxu0 0
      %4462 = vmatprep.subr.bf16.mxu0 0
      %4463 = vmatpush1.bf16.msra.mxu0 0
      %4464 = vmatprep.subr.bf16.mxu0 0
      %4465 = vmatpush1.bf16.msra.mxu0 0
      %4466 = vmatprep.subr.bf16.mxu0 0
      %4467 = vmatpush1.bf16.msra.mxu0 0
      %4468 = vmatprep.subr.bf16.mxu0 0
      %4469 = vmatpush1.bf16.msra.mxu0 0
      %4470 = vmatprep.subr.bf16.mxu0 0
      %4471 = vmatpush1.bf16.msra.mxu0 0
      %4472 = vmatprep.subr.bf16.mxu0 0
      %4473 = vmatpush1.bf16.msra.mxu0 0
      %4474 = vmatprep.subr.bf16.mxu0 0
      %4475 = vmatpush1.bf16.msra.mxu0 0
      %4476 = vmatprep.subr.bf16.mxu0 0
      %4477 = vmatpush1.bf16.msra.mxu0 0
      %4478 = vmatprep.subr.bf16.mxu0 0
      %4479 = vmatpush1.bf16.msra.mxu0 0
      %4480 = vmatprep.subr.bf16.mxu0 0
      %4481 = vmatpush1.bf16.msra.mxu0 0
      %4482 = vmatprep.subr.bf16.mxu0 0
      %4483 = vmatpush1.bf16.msra.mxu0 0
      %4484 = vmatprep.subr.bf16.mxu0 0
      %4485 = vmatpush1.bf16.msra.mxu0 0
      %4486 = vmatprep.subr.bf16.mxu0 0
      %4487 = vmatpush1.bf16.msra.mxu0 0
      %4488 = vmatprep.mubr.bf16.mxu0 0
      %4489 = vmatmul.mubr.bf16.gmra.mrb[0].mxu0 %v4451
      %v4490 = vpop.f32.mrb[0].mxu0
      %v4491 = vadd.f32 0.0, %v4490
      %v4492 = vpop.f32.mrb[0].mxu0
      %v4493 = vpop.f32.mrb[0].mxu0
      %v4494 = vpop.f32.mrb[0].mxu0
      %4495 = vdwg.mxu0
      %4496 = vrot.lane.b32.xlu0 %v1289, 120
      %v4497 = vpop.permute.xlu0 %4496
      %v4499 = vsel %vm1294, %v3963, 0
      %v4502 = vsel %vm2226, %v4497, 0
      %4504 = vmatprep.subr.bf16.mxu0 0
      %4505 = vmatpush1.bf16.msra.mxu0 %v4502
      %4506 = vmatprep.subr.bf16.mxu0 0
      %4507 = vmatpush1.bf16.msra.mxu0 0
      %4508 = vmatprep.subr.bf16.mxu0 0
      %4509 = vmatpush1.bf16.msra.mxu0 0
      %4510 = vmatprep.subr.bf16.mxu0 0
      %4511 = vmatpush1.bf16.msra.mxu0 0
      %4512 = vmatprep.subr.bf16.mxu0 0
      %4513 = vmatpush1.bf16.msra.mxu0 0
      %4514 = vmatprep.subr.bf16.mxu0 0
      %4515 = vmatpush1.bf16.msra.mxu0 0
      %4516 = vmatprep.subr.bf16.mxu0 0
      %4517 = vmatpush1.bf16.msra.mxu0 0
      %4518 = vmatprep.subr.bf16.mxu0 0
      %4519 = vmatpush1.bf16.msra.mxu0 0
      %4520 = vmatprep.subr.bf16.mxu0 0
      %4521 = vmatpush1.bf16.msra.mxu0 0
      %4522 = vmatprep.subr.bf16.mxu0 0
      %4523 = vmatpush1.bf16.msra.mxu0 0
      %4524 = vmatprep.subr.bf16.mxu0 0
      %4525 = vmatpush1.bf16.msra.mxu0 0
      %4526 = vmatprep.subr.bf16.mxu0 0
      %4527 = vmatpush1.bf16.msra.mxu0 0
      %4528 = vmatprep.subr.bf16.mxu0 0
      %4529 = vmatpush1.bf16.msra.mxu0 0
      %4530 = vmatprep.subr.bf16.mxu0 0
      %4531 = vmatpush1.bf16.msra.mxu0 0
      %4532 = vmatprep.subr.bf16.mxu0 0
      %4533 = vmatpush1.bf16.msra.mxu0 0
      %4534 = vmatprep.subr.bf16.mxu0 0
      %4535 = vmatpush1.bf16.msra.mxu0 0
      %4536 = vmatprep.mubr.bf16.mxu0 0
      %4537 = vmatmul.mubr.bf16.gmra.mrb[0].mxu0 %v4499
      %v4538 = vpop.f32.mrb[0].mxu0
      %v4539 = vadd.f32 0.0, %v4538
      %v4540 = vpop.f32.mrb[0].mxu0
      %v4541 = vpop.f32.mrb[0].mxu0
      %v4542 = vpop.f32.mrb[0].mxu0
      %4543 = vdwg.mxu0
      %4544 = vrot.lane.b32.xlu0 %v1290, 120
      %v4545 = vpop.permute.xlu0 %4544
      %v4547 = vsel %vm1294, %v3964, 0
      %v4550 = vsel %vm2226, %v4545, 0
      %4552 = vmatprep.subr.bf16.mxu0 0
      %4553 = vmatpush1.bf16.msra.mxu0 %v4550
      %4554 = vmatprep.subr.bf16.mxu0 0
      %4555 = vmatpush1.bf16.msra.mxu0 0
      %4556 = vmatprep.subr.bf16.mxu0 0
      %4557 = vmatpush1.bf16.msra.mxu0 0
      %4558 = vmatprep.subr.bf16.mxu0 0
      %4559 = vmatpush1.bf16.msra.mxu0 0
      %4560 = vmatprep.subr.bf16.mxu0 0
      %4561 = vmatpush1.bf16.msra.mxu0 0
      %4562 = vmatprep.subr.bf16.mxu0 0
      %4563 = vmatpush1.bf16.msra.mxu0 0
      %4564 = vmatprep.subr.bf16.mxu0 0
      %4565 = vmatpush1.bf16.msra.mxu0 0
      %4566 = vmatprep.subr.bf16.mxu0 0
      %4567 = vmatpush1.bf16.msra.mxu0 0
      %4568 = vmatprep.subr.bf16.mxu0 0
      %4569 = vmatpush1.bf16.msra.mxu0 0
      %4570 = vmatprep.subr.bf16.mxu0 0
      %4571 = vmatpush1.bf16.msra.mxu0 0
      %4572 = vmatprep.subr.bf16.mxu0 0
      %4573 = vmatpush1.bf16.msra.mxu0 0
      %4574 = vmatprep.subr.bf16.mxu0 0
      %4575 = vmatpush1.bf16.msra.mxu0 0
      %4576 = vmatprep.subr.bf16.mxu0 0
      %4577 = vmatpush1.bf16.msra.mxu0 0
      %4578 = vmatprep.subr.bf16.mxu0 0
      %4579 = vmatpush1.bf16.msra.mxu0 0
      %4580 = vmatprep.subr.bf16.mxu0 0
      %4581 = vmatpush1.bf16.msra.mxu0 0
      %4582 = vmatprep.subr.bf16.mxu0 0
      %4583 = vmatpush1.bf16.msra.mxu0 0
      %4584 = vmatprep.mubr.bf16.mxu0 0
      %4585 = vmatmul.mubr.bf16.gmra.mrb[0].mxu0 %v4547
      %v4586 = vpop.f32.mrb[0].mxu0
      %v4587 = vadd.f32 0.0, %v4586
      %v4588 = vpop.f32.mrb[0].mxu0
      %v4589 = vpop.f32.mrb[0].mxu0
      %v4590 = vpop.f32.mrb[0].mxu0
      %4591 = vdwg.mxu0
      %4592 = vrot.lane.b32.xlu0 %v1291, 120
      %v4593 = vpop.permute.xlu0 %4592
      %v4595 = vsel %vm1294, %v3965, 0
      %v4598 = vsel %vm2226, %v4593, 0
      %4600 = vmatprep.subr.bf16.mxu0 0
      %4601 = vmatpush1.bf16.msra.mxu0 %v4598
      %4602 = vmatprep.subr.bf16.mxu0 0
      %4603 = vmatpush1.bf16.msra.mxu0 0
      %4604 = vmatprep.subr.bf16.mxu0 0
      %4605 = vmatpush1.bf16.msra.mxu0 0
      %4606 = vmatprep.subr.bf16.mxu0 0
      %4607 = vmatpush1.bf16.msra.mxu0 0
      %4608 = vmatprep.subr.bf16.mxu0 0
      %4609 = vmatpush1.bf16.msra.mxu0 0
      %4610 = vmatprep.subr.bf16.mxu0 0
      %4611 = vmatpush1.bf16.msra.mxu0 0
      %4612 = vmatprep.subr.bf16.mxu0 0
      %4613 = vmatpush1.bf16.msra.mxu0 0
      %4614 = vmatprep.subr.bf16.mxu0 0
      %4615 = vmatpush1.bf16.msra.mxu0 0
      %4616 = vmatprep.subr.bf16.mxu0 0
      %4617 = vmatpush1.bf16.msra.mxu0 0
      %4618 = vmatprep.subr.bf16.mxu0 0
      %4619 = vmatpush1.bf16.msra.mxu0 0
      %4620 = vmatprep.subr.bf16.mxu0 0
      %4621 = vmatpush1.bf16.msra.mxu0 0
      %4622 = vmatprep.subr.bf16.mxu0 0
      %4623 = vmatpush1.bf16.msra.mxu0 0
      %4624 = vmatprep.subr.bf16.mxu0 0
      %4625 = vmatpush1.bf16.msra.mxu0 0
      %4626 = vmatprep.subr.bf16.mxu0 0
      %4627 = vmatpush1.bf16.msra.mxu0 0
      %4628 = vmatprep.subr.bf16.mxu0 0
      %4629 = vmatpush1.bf16.msra.mxu0 0
      %4630 = vmatprep.subr.bf16.mxu0 0
      %4631 = vmatpush1.bf16.msra.mxu0 0
      %4632 = vmatprep.mubr.bf16.mxu0 0
      %4633 = vmatmul.mubr.bf16.gmra.mrb[0].mxu0 %v4595
      %v4634 = vpop.f32.mrb[0].mxu0
      %v4635 = vadd.f32 0.0, %v4634
      %v4636 = vpop.f32.mrb[0].mxu0
      %v4637 = vpop.f32.mrb[0].mxu0
      %v4638 = vpop.f32.mrb[0].mxu0
      %4639 = vdwg.mxu0
      %4640 = vrot.lane.b32.xlu0 %v1292, 120
      %v4641 = vpop.permute.xlu0 %4640
      %v4643 = vsel %vm1294, %v3966, 0
      %v4646 = vsel %vm2226, %v4641, 0
      %4648 = vmatprep.subr.bf16.mxu0 0
      %4649 = vmatpush1.bf16.msra.mxu0 %v4646
      %4650 = vmatprep.subr.bf16.mxu0 0
      %4651 = vmatpush1.bf16.msra.mxu0 0
      %4652 = vmatprep.subr.bf16.mxu0 0
      %4653 = vmatpush1.bf16.msra.mxu0 0
      %4654 = vmatprep.subr.bf16.mxu0 0
      %4655 = vmatpush1.bf16.msra.mxu0 0
      %4656 = vmatprep.subr.bf16.mxu0 0
      %4657 = vmatpush1.bf16.msra.mxu0 0
      %4658 = vmatprep.subr.bf16.mxu0 0
      %4659 = vmatpush1.bf16.msra.mxu0 0
      %4660 = vmatprep.subr.bf16.mxu0 0
      %4661 = vmatpush1.bf16.msra.mxu0 0
      %4662 = vmatprep.subr.bf16.mxu0 0
      %4663 = vmatpush1.bf16.msra.mxu0 0
      %4664 = vmatprep.subr.bf16.mxu0 0
      %4665 = vmatpush1.bf16.msra.mxu0 0
      %4666 = vmatprep.subr.bf16.mxu0 0
      %4667 = vmatpush1.bf16.msra.mxu0 0
      %4668 = vmatprep.subr.bf16.mxu0 0
      %4669 = vmatpush1.bf16.msra.mxu0 0
      %4670 = vmatprep.subr.bf16.mxu0 0
      %4671 = vmatpush1.bf16.msra.mxu0 0
      %4672 = vmatprep.subr.bf16.mxu0 0
      %4673 = vmatpush1.bf16.msra.mxu0 0
      %4674 = vmatprep.subr.bf16.mxu0 0
      %4675 = vmatpush1.bf16.msra.mxu0 0
      %4676 = vmatprep.subr.bf16.mxu0 0
      %4677 = vmatpush1.bf16.msra.mxu0 0
      %4678 = vmatprep.subr.bf16.mxu0 0
      %4679 = vmatpush1.bf16.msra.mxu0 0
      %4680 = vmatprep.mubr.bf16.mxu0 0
      %4681 = vmatmul.mubr.bf16.gmra.mrb[0].mxu0 %v4643
      %v4682 = vpop.f32.mrb[0].mxu0
      %v4683 = vadd.f32 0.0, %v4682
      %v4684 = vpop.f32.mrb[0].mxu0
      %v4685 = vpop.f32.mrb[0].mxu0
      %v4686 = vpop.f32.mrb[0].mxu0
      %4687 = vdwg.mxu0
      %4688 = vrot.lane.b32.xlu0 %v1293, 120
      %v4689 = vpop.permute.xlu0 %4688
      %v4691 = vsel %vm1294, %v3967, 0
      %v4694 = vsel %vm2226, %v4689, 0
      %4696 = vmatprep.subr.bf16.mxu0 0
      %4697 = vmatpush1.bf16.msra.mxu0 %v4694
      %4698 = vmatprep.subr.bf16.mxu0 0
      %4699 = vmatpush1.bf16.msra.mxu0 0
      %4700 = vmatprep.subr.bf16.mxu0 0
      %4701 = vmatpush1.bf16.msra.mxu0 0
      %4702 = vmatprep.subr.bf16.mxu0 0
      %4703 = vmatpush1.bf16.msra.mxu0 0
      %4704 = vmatprep.subr.bf16.mxu0 0
      %4705 = vmatpush1.bf16.msra.mxu0 0
      %4706 = vmatprep.subr.bf16.mxu0 0
      %4707 = vmatpush1.bf16.msra.mxu0 0
      %4708 = vmatprep.subr.bf16.mxu0 0
      %4709 = vmatpush1.bf16.msra.mxu0 0
      %4710 = vmatprep.subr.bf16.mxu0 0
      %4711 = vmatpush1.bf16.msra.mxu0 0
      %4712 = vmatprep.subr.bf16.mxu0 0
      %4713 = vmatpush1.bf16.msra.mxu0 0
      %4714 = vmatprep.subr.bf16.mxu0 0
      %4715 = vmatpush1.bf16.msra.mxu0 0
      %4716 = vmatprep.subr.bf16.mxu0 0
      %4717 = vmatpush1.bf16.msra.mxu0 0
      %4718 = vmatprep.subr.bf16.mxu0 0
      %4719 = vmatpush1.bf16.msra.mxu0 0
      %4720 = vmatprep.subr.bf16.mxu0 0
      %4721 = vmatpush1.bf16.msra.mxu0 0
      %4722 = vmatprep.subr.bf16.mxu0 0
      %4723 = vmatpush1.bf16.msra.mxu0 0
      %4724 = vmatprep.subr.bf16.mxu0 0
      %4725 = vmatpush1.bf16.msra.mxu0 0
      %4726 = vmatprep.subr.bf16.mxu0 0
      %4727 = vmatpush1.bf16.msra.mxu0 0
      %4728 = vmatprep.mubr.bf16.mxu0 0
      %4729 = vmatmul.mubr.bf16.gmra.mrb[0].mxu0 %v4691
      %v4730 = vpop.f32.mrb[0].mxu0
      %v4731 = vadd.f32 0.0, %v4730
      %v4732 = vpop.f32.mrb[0].mxu0
      %v4733 = vpop.f32.mrb[0].mxu0
      %v4734 = vpop.f32.mrb[0].mxu0
      %4735 = vdwg.mxu0
      %4752 = vrot.lane.b32.xlu0 %v4011, 8
      %v4753 = vpop.permute.xlu0 %4752
      %4754 = vrot.lane.b32.xlu0 %v4059, 8
      %v4755 = vpop.permute.xlu0 %4754
      %4756 = vrot.lane.b32.xlu0 %v4107, 8
      %v4757 = vpop.permute.xlu0 %4756
      %4758 = vrot.lane.b32.xlu0 %v4155, 8
      %v4759 = vpop.permute.xlu0 %4758
      %4760 = vrot.lane.b32.xlu0 %v4203, 8
      %v4761 = vpop.permute.xlu0 %4760
      %4762 = vrot.lane.b32.xlu0 %v4251, 8
      %v4763 = vpop.permute.xlu0 %4762
      %4764 = vrot.lane.b32.xlu0 %v4299, 8
      %v4765 = vpop.permute.xlu0 %4764
      %4766 = vrot.lane.b32.xlu0 %v4347, 8
      %v4767 = vpop.permute.xlu0 %4766
      %4768 = vrot.lane.b32.xlu0 %v4395, 8
      %v4769 = vpop.permute.xlu0 %4768
      %4770 = vrot.lane.b32.xlu0 %v4443, 8
      %v4771 = vpop.permute.xlu0 %4770
      %4772 = vrot.lane.b32.xlu0 %v4491, 8
      %v4773 = vpop.permute.xlu0 %4772
      %4774 = vrot.lane.b32.xlu0 %v4539, 8
      %v4775 = vpop.permute.xlu0 %4774
      %4776 = vrot.lane.b32.xlu0 %v4587, 8
      %v4777 = vpop.permute.xlu0 %4776
      %4778 = vrot.lane.b32.xlu0 %v4635, 8
      %v4779 = vpop.permute.xlu0 %4778
      %4780 = vrot.lane.b32.xlu0 %v4683, 8
      %v4781 = vpop.permute.xlu0 %4780
      %4782 = vrot.lane.b32.xlu0 %v4731, 8
      %v4783 = vpop.permute.xlu0 %4782
      %vm4800 = vcmask 130112
      %4801 = vst.msk [vmem:[#allocation2] sm:$0xff] %vm4800, %v4753
      %4802 = vst.msk [vmem:[#allocation2 + $0x8] sm:$0xff] %vm4800, %v4755
      %4803 = vst.msk [vmem:[#allocation2 + $0x10] sm:$0xff] %vm4800, %v4757
      %4804 = vst.msk [vmem:[#allocation2 + $0x18] sm:$0xff] %vm4800, %v4759
      %4805 = vst.msk [vmem:[#allocation2 + $0x20] sm:$0xff] %vm4800, %v4761
      %4806 = vst.msk [vmem:[#allocation2 + $0x28] sm:$0xff] %vm4800, %v4763
      %4807 = vst.msk [vmem:[#allocation2 + $0x30] sm:$0xff] %vm4800, %v4765
      %4808 = vst.msk [vmem:[#allocation2 + $0x38] sm:$0xff] %vm4800, %v4767
      %4809 = vst.msk [vmem:[#allocation2 + $0x40] sm:$0xff] %vm4800, %v4769
      %4810 = vst.msk [vmem:[#allocation2 + $0x48] sm:$0xff] %vm4800, %v4771
      %4811 = vst.msk [vmem:[#allocation2 + $0x50] sm:$0xff] %vm4800, %v4773
      %4812 = vst.msk [vmem:[#allocation2 + $0x58] sm:$0xff] %vm4800, %v4775
      %4813 = vst.msk [vmem:[#allocation2 + $0x60] sm:$0xff] %vm4800, %v4777
      %4814 = vst.msk [vmem:[#allocation2 + $0x68] sm:$0xff] %vm4800, %v4779
      %4815 = vst.msk [vmem:[#allocation2 + $0x70] sm:$0xff] %vm4800, %v4781
      %4816 = vst.msk [vmem:[#allocation2 + $0x78] sm:$0xff] %vm4800, %v4783
      %4817 = vrot.lane.b32.xlu0 %v828, 112
      %v4818 = vpop.permute.xlu0 %4817
      %4819 = vrot.lane.b32.xlu0 %v1053, 112
      %v4820 = vpop.permute.xlu0 %4819
      %v4822 = vsel %vm1294, %v4818, 0
      %v4825 = vsel %vm1294, %v4820, 0
      %4827 = vmatprep.subr.bf16.mxu0 0
      %4828 = vmatpush1.bf16.xpose.msra.mxu0 %v4825
      %4829 = vmatprep.subr.bf16.mxu0 0
      %4830 = vmatpush1.bf16.xpose.msra.mxu0 0
      %4831 = vmatprep.subr.bf16.mxu0 0
      %4832 = vmatpush1.bf16.xpose.msra.mxu0 0
      %4833 = vmatprep.subr.bf16.mxu0 0
      %4834 = vmatpush1.bf16.xpose.msra.mxu0 0
      %4835 = vmatprep.subr.bf16.mxu0 0
      %4836 = vmatpush1.bf16.xpose.msra.mxu0 0
      %4837 = vmatprep.subr.bf16.mxu0 0
      %4838 = vmatpush1.bf16.xpose.msra.mxu0 0
      %4839 = vmatprep.subr.bf16.mxu0 0
      %4840 = vmatpush1.bf16.xpose.msra.mxu0 0
      %4841 = vmatprep.subr.bf16.mxu0 0
      %4842 = vmatpush1.bf16.xpose.msra.mxu0 0
      %4843 = vmatprep.subr.bf16.mxu0 0
      %4844 = vmatpush1.bf16.xpose.msra.mxu0 0
      %4845 = vmatprep.subr.bf16.mxu0 0
      %4846 = vmatpush1.bf16.xpose.msra.mxu0 0
      %4847 = vmatprep.subr.bf16.mxu0 0
      %4848 = vmatpush1.bf16.xpose.msra.mxu0 0
      %4849 = vmatprep.subr.bf16.mxu0 0
      %4850 = vmatpush1.bf16.xpose.msra.mxu0 0
      %4851 = vmatprep.subr.bf16.mxu0 0
      %4852 = vmatpush1.bf16.xpose.msra.mxu0 0
      %4853 = vmatprep.subr.bf16.mxu0 0
      %4854 = vmatpush1.bf16.xpose.msra.mxu0 0
      %4855 = vmatprep.subr.bf16.mxu0 0
      %4856 = vmatpush1.bf16.xpose.msra.mxu0 0
      %4857 = vmatprep.subr.bf16.mxu0 0
      %4858 = vmatpush1.bf16.xpose.msra.mxu0 0
      %4859 = vmatprep.mubr.bf16.mxu0 0
      %4860 = vmatmul.mubr.bf16.gmra.mrb[0].mxu0 %v4822
      %v4861 = vpop.f32.mrb[0].mxu0
      %v4862 = vadd.f32 0.0, %v4861
      %v4863 = vpop.f32.mrb[0].mxu0
      %v4864 = vpop.f32.mrb[0].mxu0
      %v4865 = vpop.f32.mrb[0].mxu0
      %4866 = vdwg.mxu0
      %4867 = vrot.lane.b32.xlu0 %v829, 112
      %v4868 = vpop.permute.xlu0 %4867
      %4869 = vrot.lane.b32.xlu0 %v1054, 112
      %v4870 = vpop.permute.xlu0 %4869
      %v4872 = vsel %vm1294, %v4868, 0
      %v4875 = vsel %vm1294, %v4870, 0
      %4877 = vmatprep.subr.bf16.mxu0 0
      %4878 = vmatpush1.bf16.xpose.msra.mxu0 %v4875
      %4879 = vmatprep.subr.bf16.mxu0 0
      %4880 = vmatpush1.bf16.xpose.msra.mxu0 0
      %4881 = vmatprep.subr.bf16.mxu0 0
      %4882 = vmatpush1.bf16.xpose.msra.mxu0 0
      %4883 = vmatprep.subr.bf16.mxu0 0
      %4884 = vmatpush1.bf16.xpose.msra.mxu0 0
      %4885 = vmatprep.subr.bf16.mxu0 0
      %4886 = vmatpush1.bf16.xpose.msra.mxu0 0
      %4887 = vmatprep.subr.bf16.mxu0 0
      %4888 = vmatpush1.bf16.xpose.msra.mxu0 0
      %4889 = vmatprep.subr.bf16.mxu0 0
      %4890 = vmatpush1.bf16.xpose.msra.mxu0 0
      %4891 = vmatprep.subr.bf16.mxu0 0
      %4892 = vmatpush1.bf16.xpose.msra.mxu0 0
      %4893 = vmatprep.subr.bf16.mxu0 0
      %4894 = vmatpush1.bf16.xpose.msra.mxu0 0
      %4895 = vmatprep.subr.bf16.mxu0 0
      %4896 = vmatpush1.bf16.xpose.msra.mxu0 0
      %4897 = vmatprep.subr.bf16.mxu0 0
      %4898 = vmatpush1.bf16.xpose.msra.mxu0 0
      %4899 = vmatprep.subr.bf16.mxu0 0
      %4900 = vmatpush1.bf16.xpose.msra.mxu0 0
      %4901 = vmatprep.subr.bf16.mxu0 0
      %4902 = vmatpush1.bf16.xpose.msra.mxu0 0
      %4903 = vmatprep.subr.bf16.mxu0 0
      %4904 = vmatpush1.bf16.xpose.msra.mxu0 0
      %4905 = vmatprep.subr.bf16.mxu0 0
      %4906 = vmatpush1.bf16.xpose.msra.mxu0 0
      %4907 = vmatprep.subr.bf16.mxu0 0
      %4908 = vmatpush1.bf16.xpose.msra.mxu0 0
      %4909 = vmatprep.mubr.bf16.mxu0 0
      %4910 = vmatmul.mubr.bf16.gmra.mrb[0].mxu0 %v4872
      %v4911 = vpop.f32.mrb[0].mxu0
      %v4912 = vadd.f32 0.0, %v4911
      %v4913 = vpop.f32.mrb[0].mxu0
      %v4914 = vpop.f32.mrb[0].mxu0
      %v4915 = vpop.f32.mrb[0].mxu0
      %4916 = vdwg.mxu0
      %4917 = vrot.lane.b32.xlu0 %v830, 112
      %v4918 = vpop.permute.xlu0 %4917
      %4919 = vrot.lane.b32.xlu0 %v1055, 112
      %v4920 = vpop.permute.xlu0 %4919
      %v4922 = vsel %vm1294, %v4918, 0
      %v4925 = vsel %vm1294, %v4920, 0
      %4927 = vmatprep.subr.bf16.mxu0 0
      %4928 = vmatpush1.bf16.xpose.msra.mxu0 %v4925
      %4929 = vmatprep.subr.bf16.mxu0 0
      %4930 = vmatpush1.bf16.xpose.msra.mxu0 0
      %4931 = vmatprep.subr.bf16.mxu0 0
      %4932 = vmatpush1.bf16.xpose.msra.mxu0 0
      %4933 = vmatprep.subr.bf16.mxu0 0
      %4934 = vmatpush1.bf16.xpose.msra.mxu0 0
      %4935 = vmatprep.subr.bf16.mxu0 0
      %4936 = vmatpush1.bf16.xpose.msra.mxu0 0
      %4937 = vmatprep.subr.bf16.mxu0 0
      %4938 = vmatpush1.bf16.xpose.msra.mxu0 0
      %4939 = vmatprep.subr.bf16.mxu0 0
      %4940 = vmatpush1.bf16.xpose.msra.mxu0 0
      %4941 = vmatprep.subr.bf16.mxu0 0
      %4942 = vmatpush1.bf16.xpose.msra.mxu0 0
      %4943 = vmatprep.subr.bf16.mxu0 0
      %4944 = vmatpush1.bf16.xpose.msra.mxu0 0
      %4945 = vmatprep.subr.bf16.mxu0 0
      %4946 = vmatpush1.bf16.xpose.msra.mxu0 0
      %4947 = vmatprep.subr.bf16.mxu0 0
      %4948 = vmatpush1.bf16.xpose.msra.mxu0 0
      %4949 = vmatprep.subr.bf16.mxu0 0
      %4950 = vmatpush1.bf16.xpose.msra.mxu0 0
      %4951 = vmatprep.subr.bf16.mxu0 0
      %4952 = vmatpush1.bf16.xpose.msra.mxu0 0
      %4953 = vmatprep.subr.bf16.mxu0 0
      %4954 = vmatpush1.bf16.xpose.msra.mxu0 0
      %4955 = vmatprep.subr.bf16.mxu0 0
      %4956 = vmatpush1.bf16.xpose.msra.mxu0 0
      %4957 = vmatprep.subr.bf16.mxu0 0
      %4958 = vmatpush1.bf16.xpose.msra.mxu0 0
      %4959 = vmatprep.mubr.bf16.mxu0 0
      %4960 = vmatmul.mubr.bf16.gmra.mrb[0].mxu0 %v4922
      %v4961 = vpop.f32.mrb[0].mxu0
      %v4962 = vadd.f32 0.0, %v4961
      %v4963 = vpop.f32.mrb[0].mxu0
      %v4964 = vpop.f32.mrb[0].mxu0
      %v4965 = vpop.f32.mrb[0].mxu0
      %4966 = vdwg.mxu0
      %4967 = vrot.lane.b32.xlu0 %v831, 112
      %v4968 = vpop.permute.xlu0 %4967
      %4969 = vrot.lane.b32.xlu0 %v1056, 112
      %v4970 = vpop.permute.xlu0 %4969
      %v4972 = vsel %vm1294, %v4968, 0
      %v4975 = vsel %vm1294, %v4970, 0
      %4977 = vmatprep.subr.bf16.mxu0 0
      %4978 = vmatpush1.bf16.xpose.msra.mxu0 %v4975
      %4979 = vmatprep.subr.bf16.mxu0 0
      %4980 = vmatpush1.bf16.xpose.msra.mxu0 0
      %4981 = vmatprep.subr.bf16.mxu0 0
      %4982 = vmatpush1.bf16.xpose.msra.mxu0 0
      %4983 = vmatprep.subr.bf16.mxu0 0
      %4984 = vmatpush1.bf16.xpose.msra.mxu0 0
      %4985 = vmatprep.subr.bf16.mxu0 0
      %4986 = vmatpush1.bf16.xpose.msra.mxu0 0
      %4987 = vmatprep.subr.bf16.mxu0 0
      %4988 = vmatpush1.bf16.xpose.msra.mxu0 0
      %4989 = vmatprep.subr.bf16.mxu0 0
      %4990 = vmatpush1.bf16.xpose.msra.mxu0 0
      %4991 = vmatprep.subr.bf16.mxu0 0
      %4992 = vmatpush1.bf16.xpose.msra.mxu0 0
      %4993 = vmatprep.subr.bf16.mxu0 0
      %4994 = vmatpush1.bf16.xpose.msra.mxu0 0
      %4995 = vmatprep.subr.bf16.mxu0 0
      %4996 = vmatpush1.bf16.xpose.msra.mxu0 0
      %4997 = vmatprep.subr.bf16.mxu0 0
      %4998 = vmatpush1.bf16.xpose.msra.mxu0 0
      %4999 = vmatprep.subr.bf16.mxu0 0
      %5000 = vmatpush1.bf16.xpose.msra.mxu0 0
      %5001 = vmatprep.subr.bf16.mxu0 0
      %5002 = vmatpush1.bf16.xpose.msra.mxu0 0
      %5003 = vmatprep.subr.bf16.mxu0 0
      %5004 = vmatpush1.bf16.xpose.msra.mxu0 0
      %5005 = vmatprep.subr.bf16.mxu0 0
      %5006 = vmatpush1.bf16.xpose.msra.mxu0 0
      %5007 = vmatprep.subr.bf16.mxu0 0
      %5008 = vmatpush1.bf16.xpose.msra.mxu0 0
      %5009 = vmatprep.mubr.bf16.mxu0 0
      %5010 = vmatmul.mubr.bf16.gmra.mrb[0].mxu0 %v4972
      %v5011 = vpop.f32.mrb[0].mxu0
      %v5012 = vadd.f32 0.0, %v5011
      %v5013 = vpop.f32.mrb[0].mxu0
      %v5014 = vpop.f32.mrb[0].mxu0
      %v5015 = vpop.f32.mrb[0].mxu0
      %5016 = vdwg.mxu0
      %5017 = vrot.lane.b32.xlu0 %v832, 112
      %v5018 = vpop.permute.xlu0 %5017
      %5019 = vrot.lane.b32.xlu0 %v1057, 112
      %v5020 = vpop.permute.xlu0 %5019
      %v5022 = vsel %vm1294, %v5018, 0
      %v5025 = vsel %vm1294, %v5020, 0
      %5027 = vmatprep.subr.bf16.mxu0 0
      %5028 = vmatpush1.bf16.xpose.msra.mxu0 %v5025
      %5029 = vmatprep.subr.bf16.mxu0 0
      %5030 = vmatpush1.bf16.xpose.msra.mxu0 0
      %5031 = vmatprep.subr.bf16.mxu0 0
      %5032 = vmatpush1.bf16.xpose.msra.mxu0 0
      %5033 = vmatprep.subr.bf16.mxu0 0
      %5034 = vmatpush1.bf16.xpose.msra.mxu0 0
      %5035 = vmatprep.subr.bf16.mxu0 0
      %5036 = vmatpush1.bf16.xpose.msra.mxu0 0
      %5037 = vmatprep.subr.bf16.mxu0 0
      %5038 = vmatpush1.bf16.xpose.msra.mxu0 0
      %5039 = vmatprep.subr.bf16.mxu0 0
      %5040 = vmatpush1.bf16.xpose.msra.mxu0 0
      %5041 = vmatprep.subr.bf16.mxu0 0
      %5042 = vmatpush1.bf16.xpose.msra.mxu0 0
      %5043 = vmatprep.subr.bf16.mxu0 0
      %5044 = vmatpush1.bf16.xpose.msra.mxu0 0
      %5045 = vmatprep.subr.bf16.mxu0 0
      %5046 = vmatpush1.bf16.xpose.msra.mxu0 0
      %5047 = vmatprep.subr.bf16.mxu0 0
      %5048 = vmatpush1.bf16.xpose.msra.mxu0 0
      %5049 = vmatprep.subr.bf16.mxu0 0
      %5050 = vmatpush1.bf16.xpose.msra.mxu0 0
      %5051 = vmatprep.subr.bf16.mxu0 0
      %5052 = vmatpush1.bf16.xpose.msra.mxu0 0
      %5053 = vmatprep.subr.bf16.mxu0 0
      %5054 = vmatpush1.bf16.xpose.msra.mxu0 0
      %5055 = vmatprep.subr.bf16.mxu0 0
      %5056 = vmatpush1.bf16.xpose.msra.mxu0 0
      %5057 = vmatprep.subr.bf16.mxu0 0
      %5058 = vmatpush1.bf16.xpose.msra.mxu0 0
      %5059 = vmatprep.mubr.bf16.mxu0 0
      %5060 = vmatmul.mubr.bf16.gmra.mrb[0].mxu0 %v5022
      %v5061 = vpop.f32.mrb[0].mxu0
      %v5062 = vadd.f32 0.0, %v5061
      %v5063 = vpop.f32.mrb[0].mxu0
      %v5064 = vpop.f32.mrb[0].mxu0
      %v5065 = vpop.f32.mrb[0].mxu0
      %5066 = vdwg.mxu0
      %5067 = vrot.lane.b32.xlu0 %v833, 112
      %v5068 = vpop.permute.xlu0 %5067
      %5069 = vrot.lane.b32.xlu0 %v1058, 112
      %v5070 = vpop.permute.xlu0 %5069
      %v5072 = vsel %vm1294, %v5068, 0
      %v5075 = vsel %vm1294, %v5070, 0
      %5077 = vmatprep.subr.bf16.mxu0 0
      %5078 = vmatpush1.bf16.xpose.msra.mxu0 %v5075
      %5079 = vmatprep.subr.bf16.mxu0 0
      %5080 = vmatpush1.bf16.xpose.msra.mxu0 0
      %5081 = vmatprep.subr.bf16.mxu0 0
      %5082 = vmatpush1.bf16.xpose.msra.mxu0 0
      %5083 = vmatprep.subr.bf16.mxu0 0
      %5084 = vmatpush1.bf16.xpose.msra.mxu0 0
      %5085 = vmatprep.subr.bf16.mxu0 0
      %5086 = vmatpush1.bf16.xpose.msra.mxu0 0
      %5087 = vmatprep.subr.bf16.mxu0 0
      %5088 = vmatpush1.bf16.xpose.msra.mxu0 0
      %5089 = vmatprep.subr.bf16.mxu0 0
      %5090 = vmatpush1.bf16.xpose.msra.mxu0 0
      %5091 = vmatprep.subr.bf16.mxu0 0
      %5092 = vmatpush1.bf16.xpose.msra.mxu0 0
      %5093 = vmatprep.subr.bf16.mxu0 0
      %5094 = vmatpush1.bf16.xpose.msra.mxu0 0
      %5095 = vmatprep.subr.bf16.mxu0 0
      %5096 = vmatpush1.bf16.xpose.msra.mxu0 0
      %5097 = vmatprep.subr.bf16.mxu0 0
      %5098 = vmatpush1.bf16.xpose.msra.mxu0 0
      %5099 = vmatprep.subr.bf16.mxu0 0
      %5100 = vmatpush1.bf16.xpose.msra.mxu0 0
      %5101 = vmatprep.subr.bf16.mxu0 0
      %5102 = vmatpush1.bf16.xpose.msra.mxu0 0
      %5103 = vmatprep.subr.bf16.mxu0 0
      %5104 = vmatpush1.bf16.xpose.msra.mxu0 0
      %5105 = vmatprep.subr.bf16.mxu0 0
      %5106 = vmatpush1.bf16.xpose.msra.mxu0 0
      %5107 = vmatprep.subr.bf16.mxu0 0
      %5108 = vmatpush1.bf16.xpose.msra.mxu0 0
      %5109 = vmatprep.mubr.bf16.mxu0 0
      %5110 = vmatmul.mubr.bf16.gmra.mrb[0].mxu0 %v5072
      %v5111 = vpop.f32.mrb[0].mxu0
      %v5112 = vadd.f32 0.0, %v5111
      %v5113 = vpop.f32.mrb[0].mxu0
      %v5114 = vpop.f32.mrb[0].mxu0
      %v5115 = vpop.f32.mrb[0].mxu0
      %5116 = vdwg.mxu0
      %5117 = vrot.lane.b32.xlu0 %v834, 112
      %v5118 = vpop.permute.xlu0 %5117
      %5119 = vrot.lane.b32.xlu0 %v1059, 112
      %v5120 = vpop.permute.xlu0 %5119
      %v5122 = vsel %vm1294, %v5118, 0
      %v5125 = vsel %vm1294, %v5120, 0
      %5127 = vmatprep.subr.bf16.mxu0 0
      %5128 = vmatpush1.bf16.xpose.msra.mxu0 %v5125
      %5129 = vmatprep.subr.bf16.mxu0 0
      %5130 = vmatpush1.bf16.xpose.msra.mxu0 0
      %5131 = vmatprep.subr.bf16.mxu0 0
      %5132 = vmatpush1.bf16.xpose.msra.mxu0 0
      %5133 = vmatprep.subr.bf16.mxu0 0
      %5134 = vmatpush1.bf16.xpose.msra.mxu0 0
      %5135 = vmatprep.subr.bf16.mxu0 0
      %5136 = vmatpush1.bf16.xpose.msra.mxu0 0
      %5137 = vmatprep.subr.bf16.mxu0 0
      %5138 = vmatpush1.bf16.xpose.msra.mxu0 0
      %5139 = vmatprep.subr.bf16.mxu0 0
      %5140 = vmatpush1.bf16.xpose.msra.mxu0 0
      %5141 = vmatprep.subr.bf16.mxu0 0
      %5142 = vmatpush1.bf16.xpose.msra.mxu0 0
      %5143 = vmatprep.subr.bf16.mxu0 0
      %5144 = vmatpush1.bf16.xpose.msra.mxu0 0
      %5145 = vmatprep.subr.bf16.mxu0 0
      %5146 = vmatpush1.bf16.xpose.msra.mxu0 0
      %5147 = vmatprep.subr.bf16.mxu0 0
      %5148 = vmatpush1.bf16.xpose.msra.mxu0 0
      %5149 = vmatprep.subr.bf16.mxu0 0
      %5150 = vmatpush1.bf16.xpose.msra.mxu0 0
      %5151 = vmatprep.subr.bf16.mxu0 0
      %5152 = vmatpush1.bf16.xpose.msra.mxu0 0
      %5153 = vmatprep.subr.bf16.mxu0 0
      %5154 = vmatpush1.bf16.xpose.msra.mxu0 0
      %5155 = vmatprep.subr.bf16.mxu0 0
      %5156 = vmatpush1.bf16.xpose.msra.mxu0 0
      %5157 = vmatprep.subr.bf16.mxu0 0
      %5158 = vmatpush1.bf16.xpose.msra.mxu0 0
      %5159 = vmatprep.mubr.bf16.mxu0 0
      %5160 = vmatmul.mubr.bf16.gmra.mrb[0].mxu0 %v5122
      %v5161 = vpop.f32.mrb[0].mxu0
      %v5162 = vadd.f32 0.0, %v5161
      %v5163 = vpop.f32.mrb[0].mxu0
      %v5164 = vpop.f32.mrb[0].mxu0
      %v5165 = vpop.f32.mrb[0].mxu0
      %5166 = vdwg.mxu0
      %5167 = vrot.lane.b32.xlu0 %v835, 112
      %v5168 = vpop.permute.xlu0 %5167
      %5169 = vrot.lane.b32.xlu0 %v1060, 112
      %v5170 = vpop.permute.xlu0 %5169
      %v5172 = vsel %vm1294, %v5168, 0
      %v5175 = vsel %vm1294, %v5170, 0
      %5177 = vmatprep.subr.bf16.mxu0 0
      %5178 = vmatpush1.bf16.xpose.msra.mxu0 %v5175
      %5179 = vmatprep.subr.bf16.mxu0 0
      %5180 = vmatpush1.bf16.xpose.msra.mxu0 0
      %5181 = vmatprep.subr.bf16.mxu0 0
      %5182 = vmatpush1.bf16.xpose.msra.mxu0 0
      %5183 = vmatprep.subr.bf16.mxu0 0
      %5184 = vmatpush1.bf16.xpose.msra.mxu0 0
      %5185 = vmatprep.subr.bf16.mxu0 0
      %5186 = vmatpush1.bf16.xpose.msra.mxu0 0
      %5187 = vmatprep.subr.bf16.mxu0 0
      %5188 = vmatpush1.bf16.xpose.msra.mxu0 0
      %5189 = vmatprep.subr.bf16.mxu0 0
      %5190 = vmatpush1.bf16.xpose.msra.mxu0 0
      %5191 = vmatprep.subr.bf16.mxu0 0
      %5192 = vmatpush1.bf16.xpose.msra.mxu0 0
      %5193 = vmatprep.subr.bf16.mxu0 0
      %5194 = vmatpush1.bf16.xpose.msra.mxu0 0
      %5195 = vmatprep.subr.bf16.mxu0 0
      %5196 = vmatpush1.bf16.xpose.msra.mxu0 0
      %5197 = vmatprep.subr.bf16.mxu0 0
      %5198 = vmatpush1.bf16.xpose.msra.mxu0 0
      %5199 = vmatprep.subr.bf16.mxu0 0
      %5200 = vmatpush1.bf16.xpose.msra.mxu0 0
      %5201 = vmatprep.subr.bf16.mxu0 0
      %5202 = vmatpush1.bf16.xpose.msra.mxu0 0
      %5203 = vmatprep.subr.bf16.mxu0 0
      %5204 = vmatpush1.bf16.xpose.msra.mxu0 0
      %5205 = vmatprep.subr.bf16.mxu0 0
      %5206 = vmatpush1.bf16.xpose.msra.mxu0 0
      %5207 = vmatprep.subr.bf16.mxu0 0
      %5208 = vmatpush1.bf16.xpose.msra.mxu0 0
      %5209 = vmatprep.mubr.bf16.mxu0 0
      %5210 = vmatmul.mubr.bf16.gmra.mrb[0].mxu0 %v5172
      %v5211 = vpop.f32.mrb[0].mxu0
      %v5212 = vadd.f32 0.0, %v5211
      %v5213 = vpop.f32.mrb[0].mxu0
      %v5214 = vpop.f32.mrb[0].mxu0
      %v5215 = vpop.f32.mrb[0].mxu0
      %5216 = vdwg.mxu0
      %5217 = vrot.lane.b32.xlu0 %v836, 112
      %v5218 = vpop.permute.xlu0 %5217
      %5219 = vrot.lane.b32.xlu0 %v1061, 112
      %v5220 = vpop.permute.xlu0 %5219
      %v5222 = vsel %vm1294, %v5218, 0
      %v5225 = vsel %vm1294, %v5220, 0
      %5227 = vmatprep.subr.bf16.mxu0 0
      %5228 = vmatpush1.bf16.xpose.msra.mxu0 %v5225
      %5229 = vmatprep.subr.bf16.mxu0 0
      %5230 = vmatpush1.bf16.xpose.msra.mxu0 0
      %5231 = vmatprep.subr.bf16.mxu0 0
      %5232 = vmatpush1.bf16.xpose.msra.mxu0 0
      %5233 = vmatprep.subr.bf16.mxu0 0
      %5234 = vmatpush1.bf16.xpose.msra.mxu0 0
      %5235 = vmatprep.subr.bf16.mxu0 0
      %5236 = vmatpush1.bf16.xpose.msra.mxu0 0
      %5237 = vmatprep.subr.bf16.mxu0 0
      %5238 = vmatpush1.bf16.xpose.msra.mxu0 0
      %5239 = vmatprep.subr.bf16.mxu0 0
      %5240 = vmatpush1.bf16.xpose.msra.mxu0 0
      %5241 = vmatprep.subr.bf16.mxu0 0
      %5242 = vmatpush1.bf16.xpose.msra.mxu0 0
      %5243 = vmatprep.subr.bf16.mxu0 0
      %5244 = vmatpush1.bf16.xpose.msra.mxu0 0
      %5245 = vmatprep.subr.bf16.mxu0 0
      %5246 = vmatpush1.bf16.xpose.msra.mxu0 0
      %5247 = vmatprep.subr.bf16.mxu0 0
      %5248 = vmatpush1.bf16.xpose.msra.mxu0 0
      %5249 = vmatprep.subr.bf16.mxu0 0
      %5250 = vmatpush1.bf16.xpose.msra.mxu0 0
      %5251 = vmatprep.subr.bf16.mxu0 0
      %5252 = vmatpush1.bf16.xpose.msra.mxu0 0
      %5253 = vmatprep.subr.bf16.mxu0 0
      %5254 = vmatpush1.bf16.xpose.msra.mxu0 0
      %5255 = vmatprep.subr.bf16.mxu0 0
      %5256 = vmatpush1.bf16.xpose.msra.mxu0 0
      %5257 = vmatprep.subr.bf16.mxu0 0
      %5258 = vmatpush1.bf16.xpose.msra.mxu0 0
      %5259 = vmatprep.mubr.bf16.mxu0 0
      %5260 = vmatmul.mubr.bf16.gmra.mrb[0].mxu0 %v5222
      %v5261 = vpop.f32.mrb[0].mxu0
      %v5262 = vadd.f32 0.0, %v5261
      %v5263 = vpop.f32.mrb[0].mxu0
      %v5264 = vpop.f32.mrb[0].mxu0
      %v5265 = vpop.f32.mrb[0].mxu0
      %5266 = vdwg.mxu0
      %5267 = vrot.lane.b32.xlu0 %v837, 112
      %v5268 = vpop.permute.xlu0 %5267
      %5269 = vrot.lane.b32.xlu0 %v1062, 112
      %v5270 = vpop.permute.xlu0 %5269
      %v5272 = vsel %vm1294, %v5268, 0
      %v5275 = vsel %vm1294, %v5270, 0
      %5277 = vmatprep.subr.bf16.mxu0 0
      %5278 = vmatpush1.bf16.xpose.msra.mxu0 %v5275
      %5279 = vmatprep.subr.bf16.mxu0 0
      %5280 = vmatpush1.bf16.xpose.msra.mxu0 0
      %5281 = vmatprep.subr.bf16.mxu0 0
      %5282 = vmatpush1.bf16.xpose.msra.mxu0 0
      %5283 = vmatprep.subr.bf16.mxu0 0
      %5284 = vmatpush1.bf16.xpose.msra.mxu0 0
      %5285 = vmatprep.subr.bf16.mxu0 0
      %5286 = vmatpush1.bf16.xpose.msra.mxu0 0
      %5287 = vmatprep.subr.bf16.mxu0 0
      %5288 = vmatpush1.bf16.xpose.msra.mxu0 0
      %5289 = vmatprep.subr.bf16.mxu0 0
      %5290 = vmatpush1.bf16.xpose.msra.mxu0 0
      %5291 = vmatprep.subr.bf16.mxu0 0
      %5292 = vmatpush1.bf16.xpose.msra.mxu0 0
      %5293 = vmatprep.subr.bf16.mxu0 0
      %5294 = vmatpush1.bf16.xpose.msra.mxu0 0
      %5295 = vmatprep.subr.bf16.mxu0 0
      %5296 = vmatpush1.bf16.xpose.msra.mxu0 0
      %5297 = vmatprep.subr.bf16.mxu0 0
      %5298 = vmatpush1.bf16.xpose.msra.mxu0 0
      %5299 = vmatprep.subr.bf16.mxu0 0
      %5300 = vmatpush1.bf16.xpose.msra.mxu0 0
      %5301 = vmatprep.subr.bf16.mxu0 0
      %5302 = vmatpush1.bf16.xpose.msra.mxu0 0
      %5303 = vmatprep.subr.bf16.mxu0 0
      %5304 = vmatpush1.bf16.xpose.msra.mxu0 0
      %5305 = vmatprep.subr.bf16.mxu0 0
      %5306 = vmatpush1.bf16.xpose.msra.mxu0 0
      %5307 = vmatprep.subr.bf16.mxu0 0
      %5308 = vmatpush1.bf16.xpose.msra.mxu0 0
      %5309 = vmatprep.mubr.bf16.mxu0 0
      %5310 = vmatmul.mubr.bf16.gmra.mrb[0].mxu0 %v5272
      %v5311 = vpop.f32.mrb[0].mxu0
      %v5312 = vadd.f32 0.0, %v5311
      %v5313 = vpop.f32.mrb[0].mxu0
      %v5314 = vpop.f32.mrb[0].mxu0
      %v5315 = vpop.f32.mrb[0].mxu0
      %5316 = vdwg.mxu0
      %5317 = vrot.lane.b32.xlu0 %v838, 112
      %v5318 = vpop.permute.xlu0 %5317
      %5319 = vrot.lane.b32.xlu0 %v1063, 112
      %v5320 = vpop.permute.xlu0 %5319
      %v5322 = vsel %vm1294, %v5318, 0
      %v5325 = vsel %vm1294, %v5320, 0
      %5327 = vmatprep.subr.bf16.mxu0 0
      %5328 = vmatpush1.bf16.xpose.msra.mxu0 %v5325
      %5329 = vmatprep.subr.bf16.mxu0 0
      %5330 = vmatpush1.bf16.xpose.msra.mxu0 0
      %5331 = vmatprep.subr.bf16.mxu0 0
      %5332 = vmatpush1.bf16.xpose.msra.mxu0 0
      %5333 = vmatprep.subr.bf16.mxu0 0
      %5334 = vmatpush1.bf16.xpose.msra.mxu0 0
      %5335 = vmatprep.subr.bf16.mxu0 0
      %5336 = vmatpush1.bf16.xpose.msra.mxu0 0
      %5337 = vmatprep.subr.bf16.mxu0 0
      %5338 = vmatpush1.bf16.xpose.msra.mxu0 0
      %5339 = vmatprep.subr.bf16.mxu0 0
      %5340 = vmatpush1.bf16.xpose.msra.mxu0 0
      %5341 = vmatprep.subr.bf16.mxu0 0
      %5342 = vmatpush1.bf16.xpose.msra.mxu0 0
      %5343 = vmatprep.subr.bf16.mxu0 0
      %5344 = vmatpush1.bf16.xpose.msra.mxu0 0
      %5345 = vmatprep.subr.bf16.mxu0 0
      %5346 = vmatpush1.bf16.xpose.msra.mxu0 0
      %5347 = vmatprep.subr.bf16.mxu0 0
      %5348 = vmatpush1.bf16.xpose.msra.mxu0 0
      %5349 = vmatprep.subr.bf16.mxu0 0
      %5350 = vmatpush1.bf16.xpose.msra.mxu0 0
      %5351 = vmatprep.subr.bf16.mxu0 0
      %5352 = vmatpush1.bf16.xpose.msra.mxu0 0
      %5353 = vmatprep.subr.bf16.mxu0 0
      %5354 = vmatpush1.bf16.xpose.msra.mxu0 0
      %5355 = vmatprep.subr.bf16.mxu0 0
      %5356 = vmatpush1.bf16.xpose.msra.mxu0 0
      %5357 = vmatprep.subr.bf16.mxu0 0
      %5358 = vmatpush1.bf16.xpose.msra.mxu0 0
      %5359 = vmatprep.mubr.bf16.mxu0 0
      %5360 = vmatmul.mubr.bf16.gmra.mrb[0].mxu0 %v5322
      %v5361 = vpop.f32.mrb[0].mxu0
      %v5362 = vadd.f32 0.0, %v5361
      %v5363 = vpop.f32.mrb[0].mxu0
      %v5364 = vpop.f32.mrb[0].mxu0
      %v5365 = vpop.f32.mrb[0].mxu0
      %5366 = vdwg.mxu0
      %5367 = vrot.lane.b32.xlu0 %v839, 112
      %v5368 = vpop.permute.xlu0 %5367
      %5369 = vrot.lane.b32.xlu0 %v1064, 112
      %v5370 = vpop.permute.xlu0 %5369
      %v5372 = vsel %vm1294, %v5368, 0
      %v5375 = vsel %vm1294, %v5370, 0
      %5377 = vmatprep.subr.bf16.mxu0 0
      %5378 = vmatpush1.bf16.xpose.msra.mxu0 %v5375
      %5379 = vmatprep.subr.bf16.mxu0 0
      %5380 = vmatpush1.bf16.xpose.msra.mxu0 0
      %5381 = vmatprep.subr.bf16.mxu0 0
      %5382 = vmatpush1.bf16.xpose.msra.mxu0 0
      %5383 = vmatprep.subr.bf16.mxu0 0
      %5384 = vmatpush1.bf16.xpose.msra.mxu0 0
      %5385 = vmatprep.subr.bf16.mxu0 0
      %5386 = vmatpush1.bf16.xpose.msra.mxu0 0
      %5387 = vmatprep.subr.bf16.mxu0 0
      %5388 = vmatpush1.bf16.xpose.msra.mxu0 0
      %5389 = vmatprep.subr.bf16.mxu0 0
      %5390 = vmatpush1.bf16.xpose.msra.mxu0 0
      %5391 = vmatprep.subr.bf16.mxu0 0
      %5392 = vmatpush1.bf16.xpose.msra.mxu0 0
      %5393 = vmatprep.subr.bf16.mxu0 0
      %5394 = vmatpush1.bf16.xpose.msra.mxu0 0
      %5395 = vmatprep.subr.bf16.mxu0 0
      %5396 = vmatpush1.bf16.xpose.msra.mxu0 0
      %5397 = vmatprep.subr.bf16.mxu0 0
      %5398 = vmatpush1.bf16.xpose.msra.mxu0 0
      %5399 = vmatprep.subr.bf16.mxu0 0
      %5400 = vmatpush1.bf16.xpose.msra.mxu0 0
      %5401 = vmatprep.subr.bf16.mxu0 0
      %5402 = vmatpush1.bf16.xpose.msra.mxu0 0
      %5403 = vmatprep.subr.bf16.mxu0 0
      %5404 = vmatpush1.bf16.xpose.msra.mxu0 0
      %5405 = vmatprep.subr.bf16.mxu0 0
      %5406 = vmatpush1.bf16.xpose.msra.mxu0 0
      %5407 = vmatprep.subr.bf16.mxu0 0
      %5408 = vmatpush1.bf16.xpose.msra.mxu0 0
      %5409 = vmatprep.mubr.bf16.mxu0 0
      %5410 = vmatmul.mubr.bf16.gmra.mrb[0].mxu0 %v5372
      %v5411 = vpop.f32.mrb[0].mxu0
      %v5412 = vadd.f32 0.0, %v5411
      %v5413 = vpop.f32.mrb[0].mxu0
      %v5414 = vpop.f32.mrb[0].mxu0
      %v5415 = vpop.f32.mrb[0].mxu0
      %5416 = vdwg.mxu0
      %5417 = vrot.lane.b32.xlu0 %v840, 112
      %v5418 = vpop.permute.xlu0 %5417
      %5419 = vrot.lane.b32.xlu0 %v1065, 112
      %v5420 = vpop.permute.xlu0 %5419
      %v5422 = vsel %vm1294, %v5418, 0
      %v5425 = vsel %vm1294, %v5420, 0
      %5427 = vmatprep.subr.bf16.mxu0 0
      %5428 = vmatpush1.bf16.xpose.msra.mxu0 %v5425
      %5429 = vmatprep.subr.bf16.mxu0 0
      %5430 = vmatpush1.bf16.xpose.msra.mxu0 0
      %5431 = vmatprep.subr.bf16.mxu0 0
      %5432 = vmatpush1.bf16.xpose.msra.mxu0 0
      %5433 = vmatprep.subr.bf16.mxu0 0
      %5434 = vmatpush1.bf16.xpose.msra.mxu0 0
      %5435 = vmatprep.subr.bf16.mxu0 0
      %5436 = vmatpush1.bf16.xpose.msra.mxu0 0
      %5437 = vmatprep.subr.bf16.mxu0 0
      %5438 = vmatpush1.bf16.xpose.msra.mxu0 0
      %5439 = vmatprep.subr.bf16.mxu0 0
      %5440 = vmatpush1.bf16.xpose.msra.mxu0 0
      %5441 = vmatprep.subr.bf16.mxu0 0
      %5442 = vmatpush1.bf16.xpose.msra.mxu0 0
      %5443 = vmatprep.subr.bf16.mxu0 0
      %5444 = vmatpush1.bf16.xpose.msra.mxu0 0
      %5445 = vmatprep.subr.bf16.mxu0 0
      %5446 = vmatpush1.bf16.xpose.msra.mxu0 0
      %5447 = vmatprep.subr.bf16.mxu0 0
      %5448 = vmatpush1.bf16.xpose.msra.mxu0 0
      %5449 = vmatprep.subr.bf16.mxu0 0
      %5450 = vmatpush1.bf16.xpose.msra.mxu0 0
      %5451 = vmatprep.subr.bf16.mxu0 0
      %5452 = vmatpush1.bf16.xpose.msra.mxu0 0
      %5453 = vmatprep.subr.bf16.mxu0 0
      %5454 = vmatpush1.bf16.xpose.msra.mxu0 0
      %5455 = vmatprep.subr.bf16.mxu0 0
      %5456 = vmatpush1.bf16.xpose.msra.mxu0 0
      %5457 = vmatprep.subr.bf16.mxu0 0
      %5458 = vmatpush1.bf16.xpose.msra.mxu0 0
      %5459 = vmatprep.mubr.bf16.mxu0 0
      %5460 = vmatmul.mubr.bf16.gmra.mrb[0].mxu0 %v5422
      %v5461 = vpop.f32.mrb[0].mxu0
      %v5462 = vadd.f32 0.0, %v5461
      %v5463 = vpop.f32.mrb[0].mxu0
      %v5464 = vpop.f32.mrb[0].mxu0
      %v5465 = vpop.f32.mrb[0].mxu0
      %5466 = vdwg.mxu0
      %5467 = vrot.lane.b32.xlu0 %v841, 112
      %v5468 = vpop.permute.xlu0 %5467
      %5469 = vrot.lane.b32.xlu0 %v1066, 112
      %v5470 = vpop.permute.xlu0 %5469
      %v5472 = vsel %vm1294, %v5468, 0
      %v5475 = vsel %vm1294, %v5470, 0
      %5477 = vmatprep.subr.bf16.mxu0 0
      %5478 = vmatpush1.bf16.xpose.msra.mxu0 %v5475
      %5479 = vmatprep.subr.bf16.mxu0 0
      %5480 = vmatpush1.bf16.xpose.msra.mxu0 0
      %5481 = vmatprep.subr.bf16.mxu0 0
      %5482 = vmatpush1.bf16.xpose.msra.mxu0 0
      %5483 = vmatprep.subr.bf16.mxu0 0
      %5484 = vmatpush1.bf16.xpose.msra.mxu0 0
      %5485 = vmatprep.subr.bf16.mxu0 0
      %5486 = vmatpush1.bf16.xpose.msra.mxu0 0
      %5487 = vmatprep.subr.bf16.mxu0 0
      %5488 = vmatpush1.bf16.xpose.msra.mxu0 0
      %5489 = vmatprep.subr.bf16.mxu0 0
      %5490 = vmatpush1.bf16.xpose.msra.mxu0 0
      %5491 = vmatprep.subr.bf16.mxu0 0
      %5492 = vmatpush1.bf16.xpose.msra.mxu0 0
      %5493 = vmatprep.subr.bf16.mxu0 0
      %5494 = vmatpush1.bf16.xpose.msra.mxu0 0
      %5495 = vmatprep.subr.bf16.mxu0 0
      %5496 = vmatpush1.bf16.xpose.msra.mxu0 0
      %5497 = vmatprep.subr.bf16.mxu0 0
      %5498 = vmatpush1.bf16.xpose.msra.mxu0 0
      %5499 = vmatprep.subr.bf16.mxu0 0
      %5500 = vmatpush1.bf16.xpose.msra.mxu0 0
      %5501 = vmatprep.subr.bf16.mxu0 0
      %5502 = vmatpush1.bf16.xpose.msra.mxu0 0
      %5503 = vmatprep.subr.bf16.mxu0 0
      %5504 = vmatpush1.bf16.xpose.msra.mxu0 0
      %5505 = vmatprep.subr.bf16.mxu0 0
      %5506 = vmatpush1.bf16.xpose.msra.mxu0 0
      %5507 = vmatprep.subr.bf16.mxu0 0
      %5508 = vmatpush1.bf16.xpose.msra.mxu0 0
      %5509 = vmatprep.mubr.bf16.mxu0 0
      %5510 = vmatmul.mubr.bf16.gmra.mrb[0].mxu0 %v5472
      %v5511 = vpop.f32.mrb[0].mxu0
      %v5512 = vadd.f32 0.0, %v5511
      %v5513 = vpop.f32.mrb[0].mxu0
      %v5514 = vpop.f32.mrb[0].mxu0
      %v5515 = vpop.f32.mrb[0].mxu0
      %5516 = vdwg.mxu0
      %5517 = vrot.lane.b32.xlu0 %v842, 112
      %v5518 = vpop.permute.xlu0 %5517
      %5519 = vrot.lane.b32.xlu0 %v1067, 112
      %v5520 = vpop.permute.xlu0 %5519
      %v5522 = vsel %vm1294, %v5518, 0
      %v5525 = vsel %vm1294, %v5520, 0
      %5527 = vmatprep.subr.bf16.mxu0 0
      %5528 = vmatpush1.bf16.xpose.msra.mxu0 %v5525
      %5529 = vmatprep.subr.bf16.mxu0 0
      %5530 = vmatpush1.bf16.xpose.msra.mxu0 0
      %5531 = vmatprep.subr.bf16.mxu0 0
      %5532 = vmatpush1.bf16.xpose.msra.mxu0 0
      %5533 = vmatprep.subr.bf16.mxu0 0
      %5534 = vmatpush1.bf16.xpose.msra.mxu0 0
      %5535 = vmatprep.subr.bf16.mxu0 0
      %5536 = vmatpush1.bf16.xpose.msra.mxu0 0
      %5537 = vmatprep.subr.bf16.mxu0 0
      %5538 = vmatpush1.bf16.xpose.msra.mxu0 0
      %5539 = vmatprep.subr.bf16.mxu0 0
      %5540 = vmatpush1.bf16.xpose.msra.mxu0 0
      %5541 = vmatprep.subr.bf16.mxu0 0
      %5542 = vmatpush1.bf16.xpose.msra.mxu0 0
      %5543 = vmatprep.subr.bf16.mxu0 0
      %5544 = vmatpush1.bf16.xpose.msra.mxu0 0
      %5545 = vmatprep.subr.bf16.mxu0 0
      %5546 = vmatpush1.bf16.xpose.msra.mxu0 0
      %5547 = vmatprep.subr.bf16.mxu0 0
      %5548 = vmatpush1.bf16.xpose.msra.mxu0 0
      %5549 = vmatprep.subr.bf16.mxu0 0
      %5550 = vmatpush1.bf16.xpose.msra.mxu0 0
      %5551 = vmatprep.subr.bf16.mxu0 0
      %5552 = vmatpush1.bf16.xpose.msra.mxu0 0
      %5553 = vmatprep.subr.bf16.mxu0 0
      %5554 = vmatpush1.bf16.xpose.msra.mxu0 0
      %5555 = vmatprep.subr.bf16.mxu0 0
      %5556 = vmatpush1.bf16.xpose.msra.mxu0 0
      %5557 = vmatprep.subr.bf16.mxu0 0
      %5558 = vmatpush1.bf16.xpose.msra.mxu0 0
      %5559 = vmatprep.mubr.bf16.mxu0 0
      %5560 = vmatmul.mubr.bf16.gmra.mrb[0].mxu0 %v5522
      %v5561 = vpop.f32.mrb[0].mxu0
      %v5562 = vadd.f32 0.0, %v5561
      %v5563 = vpop.f32.mrb[0].mxu0
      %v5564 = vpop.f32.mrb[0].mxu0
      %v5565 = vpop.f32.mrb[0].mxu0
      %5566 = vdwg.mxu0
      %5567 = vrot.lane.b32.xlu0 %v843, 112
      %v5568 = vpop.permute.xlu0 %5567
      %5569 = vrot.lane.b32.xlu0 %v1068, 112
      %v5570 = vpop.permute.xlu0 %5569
      %v5572 = vsel %vm1294, %v5568, 0
      %v5575 = vsel %vm1294, %v5570, 0
      %5577 = vmatprep.subr.bf16.mxu0 0
      %5578 = vmatpush1.bf16.xpose.msra.mxu0 %v5575
      %5579 = vmatprep.subr.bf16.mxu0 0
      %5580 = vmatpush1.bf16.xpose.msra.mxu0 0
      %5581 = vmatprep.subr.bf16.mxu0 0
      %5582 = vmatpush1.bf16.xpose.msra.mxu0 0
      %5583 = vmatprep.subr.bf16.mxu0 0
      %5584 = vmatpush1.bf16.xpose.msra.mxu0 0
      %5585 = vmatprep.subr.bf16.mxu0 0
      %5586 = vmatpush1.bf16.xpose.msra.mxu0 0
      %5587 = vmatprep.subr.bf16.mxu0 0
      %5588 = vmatpush1.bf16.xpose.msra.mxu0 0
      %5589 = vmatprep.subr.bf16.mxu0 0
      %5590 = vmatpush1.bf16.xpose.msra.mxu0 0
      %5591 = vmatprep.subr.bf16.mxu0 0
      %5592 = vmatpush1.bf16.xpose.msra.mxu0 0
      %5593 = vmatprep.subr.bf16.mxu0 0
      %5594 = vmatpush1.bf16.xpose.msra.mxu0 0
      %5595 = vmatprep.subr.bf16.mxu0 0
      %5596 = vmatpush1.bf16.xpose.msra.mxu0 0
      %5597 = vmatprep.subr.bf16.mxu0 0
      %5598 = vmatpush1.bf16.xpose.msra.mxu0 0
      %5599 = vmatprep.subr.bf16.mxu0 0
      %5600 = vmatpush1.bf16.xpose.msra.mxu0 0
      %5601 = vmatprep.subr.bf16.mxu0 0
      %5602 = vmatpush1.bf16.xpose.msra.mxu0 0
      %5603 = vmatprep.subr.bf16.mxu0 0
      %5604 = vmatpush1.bf16.xpose.msra.mxu0 0
      %5605 = vmatprep.subr.bf16.mxu0 0
      %5606 = vmatpush1.bf16.xpose.msra.mxu0 0
      %5607 = vmatprep.subr.bf16.mxu0 0
      %5608 = vmatpush1.bf16.xpose.msra.mxu0 0
      %5609 = vmatprep.mubr.bf16.mxu0 0
      %5610 = vmatmul.mubr.bf16.gmra.mrb[0].mxu0 %v5572
      %v5611 = vpop.f32.mrb[0].mxu0
      %v5612 = vadd.f32 0.0, %v5611
      %v5613 = vpop.f32.mrb[0].mxu0
      %v5614 = vpop.f32.mrb[0].mxu0
      %v5615 = vpop.f32.mrb[0].mxu0
      %5616 = vdwg.mxu0
      %v5617 = vsel %vm1294, %v4862, -inf
      %5618 = vmax.xlane.f32.xlu0 %v5617
      %v5619 = vpop.xlane.xlu0 %5618
      %v5620 = vsel %vm1294, %v4912, -inf
      %5621 = vmax.xlane.f32.xlu0 %v5620
      %v5622 = vpop.xlane.xlu0 %5621
      %v5623 = vsel %vm1294, %v4962, -inf
      %5624 = vmax.xlane.f32.xlu0 %v5623
      %v5625 = vpop.xlane.xlu0 %5624
      %v5626 = vsel %vm1294, %v5012, -inf
      %5627 = vmax.xlane.f32.xlu0 %v5626
      %v5628 = vpop.xlane.xlu0 %5627
      %v5629 = vsel %vm1294, %v5062, -inf
      %5630 = vmax.xlane.f32.xlu0 %v5629
      %v5631 = vpop.xlane.xlu0 %5630
      %v5632 = vsel %vm1294, %v5112, -inf
      %5633 = vmax.xlane.f32.xlu0 %v5632
      %v5634 = vpop.xlane.xlu0 %5633
      %v5635 = vsel %vm1294, %v5162, -inf
      %5636 = vmax.xlane.f32.xlu0 %v5635
      %v5637 = vpop.xlane.xlu0 %5636
      %v5638 = vsel %vm1294, %v5212, -inf
      %5639 = vmax.xlane.f32.xlu0 %v5638
      %v5640 = vpop.xlane.xlu0 %5639
      %v5641 = vsel %vm1294, %v5262, -inf
      %5642 = vmax.xlane.f32.xlu0 %v5641
      %v5643 = vpop.xlane.xlu0 %5642
      %v5644 = vsel %vm1294, %v5312, -inf
      %5645 = vmax.xlane.f32.xlu0 %v5644
      %v5646 = vpop.xlane.xlu0 %5645
      %v5647 = vsel %vm1294, %v5362, -inf
      %5648 = vmax.xlane.f32.xlu0 %v5647
      %v5649 = vpop.xlane.xlu0 %5648
      %v5650 = vsel %vm1294, %v5412, -inf
      %5651 = vmax.xlane.f32.xlu0 %v5650
      %v5652 = vpop.xlane.xlu0 %5651
      %v5653 = vsel %vm1294, %v5462, -inf
      %5654 = vmax.xlane.f32.xlu0 %v5653
      %v5655 = vpop.xlane.xlu0 %5654
      %v5656 = vsel %vm1294, %v5512, -inf
      %5657 = vmax.xlane.f32.xlu0 %v5656
      %v5658 = vpop.xlane.xlu0 %5657
      %v5659 = vsel %vm1294, %v5562, -inf
      %5660 = vmax.xlane.f32.xlu0 %v5659
      %v5661 = vpop.xlane.xlu0 %5660
      %v5662 = vsel %vm1294, %v5612, -inf
      %5663 = vmax.xlane.f32.xlu0 %v5662
      %v5664 = vpop.xlane.xlu0 %5663
      %v5665 = vsub.f32 %v4862, %v5619
      %v5666 = vsub.f32 %v4912, %v5622
      %v5667 = vsub.f32 %v4962, %v5625
      %v5668 = vsub.f32 %v5012, %v5628
      %v5669 = vsub.f32 %v5062, %v5631
      %v5670 = vsub.f32 %v5112, %v5634
      %v5671 = vsub.f32 %v5162, %v5637
      %v5672 = vsub.f32 %v5212, %v5640
      %v5673 = vsub.f32 %v5262, %v5643
      %v5674 = vsub.f32 %v5312, %v5646
      %v5675 = vsub.f32 %v5362, %v5649
      %v5676 = vsub.f32 %v5412, %v5652
      %v5677 = vsub.f32 %v5462, %v5655
      %v5678 = vsub.f32 %v5512, %v5658
      %v5679 = vsub.f32 %v5562, %v5661
      %v5680 = vsub.f32 %v5612, %v5664
      %v5681 = vmul.f32 %v5665, 1.442695
      %v5682 = vpow.pop %v5681
      %v5683 = vmul.f32 %v5666, 1.442695
      %v5684 = vpow.pop %v5683
      %v5685 = vmul.f32 %v5667, 1.442695
      %v5686 = vpow.pop %v5685
      %v5687 = vmul.f32 %v5668, 1.442695
      %v5688 = vpow.pop %v5687
      %v5689 = vmul.f32 %v5669, 1.442695
      %v5690 = vpow.pop %v5689
      %v5691 = vmul.f32 %v5670, 1.442695
      %v5692 = vpow.pop %v5691
      %v5693 = vmul.f32 %v5671, 1.442695
      %v5694 = vpow.pop %v5693
      %v5695 = vmul.f32 %v5672, 1.442695
      %v5696 = vpow.pop %v5695
      %v5697 = vmul.f32 %v5673, 1.442695
      %v5698 = vpow.pop %v5697
      %v5699 = vmul.f32 %v5674, 1.442695
      %v5700 = vpow.pop %v5699
      %v5701 = vmul.f32 %v5675, 1.442695
      %v5702 = vpow.pop %v5701
      %v5703 = vmul.f32 %v5676, 1.442695
      %v5704 = vpow.pop %v5703
      %v5705 = vmul.f32 %v5677, 1.442695
      %v5706 = vpow.pop %v5705
      %v5707 = vmul.f32 %v5678, 1.442695
      %v5708 = vpow.pop %v5707
      %v5709 = vmul.f32 %v5679, 1.442695
      %v5710 = vpow.pop %v5709
      %v5711 = vmul.f32 %v5680, 1.442695
      %v5712 = vpow.pop %v5711
      %v5713 = vsel %vm1294, %v5682, 0.0
      %5714 = vadd.xlane.f32.xlu0 %v5713
      %v5715 = vpop.xlane.xlu0 %5714
      %v5716 = vsel %vm1294, %v5684, 0.0
      %5717 = vadd.xlane.f32.xlu0 %v5716
      %v5718 = vpop.xlane.xlu0 %5717
      %v5719 = vsel %vm1294, %v5686, 0.0
      %5720 = vadd.xlane.f32.xlu0 %v5719
      %v5721 = vpop.xlane.xlu0 %5720
      %v5722 = vsel %vm1294, %v5688, 0.0
      %5723 = vadd.xlane.f32.xlu0 %v5722
      %v5724 = vpop.xlane.xlu0 %5723
      %v5725 = vsel %vm1294, %v5690, 0.0
      %5726 = vadd.xlane.f32.xlu0 %v5725
      %v5727 = vpop.xlane.xlu0 %5726
      %v5728 = vsel %vm1294, %v5692, 0.0
      %5729 = vadd.xlane.f32.xlu0 %v5728
      %v5730 = vpop.xlane.xlu0 %5729
      %v5731 = vsel %vm1294, %v5694, 0.0
      %5732 = vadd.xlane.f32.xlu0 %v5731
      %v5733 = vpop.xlane.xlu0 %5732
      %v5734 = vsel %vm1294, %v5696, 0.0
      %5735 = vadd.xlane.f32.xlu0 %v5734
      %v5736 = vpop.xlane.xlu0 %5735
      %v5737 = vsel %vm1294, %v5698, 0.0
      %5738 = vadd.xlane.f32.xlu0 %v5737
      %v5739 = vpop.xlane.xlu0 %5738
      %v5740 = vsel %vm1294, %v5700, 0.0
      %5741 = vadd.xlane.f32.xlu0 %v5740
      %v5742 = vpop.xlane.xlu0 %5741
      %v5743 = vsel %vm1294, %v5702, 0.0
      %5744 = vadd.xlane.f32.xlu0 %v5743
      %v5745 = vpop.xlane.xlu0 %5744
      %v5746 = vsel %vm1294, %v5704, 0.0
      %5747 = vadd.xlane.f32.xlu0 %v5746
      %v5748 = vpop.xlane.xlu0 %5747
      %v5749 = vsel %vm1294, %v5706, 0.0
      %5750 = vadd.xlane.f32.xlu0 %v5749
      %v5751 = vpop.xlane.xlu0 %5750
      %v5752 = vsel %vm1294, %v5708, 0.0
      %5753 = vadd.xlane.f32.xlu0 %v5752
      %v5754 = vpop.xlane.xlu0 %5753
      %v5755 = vsel %vm1294, %v5710, 0.0
      %5756 = vadd.xlane.f32.xlu0 %v5755
      %v5757 = vpop.xlane.xlu0 %5756
      %v5758 = vsel %vm1294, %v5712, 0.0
      %5759 = vadd.xlane.f32.xlu0 %v5758
      %v5760 = vpop.xlane.xlu0 %5759
      %v5761 = vrcp.pop %v5715
      %v5762 = vrcp.pop %v5718
      %v5763 = vrcp.pop %v5721
      %v5764 = vrcp.pop %v5724
      %v5765 = vrcp.pop %v5727
      %v5766 = vrcp.pop %v5730
      %v5767 = vrcp.pop %v5733
      %v5768 = vrcp.pop %v5736
      %v5769 = vrcp.pop %v5739
      %v5770 = vrcp.pop %v5742
      %v5771 = vrcp.pop %v5745
      %v5772 = vrcp.pop %v5748
      %v5773 = vrcp.pop %v5751
      %v5774 = vrcp.pop %v5754
      %v5775 = vrcp.pop %v5757
      %v5776 = vrcp.pop %v5760
      %v5777 = vmul.f32 %v5682, %v5761
      %v5778 = vmul.f32 %v5684, %v5762
      %v5779 = vmul.f32 %v5686, %v5763
      %v5780 = vmul.f32 %v5688, %v5764
      %v5781 = vmul.f32 %v5690, %v5765
      %v5782 = vmul.f32 %v5692, %v5766
      %v5783 = vmul.f32 %v5694, %v5767
      %v5784 = vmul.f32 %v5696, %v5768
      %v5785 = vmul.f32 %v5698, %v5769
      %v5786 = vmul.f32 %v5700, %v5770
      %v5787 = vmul.f32 %v5702, %v5771
      %v5788 = vmul.f32 %v5704, %v5772
      %v5789 = vmul.f32 %v5706, %v5773
      %v5790 = vmul.f32 %v5708, %v5774
      %v5791 = vmul.f32 %v5710, %v5775
      %v5792 = vmul.f32 %v5712, %v5776
      %v5793 = vpack.c.bf16 %v5777, %v5777
      %v5794 = vpack.c.bf16 %v5778, %v5778
      %v5795 = vpack.c.bf16 %v5779, %v5779
      %v5796 = vpack.c.bf16 %v5780, %v5780
      %v5797 = vpack.c.bf16 %v5781, %v5781
      %v5798 = vpack.c.bf16 %v5782, %v5782
      %v5799 = vpack.c.bf16 %v5783, %v5783
      %v5800 = vpack.c.bf16 %v5784, %v5784
      %v5801 = vpack.c.bf16 %v5785, %v5785
      %v5802 = vpack.c.bf16 %v5786, %v5786
      %v5803 = vpack.c.bf16 %v5787, %v5787
      %v5804 = vpack.c.bf16 %v5788, %v5788
      %v5805 = vpack.c.bf16 %v5789, %v5789
      %v5806 = vpack.c.bf16 %v5790, %v5790
      %v5807 = vpack.c.bf16 %v5791, %v5791
      %v5808 = vpack.c.bf16 %v5792, %v5792
      %5809 = vrot.lane.b32.xlu0 %v1278, 112
      %v5810 = vpop.permute.xlu0 %5809
      %v5812 = vsel %vm1294, %v5793, 0
      %v5815 = vsel %vm2226, %v5810, 0
      %5817 = vmatprep.subr.bf16.mxu0 0
      %5818 = vmatpush1.bf16.msra.mxu0 %v5815
      %5819 = vmatprep.subr.bf16.mxu0 0
      %5820 = vmatpush1.bf16.msra.mxu0 0
      %5821 = vmatprep.subr.bf16.mxu0 0
      %5822 = vmatpush1.bf16.msra.mxu0 0
      %5823 = vmatprep.subr.bf16.mxu0 0
      %5824 = vmatpush1.bf16.msra.mxu0 0
      %5825 = vmatprep.subr.bf16.mxu0 0
      %5826 = vmatpush1.bf16.msra.mxu0 0
      %5827 = vmatprep.subr.bf16.mxu0 0
      %5828 = vmatpush1.bf16.msra.mxu0 0
      %5829 = vmatprep.subr.bf16.mxu0 0
      %5830 = vmatpush1.bf16.msra.mxu0 0
      %5831 = vmatprep.subr.bf16.mxu0 0
      %5832 = vmatpush1.bf16.msra.mxu0 0
      %5833 = vmatprep.subr.bf16.mxu0 0
      %5834 = vmatpush1.bf16.msra.mxu0 0
      %5835 = vmatprep.subr.bf16.mxu0 0
      %5836 = vmatpush1.bf16.msra.mxu0 0
      %5837 = vmatprep.subr.bf16.mxu0 0
      %5838 = vmatpush1.bf16.msra.mxu0 0
      %5839 = vmatprep.subr.bf16.mxu0 0
      %5840 = vmatpush1.bf16.msra.mxu0 0
      %5841 = vmatprep.subr.bf16.mxu0 0
      %5842 = vmatpush1.bf16.msra.mxu0 0
      %5843 = vmatprep.subr.bf16.mxu0 0
      %5844 = vmatpush1.bf16.msra.mxu0 0
      %5845 = vmatprep.subr.bf16.mxu0 0
      %5846 = vmatpush1.bf16.msra.mxu0 0
      %5847 = vmatprep.subr.bf16.mxu0 0
      %5848 = vmatpush1.bf16.msra.mxu0 0
      %5849 = vmatprep.mubr.bf16.mxu0 0
      %5850 = vmatmul.mubr.bf16.gmra.mrb[0].mxu0 %v5812
      %v5851 = vpop.f32.mrb[0].mxu0
      %v5852 = vadd.f32 0.0, %v5851
      %v5853 = vpop.f32.mrb[0].mxu0
      %v5854 = vpop.f32.mrb[0].mxu0
      %v5855 = vpop.f32.mrb[0].mxu0
      %5856 = vdwg.mxu0
      %5857 = vrot.lane.b32.xlu0 %v1279, 112
      %v5858 = vpop.permute.xlu0 %5857
      %v5860 = vsel %vm1294, %v5794, 0
      %v5863 = vsel %vm2226, %v5858, 0
      %5865 = vmatprep.subr.bf16.mxu0 0
      %5866 = vmatpush1.bf16.msra.mxu0 %v5863
      %5867 = vmatprep.subr.bf16.mxu0 0
      %5868 = vmatpush1.bf16.msra.mxu0 0
      %5869 = vmatprep.subr.bf16.mxu0 0
      %5870 = vmatpush1.bf16.msra.mxu0 0
      %5871 = vmatprep.subr.bf16.mxu0 0
      %5872 = vmatpush1.bf16.msra.mxu0 0
      %5873 = vmatprep.subr.bf16.mxu0 0
      %5874 = vmatpush1.bf16.msra.mxu0 0
      %5875 = vmatprep.subr.bf16.mxu0 0
      %5876 = vmatpush1.bf16.msra.mxu0 0
      %5877 = vmatprep.subr.bf16.mxu0 0
      %5878 = vmatpush1.bf16.msra.mxu0 0
      %5879 = vmatprep.subr.bf16.mxu0 0
      %5880 = vmatpush1.bf16.msra.mxu0 0
      %5881 = vmatprep.subr.bf16.mxu0 0
      %5882 = vmatpush1.bf16.msra.mxu0 0
      %5883 = vmatprep.subr.bf16.mxu0 0
      %5884 = vmatpush1.bf16.msra.mxu0 0
      %5885 = vmatprep.subr.bf16.mxu0 0
      %5886 = vmatpush1.bf16.msra.mxu0 0
      %5887 = vmatprep.subr.bf16.mxu0 0
      %5888 = vmatpush1.bf16.msra.mxu0 0
      %5889 = vmatprep.subr.bf16.mxu0 0
      %5890 = vmatpush1.bf16.msra.mxu0 0
      %5891 = vmatprep.subr.bf16.mxu0 0
      %5892 = vmatpush1.bf16.msra.mxu0 0
      %5893 = vmatprep.subr.bf16.mxu0 0
      %5894 = vmatpush1.bf16.msra.mxu0 0
      %5895 = vmatprep.subr.bf16.mxu0 0
      %5896 = vmatpush1.bf16.msra.mxu0 0
      %5897 = vmatprep.mubr.bf16.mxu0 0
      %5898 = vmatmul.mubr.bf16.gmra.mrb[0].mxu0 %v5860
      %v5899 = vpop.f32.mrb[0].mxu0
      %v5900 = vadd.f32 0.0, %v5899
      %v5901 = vpop.f32.mrb[0].mxu0
      %v5902 = vpop.f32.mrb[0].mxu0
      %v5903 = vpop.f32.mrb[0].mxu0
      %5904 = vdwg.mxu0
      %5905 = vrot.lane.b32.xlu0 %v1280, 112
      %v5906 = vpop.permute.xlu0 %5905
      %v5908 = vsel %vm1294, %v5795, 0
      %v5911 = vsel %vm2226, %v5906, 0
      %5913 = vmatprep.subr.bf16.mxu0 0
      %5914 = vmatpush1.bf16.msra.mxu0 %v5911
      %5915 = vmatprep.subr.bf16.mxu0 0
      %5916 = vmatpush1.bf16.msra.mxu0 0
      %5917 = vmatprep.subr.bf16.mxu0 0
      %5918 = vmatpush1.bf16.msra.mxu0 0
      %5919 = vmatprep.subr.bf16.mxu0 0
      %5920 = vmatpush1.bf16.msra.mxu0 0
      %5921 = vmatprep.subr.bf16.mxu0 0
      %5922 = vmatpush1.bf16.msra.mxu0 0
      %5923 = vmatprep.subr.bf16.mxu0 0
      %5924 = vmatpush1.bf16.msra.mxu0 0
      %5925 = vmatprep.subr.bf16.mxu0 0
      %5926 = vmatpush1.bf16.msra.mxu0 0
      %5927 = vmatprep.subr.bf16.mxu0 0
      %5928 = vmatpush1.bf16.msra.mxu0 0
      %5929 = vmatprep.subr.bf16.mxu0 0
      %5930 = vmatpush1.bf16.msra.mxu0 0
      %5931 = vmatprep.subr.bf16.mxu0 0
      %5932 = vmatpush1.bf16.msra.mxu0 0
      %5933 = vmatprep.subr.bf16.mxu0 0
      %5934 = vmatpush1.bf16.msra.mxu0 0
      %5935 = vmatprep.subr.bf16.mxu0 0
      %5936 = vmatpush1.bf16.msra.mxu0 0
      %5937 = vmatprep.subr.bf16.mxu0 0
      %5938 = vmatpush1.bf16.msra.mxu0 0
      %5939 = vmatprep.subr.bf16.mxu0 0
      %5940 = vmatpush1.bf16.msra.mxu0 0
      %5941 = vmatprep.subr.bf16.mxu0 0
      %5942 = vmatpush1.bf16.msra.mxu0 0
      %5943 = vmatprep.subr.bf16.mxu0 0
      %5944 = vmatpush1.bf16.msra.mxu0 0
      %5945 = vmatprep.mubr.bf16.mxu0 0
      %5946 = vmatmul.mubr.bf16.gmra.mrb[0].mxu0 %v5908
      %v5947 = vpop.f32.mrb[0].mxu0
      %v5948 = vadd.f32 0.0, %v5947
      %v5949 = vpop.f32.mrb[0].mxu0
      %v5950 = vpop.f32.mrb[0].mxu0
      %v5951 = vpop.f32.mrb[0].mxu0
      %5952 = vdwg.mxu0
      %5953 = vrot.lane.b32.xlu0 %v1281, 112
      %v5954 = vpop.permute.xlu0 %5953
      %v5956 = vsel %vm1294, %v5796, 0
      %v5959 = vsel %vm2226, %v5954, 0
      %5961 = vmatprep.subr.bf16.mxu0 0
      %5962 = vmatpush1.bf16.msra.mxu0 %v5959
      %5963 = vmatprep.subr.bf16.mxu0 0
      %5964 = vmatpush1.bf16.msra.mxu0 0
      %5965 = vmatprep.subr.bf16.mxu0 0
      %5966 = vmatpush1.bf16.msra.mxu0 0
      %5967 = vmatprep.subr.bf16.mxu0 0
      %5968 = vmatpush1.bf16.msra.mxu0 0
      %5969 = vmatprep.subr.bf16.mxu0 0
      %5970 = vmatpush1.bf16.msra.mxu0 0
      %5971 = vmatprep.subr.bf16.mxu0 0
      %5972 = vmatpush1.bf16.msra.mxu0 0
      %5973 = vmatprep.subr.bf16.mxu0 0
      %5974 = vmatpush1.bf16.msra.mxu0 0
      %5975 = vmatprep.subr.bf16.mxu0 0
      %5976 = vmatpush1.bf16.msra.mxu0 0
      %5977 = vmatprep.subr.bf16.mxu0 0
      %5978 = vmatpush1.bf16.msra.mxu0 0
      %5979 = vmatprep.subr.bf16.mxu0 0
      %5980 = vmatpush1.bf16.msra.mxu0 0
      %5981 = vmatprep.subr.bf16.mxu0 0
      %5982 = vmatpush1.bf16.msra.mxu0 0
      %5983 = vmatprep.subr.bf16.mxu0 0
      %5984 = vmatpush1.bf16.msra.mxu0 0
      %5985 = vmatprep.subr.bf16.mxu0 0
      %5986 = vmatpush1.bf16.msra.mxu0 0
      %5987 = vmatprep.subr.bf16.mxu0 0
      %5988 = vmatpush1.bf16.msra.mxu0 0
      %5989 = vmatprep.subr.bf16.mxu0 0
      %5990 = vmatpush1.bf16.msra.mxu0 0
      %5991 = vmatprep.subr.bf16.mxu0 0
      %5992 = vmatpush1.bf16.msra.mxu0 0
      %5993 = vmatprep.mubr.bf16.mxu0 0
      %5994 = vmatmul.mubr.bf16.gmra.mrb[0].mxu0 %v5956
      %v5995 = vpop.f32.mrb[0].mxu0
      %v5996 = vadd.f32 0.0, %v5995
      %v5997 = vpop.f32.mrb[0].mxu0
      %v5998 = vpop.f32.mrb[0].mxu0
      %v5999 = vpop.f32.mrb[0].mxu0
      %6000 = vdwg.mxu0
      %6001 = vrot.lane.b32.xlu0 %v1282, 112
      %v6002 = vpop.permute.xlu0 %6001
      %v6004 = vsel %vm1294, %v5797, 0
      %v6007 = vsel %vm2226, %v6002, 0
      %6009 = vmatprep.subr.bf16.mxu0 0
      %6010 = vmatpush1.bf16.msra.mxu0 %v6007
      %6011 = vmatprep.subr.bf16.mxu0 0
      %6012 = vmatpush1.bf16.msra.mxu0 0
      %6013 = vmatprep.subr.bf16.mxu0 0
      %6014 = vmatpush1.bf16.msra.mxu0 0
      %6015 = vmatprep.subr.bf16.mxu0 0
      %6016 = vmatpush1.bf16.msra.mxu0 0
      %6017 = vmatprep.subr.bf16.mxu0 0
      %6018 = vmatpush1.bf16.msra.mxu0 0
      %6019 = vmatprep.subr.bf16.mxu0 0
      %6020 = vmatpush1.bf16.msra.mxu0 0
      %6021 = vmatprep.subr.bf16.mxu0 0
      %6022 = vmatpush1.bf16.msra.mxu0 0
      %6023 = vmatprep.subr.bf16.mxu0 0
      %6024 = vmatpush1.bf16.msra.mxu0 0
      %6025 = vmatprep.subr.bf16.mxu0 0
      %6026 = vmatpush1.bf16.msra.mxu0 0
      %6027 = vmatprep.subr.bf16.mxu0 0
      %6028 = vmatpush1.bf16.msra.mxu0 0
      %6029 = vmatprep.subr.bf16.mxu0 0
      %6030 = vmatpush1.bf16.msra.mxu0 0
      %6031 = vmatprep.subr.bf16.mxu0 0
      %6032 = vmatpush1.bf16.msra.mxu0 0
      %6033 = vmatprep.subr.bf16.mxu0 0
      %6034 = vmatpush1.bf16.msra.mxu0 0
      %6035 = vmatprep.subr.bf16.mxu0 0
      %6036 = vmatpush1.bf16.msra.mxu0 0
      %6037 = vmatprep.subr.bf16.mxu0 0
      %6038 = vmatpush1.bf16.msra.mxu0 0
      %6039 = vmatprep.subr.bf16.mxu0 0
      %6040 = vmatpush1.bf16.msra.mxu0 0
      %6041 = vmatprep.mubr.bf16.mxu0 0
      %6042 = vmatmul.mubr.bf16.gmra.mrb[0].mxu0 %v6004
      %v6043 = vpop.f32.mrb[0].mxu0
      %v6044 = vadd.f32 0.0, %v6043
      %v6045 = vpop.f32.mrb[0].mxu0
      %v6046 = vpop.f32.mrb[0].mxu0
      %v6047 = vpop.f32.mrb[0].mxu0
      %6048 = vdwg.mxu0
      %6049 = vrot.lane.b32.xlu0 %v1283, 112
      %v6050 = vpop.permute.xlu0 %6049
      %v6052 = vsel %vm1294, %v5798, 0
      %v6055 = vsel %vm2226, %v6050, 0
      %6057 = vmatprep.subr.bf16.mxu0 0
      %6058 = vmatpush1.bf16.msra.mxu0 %v6055
      %6059 = vmatprep.subr.bf16.mxu0 0
      %6060 = vmatpush1.bf16.msra.mxu0 0
      %6061 = vmatprep.subr.bf16.mxu0 0
      %6062 = vmatpush1.bf16.msra.mxu0 0
      %6063 = vmatprep.subr.bf16.mxu0 0
      %6064 = vmatpush1.bf16.msra.mxu0 0
      %6065 = vmatprep.subr.bf16.mxu0 0
      %6066 = vmatpush1.bf16.msra.mxu0 0
      %6067 = vmatprep.subr.bf16.mxu0 0
      %6068 = vmatpush1.bf16.msra.mxu0 0
      %6069 = vmatprep.subr.bf16.mxu0 0
      %6070 = vmatpush1.bf16.msra.mxu0 0
      %6071 = vmatprep.subr.bf16.mxu0 0
      %6072 = vmatpush1.bf16.msra.mxu0 0
      %6073 = vmatprep.subr.bf16.mxu0 0
      %6074 = vmatpush1.bf16.msra.mxu0 0
      %6075 = vmatprep.subr.bf16.mxu0 0
      %6076 = vmatpush1.bf16.msra.mxu0 0
      %6077 = vmatprep.subr.bf16.mxu0 0
      %6078 = vmatpush1.bf16.msra.mxu0 0
      %6079 = vmatprep.subr.bf16.mxu0 0
      %6080 = vmatpush1.bf16.msra.mxu0 0
      %6081 = vmatprep.subr.bf16.mxu0 0
      %6082 = vmatpush1.bf16.msra.mxu0 0
      %6083 = vmatprep.subr.bf16.mxu0 0
      %6084 = vmatpush1.bf16.msra.mxu0 0
      %6085 = vmatprep.subr.bf16.mxu0 0
      %6086 = vmatpush1.bf16.msra.mxu0 0
      %6087 = vmatprep.subr.bf16.mxu0 0
      %6088 = vmatpush1.bf16.msra.mxu0 0
      %6089 = vmatprep.mubr.bf16.mxu0 0
      %6090 = vmatmul.mubr.bf16.gmra.mrb[0].mxu0 %v6052
      %v6091 = vpop.f32.mrb[0].mxu0
      %v6092 = vadd.f32 0.0, %v6091
      %v6093 = vpop.f32.mrb[0].mxu0
      %v6094 = vpop.f32.mrb[0].mxu0
      %v6095 = vpop.f32.mrb[0].mxu0
      %6096 = vdwg.mxu0
      %6097 = vrot.lane.b32.xlu0 %v1284, 112
      %v6098 = vpop.permute.xlu0 %6097
      %v6100 = vsel %vm1294, %v5799, 0
      %v6103 = vsel %vm2226, %v6098, 0
      %6105 = vmatprep.subr.bf16.mxu0 0
      %6106 = vmatpush1.bf16.msra.mxu0 %v6103
      %6107 = vmatprep.subr.bf16.mxu0 0
      %6108 = vmatpush1.bf16.msra.mxu0 0
      %6109 = vmatprep.subr.bf16.mxu0 0
      %6110 = vmatpush1.bf16.msra.mxu0 0
      %6111 = vmatprep.subr.bf16.mxu0 0
      %6112 = vmatpush1.bf16.msra.mxu0 0
      %6113 = vmatprep.subr.bf16.mxu0 0
      %6114 = vmatpush1.bf16.msra.mxu0 0
      %6115 = vmatprep.subr.bf16.mxu0 0
      %6116 = vmatpush1.bf16.msra.mxu0 0
      %6117 = vmatprep.subr.bf16.mxu0 0
      %6118 = vmatpush1.bf16.msra.mxu0 0
      %6119 = vmatprep.subr.bf16.mxu0 0
      %6120 = vmatpush1.bf16.msra.mxu0 0
      %6121 = vmatprep.subr.bf16.mxu0 0
      %6122 = vmatpush1.bf16.msra.mxu0 0
      %6123 = vmatprep.subr.bf16.mxu0 0
      %6124 = vmatpush1.bf16.msra.mxu0 0
      %6125 = vmatprep.subr.bf16.mxu0 0
      %6126 = vmatpush1.bf16.msra.mxu0 0
      %6127 = vmatprep.subr.bf16.mxu0 0
      %6128 = vmatpush1.bf16.msra.mxu0 0
      %6129 = vmatprep.subr.bf16.mxu0 0
      %6130 = vmatpush1.bf16.msra.mxu0 0
      %6131 = vmatprep.subr.bf16.mxu0 0
      %6132 = vmatpush1.bf16.msra.mxu0 0
      %6133 = vmatprep.subr.bf16.mxu0 0
      %6134 = vmatpush1.bf16.msra.mxu0 0
      %6135 = vmatprep.subr.bf16.mxu0 0
      %6136 = vmatpush1.bf16.msra.mxu0 0
      %6137 = vmatprep.mubr.bf16.mxu0 0
      %6138 = vmatmul.mubr.bf16.gmra.mrb[0].mxu0 %v6100
      %v6139 = vpop.f32.mrb[0].mxu0
      %v6140 = vadd.f32 0.0, %v6139
      %v6141 = vpop.f32.mrb[0].mxu0
      %v6142 = vpop.f32.mrb[0].mxu0
      %v6143 = vpop.f32.mrb[0].mxu0
      %6144 = vdwg.mxu0
      %6145 = vrot.lane.b32.xlu0 %v1285, 112
      %v6146 = vpop.permute.xlu0 %6145
      %v6148 = vsel %vm1294, %v5800, 0
      %v6151 = vsel %vm2226, %v6146, 0
      %6153 = vmatprep.subr.bf16.mxu0 0
      %6154 = vmatpush1.bf16.msra.mxu0 %v6151
      %6155 = vmatprep.subr.bf16.mxu0 0
      %6156 = vmatpush1.bf16.msra.mxu0 0
      %6157 = vmatprep.subr.bf16.mxu0 0
      %6158 = vmatpush1.bf16.msra.mxu0 0
      %6159 = vmatprep.subr.bf16.mxu0 0
      %6160 = vmatpush1.bf16.msra.mxu0 0
      %6161 = vmatprep.subr.bf16.mxu0 0
      %6162 = vmatpush1.bf16.msra.mxu0 0
      %6163 = vmatprep.subr.bf16.mxu0 0
      %6164 = vmatpush1.bf16.msra.mxu0 0
      %6165 = vmatprep.subr.bf16.mxu0 0
      %6166 = vmatpush1.bf16.msra.mxu0 0
      %6167 = vmatprep.subr.bf16.mxu0 0
      %6168 = vmatpush1.bf16.msra.mxu0 0
      %6169 = vmatprep.subr.bf16.mxu0 0
      %6170 = vmatpush1.bf16.msra.mxu0 0
      %6171 = vmatprep.subr.bf16.mxu0 0
      %6172 = vmatpush1.bf16.msra.mxu0 0
      %6173 = vmatprep.subr.bf16.mxu0 0
      %6174 = vmatpush1.bf16.msra.mxu0 0
      %6175 = vmatprep.subr.bf16.mxu0 0
      %6176 = vmatpush1.bf16.msra.mxu0 0
      %6177 = vmatprep.subr.bf16.mxu0 0
      %6178 = vmatpush1.bf16.msra.mxu0 0
      %6179 = vmatprep.subr.bf16.mxu0 0
      %6180 = vmatpush1.bf16.msra.mxu0 0
      %6181 = vmatprep.subr.bf16.mxu0 0
      %6182 = vmatpush1.bf16.msra.mxu0 0
      %6183 = vmatprep.subr.bf16.mxu0 0
      %6184 = vmatpush1.bf16.msra.mxu0 0
      %6185 = vmatprep.mubr.bf16.mxu0 0
      %6186 = vmatmul.mubr.bf16.gmra.mrb[0].mxu0 %v6148
      %v6187 = vpop.f32.mrb[0].mxu0
      %v6188 = vadd.f32 0.0, %v6187
      %v6189 = vpop.f32.mrb[0].mxu0
      %v6190 = vpop.f32.mrb[0].mxu0
      %v6191 = vpop.f32.mrb[0].mxu0
      %6192 = vdwg.mxu0
      %6193 = vrot.lane.b32.xlu0 %v1286, 112
      %v6194 = vpop.permute.xlu0 %6193
      %v6196 = vsel %vm1294, %v5801, 0
      %v6199 = vsel %vm2226, %v6194, 0
      %6201 = vmatprep.subr.bf16.mxu0 0
      %6202 = vmatpush1.bf16.msra.mxu0 %v6199
      %6203 = vmatprep.subr.bf16.mxu0 0
      %6204 = vmatpush1.bf16.msra.mxu0 0
      %6205 = vmatprep.subr.bf16.mxu0 0
      %6206 = vmatpush1.bf16.msra.mxu0 0
      %6207 = vmatprep.subr.bf16.mxu0 0
      %6208 = vmatpush1.bf16.msra.mxu0 0
      %6209 = vmatprep.subr.bf16.mxu0 0
      %6210 = vmatpush1.bf16.msra.mxu0 0
      %6211 = vmatprep.subr.bf16.mxu0 0
      %6212 = vmatpush1.bf16.msra.mxu0 0
      %6213 = vmatprep.subr.bf16.mxu0 0
      %6214 = vmatpush1.bf16.msra.mxu0 0
      %6215 = vmatprep.subr.bf16.mxu0 0
      %6216 = vmatpush1.bf16.msra.mxu0 0
      %6217 = vmatprep.subr.bf16.mxu0 0
      %6218 = vmatpush1.bf16.msra.mxu0 0
      %6219 = vmatprep.subr.bf16.mxu0 0
      %6220 = vmatpush1.bf16.msra.mxu0 0
      %6221 = vmatprep.subr.bf16.mxu0 0
      %6222 = vmatpush1.bf16.msra.mxu0 0
      %6223 = vmatprep.subr.bf16.mxu0 0
      %6224 = vmatpush1.bf16.msra.mxu0 0
      %6225 = vmatprep.subr.bf16.mxu0 0
      %6226 = vmatpush1.bf16.msra.mxu0 0
      %6227 = vmatprep.subr.bf16.mxu0 0
      %6228 = vmatpush1.bf16.msra.mxu0 0
      %6229 = vmatprep.subr.bf16.mxu0 0
      %6230 = vmatpush1.bf16.msra.mxu0 0
      %6231 = vmatprep.subr.bf16.mxu0 0
      %6232 = vmatpush1.bf16.msra.mxu0 0
      %6233 = vmatprep.mubr.bf16.mxu0 0
      %6234 = vmatmul.mubr.bf16.gmra.mrb[0].mxu0 %v6196
      %v6235 = vpop.f32.mrb[0].mxu0
      %v6236 = vadd.f32 0.0, %v6235
      %v6237 = vpop.f32.mrb[0].mxu0
      %v6238 = vpop.f32.mrb[0].mxu0
      %v6239 = vpop.f32.mrb[0].mxu0
      %6240 = vdwg.mxu0
      %6241 = vrot.lane.b32.xlu0 %v1287, 112
      %v6242 = vpop.permute.xlu0 %6241
      %v6244 = vsel %vm1294, %v5802, 0
      %v6247 = vsel %vm2226, %v6242, 0
      %6249 = vmatprep.subr.bf16.mxu0 0
      %6250 = vmatpush1.bf16.msra.mxu0 %v6247
      %6251 = vmatprep.subr.bf16.mxu0 0
      %6252 = vmatpush1.bf16.msra.mxu0 0
      %6253 = vmatprep.subr.bf16.mxu0 0
      %6254 = vmatpush1.bf16.msra.mxu0 0
      %6255 = vmatprep.subr.bf16.mxu0 0
      %6256 = vmatpush1.bf16.msra.mxu0 0
      %6257 = vmatprep.subr.bf16.mxu0 0
      %6258 = vmatpush1.bf16.msra.mxu0 0
      %6259 = vmatprep.subr.bf16.mxu0 0
      %6260 = vmatpush1.bf16.msra.mxu0 0
      %6261 = vmatprep.subr.bf16.mxu0 0
      %6262 = vmatpush1.bf16.msra.mxu0 0
      %6263 = vmatprep.subr.bf16.mxu0 0
      %6264 = vmatpush1.bf16.msra.mxu0 0
      %6265 = vmatprep.subr.bf16.mxu0 0
      %6266 = vmatpush1.bf16.msra.mxu0 0
      %6267 = vmatprep.subr.bf16.mxu0 0
      %6268 = vmatpush1.bf16.msra.mxu0 0
      %6269 = vmatprep.subr.bf16.mxu0 0
      %6270 = vmatpush1.bf16.msra.mxu0 0
      %6271 = vmatprep.subr.bf16.mxu0 0
      %6272 = vmatpush1.bf16.msra.mxu0 0
      %6273 = vmatprep.subr.bf16.mxu0 0
      %6274 = vmatpush1.bf16.msra.mxu0 0
      %6275 = vmatprep.subr.bf16.mxu0 0
      %6276 = vmatpush1.bf16.msra.mxu0 0
      %6277 = vmatprep.subr.bf16.mxu0 0
      %6278 = vmatpush1.bf16.msra.mxu0 0
      %6279 = vmatprep.subr.bf16.mxu0 0
      %6280 = vmatpush1.bf16.msra.mxu0 0
      %6281 = vmatprep.mubr.bf16.mxu0 0
      %6282 = vmatmul.mubr.bf16.gmra.mrb[0].mxu0 %v6244
      %v6283 = vpop.f32.mrb[0].mxu0
      %v6284 = vadd.f32 0.0, %v6283
      %v6285 = vpop.f32.mrb[0].mxu0
      %v6286 = vpop.f32.mrb[0].mxu0
      %v6287 = vpop.f32.mrb[0].mxu0
      %6288 = vdwg.mxu0
      %6289 = vrot.lane.b32.xlu0 %v1288, 112
      %v6290 = vpop.permute.xlu0 %6289
      %v6292 = vsel %vm1294, %v5803, 0
      %v6295 = vsel %vm2226, %v6290, 0
      %6297 = vmatprep.subr.bf16.mxu0 0
      %6298 = vmatpush1.bf16.msra.mxu0 %v6295
      %6299 = vmatprep.subr.bf16.mxu0 0
      %6300 = vmatpush1.bf16.msra.mxu0 0
      %6301 = vmatprep.subr.bf16.mxu0 0
      %6302 = vmatpush1.bf16.msra.mxu0 0
      %6303 = vmatprep.subr.bf16.mxu0 0
      %6304 = vmatpush1.bf16.msra.mxu0 0
      %6305 = vmatprep.subr.bf16.mxu0 0
      %6306 = vmatpush1.bf16.msra.mxu0 0
      %6307 = vmatprep.subr.bf16.mxu0 0
      %6308 = vmatpush1.bf16.msra.mxu0 0
      %6309 = vmatprep.subr.bf16.mxu0 0
      %6310 = vmatpush1.bf16.msra.mxu0 0
      %6311 = vmatprep.subr.bf16.mxu0 0
      %6312 = vmatpush1.bf16.msra.mxu0 0
      %6313 = vmatprep.subr.bf16.mxu0 0
      %6314 = vmatpush1.bf16.msra.mxu0 0
      %6315 = vmatprep.subr.bf16.mxu0 0
      %6316 = vmatpush1.bf16.msra.mxu0 0
      %6317 = vmatprep.subr.bf16.mxu0 0
      %6318 = vmatpush1.bf16.msra.mxu0 0
      %6319 = vmatprep.subr.bf16.mxu0 0
      %6320 = vmatpush1.bf16.msra.mxu0 0
      %6321 = vmatprep.subr.bf16.mxu0 0
      %6322 = vmatpush1.bf16.msra.mxu0 0
      %6323 = vmatprep.subr.bf16.mxu0 0
      %6324 = vmatpush1.bf16.msra.mxu0 0
      %6325 = vmatprep.subr.bf16.mxu0 0
      %6326 = vmatpush1.bf16.msra.mxu0 0
      %6327 = vmatprep.subr.bf16.mxu0 0
      %6328 = vmatpush1.bf16.msra.mxu0 0
      %6329 = vmatprep.mubr.bf16.mxu0 0
      %6330 = vmatmul.mubr.bf16.gmra.mrb[0].mxu0 %v6292
      %v6331 = vpop.f32.mrb[0].mxu0
      %v6332 = vadd.f32 0.0, %v6331
      %v6333 = vpop.f32.mrb[0].mxu0
      %v6334 = vpop.f32.mrb[0].mxu0
      %v6335 = vpop.f32.mrb[0].mxu0
      %6336 = vdwg.mxu0
      %6337 = vrot.lane.b32.xlu0 %v1289, 112
      %v6338 = vpop.permute.xlu0 %6337
      %v6340 = vsel %vm1294, %v5804, 0
      %v6343 = vsel %vm2226, %v6338, 0
      %6345 = vmatprep.subr.bf16.mxu0 0
      %6346 = vmatpush1.bf16.msra.mxu0 %v6343
      %6347 = vmatprep.subr.bf16.mxu0 0
      %6348 = vmatpush1.bf16.msra.mxu0 0
      %6349 = vmatprep.subr.bf16.mxu0 0
      %6350 = vmatpush1.bf16.msra.mxu0 0
      %6351 = vmatprep.subr.bf16.mxu0 0
      %6352 = vmatpush1.bf16.msra.mxu0 0
      %6353 = vmatprep.subr.bf16.mxu0 0
      %6354 = vmatpush1.bf16.msra.mxu0 0
      %6355 = vmatprep.subr.bf16.mxu0 0
      %6356 = vmatpush1.bf16.msra.mxu0 0
      %6357 = vmatprep.subr.bf16.mxu0 0
      %6358 = vmatpush1.bf16.msra.mxu0 0
      %6359 = vmatprep.subr.bf16.mxu0 0
      %6360 = vmatpush1.bf16.msra.mxu0 0
      %6361 = vmatprep.subr.bf16.mxu0 0
      %6362 = vmatpush1.bf16.msra.mxu0 0
      %6363 = vmatprep.subr.bf16.mxu0 0
      %6364 = vmatpush1.bf16.msra.mxu0 0
      %6365 = vmatprep.subr.bf16.mxu0 0
      %6366 = vmatpush1.bf16.msra.mxu0 0
      %6367 = vmatprep.subr.bf16.mxu0 0
      %6368 = vmatpush1.bf16.msra.mxu0 0
      %6369 = vmatprep.subr.bf16.mxu0 0
      %6370 = vmatpush1.bf16.msra.mxu0 0
      %6371 = vmatprep.subr.bf16.mxu0 0
      %6372 = vmatpush1.bf16.msra.mxu0 0
      %6373 = vmatprep.subr.bf16.mxu0 0
      %6374 = vmatpush1.bf16.msra.mxu0 0
      %6375 = vmatprep.subr.bf16.mxu0 0
      %6376 = vmatpush1.bf16.msra.mxu0 0
      %6377 = vmatprep.mubr.bf16.mxu0 0
      %6378 = vmatmul.mubr.bf16.gmra.mrb[0].mxu0 %v6340
      %v6379 = vpop.f32.mrb[0].mxu0
      %v6380 = vadd.f32 0.0, %v6379
      %v6381 = vpop.f32.mrb[0].mxu0
      %v6382 = vpop.f32.mrb[0].mxu0
      %v6383 = vpop.f32.mrb[0].mxu0
      %6384 = vdwg.mxu0
      %6385 = vrot.lane.b32.xlu0 %v1290, 112
      %v6386 = vpop.permute.xlu0 %6385
      %v6388 = vsel %vm1294, %v5805, 0
      %v6391 = vsel %vm2226, %v6386, 0
      %6393 = vmatprep.subr.bf16.mxu0 0
      %6394 = vmatpush1.bf16.msra.mxu0 %v6391
      %6395 = vmatprep.subr.bf16.mxu0 0
      %6396 = vmatpush1.bf16.msra.mxu0 0
      %6397 = vmatprep.subr.bf16.mxu0 0
      %6398 = vmatpush1.bf16.msra.mxu0 0
      %6399 = vmatprep.subr.bf16.mxu0 0
      %6400 = vmatpush1.bf16.msra.mxu0 0
      %6401 = vmatprep.subr.bf16.mxu0 0
      %6402 = vmatpush1.bf16.msra.mxu0 0
      %6403 = vmatprep.subr.bf16.mxu0 0
      %6404 = vmatpush1.bf16.msra.mxu0 0
      %6405 = vmatprep.subr.bf16.mxu0 0
      %6406 = vmatpush1.bf16.msra.mxu0 0
      %6407 = vmatprep.subr.bf16.mxu0 0
      %6408 = vmatpush1.bf16.msra.mxu0 0
      %6409 = vmatprep.subr.bf16.mxu0 0
      %6410 = vmatpush1.bf16.msra.mxu0 0
      %6411 = vmatprep.subr.bf16.mxu0 0
      %6412 = vmatpush1.bf16.msra.mxu0 0
      %6413 = vmatprep.subr.bf16.mxu0 0
      %6414 = vmatpush1.bf16.msra.mxu0 0
      %6415 = vmatprep.subr.bf16.mxu0 0
      %6416 = vmatpush1.bf16.msra.mxu0 0
      %6417 = vmatprep.subr.bf16.mxu0 0
      %6418 = vmatpush1.bf16.msra.mxu0 0
      %6419 = vmatprep.subr.bf16.mxu0 0
      %6420 = vmatpush1.bf16.msra.mxu0 0
      %6421 = vmatprep.subr.bf16.mxu0 0
      %6422 = vmatpush1.bf16.msra.mxu0 0
      %6423 = vmatprep.subr.bf16.mxu0 0
      %6424 = vmatpush1.bf16.msra.mxu0 0
      %6425 = vmatprep.mubr.bf16.mxu0 0
      %6426 = vmatmul.mubr.bf16.gmra.mrb[0].mxu0 %v6388
      %v6427 = vpop.f32.mrb[0].mxu0
      %v6428 = vadd.f32 0.0, %v6427
      %v6429 = vpop.f32.mrb[0].mxu0
      %v6430 = vpop.f32.mrb[0].mxu0
      %v6431 = vpop.f32.mrb[0].mxu0
      %6432 = vdwg.mxu0
      %6433 = vrot.lane.b32.xlu0 %v1291, 112
      %v6434 = vpop.permute.xlu0 %6433
      %v6436 = vsel %vm1294, %v5806, 0
      %v6439 = vsel %vm2226, %v6434, 0
      %6441 = vmatprep.subr.bf16.mxu0 0
      %6442 = vmatpush1.bf16.msra.mxu0 %v6439
      %6443 = vmatprep.subr.bf16.mxu0 0
      %6444 = vmatpush1.bf16.msra.mxu0 0
      %6445 = vmatprep.subr.bf16.mxu0 0
      %6446 = vmatpush1.bf16.msra.mxu0 0
      %6447 = vmatprep.subr.bf16.mxu0 0
      %6448 = vmatpush1.bf16.msra.mxu0 0
      %6449 = vmatprep.subr.bf16.mxu0 0
      %6450 = vmatpush1.bf16.msra.mxu0 0
      %6451 = vmatprep.subr.bf16.mxu0 0
      %6452 = vmatpush1.bf16.msra.mxu0 0
      %6453 = vmatprep.subr.bf16.mxu0 0
      %6454 = vmatpush1.bf16.msra.mxu0 0
      %6455 = vmatprep.subr.bf16.mxu0 0
      %6456 = vmatpush1.bf16.msra.mxu0 0
      %6457 = vmatprep.subr.bf16.mxu0 0
      %6458 = vmatpush1.bf16.msra.mxu0 0
      %6459 = vmatprep.subr.bf16.mxu0 0
      %6460 = vmatpush1.bf16.msra.mxu0 0
      %6461 = vmatprep.subr.bf16.mxu0 0
      %6462 = vmatpush1.bf16.msra.mxu0 0
      %6463 = vmatprep.subr.bf16.mxu0 0
      %6464 = vmatpush1.bf16.msra.mxu0 0
      %6465 = vmatprep.subr.bf16.mxu0 0
      %6466 = vmatpush1.bf16.msra.mxu0 0
      %6467 = vmatprep.subr.bf16.mxu0 0
      %6468 = vmatpush1.bf16.msra.mxu0 0
      %6469 = vmatprep.subr.bf16.mxu0 0
      %6470 = vmatpush1.bf16.msra.mxu0 0
      %6471 = vmatprep.subr.bf16.mxu0 0
      %6472 = vmatpush1.bf16.msra.mxu0 0
      %6473 = vmatprep.mubr.bf16.mxu0 0
      %6474 = vmatmul.mubr.bf16.gmra.mrb[0].mxu0 %v6436
      %v6475 = vpop.f32.mrb[0].mxu0
      %v6476 = vadd.f32 0.0, %v6475
      %v6477 = vpop.f32.mrb[0].mxu0
      %v6478 = vpop.f32.mrb[0].mxu0
      %v6479 = vpop.f32.mrb[0].mxu0
      %6480 = vdwg.mxu0
      %6481 = vrot.lane.b32.xlu0 %v1292, 112
      %v6482 = vpop.permute.xlu0 %6481
      %v6484 = vsel %vm1294, %v5807, 0
      %v6487 = vsel %vm2226, %v6482, 0
      %6489 = vmatprep.subr.bf16.mxu0 0
      %6490 = vmatpush1.bf16.msra.mxu0 %v6487
      %6491 = vmatprep.subr.bf16.mxu0 0
      %6492 = vmatpush1.bf16.msra.mxu0 0
      %6493 = vmatprep.subr.bf16.mxu0 0
      %6494 = vmatpush1.bf16.msra.mxu0 0
      %6495 = vmatprep.subr.bf16.mxu0 0
      %6496 = vmatpush1.bf16.msra.mxu0 0
      %6497 = vmatprep.subr.bf16.mxu0 0
      %6498 = vmatpush1.bf16.msra.mxu0 0
      %6499 = vmatprep.subr.bf16.mxu0 0
      %6500 = vmatpush1.bf16.msra.mxu0 0
      %6501 = vmatprep.subr.bf16.mxu0 0
      %6502 = vmatpush1.bf16.msra.mxu0 0
      %6503 = vmatprep.subr.bf16.mxu0 0
      %6504 = vmatpush1.bf16.msra.mxu0 0
      %6505 = vmatprep.subr.bf16.mxu0 0
      %6506 = vmatpush1.bf16.msra.mxu0 0
      %6507 = vmatprep.subr.bf16.mxu0 0
      %6508 = vmatpush1.bf16.msra.mxu0 0
      %6509 = vmatprep.subr.bf16.mxu0 0
      %6510 = vmatpush1.bf16.msra.mxu0 0
      %6511 = vmatprep.subr.bf16.mxu0 0
      %6512 = vmatpush1.bf16.msra.mxu0 0
      %6513 = vmatprep.subr.bf16.mxu0 0
      %6514 = vmatpush1.bf16.msra.mxu0 0
      %6515 = vmatprep.subr.bf16.mxu0 0
      %6516 = vmatpush1.bf16.msra.mxu0 0
      %6517 = vmatprep.subr.bf16.mxu0 0
      %6518 = vmatpush1.bf16.msra.mxu0 0
      %6519 = vmatprep.subr.bf16.mxu0 0
      %6520 = vmatpush1.bf16.msra.mxu0 0
      %6521 = vmatprep.mubr.bf16.mxu0 0
      %6522 = vmatmul.mubr.bf16.gmra.mrb[0].mxu0 %v6484
      %v6523 = vpop.f32.mrb[0].mxu0
      %v6524 = vadd.f32 0.0, %v6523
      %v6525 = vpop.f32.mrb[0].mxu0
      %v6526 = vpop.f32.mrb[0].mxu0
      %v6527 = vpop.f32.mrb[0].mxu0
      %6528 = vdwg.mxu0
      %6529 = vrot.lane.b32.xlu0 %v1293, 112
      %v6530 = vpop.permute.xlu0 %6529
      %v6532 = vsel %vm1294, %v5808, 0
      %v6535 = vsel %vm2226, %v6530, 0
      %6537 = vmatprep.subr.bf16.mxu0 0
      %6538 = vmatpush1.bf16.msra.mxu0 %v6535
      %6539 = vmatprep.subr.bf16.mxu0 0
      %6540 = vmatpush1.bf16.msra.mxu0 0
      %6541 = vmatprep.subr.bf16.mxu0 0
      %6542 = vmatpush1.bf16.msra.mxu0 0
      %6543 = vmatprep.subr.bf16.mxu0 0
      %6544 = vmatpush1.bf16.msra.mxu0 0
      %6545 = vmatprep.subr.bf16.mxu0 0
      %6546 = vmatpush1.bf16.msra.mxu0 0
      %6547 = vmatprep.subr.bf16.mxu0 0
      %6548 = vmatpush1.bf16.msra.mxu0 0
      %6549 = vmatprep.subr.bf16.mxu0 0
      %6550 = vmatpush1.bf16.msra.mxu0 0
      %6551 = vmatprep.subr.bf16.mxu0 0
      %6552 = vmatpush1.bf16.msra.mxu0 0
      %6553 = vmatprep.subr.bf16.mxu0 0
      %6554 = vmatpush1.bf16.msra.mxu0 0
      %6555 = vmatprep.subr.bf16.mxu0 0
      %6556 = vmatpush1.bf16.msra.mxu0 0
      %6557 = vmatprep.subr.bf16.mxu0 0
      %6558 = vmatpush1.bf16.msra.mxu0 0
      %6559 = vmatprep.subr.bf16.mxu0 0
      %6560 = vmatpush1.bf16.msra.mxu0 0
      %6561 = vmatprep.subr.bf16.mxu0 0
      %6562 = vmatpush1.bf16.msra.mxu0 0
      %6563 = vmatprep.subr.bf16.mxu0 0
      %6564 = vmatpush1.bf16.msra.mxu0 0
      %6565 = vmatprep.subr.bf16.mxu0 0
      %6566 = vmatpush1.bf16.msra.mxu0 0
      %6567 = vmatprep.subr.bf16.mxu0 0
      %6568 = vmatpush1.bf16.msra.mxu0 0
      %6569 = vmatprep.mubr.bf16.mxu0 0
      %6570 = vmatmul.mubr.bf16.gmra.mrb[0].mxu0 %v6532
      %v6571 = vpop.f32.mrb[0].mxu0
      %v6572 = vadd.f32 0.0, %v6571
      %v6573 = vpop.f32.mrb[0].mxu0
      %v6574 = vpop.f32.mrb[0].mxu0
      %v6575 = vpop.f32.mrb[0].mxu0
      %6576 = vdwg.mxu0
      %6593 = vrot.lane.b32.xlu0 %v5852, 16
      %v6594 = vpop.permute.xlu0 %6593
      %6595 = vrot.lane.b32.xlu0 %v5900, 16
      %v6596 = vpop.permute.xlu0 %6595
      %6597 = vrot.lane.b32.xlu0 %v5948, 16
      %v6598 = vpop.permute.xlu0 %6597
      %6599 = vrot.lane.b32.xlu0 %v5996, 16
      %v6600 = vpop.permute.xlu0 %6599
      %6601 = vrot.lane.b32.xlu0 %v6044, 16
      %v6602 = vpop.permute.xlu0 %6601
      %6603 = vrot.lane.b32.xlu0 %v6092, 16
      %v6604 = vpop.permute.xlu0 %6603
      %6605 = vrot.lane.b32.xlu0 %v6140, 16
      %v6606 = vpop.permute.xlu0 %6605
      %6607 = vrot.lane.b32.xlu0 %v6188, 16
      %v6608 = vpop.permute.xlu0 %6607
      %6609 = vrot.lane.b32.xlu0 %v6236, 16
      %v6610 = vpop.permute.xlu0 %6609
      %6611 = vrot.lane.b32.xlu0 %v6284, 16
      %v6612 = vpop.permute.xlu0 %6611
      %6613 = vrot.lane.b32.xlu0 %v6332, 16
      %v6614 = vpop.permute.xlu0 %6613
      %6615 = vrot.lane.b32.xlu0 %v6380, 16
      %v6616 = vpop.permute.xlu0 %6615
      %6617 = vrot.lane.b32.xlu0 %v6428, 16
      %v6618 = vpop.permute.xlu0 %6617
      %6619 = vrot.lane.b32.xlu0 %v6476, 16
      %v6620 = vpop.permute.xlu0 %6619
      %6621 = vrot.lane.b32.xlu0 %v6524, 16
      %v6622 = vpop.permute.xlu0 %6621
      %6623 = vrot.lane.b32.xlu0 %v6572, 16
      %v6624 = vpop.permute.xlu0 %6623
      %vm6641 = vcmask 195712
      %6642 = vst.msk [vmem:[#allocation2] sm:$0xff] %vm6641, %v6594
      %6643 = vst.msk [vmem:[#allocation2 + $0x8] sm:$0xff] %vm6641, %v6596
      %6644 = vst.msk [vmem:[#allocation2 + $0x10] sm:$0xff] %vm6641, %v6598
      %6645 = vst.msk [vmem:[#allocation2 + $0x18] sm:$0xff] %vm6641, %v6600
      %6646 = vst.msk [vmem:[#allocation2 + $0x20] sm:$0xff] %vm6641, %v6602
      %6647 = vst.msk [vmem:[#allocation2 + $0x28] sm:$0xff] %vm6641, %v6604
      %6648 = vst.msk [vmem:[#allocation2 + $0x30] sm:$0xff] %vm6641, %v6606
      %6649 = vst.msk [vmem:[#allocation2 + $0x38] sm:$0xff] %vm6641, %v6608
      %6650 = vst.msk [vmem:[#allocation2 + $0x40] sm:$0xff] %vm6641, %v6610
      %6651 = vst.msk [vmem:[#allocation2 + $0x48] sm:$0xff] %vm6641, %v6612
      %6652 = vst.msk [vmem:[#allocation2 + $0x50] sm:$0xff] %vm6641, %v6614
      %6653 = vst.msk [vmem:[#allocation2 + $0x58] sm:$0xff] %vm6641, %v6616
      %6654 = vst.msk [vmem:[#allocation2 + $0x60] sm:$0xff] %vm6641, %v6618
      %6655 = vst.msk [vmem:[#allocation2 + $0x68] sm:$0xff] %vm6641, %v6620
      %6656 = vst.msk [vmem:[#allocation2 + $0x70] sm:$0xff] %vm6641, %v6622
      %6657 = vst.msk [vmem:[#allocation2 + $0x78] sm:$0xff] %vm6641, %v6624
      %6658 = vrot.lane.b32.xlu0 %v828, 104
      %v6659 = vpop.permute.xlu0 %6658
      %6660 = vrot.lane.b32.xlu0 %v1053, 104
      %v6661 = vpop.permute.xlu0 %6660
      %v6663 = vsel %vm1294, %v6659, 0
      %v6666 = vsel %vm1294, %v6661, 0
      %6668 = vmatprep.subr.bf16.mxu0 0
      %6669 = vmatpush1.bf16.xpose.msra.mxu0 %v6666
      %6670 = vmatprep.subr.bf16.mxu0 0
      %6671 = vmatpush1.bf16.xpose.msra.mxu0 0
      %6672 = vmatprep.subr.bf16.mxu0 0
      %6673 = vmatpush1.bf16.xpose.msra.mxu0 0
      %6674 = vmatprep.subr.bf16.mxu0 0
      %6675 = vmatpush1.bf16.xpose.msra.mxu0 0
      %6676 = vmatprep.subr.bf16.mxu0 0
      %6677 = vmatpush1.bf16.xpose.msra.mxu0 0
      %6678 = vmatprep.subr.bf16.mxu0 0
      %6679 = vmatpush1.bf16.xpose.msra.mxu0 0
      %6680 = vmatprep.subr.bf16.mxu0 0
      %6681 = vmatpush1.bf16.xpose.msra.mxu0 0
      %6682 = vmatprep.subr.bf16.mxu0 0
      %6683 = vmatpush1.bf16.xpose.msra.mxu0 0
      %6684 = vmatprep.subr.bf16.mxu0 0
      %6685 = vmatpush1.bf16.xpose.msra.mxu0 0
      %6686 = vmatprep.subr.bf16.mxu0 0
      %6687 = vmatpush1.bf16.xpose.msra.mxu0 0
      %6688 = vmatprep.subr.bf16.mxu0 0
      %6689 = vmatpush1.bf16.xpose.msra.mxu0 0
      %6690 = vmatprep.subr.bf16.mxu0 0
      %6691 = vmatpush1.bf16.xpose.msra.mxu0 0
      %6692 = vmatprep.subr.bf16.mxu0 0
      %6693 = vmatpush1.bf16.xpose.msra.mxu0 0
      %6694 = vmatprep.subr.bf16.mxu0 0
      %6695 = vmatpush1.bf16.xpose.msra.mxu0 0
      %6696 = vmatprep.subr.bf16.mxu0 0
      %6697 = vmatpush1.bf16.xpose.msra.mxu0 0
      %6698 = vmatprep.subr.bf16.mxu0 0
      %6699 = vmatpush1.bf16.xpose.msra.mxu0 0
      %6700 = vmatprep.mubr.bf16.mxu0 0
      %6701 = vmatmul.mubr.bf16.gmra.mrb[0].mxu0 %v6663
      %v6702 = vpop.f32.mrb[0].mxu0
      %v6703 = vadd.f32 0.0, %v6702
      %v6704 = vpop.f32.mrb[0].mxu0
      %v6705 = vpop.f32.mrb[0].mxu0
      %v6706 = vpop.f32.mrb[0].mxu0
      %6707 = vdwg.mxu0
      %6708 = vrot.lane.b32.xlu0 %v829, 104
      %v6709 = vpop.permute.xlu0 %6708
      %6710 = vrot.lane.b32.xlu0 %v1054, 104
      %v6711 = vpop.permute.xlu0 %6710
      %v6713 = vsel %vm1294, %v6709, 0
      %v6716 = vsel %vm1294, %v6711, 0
      %6718 = vmatprep.subr.bf16.mxu0 0
      %6719 = vmatpush1.bf16.xpose.msra.mxu0 %v6716
      %6720 = vmatprep.subr.bf16.mxu0 0
      %6721 = vmatpush1.bf16.xpose.msra.mxu0 0
      %6722 = vmatprep.subr.bf16.mxu0 0
      %6723 = vmatpush1.bf16.xpose.msra.mxu0 0
      %6724 = vmatprep.subr.bf16.mxu0 0
      %6725 = vmatpush1.bf16.xpose.msra.mxu0 0
      %6726 = vmatprep.subr.bf16.mxu0 0
      %6727 = vmatpush1.bf16.xpose.msra.mxu0 0
      %6728 = vmatprep.subr.bf16.mxu0 0
      %6729 = vmatpush1.bf16.xpose.msra.mxu0 0
      %6730 = vmatprep.subr.bf16.mxu0 0
      %6731 = vmatpush1.bf16.xpose.msra.mxu0 0
      %6732 = vmatprep.subr.bf16.mxu0 0
      %6733 = vmatpush1.bf16.xpose.msra.mxu0 0
      %6734 = vmatprep.subr.bf16.mxu0 0
      %6735 = vmatpush1.bf16.xpose.msra.mxu0 0
      %6736 = vmatprep.subr.bf16.mxu0 0
      %6737 = vmatpush1.bf16.xpose.msra.mxu0 0
      %6738 = vmatprep.subr.bf16.mxu0 0
      %6739 = vmatpush1.bf16.xpose.msra.mxu0 0
      %6740 = vmatprep.subr.bf16.mxu0 0
      %6741 = vmatpush1.bf16.xpose.msra.mxu0 0
      %6742 = vmatprep.subr.bf16.mxu0 0
      %6743 = vmatpush1.bf16.xpose.msra.mxu0 0
      %6744 = vmatprep.subr.bf16.mxu0 0
      %6745 = vmatpush1.bf16.xpose.msra.mxu0 0
      %6746 = vmatprep.subr.bf16.mxu0 0
      %6747 = vmatpush1.bf16.xpose.msra.mxu0 0
      %6748 = vmatprep.subr.bf16.mxu0 0
      %6749 = vmatpush1.bf16.xpose.msra.mxu0 0
      %6750 = vmatprep.mubr.bf16.mxu0 0
      %6751 = vmatmul.mubr.bf16.gmra.mrb[0].mxu0 %v6713
      %v6752 = vpop.f32.mrb[0].mxu0
      %v6753 = vadd.f32 0.0, %v6752
      %v6754 = vpop.f32.mrb[0].mxu0
      %v6755 = vpop.f32.mrb[0].mxu0
      %v6756 = vpop.f32.mrb[0].mxu0
      %6757 = vdwg.mxu0
      %6758 = vrot.lane.b32.xlu0 %v830, 104
      %v6759 = vpop.permute.xlu0 %6758
      %6760 = vrot.lane.b32.xlu0 %v1055, 104
      %v6761 = vpop.permute.xlu0 %6760
      %v6763 = vsel %vm1294, %v6759, 0
      %v6766 = vsel %vm1294, %v6761, 0
      %6768 = vmatprep.subr.bf16.mxu0 0
      %6769 = vmatpush1.bf16.xpose.msra.mxu0 %v6766
      %6770 = vmatprep.subr.bf16.mxu0 0
      %6771 = vmatpush1.bf16.xpose.msra.mxu0 0
      %6772 = vmatprep.subr.bf16.mxu0 0
      %6773 = vmatpush1.bf16.xpose.msra.mxu0 0
      %6774 = vmatprep.subr.bf16.mxu0 0
      %6775 = vmatpush1.bf16.xpose.msra.mxu0 0
      %6776 = vmatprep.subr.bf16.mxu0 0
      %6777 = vmatpush1.bf16.xpose.msra.mxu0 0
      %6778 = vmatprep.subr.bf16.mxu0 0
      %6779 = vmatpush1.bf16.xpose.msra.mxu0 0
      %6780 = vmatprep.subr.bf16.mxu0 0
      %6781 = vmatpush1.bf16.xpose.msra.mxu0 0
      %6782 = vmatprep.subr.bf16.mxu0 0
      %6783 = vmatpush1.bf16.xpose.msra.mxu0 0
      %6784 = vmatprep.subr.bf16.mxu0 0
      %6785 = vmatpush1.bf16.xpose.msra.mxu0 0
      %6786 = vmatprep.subr.bf16.mxu0 0
      %6787 = vmatpush1.bf16.xpose.msra.mxu0 0
      %6788 = vmatprep.subr.bf16.mxu0 0
      %6789 = vmatpush1.bf16.xpose.msra.mxu0 0
      %6790 = vmatprep.subr.bf16.mxu0 0
      %6791 = vmatpush1.bf16.xpose.msra.mxu0 0
      %6792 = vmatprep.subr.bf16.mxu0 0
      %6793 = vmatpush1.bf16.xpose.msra.mxu0 0
      %6794 = vmatprep.subr.bf16.mxu0 0
      %6795 = vmatpush1.bf16.xpose.msra.mxu0 0
      %6796 = vmatprep.subr.bf16.mxu0 0
      %6797 = vmatpush1.bf16.xpose.msra.mxu0 0
      %6798 = vmatprep.subr.bf16.mxu0 0
      %6799 = vmatpush1.bf16.xpose.msra.mxu0 0
      %6800 = vmatprep.mubr.bf16.mxu0 0
      %6801 = vmatmul.mubr.bf16.gmra.mrb[0].mxu0 %v6763
      %v6802 = vpop.f32.mrb[0].mxu0
      %v6803 = vadd.f32 0.0, %v6802
      %v6804 = vpop.f32.mrb[0].mxu0
      %v6805 = vpop.f32.mrb[0].mxu0
      %v6806 = vpop.f32.mrb[0].mxu0
      %6807 = vdwg.mxu0
      %6808 = vrot.lane.b32.xlu0 %v831, 104
      %v6809 = vpop.permute.xlu0 %6808
      %6810 = vrot.lane.b32.xlu0 %v1056, 104
      %v6811 = vpop.permute.xlu0 %6810
      %v6813 = vsel %vm1294, %v6809, 0
      %v6816 = vsel %vm1294, %v6811, 0
      %6818 = vmatprep.subr.bf16.mxu0 0
      %6819 = vmatpush1.bf16.xpose.msra.mxu0 %v6816
      %6820 = vmatprep.subr.bf16.mxu0 0
      %6821 = vmatpush1.bf16.xpose.msra.mxu0 0
      %6822 = vmatprep.subr.bf16.mxu0 0
      %6823 = vmatpush1.bf16.xpose.msra.mxu0 0
      %6824 = vmatprep.subr.bf16.mxu0 0
      %6825 = vmatpush1.bf16.xpose.msra.mxu0 0
      %6826 = vmatprep.subr.bf16.mxu0 0
      %6827 = vmatpush1.bf16.xpose.msra.mxu0 0
      %6828 = vmatprep.subr.bf16.mxu0 0
      %6829 = vmatpush1.bf16.xpose.msra.mxu0 0
      %6830 = vmatprep.subr.bf16.mxu0 0
      %6831 = vmatpush1.bf16.xpose.msra.mxu0 0
      %6832 = vmatprep.subr.bf16.mxu0 0
      %6833 = vmatpush1.bf16.xpose.msra.mxu0 0
      %6834 = vmatprep.subr.bf16.mxu0 0
      %6835 = vmatpush1.bf16.xpose.msra.mxu0 0
      %6836 = vmatprep.subr.bf16.mxu0 0
      %6837 = vmatpush1.bf16.xpose.msra.mxu0 0
      %6838 = vmatprep.subr.bf16.mxu0 0
      %6839 = vmatpush1.bf16.xpose.msra.mxu0 0
      %6840 = vmatprep.subr.bf16.mxu0 0
      %6841 = vmatpush1.bf16.xpose.msra.mxu0 0
      %6842 = vmatprep.subr.bf16.mxu0 0
      %6843 = vmatpush1.bf16.xpose.msra.mxu0 0
      %6844 = vmatprep.subr.bf16.mxu0 0
      %6845 = vmatpush1.bf16.xpose.msra.mxu0 0
      %6846 = vmatprep.subr.bf16.mxu0 0
      %6847 = vmatpush1.bf16.xpose.msra.mxu0 0
      %6848 = vmatprep.subr.bf16.mxu0 0
      %6849 = vmatpush1.bf16.xpose.msra.mxu0 0
      %6850 = vmatprep.mubr.bf16.mxu0 0
      %6851 = vmatmul.mubr.bf16.gmra.mrb[0].mxu0 %v6813
      %v6852 = vpop.f32.mrb[0].mxu0
      %v6853 = vadd.f32 0.0, %v6852
      %v6854 = vpop.f32.mrb[0].mxu0
      %v6855 = vpop.f32.mrb[0].mxu0
      %v6856 = vpop.f32.mrb[0].mxu0
      %6857 = vdwg.mxu0
      %6858 = vrot.lane.b32.xlu0 %v832, 104
      %v6859 = vpop.permute.xlu0 %6858
      %6860 = vrot.lane.b32.xlu0 %v1057, 104
      %v6861 = vpop.permute.xlu0 %6860
      %v6863 = vsel %vm1294, %v6859, 0
      %v6866 = vsel %vm1294, %v6861, 0
      %6868 = vmatprep.subr.bf16.mxu0 0
      %6869 = vmatpush1.bf16.xpose.msra.mxu0 %v6866
      %6870 = vmatprep.subr.bf16.mxu0 0
      %6871 = vmatpush1.bf16.xpose.msra.mxu0 0
      %6872 = vmatprep.subr.bf16.mxu0 0
      %6873 = vmatpush1.bf16.xpose.msra.mxu0 0
      %6874 = vmatprep.subr.bf16.mxu0 0
      %6875 = vmatpush1.bf16.xpose.msra.mxu0 0
      %6876 = vmatprep.subr.bf16.mxu0 0
      %6877 = vmatpush1.bf16.xpose.msra.mxu0 0
      %6878 = vmatprep.subr.bf16.mxu0 0
      %6879 = vmatpush1.bf16.xpose.msra.mxu0 0
      %6880 = vmatprep.subr.bf16.mxu0 0
      %6881 = vmatpush1.bf16.xpose.msra.mxu0 0
      %6882 = vmatprep.subr.bf16.mxu0 0
      %6883 = vmatpush1.bf16.xpose.msra.mxu0 0
      %6884 = vmatprep.subr.bf16.mxu0 0
      %6885 = vmatpush1.bf16.xpose.msra.mxu0 0
      %6886 = vmatprep.subr.bf16.mxu0 0
      %6887 = vmatpush1.bf16.xpose.msra.mxu0 0
      %6888 = vmatprep.subr.bf16.mxu0 0
      %6889 = vmatpush1.bf16.xpose.msra.mxu0 0
      %6890 = vmatprep.subr.bf16.mxu0 0
      %6891 = vmatpush1.bf16.xpose.msra.mxu0 0
      %6892 = vmatprep.subr.bf16.mxu0 0
      %6893 = vmatpush1.bf16.xpose.msra.mxu0 0
      %6894 = vmatprep.subr.bf16.mxu0 0
      %6895 = vmatpush1.bf16.xpose.msra.mxu0 0
      %6896 = vmatprep.subr.bf16.mxu0 0
      %6897 = vmatpush1.bf16.xpose.msra.mxu0 0
      %6898 = vmatprep.subr.bf16.mxu0 0
      %6899 = vmatpush1.bf16.xpose.msra.mxu0 0
      %6900 = vmatprep.mubr.bf16.mxu0 0
      %6901 = vmatmul.mubr.bf16.gmra.mrb[0].mxu0 %v6863
      %v6902 = vpop.f32.mrb[0].mxu0
      %v6903 = vadd.f32 0.0, %v6902
      %v6904 = vpop.f32.mrb[0].mxu0
      %v6905 = vpop.f32.mrb[0].mxu0
      %v6906 = vpop.f32.mrb[0].mxu0
      %6907 = vdwg.mxu0
      %6908 = vrot.lane.b32.xlu0 %v833, 104
      %v6909 = vpop.permute.xlu0 %6908
      %6910 = vrot.lane.b32.xlu0 %v1058, 104
      %v6911 = vpop.permute.xlu0 %6910
      %v6913 = vsel %vm1294, %v6909, 0
      %v6916 = vsel %vm1294, %v6911, 0
      %6918 = vmatprep.subr.bf16.mxu0 0
      %6919 = vmatpush1.bf16.xpose.msra.mxu0 %v6916
      %6920 = vmatprep.subr.bf16.mxu0 0
      %6921 = vmatpush1.bf16.xpose.msra.mxu0 0
      %6922 = vmatprep.subr.bf16.mxu0 0
      %6923 = vmatpush1.bf16.xpose.msra.mxu0 0
      %6924 = vmatprep.subr.bf16.mxu0 0
      %6925 = vmatpush1.bf16.xpose.msra.mxu0 0
      %6926 = vmatprep.subr.bf16.mxu0 0
      %6927 = vmatpush1.bf16.xpose.msra.mxu0 0
      %6928 = vmatprep.subr.bf16.mxu0 0
      %6929 = vmatpush1.bf16.xpose.msra.mxu0 0
      %6930 = vmatprep.subr.bf16.mxu0 0
      %6931 = vmatpush1.bf16.xpose.msra.mxu0 0
      %6932 = vmatprep.subr.bf16.mxu0 0
      %6933 = vmatpush1.bf16.xpose.msra.mxu0 0
      %6934 = vmatprep.subr.bf16.mxu0 0
      %6935 = vmatpush1.bf16.xpose.msra.mxu0 0
      %6936 = vmatprep.subr.bf16.mxu0 0
      %6937 = vmatpush1.bf16.xpose.msra.mxu0 0
      %6938 = vmatprep.subr.bf16.mxu0 0
      %6939 = vmatpush1.bf16.xpose.msra.mxu0 0
      %6940 = vmatprep.subr.bf16.mxu0 0
      %6941 = vmatpush1.bf16.xpose.msra.mxu0 0
      %6942 = vmatprep.subr.bf16.mxu0 0
      %6943 = vmatpush1.bf16.xpose.msra.mxu0 0
      %6944 = vmatprep.subr.bf16.mxu0 0
      %6945 = vmatpush1.bf16.xpose.msra.mxu0 0
      %6946 = vmatprep.subr.bf16.mxu0 0
      %6947 = vmatpush1.bf16.xpose.msra.mxu0 0
      %6948 = vmatprep.subr.bf16.mxu0 0
      %6949 = vmatpush1.bf16.xpose.msra.mxu0 0
      %6950 = vmatprep.mubr.bf16.mxu0 0
      %6951 = vmatmul.mubr.bf16.gmra.mrb[0].mxu0 %v6913
      %v6952 = vpop.f32.mrb[0].mxu0
      %v6953 = vadd.f32 0.0, %v6952
      %v6954 = vpop.f32.mrb[0].mxu0
      %v6955 = vpop.f32.mrb[0].mxu0
      %v6956 = vpop.f32.mrb[0].mxu0
      %6957 = vdwg.mxu0
      %6958 = vrot.lane.b32.xlu0 %v834, 104
      %v6959 = vpop.permute.xlu0 %6958
      %6960 = vrot.lane.b32.xlu0 %v1059, 104
      %v6961 = vpop.permute.xlu0 %6960
      %v6963 = vsel %vm1294, %v6959, 0
      %v6966 = vsel %vm1294, %v6961, 0
      %6968 = vmatprep.subr.bf16.mxu0 0
      %6969 = vmatpush1.bf16.xpose.msra.mxu0 %v6966
      %6970 = vmatprep.subr.bf16.mxu0 0
      %6971 = vmatpush1.bf16.xpose.msra.mxu0 0
      %6972 = vmatprep.subr.bf16.mxu0 0
      %6973 = vmatpush1.bf16.xpose.msra.mxu0 0
      %6974 = vmatprep.subr.bf16.mxu0 0
      %6975 = vmatpush1.bf16.xpose.msra.mxu0 0
      %6976 = vmatprep.subr.bf16.mxu0 0
      %6977 = vmatpush1.bf16.xpose.msra.mxu0 0
      %6978 = vmatprep.subr.bf16.mxu0 0
      %6979 = vmatpush1.bf16.xpose.msra.mxu0 0
      %6980 = vmatprep.subr.bf16.mxu0 0
      %6981 = vmatpush1.bf16.xpose.msra.mxu0 0
      %6982 = vmatprep.subr.bf16.mxu0 0
      %6983 = vmatpush1.bf16.xpose.msra.mxu0 0
      %6984 = vmatprep.subr.bf16.mxu0 0
      %6985 = vmatpush1.bf16.xpose.msra.mxu0 0
      %6986 = vmatprep.subr.bf16.mxu0 0
      %6987 = vmatpush1.bf16.xpose.msra.mxu0 0
      %6988 = vmatprep.subr.bf16.mxu0 0
      %6989 = vmatpush1.bf16.xpose.msra.mxu0 0
      %6990 = vmatprep.subr.bf16.mxu0 0
      %6991 = vmatpush1.bf16.xpose.msra.mxu0 0
      %6992 = vmatprep.subr.bf16.mxu0 0
      %6993 = vmatpush1.bf16.xpose.msra.mxu0 0
      %6994 = vmatprep.subr.bf16.mxu0 0
      %6995 = vmatpush1.bf16.xpose.msra.mxu0 0
      %6996 = vmatprep.subr.bf16.mxu0 0
      %6997 = vmatpush1.bf16.xpose.msra.mxu0 0
      %6998 = vmatprep.subr.bf16.mxu0 0
      %6999 = vmatpush1.bf16.xpose.msra.mxu0 0
      %7000 = vmatprep.mubr.bf16.mxu0 0
      %7001 = vmatmul.mubr.bf16.gmra.mrb[0].mxu0 %v6963
      %v7002 = vpop.f32.mrb[0].mxu0
      %v7003 = vadd.f32 0.0, %v7002
      %v7004 = vpop.f32.mrb[0].mxu0
      %v7005 = vpop.f32.mrb[0].mxu0
      %v7006 = vpop.f32.mrb[0].mxu0
      %7007 = vdwg.mxu0
      %7008 = vrot.lane.b32.xlu0 %v835, 104
      %v7009 = vpop.permute.xlu0 %7008
      %7010 = vrot.lane.b32.xlu0 %v1060, 104
      %v7011 = vpop.permute.xlu0 %7010
      %v7013 = vsel %vm1294, %v7009, 0
      %v7016 = vsel %vm1294, %v7011, 0
      %7018 = vmatprep.subr.bf16.mxu0 0
      %7019 = vmatpush1.bf16.xpose.msra.mxu0 %v7016
      %7020 = vmatprep.subr.bf16.mxu0 0
      %7021 = vmatpush1.bf16.xpose.msra.mxu0 0
      %7022 = vmatprep.subr.bf16.mxu0 0
      %7023 = vmatpush1.bf16.xpose.msra.mxu0 0
      %7024 = vmatprep.subr.bf16.mxu0 0
      %7025 = vmatpush1.bf16.xpose.msra.mxu0 0
      %7026 = vmatprep.subr.bf16.mxu0 0
      %7027 = vmatpush1.bf16.xpose.msra.mxu0 0
      %7028 = vmatprep.subr.bf16.mxu0 0
      %7029 = vmatpush1.bf16.xpose.msra.mxu0 0
      %7030 = vmatprep.subr.bf16.mxu0 0
      %7031 = vmatpush1.bf16.xpose.msra.mxu0 0
      %7032 = vmatprep.subr.bf16.mxu0 0
      %7033 = vmatpush1.bf16.xpose.msra.mxu0 0
      %7034 = vmatprep.subr.bf16.mxu0 0
      %7035 = vmatpush1.bf16.xpose.msra.mxu0 0
      %7036 = vmatprep.subr.bf16.mxu0 0
      %7037 = vmatpush1.bf16.xpose.msra.mxu0 0
      %7038 = vmatprep.subr.bf16.mxu0 0
      %7039 = vmatpush1.bf16.xpose.msra.mxu0 0
      %7040 = vmatprep.subr.bf16.mxu0 0
      %7041 = vmatpush1.bf16.xpose.msra.mxu0 0
      %7042 = vmatprep.subr.bf16.mxu0 0
      %7043 = vmatpush1.bf16.xpose.msra.mxu0 0
      %7044 = vmatprep.subr.bf16.mxu0 0
      %7045 = vmatpush1.bf16.xpose.msra.mxu0 0
      %7046 = vmatprep.subr.bf16.mxu0 0
      %7047 = vmatpush1.bf16.xpose.msra.mxu0 0
      %7048 = vmatprep.subr.bf16.mxu0 0
      %7049 = vmatpush1.bf16.xpose.msra.mxu0 0
      %7050 = vmatprep.mubr.bf16.mxu0 0
      %7051 = vmatmul.mubr.bf16.gmra.mrb[0].mxu0 %v7013
      %v7052 = vpop.f32.mrb[0].mxu0
      %v7053 = vadd.f32 0.0, %v7052
      %v7054 = vpop.f32.mrb[0].mxu0
      %v7055 = vpop.f32.mrb[0].mxu0
      %v7056 = vpop.f32.mrb[0].mxu0
      %7057 = vdwg.mxu0
      %7058 = vrot.lane.b32.xlu0 %v836, 104
      %v7059 = vpop.permute.xlu0 %7058
      %7060 = vrot.lane.b32.xlu0 %v1061, 104
      %v7061 = vpop.permute.xlu0 %7060
      %v7063 = vsel %vm1294, %v7059, 0
      %v7066 = vsel %vm1294, %v7061, 0
      %7068 = vmatprep.subr.bf16.mxu0 0
      %7069 = vmatpush1.bf16.xpose.msra.mxu0 %v7066
      %7070 = vmatprep.subr.bf16.mxu0 0
      %7071 = vmatpush1.bf16.xpose.msra.mxu0 0
      %7072 = vmatprep.subr.bf16.mxu0 0
      %7073 = vmatpush1.bf16.xpose.msra.mxu0 0
      %7074 = vmatprep.subr.bf16.mxu0 0
      %7075 = vmatpush1.bf16.xpose.msra.mxu0 0
      %7076 = vmatprep.subr.bf16.mxu0 0
      %7077 = vmatpush1.bf16.xpose.msra.mxu0 0
      %7078 = vmatprep.subr.bf16.mxu0 0
      %7079 = vmatpush1.bf16.xpose.msra.mxu0 0
      %7080 = vmatprep.subr.bf16.mxu0 0
      %7081 = vmatpush1.bf16.xpose.msra.mxu0 0
      %7082 = vmatprep.subr.bf16.mxu0 0
      %7083 = vmatpush1.bf16.xpose.msra.mxu0 0
      %7084 = vmatprep.subr.bf16.mxu0 0
      %7085 = vmatpush1.bf16.xpose.msra.mxu0 0
      %7086 = vmatprep.subr.bf16.mxu0 0
      %7087 = vmatpush1.bf16.xpose.msra.mxu0 0
      %7088 = vmatprep.subr.bf16.mxu0 0
      %7089 = vmatpush1.bf16.xpose.msra.mxu0 0
      %7090 = vmatprep.subr.bf16.mxu0 0
      %7091 = vmatpush1.bf16.xpose.msra.mxu0 0
      %7092 = vmatprep.subr.bf16.mxu0 0
      %7093 = vmatpush1.bf16.xpose.msra.mxu0 0
      %7094 = vmatprep.subr.bf16.mxu0 0
      %7095 = vmatpush1.bf16.xpose.msra.mxu0 0
      %7096 = vmatprep.subr.bf16.mxu0 0
      %7097 = vmatpush1.bf16.xpose.msra.mxu0 0
      %7098 = vmatprep.subr.bf16.mxu0 0
      %7099 = vmatpush1.bf16.xpose.msra.mxu0 0
      %7100 = vmatprep.mubr.bf16.mxu0 0
      %7101 = vmatmul.mubr.bf16.gmra.mrb[0].mxu0 %v7063
      %v7102 = vpop.f32.mrb[0].mxu0
      %v7103 = vadd.f32 0.0, %v7102
      %v7104 = vpop.f32.mrb[0].mxu0
      %v7105 = vpop.f32.mrb[0].mxu0
      %v7106 = vpop.f32.mrb[0].mxu0
      %7107 = vdwg.mxu0
      %7108 = vrot.lane.b32.xlu0 %v837, 104
      %v7109 = vpop.permute.xlu0 %7108
      %7110 = vrot.lane.b32.xlu0 %v1062, 104
      %v7111 = vpop.permute.xlu0 %7110
      %v7113 = vsel %vm1294, %v7109, 0
      %v7116 = vsel %vm1294, %v7111, 0
      %7118 = vmatprep.subr.bf16.mxu0 0
      %7119 = vmatpush1.bf16.xpose.msra.mxu0 %v7116
      %7120 = vmatprep.subr.bf16.mxu0 0
      %7121 = vmatpush1.bf16.xpose.msra.mxu0 0
      %7122 = vmatprep.subr.bf16.mxu0 0
      %7123 = vmatpush1.bf16.xpose.msra.mxu0 0
      %7124 = vmatprep.subr.bf16.mxu0 0
      %7125 = vmatpush1.bf16.xpose.msra.mxu0 0
      %7126 = vmatprep.subr.bf16.mxu0 0
      %7127 = vmatpush1.bf16.xpose.msra.mxu0 0
      %7128 = vmatprep.subr.bf16.mxu0 0
      %7129 = vmatpush1.bf16.xpose.msra.mxu0 0
      %7130 = vmatprep.subr.bf16.mxu0 0
      %7131 = vmatpush1.bf16.xpose.msra.mxu0 0
      %7132 = vmatprep.subr.bf16.mxu0 0
      %7133 = vmatpush1.bf16.xpose.msra.mxu0 0
      %7134 = vmatprep.subr.bf16.mxu0 0
      %7135 = vmatpush1.bf16.xpose.msra.mxu0 0
      %7136 = vmatprep.subr.bf16.mxu0 0
      %7137 = vmatpush1.bf16.xpose.msra.mxu0 0
      %7138 = vmatprep.subr.bf16.mxu0 0
      %7139 = vmatpush1.bf16.xpose.msra.mxu0 0
      %7140 = vmatprep.subr.bf16.mxu0 0
      %7141 = vmatpush1.bf16.xpose.msra.mxu0 0
      %7142 = vmatprep.subr.bf16.mxu0 0
      %7143 = vmatpush1.bf16.xpose.msra.mxu0 0
      %7144 = vmatprep.subr.bf16.mxu0 0
      %7145 = vmatpush1.bf16.xpose.msra.mxu0 0
      %7146 = vmatprep.subr.bf16.mxu0 0
      %7147 = vmatpush1.bf16.xpose.msra.mxu0 0
      %7148 = vmatprep.subr.bf16.mxu0 0
      %7149 = vmatpush1.bf16.xpose.msra.mxu0 0
      %7150 = vmatprep.mubr.bf16.mxu0 0
      %7151 = vmatmul.mubr.bf16.gmra.mrb[0].mxu0 %v7113
      %v7152 = vpop.f32.mrb[0].mxu0
      %v7153 = vadd.f32 0.0, %v7152
      %v7154 = vpop.f32.mrb[0].mxu0
      %v7155 = vpop.f32.mrb[0].mxu0
      %v7156 = vpop.f32.mrb[0].mxu0
      %7157 = vdwg.mxu0
      %7158 = vrot.lane.b32.xlu0 %v838, 104
      %v7159 = vpop.permute.xlu0 %7158
      %7160 = vrot.lane.b32.xlu0 %v1063, 104
      %v7161 = vpop.permute.xlu0 %7160
      %v7163 = vsel %vm1294, %v7159, 0
      %v7166 = vsel %vm1294, %v7161, 0
      %7168 = vmatprep.subr.bf16.mxu0 0
      %7169 = vmatpush1.bf16.xpose.msra.mxu0 %v7166
      %7170 = vmatprep.subr.bf16.mxu0 0
      %7171 = vmatpush1.bf16.xpose.msra.mxu0 0
      %7172 = vmatprep.subr.bf16.mxu0 0
      %7173 = vmatpush1.bf16.xpose.msra.mxu0 0
      %7174 = vmatprep.subr.bf16.mxu0 0
      %7175 = vmatpush1.bf16.xpose.msra.mxu0 0
      %7176 = vmatprep.subr.bf16.mxu0 0
      %7177 = vmatpush1.bf16.xpose.msra.mxu0 0
      %7178 = vmatprep.subr.bf16.mxu0 0
      %7179 = vmatpush1.bf16.xpose.msra.mxu0 0
      %7180 = vmatprep.subr.bf16.mxu0 0
      %7181 = vmatpush1.bf16.xpose.msra.mxu0 0
      %7182 = vmatprep.subr.bf16.mxu0 0
      %7183 = vmatpush1.bf16.xpose.msra.mxu0 0
      %7184 = vmatprep.subr.bf16.mxu0 0
      %7185 = vmatpush1.bf16.xpose.msra.mxu0 0
      %7186 = vmatprep.subr.bf16.mxu0 0
      %7187 = vmatpush1.bf16.xpose.msra.mxu0 0
      %7188 = vmatprep.subr.bf16.mxu0 0
      %7189 = vmatpush1.bf16.xpose.msra.mxu0 0
      %7190 = vmatprep.subr.bf16.mxu0 0
      %7191 = vmatpush1.bf16.xpose.msra.mxu0 0
      %7192 = vmatprep.subr.bf16.mxu0 0
      %7193 = vmatpush1.bf16.xpose.msra.mxu0 0
      %7194 = vmatprep.subr.bf16.mxu0 0
      %7195 = vmatpush1.bf16.xpose.msra.mxu0 0
      %7196 = vmatprep.subr.bf16.mxu0 0
      %7197 = vmatpush1.bf16.xpose.msra.mxu0 0
      %7198 = vmatprep.subr.bf16.mxu0 0
      %7199 = vmatpush1.bf16.xpose.msra.mxu0 0
      %7200 = vmatprep.mubr.bf16.mxu0 0
      %7201 = vmatmul.mubr.bf16.gmra.mrb[0].mxu0 %v7163
      %v7202 = vpop.f32.mrb[0].mxu0
      %v7203 = vadd.f32 0.0, %v7202
      %v7204 = vpop.f32.mrb[0].mxu0
      %v7205 = vpop.f32.mrb[0].mxu0
      %v7206 = vpop.f32.mrb[0].mxu0
      %7207 = vdwg.mxu0
      %7208 = vrot.lane.b32.xlu0 %v839, 104
      %v7209 = vpop.permute.xlu0 %7208
      %7210 = vrot.lane.b32.xlu0 %v1064, 104
      %v7211 = vpop.permute.xlu0 %7210
      %v7213 = vsel %vm1294, %v7209, 0
      %v7216 = vsel %vm1294, %v7211, 0
      %7218 = vmatprep.subr.bf16.mxu0 0
      %7219 = vmatpush1.bf16.xpose.msra.mxu0 %v7216
      %7220 = vmatprep.subr.bf16.mxu0 0
      %7221 = vmatpush1.bf16.xpose.msra.mxu0 0
      %7222 = vmatprep.subr.bf16.mxu0 0
      %7223 = vmatpush1.bf16.xpose.msra.mxu0 0
      %7224 = vmatprep.subr.bf16.mxu0 0
      %7225 = vmatpush1.bf16.xpose.msra.mxu0 0
      %7226 = vmatprep.subr.bf16.mxu0 0
      %7227 = vmatpush1.bf16.xpose.msra.mxu0 0
      %7228 = vmatprep.subr.bf16.mxu0 0
      %7229 = vmatpush1.bf16.xpose.msra.mxu0 0
      %7230 = vmatprep.subr.bf16.mxu0 0
      %7231 = vmatpush1.bf16.xpose.msra.mxu0 0
      %7232 = vmatprep.subr.bf16.mxu0 0
      %7233 = vmatpush1.bf16.xpose.msra.mxu0 0
      %7234 = vmatprep.subr.bf16.mxu0 0
      %7235 = vmatpush1.bf16.xpose.msra.mxu0 0
      %7236 = vmatprep.subr.bf16.mxu0 0
      %7237 = vmatpush1.bf16.xpose.msra.mxu0 0
      %7238 = vmatprep.subr.bf16.mxu0 0
      %7239 = vmatpush1.bf16.xpose.msra.mxu0 0
      %7240 = vmatprep.subr.bf16.mxu0 0
      %7241 = vmatpush1.bf16.xpose.msra.mxu0 0
      %7242 = vmatprep.subr.bf16.mxu0 0
      %7243 = vmatpush1.bf16.xpose.msra.mxu0 0
      %7244 = vmatprep.subr.bf16.mxu0 0
      %7245 = vmatpush1.bf16.xpose.msra.mxu0 0
      %7246 = vmatprep.subr.bf16.mxu0 0
      %7247 = vmatpush1.bf16.xpose.msra.mxu0 0
      %7248 = vmatprep.subr.bf16.mxu0 0
      %7249 = vmatpush1.bf16.xpose.msra.mxu0 0
      %7250 = vmatprep.mubr.bf16.mxu0 0
      %7251 = vmatmul.mubr.bf16.gmra.mrb[0].mxu0 %v7213
      %v7252 = vpop.f32.mrb[0].mxu0
      %v7253 = vadd.f32 0.0, %v7252
      %v7254 = vpop.f32.mrb[0].mxu0
      %v7255 = vpop.f32.mrb[0].mxu0
      %v7256 = vpop.f32.mrb[0].mxu0
      %7257 = vdwg.mxu0
      %7258 = vrot.lane.b32.xlu0 %v840, 104
      %v7259 = vpop.permute.xlu0 %7258
      %7260 = vrot.lane.b32.xlu0 %v1065, 104
      %v7261 = vpop.permute.xlu0 %7260
      %v7263 = vsel %vm1294, %v7259, 0
      %v7266 = vsel %vm1294, %v7261, 0
      %7268 = vmatprep.subr.bf16.mxu0 0
      %7269 = vmatpush1.bf16.xpose.msra.mxu0 %v7266
      %7270 = vmatprep.subr.bf16.mxu0 0
      %7271 = vmatpush1.bf16.xpose.msra.mxu0 0
      %7272 = vmatprep.subr.bf16.mxu0 0
      %7273 = vmatpush1.bf16.xpose.msra.mxu0 0
      %7274 = vmatprep.subr.bf16.mxu0 0
      %7275 = vmatpush1.bf16.xpose.msra.mxu0 0
      %7276 = vmatprep.subr.bf16.mxu0 0
      %7277 = vmatpush1.bf16.xpose.msra.mxu0 0
      %7278 = vmatprep.subr.bf16.mxu0 0
      %7279 = vmatpush1.bf16.xpose.msra.mxu0 0
      %7280 = vmatprep.subr.bf16.mxu0 0
      %7281 = vmatpush1.bf16.xpose.msra.mxu0 0
      %7282 = vmatprep.subr.bf16.mxu0 0
      %7283 = vmatpush1.bf16.xpose.msra.mxu0 0
      %7284 = vmatprep.subr.bf16.mxu0 0
      %7285 = vmatpush1.bf16.xpose.msra.mxu0 0
      %7286 = vmatprep.subr.bf16.mxu0 0
      %7287 = vmatpush1.bf16.xpose.msra.mxu0 0
      %7288 = vmatprep.subr.bf16.mxu0 0
      %7289 = vmatpush1.bf16.xpose.msra.mxu0 0
      %7290 = vmatprep.subr.bf16.mxu0 0
      %7291 = vmatpush1.bf16.xpose.msra.mxu0 0
      %7292 = vmatprep.subr.bf16.mxu0 0
      %7293 = vmatpush1.bf16.xpose.msra.mxu0 0
      %7294 = vmatprep.subr.bf16.mxu0 0
      %7295 = vmatpush1.bf16.xpose.msra.mxu0 0
      %7296 = vmatprep.subr.bf16.mxu0 0
      %7297 = vmatpush1.bf16.xpose.msra.mxu0 0
      %7298 = vmatprep.subr.bf16.mxu0 0
      %7299 = vmatpush1.bf16.xpose.msra.mxu0 0
      %7300 = vmatprep.mubr.bf16.mxu0 0
      %7301 = vmatmul.mubr.bf16.gmra.mrb[0].mxu0 %v7263
      %v7302 = vpop.f32.mrb[0].mxu0
      %v7303 = vadd.f32 0.0, %v7302
      %v7304 = vpop.f32.mrb[0].mxu0
      %v7305 = vpop.f32.mrb[0].mxu0
      %v7306 = vpop.f32.mrb[0].mxu0
      %7307 = vdwg.mxu0
      %7308 = vrot.lane.b32.xlu0 %v841, 104
      %v7309 = vpop.permute.xlu0 %7308
      %7310 = vrot.lane.b32.xlu0 %v1066, 104
      %v7311 = vpop.permute.xlu0 %7310
      %v7313 = vsel %vm1294, %v7309, 0
      %v7316 = vsel %vm1294, %v7311, 0
      %7318 = vmatprep.subr.bf16.mxu0 0
      %7319 = vmatpush1.bf16.xpose.msra.mxu0 %v7316
      %7320 = vmatprep.subr.bf16.mxu0 0
      %7321 = vmatpush1.bf16.xpose.msra.mxu0 0
      %7322 = vmatprep.subr.bf16.mxu0 0
      %7323 = vmatpush1.bf16.xpose.msra.mxu0 0
      %7324 = vmatprep.subr.bf16.mxu0 0
      %7325 = vmatpush1.bf16.xpose.msra.mxu0 0
      %7326 = vmatprep.subr.bf16.mxu0 0
      %7327 = vmatpush1.bf16.xpose.msra.mxu0 0
      %7328 = vmatprep.subr.bf16.mxu0 0
      %7329 = vmatpush1.bf16.xpose.msra.mxu0 0
      %7330 = vmatprep.subr.bf16.mxu0 0
      %7331 = vmatpush1.bf16.xpose.msra.mxu0 0
      %7332 = vmatprep.subr.bf16.mxu0 0
      %7333 = vmatpush1.bf16.xpose.msra.mxu0 0
      %7334 = vmatprep.subr.bf16.mxu0 0
      %7335 = vmatpush1.bf16.xpose.msra.mxu0 0
      %7336 = vmatprep.subr.bf16.mxu0 0
      %7337 = vmatpush1.bf16.xpose.msra.mxu0 0
      %7338 = vmatprep.subr.bf16.mxu0 0
      %7339 = vmatpush1.bf16.xpose.msra.mxu0 0
      %7340 = vmatprep.subr.bf16.mxu0 0
      %7341 = vmatpush1.bf16.xpose.msra.mxu0 0
      %7342 = vmatprep.subr.bf16.mxu0 0
      %7343 = vmatpush1.bf16.xpose.msra.mxu0 0
      %7344 = vmatprep.subr.bf16.mxu0 0
      %7345 = vmatpush1.bf16.xpose.msra.mxu0 0
      %7346 = vmatprep.subr.bf16.mxu0 0
      %7347 = vmatpush1.bf16.xpose.msra.mxu0 0
      %7348 = vmatprep.subr.bf16.mxu0 0
      %7349 = vmatpush1.bf16.xpose.msra.mxu0 0
      %7350 = vmatprep.mubr.bf16.mxu0 0
      %7351 = vmatmul.mubr.bf16.gmra.mrb[0].mxu0 %v7313
      %v7352 = vpop.f32.mrb[0].mxu0
      %v7353 = vadd.f32 0.0, %v7352
      %v7354 = vpop.f32.mrb[0].mxu0
      %v7355 = vpop.f32.mrb[0].mxu0
      %v7356 = vpop.f32.mrb[0].mxu0
      %7357 = vdwg.mxu0
      %7358 = vrot.lane.b32.xlu0 %v842, 104
      %v7359 = vpop.permute.xlu0 %7358
      %7360 = vrot.lane.b32.xlu0 %v1067, 104
      %v7361 = vpop.permute.xlu0 %7360
      %v7363 = vsel %vm1294, %v7359, 0
      %v7366 = vsel %vm1294, %v7361, 0
      %7368 = vmatprep.subr.bf16.mxu0 0
      %7369 = vmatpush1.bf16.xpose.msra.mxu0 %v7366
      %7370 = vmatprep.subr.bf16.mxu0 0
      %7371 = vmatpush1.bf16.xpose.msra.mxu0 0
      %7372 = vmatprep.subr.bf16.mxu0 0
      %7373 = vmatpush1.bf16.xpose.msra.mxu0 0
      %7374 = vmatprep.subr.bf16.mxu0 0
      %7375 = vmatpush1.bf16.xpose.msra.mxu0 0
      %7376 = vmatprep.subr.bf16.mxu0 0
      %7377 = vmatpush1.bf16.xpose.msra.mxu0 0
      %7378 = vmatprep.subr.bf16.mxu0 0
      %7379 = vmatpush1.bf16.xpose.msra.mxu0 0
      %7380 = vmatprep.subr.bf16.mxu0 0
      %7381 = vmatpush1.bf16.xpose.msra.mxu0 0
      %7382 = vmatprep.subr.bf16.mxu0 0
      %7383 = vmatpush1.bf16.xpose.msra.mxu0 0
      %7384 = vmatprep.subr.bf16.mxu0 0
      %7385 = vmatpush1.bf16.xpose.msra.mxu0 0
      %7386 = vmatprep.subr.bf16.mxu0 0
      %7387 = vmatpush1.bf16.xpose.msra.mxu0 0
      %7388 = vmatprep.subr.bf16.mxu0 0
      %7389 = vmatpush1.bf16.xpose.msra.mxu0 0
      %7390 = vmatprep.subr.bf16.mxu0 0
      %7391 = vmatpush1.bf16.xpose.msra.mxu0 0
      %7392 = vmatprep.subr.bf16.mxu0 0
      %7393 = vmatpush1.bf16.xpose.msra.mxu0 0
      %7394 = vmatprep.subr.bf16.mxu0 0
      %7395 = vmatpush1.bf16.xpose.msra.mxu0 0
      %7396 = vmatprep.subr.bf16.mxu0 0
      %7397 = vmatpush1.bf16.xpose.msra.mxu0 0
      %7398 = vmatprep.subr.bf16.mxu0 0
      %7399 = vmatpush1.bf16.xpose.msra.mxu0 0
      %7400 = vmatprep.mubr.bf16.mxu0 0
      %7401 = vmatmul.mubr.bf16.gmra.mrb[0].mxu0 %v7363
      %v7402 = vpop.f32.mrb[0].mxu0
      %v7403 = vadd.f32 0.0, %v7402
      %v7404 = vpop.f32.mrb[0].mxu0
      %v7405 = vpop.f32.mrb[0].mxu0
      %v7406 = vpop.f32.mrb[0].mxu0
      %7407 = vdwg.mxu0
      %7408 = vrot.lane.b32.xlu0 %v843, 104
      %v7409 = vpop.permute.xlu0 %7408
      %7410 = vrot.lane.b32.xlu0 %v1068, 104
      %v7411 = vpop.permute.xlu0 %7410
      %v7413 = vsel %vm1294, %v7409, 0
      %v7416 = vsel %vm1294, %v7411, 0
      %7418 = vmatprep.subr.bf16.mxu0 0
      %7419 = vmatpush1.bf16.xpose.msra.mxu0 %v7416
      %7420 = vmatprep.subr.bf16.mxu0 0
      %7421 = vmatpush1.bf16.xpose.msra.mxu0 0
      %7422 = vmatprep.subr.bf16.mxu0 0
      %7423 = vmatpush1.bf16.xpose.msra.mxu0 0
      %7424 = vmatprep.subr.bf16.mxu0 0
      %7425 = vmatpush1.bf16.xpose.msra.mxu0 0
      %7426 = vmatprep.subr.bf16.mxu0 0
      %7427 = vmatpush1.bf16.xpose.msra.mxu0 0
      %7428 = vmatprep.subr.bf16.mxu0 0
      %7429 = vmatpush1.bf16.xpose.msra.mxu0 0
      %7430 = vmatprep.subr.bf16.mxu0 0
      %7431 = vmatpush1.bf16.xpose.msra.mxu0 0
      %7432 = vmatprep.subr.bf16.mxu0 0
      %7433 = vmatpush1.bf16.xpose.msra.mxu0 0
      %7434 = vmatprep.subr.bf16.mxu0 0
      %7435 = vmatpush1.bf16.xpose.msra.mxu0 0
      %7436 = vmatprep.subr.bf16.mxu0 0
      %7437 = vmatpush1.bf16.xpose.msra.mxu0 0
      %7438 = vmatprep.subr.bf16.mxu0 0
      %7439 = vmatpush1.bf16.xpose.msra.mxu0 0
      %7440 = vmatprep.subr.bf16.mxu0 0
      %7441 = vmatpush1.bf16.xpose.msra.mxu0 0
      %7442 = vmatprep.subr.bf16.mxu0 0
      %7443 = vmatpush1.bf16.xpose.msra.mxu0 0
      %7444 = vmatprep.subr.bf16.mxu0 0
      %7445 = vmatpush1.bf16.xpose.msra.mxu0 0
      %7446 = vmatprep.subr.bf16.mxu0 0
      %7447 = vmatpush1.bf16.xpose.msra.mxu0 0
      %7448 = vmatprep.subr.bf16.mxu0 0
      %7449 = vmatpush1.bf16.xpose.msra.mxu0 0
      %7450 = vmatprep.mubr.bf16.mxu0 0
      %7451 = vmatmul.mubr.bf16.gmra.mrb[0].mxu0 %v7413
      %v7452 = vpop.f32.mrb[0].mxu0
      %v7453 = vadd.f32 0.0, %v7452
      %v7454 = vpop.f32.mrb[0].mxu0
      %v7455 = vpop.f32.mrb[0].mxu0
      %v7456 = vpop.f32.mrb[0].mxu0
      %7457 = vdwg.mxu0
      %v7458 = vsel %vm1294, %v6703, -inf
      %7459 = vmax.xlane.f32.xlu0 %v7458
      %v7460 = vpop.xlane.xlu0 %7459
      %v7461 = vsel %vm1294, %v6753, -inf
      %7462 = vmax.xlane.f32.xlu0 %v7461
      %v7463 = vpop.xlane.xlu0 %7462
      %v7464 = vsel %vm1294, %v6803, -inf
      %7465 = vmax.xlane.f32.xlu0 %v7464
      %v7466 = vpop.xlane.xlu0 %7465
      %v7467 = vsel %vm1294, %v6853, -inf
      %7468 = vmax.xlane.f32.xlu0 %v7467
      %v7469 = vpop.xlane.xlu0 %7468
      %v7470 = vsel %vm1294, %v6903, -inf
      %7471 = vmax.xlane.f32.xlu0 %v7470
      %v7472 = vpop.xlane.xlu0 %7471
      %v7473 = vsel %vm1294, %v6953, -inf
      %7474 = vmax.xlane.f32.xlu0 %v7473
      %v7475 = vpop.xlane.xlu0 %7474
      %v7476 = vsel %vm1294, %v7003, -inf
      %7477 = vmax.xlane.f32.xlu0 %v7476
      %v7478 = vpop.xlane.xlu0 %7477
      %v7479 = vsel %vm1294, %v7053, -inf
      %7480 = vmax.xlane.f32.xlu0 %v7479
      %v7481 = vpop.xlane.xlu0 %7480
      %v7482 = vsel %vm1294, %v7103, -inf
      %7483 = vmax.xlane.f32.xlu0 %v7482
      %v7484 = vpop.xlane.xlu0 %7483
      %v7485 = vsel %vm1294, %v7153, -inf
      %7486 = vmax.xlane.f32.xlu0 %v7485
      %v7487 = vpop.xlane.xlu0 %7486
      %v7488 = vsel %vm1294, %v7203, -inf
      %7489 = vmax.xlane.f32.xlu0 %v7488
      %v7490 = vpop.xlane.xlu0 %7489
      %v7491 = vsel %vm1294, %v7253, -inf
      %7492 = vmax.xlane.f32.xlu0 %v7491
      %v7493 = vpop.xlane.xlu0 %7492
      %v7494 = vsel %vm1294, %v7303, -inf
      %7495 = vmax.xlane.f32.xlu0 %v7494
      %v7496 = vpop.xlane.xlu0 %7495
      %v7497 = vsel %vm1294, %v7353, -inf
      %7498 = vmax.xlane.f32.xlu0 %v7497
      %v7499 = vpop.xlane.xlu0 %7498
      %v7500 = vsel %vm1294, %v7403, -inf
      %7501 = vmax.xlane.f32.xlu0 %v7500
      %v7502 = vpop.xlane.xlu0 %7501
      %v7503 = vsel %vm1294, %v7453, -inf
      %7504 = vmax.xlane.f32.xlu0 %v7503
      %v7505 = vpop.xlane.xlu0 %7504
      %v7506 = vsub.f32 %v6703, %v7460
      %v7507 = vsub.f32 %v6753, %v7463
      %v7508 = vsub.f32 %v6803, %v7466
      %v7509 = vsub.f32 %v6853, %v7469
      %v7510 = vsub.f32 %v6903, %v7472
      %v7511 = vsub.f32 %v6953, %v7475
      %v7512 = vsub.f32 %v7003, %v7478
      %v7513 = vsub.f32 %v7053, %v7481
      %v7514 = vsub.f32 %v7103, %v7484
      %v7515 = vsub.f32 %v7153, %v7487
      %v7516 = vsub.f32 %v7203, %v7490
      %v7517 = vsub.f32 %v7253, %v7493
      %v7518 = vsub.f32 %v7303, %v7496
      %v7519 = vsub.f32 %v7353, %v7499
      %v7520 = vsub.f32 %v7403, %v7502
      %v7521 = vsub.f32 %v7453, %v7505
      %v7522 = vmul.f32 %v7506, 1.442695
      %v7523 = vpow.pop %v7522
      %v7524 = vmul.f32 %v7507, 1.442695
      %v7525 = vpow.pop %v7524
      %v7526 = vmul.f32 %v7508, 1.442695
      %v7527 = vpow.pop %v7526
      %v7528 = vmul.f32 %v7509, 1.442695
      %v7529 = vpow.pop %v7528
      %v7530 = vmul.f32 %v7510, 1.442695
      %v7531 = vpow.pop %v7530
      %v7532 = vmul.f32 %v7511, 1.442695
      %v7533 = vpow.pop %v7532
      %v7534 = vmul.f32 %v7512, 1.442695
      %v7535 = vpow.pop %v7534
      %v7536 = vmul.f32 %v7513, 1.442695
      %v7537 = vpow.pop %v7536
      %v7538 = vmul.f32 %v7514, 1.442695
      %v7539 = vpow.pop %v7538
      %v7540 = vmul.f32 %v7515, 1.442695
      %v7541 = vpow.pop %v7540
      %v7542 = vmul.f32 %v7516, 1.442695
      %v7543 = vpow.pop %v7542
      %v7544 = vmul.f32 %v7517, 1.442695
      %v7545 = vpow.pop %v7544
      %v7546 = vmul.f32 %v7518, 1.442695
      %v7547 = vpow.pop %v7546
      %v7548 = vmul.f32 %v7519, 1.442695
      %v7549 = vpow.pop %v7548
      %v7550 = vmul.f32 %v7520, 1.442695
      %v7551 = vpow.pop %v7550
      %v7552 = vmul.f32 %v7521, 1.442695
      %v7553 = vpow.pop %v7552
      %v7554 = vsel %vm1294, %v7523, 0.0
      %7555 = vadd.xlane.f32.xlu0 %v7554
      %v7556 = vpop.xlane.xlu0 %7555
      %v7557 = vsel %vm1294, %v7525, 0.0
      %7558 = vadd.xlane.f32.xlu0 %v7557
      %v7559 = vpop.xlane.xlu0 %7558
      %v7560 = vsel %vm1294, %v7527, 0.0
      %7561 = vadd.xlane.f32.xlu0 %v7560
      %v7562 = vpop.xlane.xlu0 %7561
      %v7563 = vsel %vm1294, %v7529, 0.0
      %7564 = vadd.xlane.f32.xlu0 %v7563
      %v7565 = vpop.xlane.xlu0 %7564
      %v7566 = vsel %vm1294, %v7531, 0.0
      %7567 = vadd.xlane.f32.xlu0 %v7566
      %v7568 = vpop.xlane.xlu0 %7567
      %v7569 = vsel %vm1294, %v7533, 0.0
      %7570 = vadd.xlane.f32.xlu0 %v7569
      %v7571 = vpop.xlane.xlu0 %7570
      %v7572 = vsel %vm1294, %v7535, 0.0
      %7573 = vadd.xlane.f32.xlu0 %v7572
      %v7574 = vpop.xlane.xlu0 %7573
      %v7575 = vsel %vm1294, %v7537, 0.0
      %7576 = vadd.xlane.f32.xlu0 %v7575
      %v7577 = vpop.xlane.xlu0 %7576
      %v7578 = vsel %vm1294, %v7539, 0.0
      %7579 = vadd.xlane.f32.xlu0 %v7578
      %v7580 = vpop.xlane.xlu0 %7579
      %v7581 = vsel %vm1294, %v7541, 0.0
      %7582 = vadd.xlane.f32.xlu0 %v7581
      %v7583 = vpop.xlane.xlu0 %7582
      %v7584 = vsel %vm1294, %v7543, 0.0
      %7585 = vadd.xlane.f32.xlu0 %v7584
      %v7586 = vpop.xlane.xlu0 %7585
      %v7587 = vsel %vm1294, %v7545, 0.0
      %7588 = vadd.xlane.f32.xlu0 %v7587
      %v7589 = vpop.xlane.xlu0 %7588
      %v7590 = vsel %vm1294, %v7547, 0.0
      %7591 = vadd.xlane.f32.xlu0 %v7590
      %v7592 = vpop.xlane.xlu0 %7591
      %v7593 = vsel %vm1294, %v7549, 0.0
      %7594 = vadd.xlane.f32.xlu0 %v7593
      %v7595 = vpop.xlane.xlu0 %7594
      %v7596 = vsel %vm1294, %v7551, 0.0
      %7597 = vadd.xlane.f32.xlu0 %v7596
      %v7598 = vpop.xlane.xlu0 %7597
      %v7599 = vsel %vm1294, %v7553, 0.0
      %7600 = vadd.xlane.f32.xlu0 %v7599
      %v7601 = vpop.xlane.xlu0 %7600
      %v7602 = vrcp.pop %v7556
      %v7603 = vrcp.pop %v7559
      %v7604 = vrcp.pop %v7562
      %v7605 = vrcp.pop %v7565
      %v7606 = vrcp.pop %v7568
      %v7607 = vrcp.pop %v7571
      %v7608 = vrcp.pop %v7574
      %v7609 = vrcp.pop %v7577
      %v7610 = vrcp.pop %v7580
      %v7611 = vrcp.pop %v7583
      %v7612 = vrcp.pop %v7586
      %v7613 = vrcp.pop %v7589
      %v7614 = vrcp.pop %v7592
      %v7615 = vrcp.pop %v7595
      %v7616 = vrcp.pop %v7598
      %v7617 = vrcp.pop %v7601
      %v7618 = vmul.f32 %v7523, %v7602
      %v7619 = vmul.f32 %v7525, %v7603
      %v7620 = vmul.f32 %v7527, %v7604
      %v7621 = vmul.f32 %v7529, %v7605
      %v7622 = vmul.f32 %v7531, %v7606
      %v7623 = vmul.f32 %v7533, %v7607
      %v7624 = vmul.f32 %v7535, %v7608
      %v7625 = vmul.f32 %v7537, %v7609
      %v7626 = vmul.f32 %v7539, %v7610
      %v7627 = vmul.f32 %v7541, %v7611
      %v7628 = vmul.f32 %v7543, %v7612
      %v7629 = vmul.f32 %v7545, %v7613
      %v7630 = vmul.f32 %v7547, %v7614
      %v7631 = vmul.f32 %v7549, %v7615
      %v7632 = vmul.f32 %v7551, %v7616
      %v7633 = vmul.f32 %v7553, %v7617
      %v7634 = vpack.c.bf16 %v7618, %v7618
      %v7635 = vpack.c.bf16 %v7619, %v7619
      %v7636 = vpack.c.bf16 %v7620, %v7620
      %v7637 = vpack.c.bf16 %v7621, %v7621
      %v7638 = vpack.c.bf16 %v7622, %v7622
      %v7639 = vpack.c.bf16 %v7623, %v7623
      %v7640 = vpack.c.bf16 %v7624, %v7624
      %v7641 = vpack.c.bf16 %v7625, %v7625
      %v7642 = vpack.c.bf16 %v7626, %v7626
      %v7643 = vpack.c.bf16 %v7627, %v7627
      %v7644 = vpack.c.bf16 %v7628, %v7628
      %v7645 = vpack.c.bf16 %v7629, %v7629
      %v7646 = vpack.c.bf16 %v7630, %v7630
      %v7647 = vpack.c.bf16 %v7631, %v7631
      %v7648 = vpack.c.bf16 %v7632, %v7632
      %v7649 = vpack.c.bf16 %v7633, %v7633
      %7650 = vrot.lane.b32.xlu0 %v1278, 104
      %v7651 = vpop.permute.xlu0 %7650
      %v7653 = vsel %vm1294, %v7634, 0
      %v7656 = vsel %vm2226, %v7651, 0
      %7658 = vmatprep.subr.bf16.mxu0 0
      %7659 = vmatpush1.bf16.msra.mxu0 %v7656
      %7660 = vmatprep.subr.bf16.mxu0 0
      %7661 = vmatpush1.bf16.msra.mxu0 0
      %7662 = vmatprep.subr.bf16.mxu0 0
      %7663 = vmatpush1.bf16.msra.mxu0 0
      %7664 = vmatprep.subr.bf16.mxu0 0
      %7665 = vmatpush1.bf16.msra.mxu0 0
      %7666 = vmatprep.subr.bf16.mxu0 0
      %7667 = vmatpush1.bf16.msra.mxu0 0
      %7668 = vmatprep.subr.bf16.mxu0 0
      %7669 = vmatpush1.bf16.msra.mxu0 0
      %7670 = vmatprep.subr.bf16.mxu0 0
      %7671 = vmatpush1.bf16.msra.mxu0 0
      %7672 = vmatprep.subr.bf16.mxu0 0
      %7673 = vmatpush1.bf16.msra.mxu0 0
      %7674 = vmatprep.subr.bf16.mxu0 0
      %7675 = vmatpush1.bf16.msra.mxu0 0
      %7676 = vmatprep.subr.bf16.mxu0 0
      %7677 = vmatpush1.bf16.msra.mxu0 0
      %7678 = vmatprep.subr.bf16.mxu0 0
      %7679 = vmatpush1.bf16.msra.mxu0 0
      %7680 = vmatprep.subr.bf16.mxu0 0
      %7681 = vmatpush1.bf16.msra.mxu0 0
      %7682 = vmatprep.subr.bf16.mxu0 0
      %7683 = vmatpush1.bf16.msra.mxu0 0
      %7684 = vmatprep.subr.bf16.mxu0 0
      %7685 = vmatpush1.bf16.msra.mxu0 0
      %7686 = vmatprep.subr.bf16.mxu0 0
      %7687 = vmatpush1.bf16.msra.mxu0 0
      %7688 = vmatprep.subr.bf16.mxu0 0
      %7689 = vmatpush1.bf16.msra.mxu0 0
      %7690 = vmatprep.mubr.bf16.mxu0 0
      %7691 = vmatmul.mubr.bf16.gmra.mrb[0].mxu0 %v7653
      %v7692 = vpop.f32.mrb[0].mxu0
      %v7693 = vadd.f32 0.0, %v7692
      %v7694 = vpop.f32.mrb[0].mxu0
      %v7695 = vpop.f32.mrb[0].mxu0
      %v7696 = vpop.f32.mrb[0].mxu0
      %7697 = vdwg.mxu0
      %7698 = vrot.lane.b32.xlu0 %v1279, 104
      %v7699 = vpop.permute.xlu0 %7698
      %v7701 = vsel %vm1294, %v7635, 0
      %v7704 = vsel %vm2226, %v7699, 0
      %7706 = vmatprep.subr.bf16.mxu0 0
      %7707 = vmatpush1.bf16.msra.mxu0 %v7704
      %7708 = vmatprep.subr.bf16.mxu0 0
      %7709 = vmatpush1.bf16.msra.mxu0 0
      %7710 = vmatprep.subr.bf16.mxu0 0
      %7711 = vmatpush1.bf16.msra.mxu0 0
      %7712 = vmatprep.subr.bf16.mxu0 0
      %7713 = vmatpush1.bf16.msra.mxu0 0
      %7714 = vmatprep.subr.bf16.mxu0 0
      %7715 = vmatpush1.bf16.msra.mxu0 0
      %7716 = vmatprep.subr.bf16.mxu0 0
      %7717 = vmatpush1.bf16.msra.mxu0 0
      %7718 = vmatprep.subr.bf16.mxu0 0
      %7719 = vmatpush1.bf16.msra.mxu0 0
      %7720 = vmatprep.subr.bf16.mxu0 0
      %7721 = vmatpush1.bf16.msra.mxu0 0
      %7722 = vmatprep.subr.bf16.mxu0 0
      %7723 = vmatpush1.bf16.msra.mxu0 0
      %7724 = vmatprep.subr.bf16.mxu0 0
      %7725 = vmatpush1.bf16.msra.mxu0 0
      %7726 = vmatprep.subr.bf16.mxu0 0
      %7727 = vmatpush1.bf16.msra.mxu0 0
      %7728 = vmatprep.subr.bf16.mxu0 0
      %7729 = vmatpush1.bf16.msra.mxu0 0
      %7730 = vmatprep.subr.bf16.mxu0 0
      %7731 = vmatpush1.bf16.msra.mxu0 0
      %7732 = vmatprep.subr.bf16.mxu0 0
      %7733 = vmatpush1.bf16.msra.mxu0 0
      %7734 = vmatprep.subr.bf16.mxu0 0
      %7735 = vmatpush1.bf16.msra.mxu0 0
      %7736 = vmatprep.subr.bf16.mxu0 0
      %7737 = vmatpush1.bf16.msra.mxu0 0
      %7738 = vmatprep.mubr.bf16.mxu0 0
      %7739 = vmatmul.mubr.bf16.gmra.mrb[0].mxu0 %v7701
      %v7740 = vpop.f32.mrb[0].mxu0
      %v7741 = vadd.f32 0.0, %v7740
      %v7742 = vpop.f32.mrb[0].mxu0
      %v7743 = vpop.f32.mrb[0].mxu0
      %v7744 = vpop.f32.mrb[0].mxu0
      %7745 = vdwg.mxu0
      %7746 = vrot.lane.b32.xlu0 %v1280, 104
      %v7747 = vpop.permute.xlu0 %7746
      %v7749 = vsel %vm1294, %v7636, 0
      %v7752 = vsel %vm2226, %v7747, 0
      %7754 = vmatprep.subr.bf16.mxu0 0
      %7755 = vmatpush1.bf16.msra.mxu0 %v7752
      %7756 = vmatprep.subr.bf16.mxu0 0
      %7757 = vmatpush1.bf16.msra.mxu0 0
      %7758 = vmatprep.subr.bf16.mxu0 0
      %7759 = vmatpush1.bf16.msra.mxu0 0
      %7760 = vmatprep.subr.bf16.mxu0 0
      %7761 = vmatpush1.bf16.msra.mxu0 0
      %7762 = vmatprep.subr.bf16.mxu0 0
      %7763 = vmatpush1.bf16.msra.mxu0 0
      %7764 = vmatprep.subr.bf16.mxu0 0
      %7765 = vmatpush1.bf16.msra.mxu0 0
      %7766 = vmatprep.subr.bf16.mxu0 0
      %7767 = vmatpush1.bf16.msra.mxu0 0
      %7768 = vmatprep.subr.bf16.mxu0 0
      %7769 = vmatpush1.bf16.msra.mxu0 0
      %7770 = vmatprep.subr.bf16.mxu0 0
      %7771 = vmatpush1.bf16.msra.mxu0 0
      %7772 = vmatprep.subr.bf16.mxu0 0
      %7773 = vmatpush1.bf16.msra.mxu0 0
      %7774 = vmatprep.subr.bf16.mxu0 0
      %7775 = vmatpush1.bf16.msra.mxu0 0
      %7776 = vmatprep.subr.bf16.mxu0 0
      %7777 = vmatpush1.bf16.msra.mxu0 0
      %7778 = vmatprep.subr.bf16.mxu0 0
      %7779 = vmatpush1.bf16.msra.mxu0 0
      %7780 = vmatprep.subr.bf16.mxu0 0
      %7781 = vmatpush1.bf16.msra.mxu0 0
      %7782 = vmatprep.subr.bf16.mxu0 0
      %7783 = vmatpush1.bf16.msra.mxu0 0
      %7784 = vmatprep.subr.bf16.mxu0 0
      %7785 = vmatpush1.bf16.msra.mxu0 0
      %7786 = vmatprep.mubr.bf16.mxu0 0
      %7787 = vmatmul.mubr.bf16.gmra.mrb[0].mxu0 %v7749
      %v7788 = vpop.f32.mrb[0].mxu0
      %v7789 = vadd.f32 0.0, %v7788
      %v7790 = vpop.f32.mrb[0].mxu0
      %v7791 = vpop.f32.mrb[0].mxu0
      %v7792 = vpop.f32.mrb[0].mxu0
      %7793 = vdwg.mxu0
      %7794 = vrot.lane.b32.xlu0 %v1281, 104
      %v7795 = vpop.permute.xlu0 %7794
      %v7797 = vsel %vm1294, %v7637, 0
      %v7800 = vsel %vm2226, %v7795, 0
      %7802 = vmatprep.subr.bf16.mxu0 0
      %7803 = vmatpush1.bf16.msra.mxu0 %v7800
      %7804 = vmatprep.subr.bf16.mxu0 0
      %7805 = vmatpush1.bf16.msra.mxu0 0
      %7806 = vmatprep.subr.bf16.mxu0 0
      %7807 = vmatpush1.bf16.msra.mxu0 0
      %7808 = vmatprep.subr.bf16.mxu0 0
      %7809 = vmatpush1.bf16.msra.mxu0 0
      %7810 = vmatprep.subr.bf16.mxu0 0
      %7811 = vmatpush1.bf16.msra.mxu0 0
      %7812 = vmatprep.subr.bf16.mxu0 0
      %7813 = vmatpush1.bf16.msra.mxu0 0
      %7814 = vmatprep.subr.bf16.mxu0 0
      %7815 = vmatpush1.bf16.msra.mxu0 0
      %7816 = vmatprep.subr.bf16.mxu0 0
      %7817 = vmatpush1.bf16.msra.mxu0 0
      %7818 = vmatprep.subr.bf16.mxu0 0
      %7819 = vmatpush1.bf16.msra.mxu0 0
      %7820 = vmatprep.subr.bf16.mxu0 0
      %7821 = vmatpush1.bf16.msra.mxu0 0
      %7822 = vmatprep.subr.bf16.mxu0 0
      %7823 = vmatpush1.bf16.msra.mxu0 0
      %7824 = vmatprep.subr.bf16.mxu0 0
      %7825 = vmatpush1.bf16.msra.mxu0 0
      %7826 = vmatprep.subr.bf16.mxu0 0
      %7827 = vmatpush1.bf16.msra.mxu0 0
      %7828 = vmatprep.subr.bf16.mxu0 0
      %7829 = vmatpush1.bf16.msra.mxu0 0
      %7830 = vmatprep.subr.bf16.mxu0 0
      %7831 = vmatpush1.bf16.msra.mxu0 0
      %7832 = vmatprep.subr.bf16.mxu0 0
      %7833 = vmatpush1.bf16.msra.mxu0 0
      %7834 = vmatprep.mubr.bf16.mxu0 0
      %7835 = vmatmul.mubr.bf16.gmra.mrb[0].mxu0 %v7797
      %v7836 = vpop.f32.mrb[0].mxu0
      %v7837 = vadd.f32 0.0, %v7836
      %v7838 = vpop.f32.mrb[0].mxu0
      %v7839 = vpop.f32.mrb[0].mxu0
      %v7840 = vpop.f32.mrb[0].mxu0
      %7841 = vdwg.mxu0
      %7842 = vrot.lane.b32.xlu0 %v1282, 104
      %v7843 = vpop.permute.xlu0 %7842
      %v7845 = vsel %vm1294, %v7638, 0
      %v7848 = vsel %vm2226, %v7843, 0
      %7850 = vmatprep.subr.bf16.mxu0 0
      %7851 = vmatpush1.bf16.msra.mxu0 %v7848
      %7852 = vmatprep.subr.bf16.mxu0 0
      %7853 = vmatpush1.bf16.msra.mxu0 0
      %7854 = vmatprep.subr.bf16.mxu0 0
      %7855 = vmatpush1.bf16.msra.mxu0 0
      %7856 = vmatprep.subr.bf16.mxu0 0
      %7857 = vmatpush1.bf16.msra.mxu0 0
      %7858 = vmatprep.subr.bf16.mxu0 0
      %7859 = vmatpush1.bf16.msra.mxu0 0
      %7860 = vmatprep.subr.bf16.mxu0 0
      %7861 = vmatpush1.bf16.msra.mxu0 0
      %7862 = vmatprep.subr.bf16.mxu0 0
      %7863 = vmatpush1.bf16.msra.mxu0 0
      %7864 = vmatprep.subr.bf16.mxu0 0
      %7865 = vmatpush1.bf16.msra.mxu0 0
      %7866 = vmatprep.subr.bf16.mxu0 0
      %7867 = vmatpush1.bf16.msra.mxu0 0
      %7868 = vmatprep.subr.bf16.mxu0 0
      %7869 = vmatpush1.bf16.msra.mxu0 0
      %7870 = vmatprep.subr.bf16.mxu0 0
      %7871 = vmatpush1.bf16.msra.mxu0 0
      %7872 = vmatprep.subr.bf16.mxu0 0
      %7873 = vmatpush1.bf16.msra.mxu0 0
      %7874 = vmatprep.subr.bf16.mxu0 0
      %7875 = vmatpush1.bf16.msra.mxu0 0
      %7876 = vmatprep.subr.bf16.mxu0 0
      %7877 = vmatpush1.bf16.msra.mxu0 0
      %7878 = vmatprep.subr.bf16.mxu0 0
      %7879 = vmatpush1.bf16.msra.mxu0 0
      %7880 = vmatprep.subr.bf16.mxu0 0
      %7881 = vmatpush1.bf16.msra.mxu0 0
      %7882 = vmatprep.mubr.bf16.mxu0 0
      %7883 = vmatmul.mubr.bf16.gmra.mrb[0].mxu0 %v7845
      %v7884 = vpop.f32.mrb[0].mxu0
      %v7885 = vadd.f32 0.0, %v7884
      %v7886 = vpop.f32.mrb[0].mxu0
      %v7887 = vpop.f32.mrb[0].mxu0
      %v7888 = vpop.f32.mrb[0].mxu0
      %7889 = vdwg.mxu0
      %7890 = vrot.lane.b32.xlu0 %v1283, 104
      %v7891 = vpop.permute.xlu0 %7890
      %v7893 = vsel %vm1294, %v7639, 0
      %v7896 = vsel %vm2226, %v7891, 0
      %7898 = vmatprep.subr.bf16.mxu0 0
      %7899 = vmatpush1.bf16.msra.mxu0 %v7896
      %7900 = vmatprep.subr.bf16.mxu0 0
      %7901 = vmatpush1.bf16.msra.mxu0 0
      %7902 = vmatprep.subr.bf16.mxu0 0
      %7903 = vmatpush1.bf16.msra.mxu0 0
      %7904 = vmatprep.subr.bf16.mxu0 0
      %7905 = vmatpush1.bf16.msra.mxu0 0
      %7906 = vmatprep.subr.bf16.mxu0 0
      %7907 = vmatpush1.bf16.msra.mxu0 0
      %7908 = vmatprep.subr.bf16.mxu0 0
      %7909 = vmatpush1.bf16.msra.mxu0 0
      %7910 = vmatprep.subr.bf16.mxu0 0
      %7911 = vmatpush1.bf16.msra.mxu0 0
      %7912 = vmatprep.subr.bf16.mxu0 0
      %7913 = vmatpush1.bf16.msra.mxu0 0
      %7914 = vmatprep.subr.bf16.mxu0 0
      %7915 = vmatpush1.bf16.msra.mxu0 0
      %7916 = vmatprep.subr.bf16.mxu0 0
      %7917 = vmatpush1.bf16.msra.mxu0 0
      %7918 = vmatprep.subr.bf16.mxu0 0
      %7919 = vmatpush1.bf16.msra.mxu0 0
      %7920 = vmatprep.subr.bf16.mxu0 0
      %7921 = vmatpush1.bf16.msra.mxu0 0
      %7922 = vmatprep.subr.bf16.mxu0 0
      %7923 = vmatpush1.bf16.msra.mxu0 0
      %7924 = vmatprep.subr.bf16.mxu0 0
      %7925 = vmatpush1.bf16.msra.mxu0 0
      %7926 = vmatprep.subr.bf16.mxu0 0
      %7927 = vmatpush1.bf16.msra.mxu0 0
      %7928 = vmatprep.subr.bf16.mxu0 0
      %7929 = vmatpush1.bf16.msra.mxu0 0
      %7930 = vmatprep.mubr.bf16.mxu0 0
      %7931 = vmatmul.mubr.bf16.gmra.mrb[0].mxu0 %v7893
      %v7932 = vpop.f32.mrb[0].mxu0
      %v7933 = vadd.f32 0.0, %v7932
      %v7934 = vpop.f32.mrb[0].mxu0
      %v7935 = vpop.f32.mrb[0].mxu0
      %v7936 = vpop.f32.mrb[0].mxu0
      %7937 = vdwg.mxu0
      %7938 = vrot.lane.b32.xlu0 %v1284, 104
      %v7939 = vpop.permute.xlu0 %7938
      %v7941 = vsel %vm1294, %v7640, 0
      %v7944 = vsel %vm2226, %v7939, 0
      %7946 = vmatprep.subr.bf16.mxu0 0
      %7947 = vmatpush1.bf16.msra.mxu0 %v7944
      %7948 = vmatprep.subr.bf16.mxu0 0
      %7949 = vmatpush1.bf16.msra.mxu0 0
      %7950 = vmatprep.subr.bf16.mxu0 0
      %7951 = vmatpush1.bf16.msra.mxu0 0
      %7952 = vmatprep.subr.bf16.mxu0 0
      %7953 = vmatpush1.bf16.msra.mxu0 0
      %7954 = vmatprep.subr.bf16.mxu0 0
      %7955 = vmatpush1.bf16.msra.mxu0 0
      %7956 = vmatprep.subr.bf16.mxu0 0
      %7957 = vmatpush1.bf16.msra.mxu0 0
      %7958 = vmatprep.subr.bf16.mxu0 0
      %7959 = vmatpush1.bf16.msra.mxu0 0
      %7960 = vmatprep.subr.bf16.mxu0 0
      %7961 = vmatpush1.bf16.msra.mxu0 0
      %7962 = vmatprep.subr.bf16.mxu0 0
      %7963 = vmatpush1.bf16.msra.mxu0 0
      %7964 = vmatprep.subr.bf16.mxu0 0
      %7965 = vmatpush1.bf16.msra.mxu0 0
      %7966 = vmatprep.subr.bf16.mxu0 0
      %7967 = vmatpush1.bf16.msra.mxu0 0
      %7968 = vmatprep.subr.bf16.mxu0 0
      %7969 = vmatpush1.bf16.msra.mxu0 0
      %7970 = vmatprep.subr.bf16.mxu0 0
      %7971 = vmatpush1.bf16.msra.mxu0 0
      %7972 = vmatprep.subr.bf16.mxu0 0
      %7973 = vmatpush1.bf16.msra.mxu0 0
      %7974 = vmatprep.subr.bf16.mxu0 0
      %7975 = vmatpush1.bf16.msra.mxu0 0
      %7976 = vmatprep.subr.bf16.mxu0 0
      %7977 = vmatpush1.bf16.msra.mxu0 0
      %7978 = vmatprep.mubr.bf16.mxu0 0
      %7979 = vmatmul.mubr.bf16.gmra.mrb[0].mxu0 %v7941
      %v7980 = vpop.f32.mrb[0].mxu0
      %v7981 = vadd.f32 0.0, %v7980
      %v7982 = vpop.f32.mrb[0].mxu0
      %v7983 = vpop.f32.mrb[0].mxu0
      %v7984 = vpop.f32.mrb[0].mxu0
      %7985 = vdwg.mxu0
      %7986 = vrot.lane.b32.xlu0 %v1285, 104
      %v7987 = vpop.permute.xlu0 %7986
      %v7989 = vsel %vm1294, %v7641, 0
      %v7992 = vsel %vm2226, %v7987, 0
      %7994 = vmatprep.subr.bf16.mxu0 0
      %7995 = vmatpush1.bf16.msra.mxu0 %v7992
      %7996 = vmatprep.subr.bf16.mxu0 0
      %7997 = vmatpush1.bf16.msra.mxu0 0
      %7998 = vmatprep.subr.bf16.mxu0 0
      %7999 = vmatpush1.bf16.msra.mxu0 0
      %8000 = vmatprep.subr.bf16.mxu0 0
      %8001 = vmatpush1.bf16.msra.mxu0 0
      %8002 = vmatprep.subr.bf16.mxu0 0
      %8003 = vmatpush1.bf16.msra.mxu0 0
      %8004 = vmatprep.subr.bf16.mxu0 0
      %8005 = vmatpush1.bf16.msra.mxu0 0
      %8006 = vmatprep.subr.bf16.mxu0 0
      %8007 = vmatpush1.bf16.msra.mxu0 0
      %8008 = vmatprep.subr.bf16.mxu0 0
      %8009 = vmatpush1.bf16.msra.mxu0 0
      %8010 = vmatprep.subr.bf16.mxu0 0
      %8011 = vmatpush1.bf16.msra.mxu0 0
      %8012 = vmatprep.subr.bf16.mxu0 0
      %8013 = vmatpush1.bf16.msra.mxu0 0
      %8014 = vmatprep.subr.bf16.mxu0 0
      %8015 = vmatpush1.bf16.msra.mxu0 0
      %8016 = vmatprep.subr.bf16.mxu0 0
      %8017 = vmatpush1.bf16.msra.mxu0 0
      %8018 = vmatprep.subr.bf16.mxu0 0
      %8019 = vmatpush1.bf16.msra.mxu0 0
      %8020 = vmatprep.subr.bf16.mxu0 0
      %8021 = vmatpush1.bf16.msra.mxu0 0
      %8022 = vmatprep.subr.bf16.mxu0 0
      %8023 = vmatpush1.bf16.msra.mxu0 0
      %8024 = vmatprep.subr.bf16.mxu0 0
      %8025 = vmatpush1.bf16.msra.mxu0 0
      %8026 = vmatprep.mubr.bf16.mxu0 0
      %8027 = vmatmul.mubr.bf16.gmra.mrb[0].mxu0 %v7989
      %v8028 = vpop.f32.mrb[0].mxu0
      %v8029 = vadd.f32 0.0, %v8028
      %v8030 = vpop.f32.mrb[0].mxu0
      %v8031 = vpop.f32.mrb[0].mxu0
      %v8032 = vpop.f32.mrb[0].mxu0
      %8033 = vdwg.mxu0
      %8034 = vrot.lane.b32.xlu0 %v1286, 104
      %v8035 = vpop.permute.xlu0 %8034
      %v8037 = vsel %vm1294, %v7642, 0
      %v8040 = vsel %vm2226, %v8035, 0
      %8042 = vmatprep.subr.bf16.mxu0 0
      %8043 = vmatpush1.bf16.msra.mxu0 %v8040
      %8044 = vmatprep.subr.bf16.mxu0 0
      %8045 = vmatpush1.bf16.msra.mxu0 0
      %8046 = vmatprep.subr.bf16.mxu0 0
      %8047 = vmatpush1.bf16.msra.mxu0 0
      %8048 = vmatprep.subr.bf16.mxu0 0
      %8049 = vmatpush1.bf16.msra.mxu0 0
      %8050 = vmatprep.subr.bf16.mxu0 0
      %8051 = vmatpush1.bf16.msra.mxu0 0
      %8052 = vmatprep.subr.bf16.mxu0 0
      %8053 = vmatpush1.bf16.msra.mxu0 0
      %8054 = vmatprep.subr.bf16.mxu0 0
      %8055 = vmatpush1.bf16.msra.mxu0 0
      %8056 = vmatprep.subr.bf16.mxu0 0
      %8057 = vmatpush1.bf16.msra.mxu0 0
      %8058 = vmatprep.subr.bf16.mxu0 0
      %8059 = vmatpush1.bf16.msra.mxu0 0
      %8060 = vmatprep.subr.bf16.mxu0 0
      %8061 = vmatpush1.bf16.msra.mxu0 0
      %8062 = vmatprep.subr.bf16.mxu0 0
      %8063 = vmatpush1.bf16.msra.mxu0 0
      %8064 = vmatprep.subr.bf16.mxu0 0
      %8065 = vmatpush1.bf16.msra.mxu0 0
      %8066 = vmatprep.subr.bf16.mxu0 0
      %8067 = vmatpush1.bf16.msra.mxu0 0
      %8068 = vmatprep.subr.bf16.mxu0 0
      %8069 = vmatpush1.bf16.msra.mxu0 0
      %8070 = vmatprep.subr.bf16.mxu0 0
      %8071 = vmatpush1.bf16.msra.mxu0 0
      %8072 = vmatprep.subr.bf16.mxu0 0
      %8073 = vmatpush1.bf16.msra.mxu0 0
      %8074 = vmatprep.mubr.bf16.mxu0 0
      %8075 = vmatmul.mubr.bf16.gmra.mrb[0].mxu0 %v8037
      %v8076 = vpop.f32.mrb[0].mxu0
      %v8077 = vadd.f32 0.0, %v8076
      %v8078 = vpop.f32.mrb[0].mxu0
      %v8079 = vpop.f32.mrb[0].mxu0
      %v8080 = vpop.f32.mrb[0].mxu0
      %8081 = vdwg.mxu0
      %8082 = vrot.lane.b32.xlu0 %v1287, 104
      %v8083 = vpop.permute.xlu0 %8082
      %v8085 = vsel %vm1294, %v7643, 0
      %v8088 = vsel %vm2226, %v8083, 0
      %8090 = vmatprep.subr.bf16.mxu0 0
      %8091 = vmatpush1.bf16.msra.mxu0 %v8088
      %8092 = vmatprep.subr.bf16.mxu0 0
      %8093 = vmatpush1.bf16.msra.mxu0 0
      %8094 = vmatprep.subr.bf16.mxu0 0
      %8095 = vmatpush1.bf16.msra.mxu0 0
      %8096 = vmatprep.subr.bf16.mxu0 0
      %8097 = vmatpush1.bf16.msra.mxu0 0
      %8098 = vmatprep.subr.bf16.mxu0 0
      %8099 = vmatpush1.bf16.msra.mxu0 0
      %8100 = vmatprep.subr.bf16.mxu0 0
      %8101 = vmatpush1.bf16.msra.mxu0 0
      %8102 = vmatprep.subr.bf16.mxu0 0
      %8103 = vmatpush1.bf16.msra.mxu0 0
      %8104 = vmatprep.subr.bf16.mxu0 0
      %8105 = vmatpush1.bf16.msra.mxu0 0
      %8106 = vmatprep.subr.bf16.mxu0 0
      %8107 = vmatpush1.bf16.msra.mxu0 0
      %8108 = vmatprep.subr.bf16.mxu0 0
      %8109 = vmatpush1.bf16.msra.mxu0 0
      %8110 = vmatprep.subr.bf16.mxu0 0
      %8111 = vmatpush1.bf16.msra.mxu0 0
      %8112 = vmatprep.subr.bf16.mxu0 0
      %8113 = vmatpush1.bf16.msra.mxu0 0
      %8114 = vmatprep.subr.bf16.mxu0 0
      %8115 = vmatpush1.bf16.msra.mxu0 0
      %8116 = vmatprep.subr.bf16.mxu0 0
      %8117 = vmatpush1.bf16.msra.mxu0 0
      %8118 = vmatprep.subr.bf16.mxu0 0
      %8119 = vmatpush1.bf16.msra.mxu0 0
      %8120 = vmatprep.subr.bf16.mxu0 0
      %8121 = vmatpush1.bf16.msra.mxu0 0
      %8122 = vmatprep.mubr.bf16.mxu0 0
      %8123 = vmatmul.mubr.bf16.gmra.mrb[0].mxu0 %v8085
      %v8124 = vpop.f32.mrb[0].mxu0
      %v8125 = vadd.f32 0.0, %v8124
      %v8126 = vpop.f32.mrb[0].mxu0
      %v8127 = vpop.f32.mrb[0].mxu0
      %v8128 = vpop.f32.mrb[0].mxu0
      %8129 = vdwg.mxu0
      %8130 = vrot.lane.b32.xlu0 %v1288, 104
      %v8131 = vpop.permute.xlu0 %8130
      %v8133 = vsel %vm1294, %v7644, 0
      %v8136 = vsel %vm2226, %v8131, 0
      %8138 = vmatprep.subr.bf16.mxu0 0
      %8139 = vmatpush1.bf16.msra.mxu0 %v8136
      %8140 = vmatprep.subr.bf16.mxu0 0
      %8141 = vmatpush1.bf16.msra.mxu0 0
      %8142 = vmatprep.subr.bf16.mxu0 0
      %8143 = vmatpush1.bf16.msra.mxu0 0
      %8144 = vmatprep.subr.bf16.mxu0 0
      %8145 = vmatpush1.bf16.msra.mxu0 0
      %8146 = vmatprep.subr.bf16.mxu0 0
      %8147 = vmatpush1.bf16.msra.mxu0 0
      %8148 = vmatprep.subr.bf16.mxu0 0
      %8149 = vmatpush1.bf16.msra.mxu0 0
      %8150 = vmatprep.subr.bf16.mxu0 0
      %8151 = vmatpush1.bf16.msra.mxu0 0
      %8152 = vmatprep.subr.bf16.mxu0 0
      %8153 = vmatpush1.bf16.msra.mxu0 0
      %8154 = vmatprep.subr.bf16.mxu0 0
      %8155 = vmatpush1.bf16.msra.mxu0 0
      %8156 = vmatprep.subr.bf16.mxu0 0
      %8157 = vmatpush1.bf16.msra.mxu0 0
      %8158 = vmatprep.subr.bf16.mxu0 0
      %8159 = vmatpush1.bf16.msra.mxu0 0
      %8160 = vmatprep.subr.bf16.mxu0 0
      %8161 = vmatpush1.bf16.msra.mxu0 0
      %8162 = vmatprep.subr.bf16.mxu0 0
      %8163 = vmatpush1.bf16.msra.mxu0 0
      %8164 = vmatprep.subr.bf16.mxu0 0
      %8165 = vmatpush1.bf16.msra.mxu0 0
      %8166 = vmatprep.subr.bf16.mxu0 0
      %8167 = vmatpush1.bf16.msra.mxu0 0
      %8168 = vmatprep.subr.bf16.mxu0 0
      %8169 = vmatpush1.bf16.msra.mxu0 0
      %8170 = vmatprep.mubr.bf16.mxu0 0
      %8171 = vmatmul.mubr.bf16.gmra.mrb[0].mxu0 %v8133
      %v8172 = vpop.f32.mrb[0].mxu0
      %v8173 = vadd.f32 0.0, %v8172
      %v8174 = vpop.f32.mrb[0].mxu0
      %v8175 = vpop.f32.mrb[0].mxu0
      %v8176 = vpop.f32.mrb[0].mxu0
      %8177 = vdwg.mxu0
      %8178 = vrot.lane.b32.xlu0 %v1289, 104
      %v8179 = vpop.permute.xlu0 %8178
      %v8181 = vsel %vm1294, %v7645, 0
      %v8184 = vsel %vm2226, %v8179, 0
      %8186 = vmatprep.subr.bf16.mxu0 0
      %8187 = vmatpush1.bf16.msra.mxu0 %v8184
      %8188 = vmatprep.subr.bf16.mxu0 0
      %8189 = vmatpush1.bf16.msra.mxu0 0
      %8190 = vmatprep.subr.bf16.mxu0 0
      %8191 = vmatpush1.bf16.msra.mxu0 0
      %8192 = vmatprep.subr.bf16.mxu0 0
      %8193 = vmatpush1.bf16.msra.mxu0 0
      %8194 = vmatprep.subr.bf16.mxu0 0
      %8195 = vmatpush1.bf16.msra.mxu0 0
      %8196 = vmatprep.subr.bf16.mxu0 0
      %8197 = vmatpush1.bf16.msra.mxu0 0
      %8198 = vmatprep.subr.bf16.mxu0 0
      %8199 = vmatpush1.bf16.msra.mxu0 0
      %8200 = vmatprep.subr.bf16.mxu0 0
      %8201 = vmatpush1.bf16.msra.mxu0 0
      %8202 = vmatprep.subr.bf16.mxu0 0
      %8203 = vmatpush1.bf16.msra.mxu0 0
      %8204 = vmatprep.subr.bf16.mxu0 0
      %8205 = vmatpush1.bf16.msra.mxu0 0
      %8206 = vmatprep.subr.bf16.mxu0 0
      %8207 = vmatpush1.bf16.msra.mxu0 0
      %8208 = vmatprep.subr.bf16.mxu0 0
      %8209 = vmatpush1.bf16.msra.mxu0 0
      %8210 = vmatprep.subr.bf16.mxu0 0
      %8211 = vmatpush1.bf16.msra.mxu0 0
      %8212 = vmatprep.subr.bf16.mxu0 0
      %8213 = vmatpush1.bf16.msra.mxu0 0
      %8214 = vmatprep.subr.bf16.mxu0 0
      %8215 = vmatpush1.bf16.msra.mxu0 0
      %8216 = vmatprep.subr.bf16.mxu0 0
      %8217 = vmatpush1.bf16.msra.mxu0 0
      %8218 = vmatprep.mubr.bf16.mxu0 0
      %8219 = vmatmul.mubr.bf16.gmra.mrb[0].mxu0 %v8181
      %v8220 = vpop.f32.mrb[0].mxu0
      %v8221 = vadd.f32 0.0, %v8220
      %v8222 = vpop.f32.mrb[0].mxu0
      %v8223 = vpop.f32.mrb[0].mxu0
      %v8224 = vpop.f32.mrb[0].mxu0
      %8225 = vdwg.mxu0
      %8226 = vrot.lane.b32.xlu0 %v1290, 104
      %v8227 = vpop.permute.xlu0 %8226
      %v8229 = vsel %vm1294, %v7646, 0
      %v8232 = vsel %vm2226, %v8227, 0
      %8234 = vmatprep.subr.bf16.mxu0 0
      %8235 = vmatpush1.bf16.msra.mxu0 %v8232
      %8236 = vmatprep.subr.bf16.mxu0 0
      %8237 = vmatpush1.bf16.msra.mxu0 0
      %8238 = vmatprep.subr.bf16.mxu0 0
      %8239 = vmatpush1.bf16.msra.mxu0 0
      %8240 = vmatprep.subr.bf16.mxu0 0
      %8241 = vmatpush1.bf16.msra.mxu0 0
      %8242 = vmatprep.subr.bf16.mxu0 0
      %8243 = vmatpush1.bf16.msra.mxu0 0
      %8244 = vmatprep.subr.bf16.mxu0 0
      %8245 = vmatpush1.bf16.msra.mxu0 0
      %8246 = vmatprep.subr.bf16.mxu0 0
      %8247 = vmatpush1.bf16.msra.mxu0 0
      %8248 = vmatprep.subr.bf16.mxu0 0
      %8249 = vmatpush1.bf16.msra.mxu0 0
      %8250 = vmatprep.subr.bf16.mxu0 0
      %8251 = vmatpush1.bf16.msra.mxu0 0
      %8252 = vmatprep.subr.bf16.mxu0 0
      %8253 = vmatpush1.bf16.msra.mxu0 0
      %8254 = vmatprep.subr.bf16.mxu0 0
      %8255 = vmatpush1.bf16.msra.mxu0 0
      %8256 = vmatprep.subr.bf16.mxu0 0
      %8257 = vmatpush1.bf16.msra.mxu0 0
      %8258 = vmatprep.subr.bf16.mxu0 0
      %8259 = vmatpush1.bf16.msra.mxu0 0
      %8260 = vmatprep.subr.bf16.mxu0 0
      %8261 = vmatpush1.bf16.msra.mxu0 0
      %8262 = vmatprep.subr.bf16.mxu0 0
      %8263 = vmatpush1.bf16.msra.mxu0 0
      %8264 = vmatprep.subr.bf16.mxu0 0
      %8265 = vmatpush1.bf16.msra.mxu0 0
      %8266 = vmatprep.mubr.bf16.mxu0 0
      %8267 = vmatmul.mubr.bf16.gmra.mrb[0].mxu0 %v8229
      %v8268 = vpop.f32.mrb[0].mxu0
      %v8269 = vadd.f32 0.0, %v8268
      %v8270 = vpop.f32.mrb[0].mxu0
      %v8271 = vpop.f32.mrb[0].mxu0
      %v8272 = vpop.f32.mrb[0].mxu0
      %8273 = vdwg.mxu0
      %8274 = vrot.lane.b32.xlu0 %v1291, 104
      %v8275 = vpop.permute.xlu0 %8274
      %v8277 = vsel %vm1294, %v7647, 0
      %v8280 = vsel %vm2226, %v8275, 0
      %8282 = vmatprep.subr.bf16.mxu0 0
      %8283 = vmatpush1.bf16.msra.mxu0 %v8280
      %8284 = vmatprep.subr.bf16.mxu0 0
      %8285 = vmatpush1.bf16.msra.mxu0 0
      %8286 = vmatprep.subr.bf16.mxu0 0
      %8287 = vmatpush1.bf16.msra.mxu0 0
      %8288 = vmatprep.subr.bf16.mxu0 0
      %8289 = vmatpush1.bf16.msra.mxu0 0
      %8290 = vmatprep.subr.bf16.mxu0 0
      %8291 = vmatpush1.bf16.msra.mxu0 0
      %8292 = vmatprep.subr.bf16.mxu0 0
      %8293 = vmatpush1.bf16.msra.mxu0 0
      %8294 = vmatprep.subr.bf16.mxu0 0
      %8295 = vmatpush1.bf16.msra.mxu0 0
      %8296 = vmatprep.subr.bf16.mxu0 0
      %8297 = vmatpush1.bf16.msra.mxu0 0
      %8298 = vmatprep.subr.bf16.mxu0 0
      %8299 = vmatpush1.bf16.msra.mxu0 0
      %8300 = vmatprep.subr.bf16.mxu0 0
      %8301 = vmatpush1.bf16.msra.mxu0 0
      %8302 = vmatprep.subr.bf16.mxu0 0
      %8303 = vmatpush1.bf16.msra.mxu0 0
      %8304 = vmatprep.subr.bf16.mxu0 0
      %8305 = vmatpush1.bf16.msra.mxu0 0
      %8306 = vmatprep.subr.bf16.mxu0 0
      %8307 = vmatpush1.bf16.msra.mxu0 0
      %8308 = vmatprep.subr.bf16.mxu0 0
      %8309 = vmatpush1.bf16.msra.mxu0 0
      %8310 = vmatprep.subr.bf16.mxu0 0
      %8311 = vmatpush1.bf16.msra.mxu0 0
      %8312 = vmatprep.subr.bf16.mxu0 0
      %8313 = vmatpush1.bf16.msra.mxu0 0
      %8314 = vmatprep.mubr.bf16.mxu0 0
      %8315 = vmatmul.mubr.bf16.gmra.mrb[0].mxu0 %v8277
      %v8316 = vpop.f32.mrb[0].mxu0
      %v8317 = vadd.f32 0.0, %v8316
      %v8318 = vpop.f32.mrb[0].mxu0
      %v8319 = vpop.f32.mrb[0].mxu0
      %v8320 = vpop.f32.mrb[0].mxu0
      %8321 = vdwg.mxu0
      %8322 = vrot.lane.b32.xlu0 %v1292, 104
      %v8323 = vpop.permute.xlu0 %8322
      %v8325 = vsel %vm1294, %v7648, 0
      %v8328 = vsel %vm2226, %v8323, 0
      %8330 = vmatprep.subr.bf16.mxu0 0
      %8331 = vmatpush1.bf16.msra.mxu0 %v8328
      %8332 = vmatprep.subr.bf16.mxu0 0
      %8333 = vmatpush1.bf16.msra.mxu0 0
      %8334 = vmatprep.subr.bf16.mxu0 0
      %8335 = vmatpush1.bf16.msra.mxu0 0
      %8336 = vmatprep.subr.bf16.mxu0 0
      %8337 = vmatpush1.bf16.msra.mxu0 0
      %8338 = vmatprep.subr.bf16.mxu0 0
      %8339 = vmatpush1.bf16.msra.mxu0 0
      %8340 = vmatprep.subr.bf16.mxu0 0
      %8341 = vmatpush1.bf16.msra.mxu0 0
      %8342 = vmatprep.subr.bf16.mxu0 0
      %8343 = vmatpush1.bf16.msra.mxu0 0
      %8344 = vmatprep.subr.bf16.mxu0 0
      %8345 = vmatpush1.bf16.msra.mxu0 0
      %8346 = vmatprep.subr.bf16.mxu0 0
      %8347 = vmatpush1.bf16.msra.mxu0 0
      %8348 = vmatprep.subr.bf16.mxu0 0
      %8349 = vmatpush1.bf16.msra.mxu0 0
      %8350 = vmatprep.subr.bf16.mxu0 0
      %8351 = vmatpush1.bf16.msra.mxu0 0
      %8352 = vmatprep.subr.bf16.mxu0 0
      %8353 = vmatpush1.bf16.msra.mxu0 0
      %8354 = vmatprep.subr.bf16.mxu0 0
      %8355 = vmatpush1.bf16.msra.mxu0 0
      %8356 = vmatprep.subr.bf16.mxu0 0
      %8357 = vmatpush1.bf16.msra.mxu0 0
      %8358 = vmatprep.subr.bf16.mxu0 0
      %8359 = vmatpush1.bf16.msra.mxu0 0
      %8360 = vmatprep.subr.bf16.mxu0 0
      %8361 = vmatpush1.bf16.msra.mxu0 0
      %8362 = vmatprep.mubr.bf16.mxu0 0
      %8363 = vmatmul.mubr.bf16.gmra.mrb[0].mxu0 %v8325
      %v8364 = vpop.f32.mrb[0].mxu0
      %v8365 = vadd.f32 0.0, %v8364
      %v8366 = vpop.f32.mrb[0].mxu0
      %v8367 = vpop.f32.mrb[0].mxu0
      %v8368 = vpop.f32.mrb[0].mxu0
      %8369 = vdwg.mxu0
      %8370 = vrot.lane.b32.xlu0 %v1293, 104
      %v8371 = vpop.permute.xlu0 %8370
      %v8373 = vsel %vm1294, %v7649, 0
      %v8376 = vsel %vm2226, %v8371, 0
      %8378 = vmatprep.subr.bf16.mxu0 0
      %8379 = vmatpush1.bf16.msra.mxu0 %v8376
      %8380 = vmatprep.subr.bf16.mxu0 0
      %8381 = vmatpush1.bf16.msra.mxu0 0
      %8382 = vmatprep.subr.bf16.mxu0 0
      %8383 = vmatpush1.bf16.msra.mxu0 0
      %8384 = vmatprep.subr.bf16.mxu0 0
      %8385 = vmatpush1.bf16.msra.mxu0 0
      %8386 = vmatprep.subr.bf16.mxu0 0
      %8387 = vmatpush1.bf16.msra.mxu0 0
      %8388 = vmatprep.subr.bf16.mxu0 0
      %8389 = vmatpush1.bf16.msra.mxu0 0
      %8390 = vmatprep.subr.bf16.mxu0 0
      %8391 = vmatpush1.bf16.msra.mxu0 0
      %8392 = vmatprep.subr.bf16.mxu0 0
      %8393 = vmatpush1.bf16.msra.mxu0 0
      %8394 = vmatprep.subr.bf16.mxu0 0
      %8395 = vmatpush1.bf16.msra.mxu0 0
      %8396 = vmatprep.subr.bf16.mxu0 0
      %8397 = vmatpush1.bf16.msra.mxu0 0
      %8398 = vmatprep.subr.bf16.mxu0 0
      %8399 = vmatpush1.bf16.msra.mxu0 0
      %8400 = vmatprep.subr.bf16.mxu0 0
      %8401 = vmatpush1.bf16.msra.mxu0 0
      %8402 = vmatprep.subr.bf16.mxu0 0
      %8403 = vmatpush1.bf16.msra.mxu0 0
      %8404 = vmatprep.subr.bf16.mxu0 0
      %8405 = vmatpush1.bf16.msra.mxu0 0
      %8406 = vmatprep.subr.bf16.mxu0 0
      %8407 = vmatpush1.bf16.msra.mxu0 0
      %8408 = vmatprep.subr.bf16.mxu0 0
      %8409 = vmatpush1.bf16.msra.mxu0 0
      %8410 = vmatprep.mubr.bf16.mxu0 0
      %8411 = vmatmul.mubr.bf16.gmra.mrb[0].mxu0 %v8373
      %v8412 = vpop.f32.mrb[0].mxu0
      %v8413 = vadd.f32 0.0, %v8412
      %v8414 = vpop.f32.mrb[0].mxu0
      %v8415 = vpop.f32.mrb[0].mxu0
      %v8416 = vpop.f32.mrb[0].mxu0
      %8417 = vdwg.mxu0
      %8434 = vrot.lane.b32.xlu0 %v7693, 24
      %v8435 = vpop.permute.xlu0 %8434
      %8436 = vrot.lane.b32.xlu0 %v7741, 24
      %v8437 = vpop.permute.xlu0 %8436
      %8438 = vrot.lane.b32.xlu0 %v7789, 24
      %v8439 = vpop.permute.xlu0 %8438
      %8440 = vrot.lane.b32.xlu0 %v7837, 24
      %v8441 = vpop.permute.xlu0 %8440
      %8442 = vrot.lane.b32.xlu0 %v7885, 24
      %v8443 = vpop.permute.xlu0 %8442
      %8444 = vrot.lane.b32.xlu0 %v7933, 24
      %v8445 = vpop.permute.xlu0 %8444
      %8446 = vrot.lane.b32.xlu0 %v7981, 24
      %v8447 = vpop.permute.xlu0 %8446
      %8448 = vrot.lane.b32.xlu0 %v8029, 24
      %v8449 = vpop.permute.xlu0 %8448
      %8450 = vrot.lane.b32.xlu0 %v8077, 24
      %v8451 = vpop.permute.xlu0 %8450
      %8452 = vrot.lane.b32.xlu0 %v8125, 24
      %v8453 = vpop.permute.xlu0 %8452
      %8454 = vrot.lane.b32.xlu0 %v8173, 24
      %v8455 = vpop.permute.xlu0 %8454
      %8456 = vrot.lane.b32.xlu0 %v8221, 24
      %v8457 = vpop.permute.xlu0 %8456
      %8458 = vrot.lane.b32.xlu0 %v8269, 24
      %v8459 = vpop.permute.xlu0 %8458
      %8460 = vrot.lane.b32.xlu0 %v8317, 24
      %v8461 = vpop.permute.xlu0 %8460
      %8462 = vrot.lane.b32.xlu0 %v8365, 24
      %v8463 = vpop.permute.xlu0 %8462
      %8464 = vrot.lane.b32.xlu0 %v8413, 24
      %v8465 = vpop.permute.xlu0 %8464
      %vm8482 = vcmask 261312
      %8483 = vst.msk [vmem:[#allocation2] sm:$0xff] %vm8482, %v8435
      %8484 = vst.msk [vmem:[#allocation2 + $0x8] sm:$0xff] %vm8482, %v8437
      %8485 = vst.msk [vmem:[#allocation2 + $0x10] sm:$0xff] %vm8482, %v8439
      %8486 = vst.msk [vmem:[#allocation2 + $0x18] sm:$0xff] %vm8482, %v8441
      %8487 = vst.msk [vmem:[#allocation2 + $0x20] sm:$0xff] %vm8482, %v8443
      %8488 = vst.msk [vmem:[#allocation2 + $0x28] sm:$0xff] %vm8482, %v8445
      %8489 = vst.msk [vmem:[#allocation2 + $0x30] sm:$0xff] %vm8482, %v8447
      %8490 = vst.msk [vmem:[#allocation2 + $0x38] sm:$0xff] %vm8482, %v8449
      %8491 = vst.msk [vmem:[#allocation2 + $0x40] sm:$0xff] %vm8482, %v8451
      %8492 = vst.msk [vmem:[#allocation2 + $0x48] sm:$0xff] %vm8482, %v8453
      %8493 = vst.msk [vmem:[#allocation2 + $0x50] sm:$0xff] %vm8482, %v8455
      %8494 = vst.msk [vmem:[#allocation2 + $0x58] sm:$0xff] %vm8482, %v8457
      %8495 = vst.msk [vmem:[#allocation2 + $0x60] sm:$0xff] %vm8482, %v8459
      %8496 = vst.msk [vmem:[#allocation2 + $0x68] sm:$0xff] %vm8482, %v8461
      %8497 = vst.msk [vmem:[#allocation2 + $0x70] sm:$0xff] %vm8482, %v8463
      %8498 = vst.msk [vmem:[#allocation2 + $0x78] sm:$0xff] %vm8482, %v8465
      %v8499 = vld [vmem:[#allocation2] sm:$0xff]
      %v8500 = vld [vmem:[#allocation2 + $0x8] sm:$0xff]
      %v8501 = vld [vmem:[#allocation2 + $0x10] sm:$0xff]
      %v8502 = vld [vmem:[#allocation2 + $0x18] sm:$0xff]
      %v8503 = vld [vmem:[#allocation2 + $0x20] sm:$0xff]
      %v8504 = vld [vmem:[#allocation2 + $0x28] sm:$0xff]
      %v8505 = vld [vmem:[#allocation2 + $0x30] sm:$0xff]
      %v8506 = vld [vmem:[#allocation2 + $0x38] sm:$0xff]
      %v8507 = vld [vmem:[#allocation2 + $0x40] sm:$0xff]
      %v8508 = vld [vmem:[#allocation2 + $0x48] sm:$0xff]
      %v8509 = vld [vmem:[#allocation2 + $0x50] sm:$0xff]
      %v8510 = vld [vmem:[#allocation2 + $0x58] sm:$0xff]
      %v8511 = vld [vmem:[#allocation2 + $0x60] sm:$0xff]
      %v8512 = vld [vmem:[#allocation2 + $0x68] sm:$0xff]
      %v8513 = vld [vmem:[#allocation2 + $0x70] sm:$0xff]
      %v8514 = vld [vmem:[#allocation2 + $0x78] sm:$0xff]
      %v8515 = vpack.c.bf16 %v8500, %v8499
      %v8516 = vpack.c.bf16 %v8502, %v8501
      %v8517 = vpack.c.bf16 %v8504, %v8503
      %v8518 = vpack.c.bf16 %v8506, %v8505
      %v8519 = vpack.c.bf16 %v8508, %v8507
      %v8520 = vpack.c.bf16 %v8510, %v8509
      %v8521 = vpack.c.bf16 %v8512, %v8511
      %v8522 = vpack.c.bf16 %v8514, %v8513
      %v8523 = vld [vmem:[%s6] sm:$0xf]
      %v8524 = vld [vmem:[%s6 + $0x4] sm:$0xf]
      %v8525 = vld [vmem:[%s6 + $0x8] sm:$0xf]
      %v8526 = vld [vmem:[%s6 + $0xc] sm:$0xf]
      %v8527 = vld [vmem:[%s7] sm:$0x1]
      %v8529 = vlaneseq
      %v8530 = vshrl.u32 %v8529, 7
      %v8531 = vsub.s32 0, %v8530
      %v8532 = vrot.slane %v8527, %v8531
      %v8538 = vunpack.c.l.b16 %v8523
      %v8539 = vunpack.c.l.b16 %v8524
      %v8540 = vunpack.c.l.b16 %v8525
      %v8541 = vunpack.c.l.b16 %v8526
      %v8542 = vpack.c.b16 %v8539, %v8538
      %v8543 = vpack.c.b16 %v8541, %v8540
      %v8547 = vsel %vm674, %v8515, 0
      %v8550 = vsel %vm674, %v8516, 0
      %v8553 = vsel %vm674, %v8517, 0
      %v8556 = vsel %vm674, %v8518, 0
      %v8559 = vsel %vm674, %v8519, 0
      %v8562 = vsel %vm674, %v8520, 0
      %v8565 = vsel %vm674, %v8521, 0
      %v8568 = vsel %vm674, %v8522, 0
      %8570 = vmatprep.subr.bf16.mxu0 0
      %8571 = vmatpush1.bf16.msra.mxu0 %v8542
      %8572 = vmatprep.subr.bf16.mxu0 0
      %8573 = vmatpush1.bf16.msra.mxu0 %v8543
      %8574 = vmatprep.subr.bf16.mxu0 0
      %8575 = vmatpush1.bf16.msra.mxu0 0
      %8576 = vmatprep.subr.bf16.mxu0 0
      %8577 = vmatpush1.bf16.msra.mxu0 0
      %8578 = vmatprep.subr.bf16.mxu0 0
      %8579 = vmatpush1.bf16.msra.mxu0 0
      %8580 = vmatprep.subr.bf16.mxu0 0
      %8581 = vmatpush1.bf16.msra.mxu0 0
      %8582 = vmatprep.subr.bf16.mxu0 0
      %8583 = vmatpush1.bf16.msra.mxu0 0
      %8584 = vmatprep.subr.bf16.mxu0 0
      %8585 = vmatpush1.bf16.msra.mxu0 0
      %8586 = vmatprep.subr.bf16.mxu0 0
      %8587 = vmatpush1.bf16.msra.mxu0 0
      %8588 = vmatprep.subr.bf16.mxu0 0
      %8589 = vmatpush1.bf16.msra.mxu0 0
      %8590 = vmatprep.subr.bf16.mxu0 0
      %8591 = vmatpush1.bf16.msra.mxu0 0
      %8592 = vmatprep.subr.bf16.mxu0 0
      %8593 = vmatpush1.bf16.msra.mxu0 0
      %8594 = vmatprep.subr.bf16.mxu0 0
      %8595 = vmatpush1.bf16.msra.mxu0 0
      %8596 = vmatprep.subr.bf16.mxu0 0
      %8597 = vmatpush1.bf16.msra.mxu0 0
      %8598 = vmatprep.subr.bf16.mxu0 0
      %8599 = vmatpush1.bf16.msra.mxu0 0
      %8600 = vmatprep.subr.bf16.mxu0 0
      %8601 = vmatpush1.bf16.msra.mxu0 0
      %8602 = vmatprep.mubr.bf16.mxu0 0
      %8603 = vmatmul.mubr.bf16.gmra.mrb[0].mxu0 %v8547
      %v8604 = vpop.f32.mrb[0].mxu0
      %v8605 = vadd.f32 %v8532, %v8604
      %v8606 = vpop.f32.mrb[0].mxu0
      %v8607 = vpop.f32.mrb[0].mxu0
      %v8608 = vadd.f32 %v8532, %v8607
      %v8609 = vpop.f32.mrb[0].mxu0
      %8610 = vmatprep.mubr.bf16.mxu0 0
      %8611 = vmatmul.mubr.bf16.gmra.mrb[0].mxu0 %v8550
      %v8612 = vpop.f32.mrb[0].mxu0
      %v8613 = vadd.f32 %v8532, %v8612
      %v8614 = vpop.f32.mrb[0].mxu0
      %v8615 = vpop.f32.mrb[0].mxu0
      %v8616 = vadd.f32 %v8532, %v8615
      %v8617 = vpop.f32.mrb[0].mxu0
      %8618 = vmatprep.mubr.bf16.mxu0 0
      %8619 = vmatmul.mubr.bf16.gmra.mrb[0].mxu0 %v8553
      %v8620 = vpop.f32.mrb[0].mxu0
      %v8621 = vadd.f32 %v8532, %v8620
      %v8622 = vpop.f32.mrb[0].mxu0
      %v8623 = vpop.f32.mrb[0].mxu0
      %v8624 = vadd.f32 %v8532, %v8623
      %v8625 = vpop.f32.mrb[0].mxu0
      %8626 = vmatprep.mubr.bf16.mxu0 0
      %8627 = vmatmul.mubr.bf16.gmra.mrb[0].mxu0 %v8556
      %v8628 = vpop.f32.mrb[0].mxu0
      %v8629 = vadd.f32 %v8532, %v8628
      %v8630 = vpop.f32.mrb[0].mxu0
      %v8631 = vpop.f32.mrb[0].mxu0
      %v8632 = vadd.f32 %v8532, %v8631
      %v8633 = vpop.f32.mrb[0].mxu0
      %8634 = vmatprep.mubr.bf16.mxu0 0
      %8635 = vmatmul.mubr.bf16.gmra.mrb[0].mxu0 %v8559
      %v8636 = vpop.f32.mrb[0].mxu0
      %v8637 = vadd.f32 %v8532, %v8636
      %v8638 = vpop.f32.mrb[0].mxu0
      %v8639 = vpop.f32.mrb[0].mxu0
      %v8640 = vadd.f32 %v8532, %v8639
      %v8641 = vpop.f32.mrb[0].mxu0
      %8642 = vmatprep.mubr.bf16.mxu0 0
      %8643 = vmatmul.mubr.bf16.gmra.mrb[0].mxu0 %v8562
      %v8644 = vpop.f32.mrb[0].mxu0
      %v8645 = vadd.f32 %v8532, %v8644
      %v8646 = vpop.f32.mrb[0].mxu0
      %v8647 = vpop.f32.mrb[0].mxu0
      %v8648 = vadd.f32 %v8532, %v8647
      %v8649 = vpop.f32.mrb[0].mxu0
      %8650 = vmatprep.mubr.bf16.mxu0 0
      %8651 = vmatmul.mubr.bf16.gmra.mrb[0].mxu0 %v8565
      %v8652 = vpop.f32.mrb[0].mxu0
      %v8653 = vadd.f32 %v8532, %v8652
      %v8654 = vpop.f32.mrb[0].mxu0
      %v8655 = vpop.f32.mrb[0].mxu0
      %v8656 = vadd.f32 %v8532, %v8655
      %v8657 = vpop.f32.mrb[0].mxu0
      %8658 = vmatprep.mubr.bf16.mxu0 0
      %8659 = vmatmul.mubr.bf16.gmra.mrb[0].mxu0 %v8568
      %v8660 = vpop.f32.mrb[0].mxu0
      %v8661 = vadd.f32 %v8532, %v8660
      %v8662 = vpop.f32.mrb[0].mxu0
      %v8663 = vpop.f32.mrb[0].mxu0
      %v8664 = vadd.f32 %v8532, %v8663
      %v8665 = vpop.f32.mrb[0].mxu0
      %8666 = vdwg.mxu0
      %v8667 = vunpack.c.l.bf16 %v570
      %v8668 = vunpack.c.l.bf16 %v571
      %v8669 = vunpack.c.l.bf16 %v572
      %v8670 = vunpack.c.l.bf16 %v573
      %v8671 = vunpack.c.l.bf16 %v574
      %v8672 = vunpack.c.l.bf16 %v575
      %v8673 = vunpack.c.l.bf16 %v576
      %v8674 = vunpack.c.l.bf16 %v577
      %v8675 = vunpack.c.l.bf16 %v578
      %v8676 = vunpack.c.l.bf16 %v579
      %v8677 = vunpack.c.l.bf16 %v580
      %v8678 = vunpack.c.l.bf16 %v581
      %v8679 = vunpack.c.l.bf16 %v582
      %v8680 = vunpack.c.l.bf16 %v583
      %v8681 = vunpack.c.l.bf16 %v584
      %v8682 = vunpack.c.l.bf16 %v585
      %v8683 = vadd.f32 %v8605, %v8667
      %v8684 = vadd.f32 %v8608, %v8668
      %v8685 = vadd.f32 %v8613, %v8669
      %v8686 = vadd.f32 %v8616, %v8670
      %v8687 = vadd.f32 %v8621, %v8671
      %v8688 = vadd.f32 %v8624, %v8672
      %v8689 = vadd.f32 %v8629, %v8673
      %v8690 = vadd.f32 %v8632, %v8674
      %v8691 = vadd.f32 %v8637, %v8675
      %v8692 = vadd.f32 %v8640, %v8676
      %v8693 = vadd.f32 %v8645, %v8677
      %v8694 = vadd.f32 %v8648, %v8678
      %v8695 = vadd.f32 %v8653, %v8679
      %v8696 = vadd.f32 %v8656, %v8680
      %v8697 = vadd.f32 %v8661, %v8681
      %v8698 = vadd.f32 %v8664, %v8682
      %v8699 = vld [vmem:[%s8] sm:$0x1]
      %v8700 = vld [vmem:[%s9] sm:$0x1]
      %v8701 = vsel %vm674, %v8683, 0.0
      %8702 = vadd.xlane.f32.xlu0 %v8701
      %v8703 = vpop.xlane.xlu0 %8702
      %v8704 = vsel %vm674, %v8684, 0.0
      %8705 = vadd.xlane.f32.xlu0 %v8704
      %v8706 = vpop.xlane.xlu0 %8705
      %v8707 = vsel %vm674, %v8685, 0.0
      %8708 = vadd.xlane.f32.xlu0 %v8707
      %v8709 = vpop.xlane.xlu0 %8708
      %v8710 = vsel %vm674, %v8686, 0.0
      %8711 = vadd.xlane.f32.xlu0 %v8710
      %v8712 = vpop.xlane.xlu0 %8711
      %v8713 = vsel %vm674, %v8687, 0.0
      %8714 = vadd.xlane.f32.xlu0 %v8713
      %v8715 = vpop.xlane.xlu0 %8714
      %v8716 = vsel %vm674, %v8688, 0.0
      %8717 = vadd.xlane.f32.xlu0 %v8716
      %v8718 = vpop.xlane.xlu0 %8717
      %v8719 = vsel %vm674, %v8689, 0.0
      %8720 = vadd.xlane.f32.xlu0 %v8719
      %v8721 = vpop.xlane.xlu0 %8720
      %v8722 = vsel %vm674, %v8690, 0.0
      %8723 = vadd.xlane.f32.xlu0 %v8722
      %v8724 = vpop.xlane.xlu0 %8723
      %v8725 = vsel %vm674, %v8691, 0.0
      %8726 = vadd.xlane.f32.xlu0 %v8725
      %v8727 = vpop.xlane.xlu0 %8726
      %v8728 = vsel %vm674, %v8692, 0.0
      %8729 = vadd.xlane.f32.xlu0 %v8728
      %v8730 = vpop.xlane.xlu0 %8729
      %v8731 = vsel %vm674, %v8693, 0.0
      %8732 = vadd.xlane.f32.xlu0 %v8731
      %v8733 = vpop.xlane.xlu0 %8732
      %v8734 = vsel %vm674, %v8694, 0.0
      %8735 = vadd.xlane.f32.xlu0 %v8734
      %v8736 = vpop.xlane.xlu0 %8735
      %v8737 = vsel %vm674, %v8695, 0.0
      %8738 = vadd.xlane.f32.xlu0 %v8737
      %v8739 = vpop.xlane.xlu0 %8738
      %v8740 = vsel %vm674, %v8696, 0.0
      %8741 = vadd.xlane.f32.xlu0 %v8740
      %v8742 = vpop.xlane.xlu0 %8741
      %v8743 = vsel %vm674, %v8697, 0.0
      %8744 = vadd.xlane.f32.xlu0 %v8743
      %v8745 = vpop.xlane.xlu0 %8744
      %v8746 = vsel %vm674, %v8698, 0.0
      %8747 = vadd.xlane.f32.xlu0 %v8746
      %v8748 = vpop.xlane.xlu0 %8747
      %v8749 = vrcp.pop 32.0
      %v8750 = vmul.f32 %v8703, %v8749
      %v8751 = vmul.f32 %v8706, %v8749
      %v8752 = vmul.f32 %v8709, %v8749
      %v8753 = vmul.f32 %v8712, %v8749
      %v8754 = vmul.f32 %v8715, %v8749
      %v8755 = vmul.f32 %v8718, %v8749
      %v8756 = vmul.f32 %v8721, %v8749
      %v8757 = vmul.f32 %v8724, %v8749
      %v8758 = vmul.f32 %v8727, %v8749
      %v8759 = vmul.f32 %v8730, %v8749
      %v8760 = vmul.f32 %v8733, %v8749
      %v8761 = vmul.f32 %v8736, %v8749
      %v8762 = vmul.f32 %v8739, %v8749
      %v8763 = vmul.f32 %v8742, %v8749
      %v8764 = vmul.f32 %v8745, %v8749
      %v8765 = vmul.f32 %v8748, %v8749
      %v8766 = vsub.f32 %v8683, %v8750
      %v8767 = vsub.f32 %v8684, %v8751
      %v8768 = vsub.f32 %v8685, %v8752
      %v8769 = vsub.f32 %v8686, %v8753
      %v8770 = vsub.f32 %v8687, %v8754
      %v8771 = vsub.f32 %v8688, %v8755
      %v8772 = vsub.f32 %v8689, %v8756
      %v8773 = vsub.f32 %v8690, %v8757
      %v8774 = vsub.f32 %v8691, %v8758
      %v8775 = vsub.f32 %v8692, %v8759
      %v8776 = vsub.f32 %v8693, %v8760
      %v8777 = vsub.f32 %v8694, %v8761
      %v8778 = vsub.f32 %v8695, %v8762
      %v8779 = vsub.f32 %v8696, %v8763
      %v8780 = vsub.f32 %v8697, %v8764
      %v8781 = vsub.f32 %v8698, %v8765
      %v8782 = vmul.f32 %v8766, %v8766
      %v8783 = vmul.f32 %v8767, %v8767
      %v8784 = vmul.f32 %v8768, %v8768
      %v8785 = vmul.f32 %v8769, %v8769
      %v8786 = vmul.f32 %v8770, %v8770
      %v8787 = vmul.f32 %v8771, %v8771
      %v8788 = vmul.f32 %v8772, %v8772
      %v8789 = vmul.f32 %v8773, %v8773
      %v8790 = vmul.f32 %v8774, %v8774
      %v8791 = vmul.f32 %v8775, %v8775
      %v8792 = vmul.f32 %v8776, %v8776
      %v8793 = vmul.f32 %v8777, %v8777
      %v8794 = vmul.f32 %v8778, %v8778
      %v8795 = vmul.f32 %v8779, %v8779
      %v8796 = vmul.f32 %v8780, %v8780
      %v8797 = vmul.f32 %v8781, %v8781
      %v8798 = vsel %vm674, %v8782, 0.0
      %8799 = vadd.xlane.f32.xlu0 %v8798
      %v8800 = vpop.xlane.xlu0 %8799
      %v8801 = vsel %vm674, %v8783, 0.0
      %8802 = vadd.xlane.f32.xlu0 %v8801
      %v8803 = vpop.xlane.xlu0 %8802
      %v8804 = vsel %vm674, %v8784, 0.0
      %8805 = vadd.xlane.f32.xlu0 %v8804
      %v8806 = vpop.xlane.xlu0 %8805
      %v8807 = vsel %vm674, %v8785, 0.0
      %8808 = vadd.xlane.f32.xlu0 %v8807
      %v8809 = vpop.xlane.xlu0 %8808
      %v8810 = vsel %vm674, %v8786, 0.0
      %8811 = vadd.xlane.f32.xlu0 %v8810
      %v8812 = vpop.xlane.xlu0 %8811
      %v8813 = vsel %vm674, %v8787, 0.0
      %8814 = vadd.xlane.f32.xlu0 %v8813
      %v8815 = vpop.xlane.xlu0 %8814
      %v8816 = vsel %vm674, %v8788, 0.0
      %8817 = vadd.xlane.f32.xlu0 %v8816
      %v8818 = vpop.xlane.xlu0 %8817
      %v8819 = vsel %vm674, %v8789, 0.0
      %8820 = vadd.xlane.f32.xlu0 %v8819
      %v8821 = vpop.xlane.xlu0 %8820
      %v8822 = vsel %vm674, %v8790, 0.0
      %8823 = vadd.xlane.f32.xlu0 %v8822
      %v8824 = vpop.xlane.xlu0 %8823
      %v8825 = vsel %vm674, %v8791, 0.0
      %8826 = vadd.xlane.f32.xlu0 %v8825
      %v8827 = vpop.xlane.xlu0 %8826
      %v8828 = vsel %vm674, %v8792, 0.0
      %8829 = vadd.xlane.f32.xlu0 %v8828
      %v8830 = vpop.xlane.xlu0 %8829
      %v8831 = vsel %vm674, %v8793, 0.0
      %8832 = vadd.xlane.f32.xlu0 %v8831
      %v8833 = vpop.xlane.xlu0 %8832
      %v8834 = vsel %vm674, %v8794, 0.0
      %8835 = vadd.xlane.f32.xlu0 %v8834
      %v8836 = vpop.xlane.xlu0 %8835
      %v8837 = vsel %vm674, %v8795, 0.0
      %8838 = vadd.xlane.f32.xlu0 %v8837
      %v8839 = vpop.xlane.xlu0 %8838
      %v8840 = vsel %vm674, %v8796, 0.0
      %8841 = vadd.xlane.f32.xlu0 %v8840
      %v8842 = vpop.xlane.xlu0 %8841
      %v8843 = vsel %vm674, %v8797, 0.0
      %8844 = vadd.xlane.f32.xlu0 %v8843
      %v8845 = vpop.xlane.xlu0 %8844
      %v8846 = vmul.f32 %v8800, %v8749
      %v8847 = vmul.f32 %v8803, %v8749
      %v8848 = vmul.f32 %v8806, %v8749
      %v8849 = vmul.f32 %v8809, %v8749
      %v8850 = vmul.f32 %v8812, %v8749
      %v8851 = vmul.f32 %v8815, %v8749
      %v8852 = vmul.f32 %v8818, %v8749
      %v8853 = vmul.f32 %v8821, %v8749
      %v8854 = vmul.f32 %v8824, %v8749
      %v8855 = vmul.f32 %v8827, %v8749
      %v8856 = vmul.f32 %v8830, %v8749
      %v8857 = vmul.f32 %v8833, %v8749
      %v8858 = vmul.f32 %v8836, %v8749
      %v8859 = vmul.f32 %v8839, %v8749
      %v8860 = vmul.f32 %v8842, %v8749
      %v8861 = vmul.f32 %v8845, %v8749
      %v8862 = vadd.f32 %v8846, 1e-05
      %v8863 = vadd.f32 %v8847, 1e-05
      %v8864 = vadd.f32 %v8848, 1e-05
      %v8865 = vadd.f32 %v8849, 1e-05
      %v8866 = vadd.f32 %v8850, 1e-05
      %v8867 = vadd.f32 %v8851, 1e-05
      %v8868 = vadd.f32 %v8852, 1e-05
      %v8869 = vadd.f32 %v8853, 1e-05
      %v8870 = vadd.f32 %v8854, 1e-05
      %v8871 = vadd.f32 %v8855, 1e-05
      %v8872 = vadd.f32 %v8856, 1e-05
      %v8873 = vadd.f32 %v8857, 1e-05
      %v8874 = vadd.f32 %v8858, 1e-05
      %v8875 = vadd.f32 %v8859, 1e-05
      %v8876 = vadd.f32 %v8860, 1e-05
      %v8877 = vadd.f32 %v8861, 1e-05
      %v8878 = vrsqrt.pop %v8862
      %v8879 = vrsqrt.pop %v8863
      %v8880 = vrsqrt.pop %v8864
      %v8881 = vrsqrt.pop %v8865
      %v8882 = vrsqrt.pop %v8866
      %v8883 = vrsqrt.pop %v8867
      %v8884 = vrsqrt.pop %v8868
      %v8885 = vrsqrt.pop %v8869
      %v8886 = vrsqrt.pop %v8870
      %v8887 = vrsqrt.pop %v8871
      %v8888 = vrsqrt.pop %v8872
      %v8889 = vrsqrt.pop %v8873
      %v8890 = vrsqrt.pop %v8874
      %v8891 = vrsqrt.pop %v8875
      %v8892 = vrsqrt.pop %v8876
      %v8893 = vrsqrt.pop %v8877
      %v8894 = vmul.f32 %v8766, %v8878
      %v8895 = vmul.f32 %v8767, %v8879
      %v8896 = vmul.f32 %v8768, %v8880
      %v8897 = vmul.f32 %v8769, %v8881
      %v8898 = vmul.f32 %v8770, %v8882
      %v8899 = vmul.f32 %v8771, %v8883
      %v8900 = vmul.f32 %v8772, %v8884
      %v8901 = vmul.f32 %v8773, %v8885
      %v8902 = vmul.f32 %v8774, %v8886
      %v8903 = vmul.f32 %v8775, %v8887
      %v8904 = vmul.f32 %v8776, %v8888
      %v8905 = vmul.f32 %v8777, %v8889
      %v8906 = vmul.f32 %v8778, %v8890
      %v8907 = vmul.f32 %v8779, %v8891
      %v8908 = vmul.f32 %v8780, %v8892
      %v8909 = vmul.f32 %v8781, %v8893
      %v8911 = vlaneseq
      %v8912 = vshrl.u32 %v8911, 7
      %v8913 = vsub.s32 0, %v8912
      %v8914 = vrot.slane %v8699, %v8913
      %v8916 = vmul.f32 %v8894, %v8914
      %v8917 = vmul.f32 %v8895, %v8914
      %v8918 = vmul.f32 %v8896, %v8914
      %v8919 = vmul.f32 %v8897, %v8914
      %v8920 = vmul.f32 %v8898, %v8914
      %v8921 = vmul.f32 %v8899, %v8914
      %v8922 = vmul.f32 %v8900, %v8914
      %v8923 = vmul.f32 %v8901, %v8914
      %v8924 = vmul.f32 %v8902, %v8914
      %v8925 = vmul.f32 %v8903, %v8914
      %v8926 = vmul.f32 %v8904, %v8914
      %v8927 = vmul.f32 %v8905, %v8914
      %v8928 = vmul.f32 %v8906, %v8914
      %v8929 = vmul.f32 %v8907, %v8914
      %v8930 = vmul.f32 %v8908, %v8914
      %v8931 = vmul.f32 %v8909, %v8914
      %v8933 = vlaneseq
      %v8934 = vshrl.u32 %v8933, 7
      %v8935 = vsub.s32 0, %v8934
      %v8936 = vrot.slane %v8700, %v8935
      %v8938 = vadd.f32 %v8916, %v8936
      %v8939 = vadd.f32 %v8917, %v8936
      %v8940 = vadd.f32 %v8918, %v8936
      %v8941 = vadd.f32 %v8919, %v8936
      %v8942 = vadd.f32 %v8920, %v8936
      %v8943 = vadd.f32 %v8921, %v8936
      %v8944 = vadd.f32 %v8922, %v8936
      %v8945 = vadd.f32 %v8923, %v8936
      %v8946 = vadd.f32 %v8924, %v8936
      %v8947 = vadd.f32 %v8925, %v8936
      %v8948 = vadd.f32 %v8926, %v8936
      %v8949 = vadd.f32 %v8927, %v8936
      %v8950 = vadd.f32 %v8928, %v8936
      %v8951 = vadd.f32 %v8929, %v8936
      %v8952 = vadd.f32 %v8930, %v8936
      %v8953 = vadd.f32 %v8931, %v8936
      %v8954 = vpack.c.bf16 %v8939, %v8938
      %v8955 = vpack.c.bf16 %v8941, %v8940
      %v8956 = vpack.c.bf16 %v8943, %v8942
      %v8957 = vpack.c.bf16 %v8945, %v8944
      %v8958 = vpack.c.bf16 %v8947, %v8946
      %v8959 = vpack.c.bf16 %v8949, %v8948
      %v8960 = vpack.c.bf16 %v8951, %v8950
      %v8961 = vpack.c.bf16 %v8953, %v8952
      %v8962 = vld [vmem:[%s10] sm:$0xf]
      %v8963 = vld [vmem:[%s10 + $0x4] sm:$0xf]
      %v8964 = vld [vmem:[%s10 + $0x8] sm:$0xf]
      %v8965 = vld [vmem:[%s10 + $0xc] sm:$0xf]
      %v8966 = vld [vmem:[%s11] sm:$0x1]
      %v8968 = vlaneseq
      %v8969 = vshrl.u32 %v8968, 7
      %v8970 = vsub.s32 0, %v8969
      %v8971 = vrot.slane %v8966, %v8970
      %v8977 = vunpack.c.l.b16 %v8962
      %v8978 = vunpack.c.l.b16 %v8963
      %v8979 = vunpack.c.l.b16 %v8964
      %v8980 = vunpack.c.l.b16 %v8965
      %v8981 = vpack.c.b16 %v8978, %v8977
      %v8982 = vpack.c.b16 %v8980, %v8979
      %v8986 = vsel %vm674, %v8954, 0
      %v8989 = vsel %vm674, %v8955, 0
      %v8992 = vsel %vm674, %v8956, 0
      %v8995 = vsel %vm674, %v8957, 0
      %v8998 = vsel %vm674, %v8958, 0
      %v9001 = vsel %vm674, %v8959, 0
      %v9004 = vsel %vm674, %v8960, 0
      %v9007 = vsel %vm674, %v8961, 0
      %9009 = vmatprep.subr.bf16.mxu0 0
      %9010 = vmatpush1.bf16.msra.mxu0 %v8981
      %9011 = vmatprep.subr.bf16.mxu0 0
      %9012 = vmatpush1.bf16.msra.mxu0 %v8982
      %9013 = vmatprep.subr.bf16.mxu0 0
      %9014 = vmatpush1.bf16.msra.mxu0 0
      %9015 = vmatprep.subr.bf16.mxu0 0
      %9016 = vmatpush1.bf16.msra.mxu0 0
      %9017 = vmatprep.subr.bf16.mxu0 0
      %9018 = vmatpush1.bf16.msra.mxu0 0
      %9019 = vmatprep.subr.bf16.mxu0 0
      %9020 = vmatpush1.bf16.msra.mxu0 0
      %9021 = vmatprep.subr.bf16.mxu0 0
      %9022 = vmatpush1.bf16.msra.mxu0 0
      %9023 = vmatprep.subr.bf16.mxu0 0
      %9024 = vmatpush1.bf16.msra.mxu0 0
      %9025 = vmatprep.subr.bf16.mxu0 0
      %9026 = vmatpush1.bf16.msra.mxu0 0
      %9027 = vmatprep.subr.bf16.mxu0 0
      %9028 = vmatpush1.bf16.msra.mxu0 0
      %9029 = vmatprep.subr.bf16.mxu0 0
      %9030 = vmatpush1.bf16.msra.mxu0 0
      %9031 = vmatprep.subr.bf16.mxu0 0
      %9032 = vmatpush1.bf16.msra.mxu0 0
      %9033 = vmatprep.subr.bf16.mxu0 0
      %9034 = vmatpush1.bf16.msra.mxu0 0
      %9035 = vmatprep.subr.bf16.mxu0 0
      %9036 = vmatpush1.bf16.msra.mxu0 0
      %9037 = vmatprep.subr.bf16.mxu0 0
      %9038 = vmatpush1.bf16.msra.mxu0 0
      %9039 = vmatprep.subr.bf16.mxu0 0
      %9040 = vmatpush1.bf16.msra.mxu0 0
      %9041 = vmatprep.mubr.bf16.mxu0 0
      %9042 = vmatmul.mubr.bf16.gmra.mrb[0].mxu0 %v8986
      %v9043 = vpop.f32.mrb[0].mxu0
      %v9044 = vadd.f32 %v8971, %v9043
      %v9045 = vpop.f32.mrb[0].mxu0
      %v9046 = vpop.f32.mrb[0].mxu0
      %v9047 = vadd.f32 %v8971, %v9046
      %v9048 = vpop.f32.mrb[0].mxu0
      %9049 = vmatprep.mubr.bf16.mxu0 0
      %9050 = vmatmul.mubr.bf16.gmra.mrb[0].mxu0 %v8989
      %v9051 = vpop.f32.mrb[0].mxu0
      %v9052 = vadd.f32 %v8971, %v9051
      %v9053 = vpop.f32.mrb[0].mxu0
      %v9054 = vpop.f32.mrb[0].mxu0
      %v9055 = vadd.f32 %v8971, %v9054
      %v9056 = vpop.f32.mrb[0].mxu0
      %9057 = vmatprep.mubr.bf16.mxu0 0
      %9058 = vmatmul.mubr.bf16.gmra.mrb[0].mxu0 %v8992
      %v9059 = vpop.f32.mrb[0].mxu0
      %v9060 = vadd.f32 %v8971, %v9059
      %v9061 = vpop.f32.mrb[0].mxu0
      %v9062 = vpop.f32.mrb[0].mxu0
      %v9063 = vadd.f32 %v8971, %v9062
      %v9064 = vpop.f32.mrb[0].mxu0
      %9065 = vmatprep.mubr.bf16.mxu0 0
      %9066 = vmatmul.mubr.bf16.gmra.mrb[0].mxu0 %v8995
      %v9067 = vpop.f32.mrb[0].mxu0
      %v9068 = vadd.f32 %v8971, %v9067
      %v9069 = vpop.f32.mrb[0].mxu0
      %v9070 = vpop.f32.mrb[0].mxu0
      %v9071 = vadd.f32 %v8971, %v9070
      %v9072 = vpop.f32.mrb[0].mxu0
      %9073 = vmatprep.mubr.bf16.mxu0 0
      %9074 = vmatmul.mubr.bf16.gmra.mrb[0].mxu0 %v8998
      %v9075 = vpop.f32.mrb[0].mxu0
      %v9076 = vadd.f32 %v8971, %v9075
      %v9077 = vpop.f32.mrb[0].mxu0
      %v9078 = vpop.f32.mrb[0].mxu0
      %v9079 = vadd.f32 %v8971, %v9078
      %v9080 = vpop.f32.mrb[0].mxu0
      %9081 = vmatprep.mubr.bf16.mxu0 0
      %9082 = vmatmul.mubr.bf16.gmra.mrb[0].mxu0 %v9001
      %v9083 = vpop.f32.mrb[0].mxu0
      %v9084 = vadd.f32 %v8971, %v9083
      %v9085 = vpop.f32.mrb[0].mxu0
      %v9086 = vpop.f32.mrb[0].mxu0
      %v9087 = vadd.f32 %v8971, %v9086
      %v9088 = vpop.f32.mrb[0].mxu0
      %9089 = vmatprep.mubr.bf16.mxu0 0
      %9090 = vmatmul.mubr.bf16.gmra.mrb[0].mxu0 %v9004
      %v9091 = vpop.f32.mrb[0].mxu0
      %v9092 = vadd.f32 %v8971, %v9091
      %v9093 = vpop.f32.mrb[0].mxu0
      %v9094 = vpop.f32.mrb[0].mxu0
      %v9095 = vadd.f32 %v8971, %v9094
      %v9096 = vpop.f32.mrb[0].mxu0
      %9097 = vmatprep.mubr.bf16.mxu0 0
      %9098 = vmatmul.mubr.bf16.gmra.mrb[0].mxu0 %v9007
      %v9099 = vpop.f32.mrb[0].mxu0
      %v9100 = vadd.f32 %v8971, %v9099
      %v9101 = vpop.f32.mrb[0].mxu0
      %v9102 = vpop.f32.mrb[0].mxu0
      %v9103 = vadd.f32 %v8971, %v9102
      %v9104 = vpop.f32.mrb[0].mxu0
      %9105 = vdwg.mxu0
      %v9106 = vmax.f32 %v9044, 0.0
      %v9107 = vmax.f32 %v9047, 0.0
      %v9108 = vmax.f32 %v9052, 0.0
      %v9109 = vmax.f32 %v9055, 0.0
      %v9110 = vmax.f32 %v9060, 0.0
      %v9111 = vmax.f32 %v9063, 0.0
      %v9112 = vmax.f32 %v9068, 0.0
      %v9113 = vmax.f32 %v9071, 0.0
      %v9114 = vmax.f32 %v9076, 0.0
      %v9115 = vmax.f32 %v9079, 0.0
      %v9116 = vmax.f32 %v9084, 0.0
      %v9117 = vmax.f32 %v9087, 0.0
      %v9118 = vmax.f32 %v9092, 0.0
      %v9119 = vmax.f32 %v9095, 0.0
      %v9120 = vmax.f32 %v9100, 0.0
      %v9121 = vmax.f32 %v9103, 0.0
      %v9122 = vpack.c.bf16 %v9107, %v9106
      %v9123 = vpack.c.bf16 %v9109, %v9108
      %v9124 = vpack.c.bf16 %v9111, %v9110
      %v9125 = vpack.c.bf16 %v9113, %v9112
      %v9126 = vpack.c.bf16 %v9115, %v9114
      %v9127 = vpack.c.bf16 %v9117, %v9116
      %v9128 = vpack.c.bf16 %v9119, %v9118
      %v9129 = vpack.c.bf16 %v9121, %v9120
      %v9130 = vld [vmem:[%s12] sm:$0xf]
      %v9131 = vld [vmem:[%s12 + $0x4] sm:$0xf]
      %v9132 = vld [vmem:[%s12 + $0x8] sm:$0xf]
      %v9133 = vld [vmem:[%s12 + $0xc] sm:$0xf]
      %v9134 = vld [vmem:[%s12 + $0x10] sm:$0xf]
      %v9135 = vld [vmem:[%s12 + $0x14] sm:$0xf]
      %v9136 = vld [vmem:[%s12 + $0x18] sm:$0xf]
      %v9137 = vld [vmem:[%s12 + $0x1c] sm:$0xf]
      %v9138 = vld [vmem:[%s12 + $0x20] sm:$0xf]
      %v9139 = vld [vmem:[%s12 + $0x24] sm:$0xf]
      %v9140 = vld [vmem:[%s12 + $0x28] sm:$0xf]
      %v9141 = vld [vmem:[%s12 + $0x2c] sm:$0xf]
      %v9142 = vld [vmem:[%s12 + $0x30] sm:$0xf]
      %v9143 = vld [vmem:[%s12 + $0x34] sm:$0xf]
      %v9144 = vld [vmem:[%s12 + $0x38] sm:$0xf]
      %v9145 = vld [vmem:[%s12 + $0x3c] sm:$0xf]
      %v9146 = vld [vmem:[%s13] sm:$0x1]
      %v9148 = vlaneseq
      %v9149 = vshrl.u32 %v9148, 7
      %v9150 = vsub.s32 0, %v9149
      %v9151 = vrot.slane %v9146, %v9150
      %v9169 = vunpack.c.l.b16 %v9130
      %v9170 = vunpack.c.l.b16 %v9131
      %v9171 = vunpack.c.l.b16 %v9132
      %v9172 = vunpack.c.l.b16 %v9133
      %v9173 = vunpack.c.l.b16 %v9134
      %v9174 = vunpack.c.l.b16 %v9135
      %v9175 = vunpack.c.l.b16 %v9136
      %v9176 = vunpack.c.l.b16 %v9137
      %v9177 = vunpack.c.l.b16 %v9138
      %v9178 = vunpack.c.l.b16 %v9139
      %v9179 = vunpack.c.l.b16 %v9140
      %v9180 = vunpack.c.l.b16 %v9141
      %v9181 = vunpack.c.l.b16 %v9142
      %v9182 = vunpack.c.l.b16 %v9143
      %v9183 = vunpack.c.l.b16 %v9144
      %v9184 = vunpack.c.l.b16 %v9145
      %v9185 = vpack.c.b16 %v9170, %v9169
      %v9186 = vpack.c.b16 %v9172, %v9171
      %v9187 = vpack.c.b16 %v9174, %v9173
      %v9188 = vpack.c.b16 %v9176, %v9175
      %v9189 = vpack.c.b16 %v9178, %v9177
      %v9190 = vpack.c.b16 %v9180, %v9179
      %v9191 = vpack.c.b16 %v9182, %v9181
      %v9192 = vpack.c.b16 %v9184, %v9183
      %9201 = vmatprep.subr.bf16.mxu0 0
      %9202 = vmatpush1.bf16.msra.mxu0 %v9185
      %9203 = vmatprep.subr.bf16.mxu0 0
      %9204 = vmatpush1.bf16.msra.mxu0 %v9186
      %9205 = vmatprep.subr.bf16.mxu0 0
      %9206 = vmatpush1.bf16.msra.mxu0 %v9187
      %9207 = vmatprep.subr.bf16.mxu0 0
      %9208 = vmatpush1.bf16.msra.mxu0 %v9188
      %9209 = vmatprep.subr.bf16.mxu0 0
      %9210 = vmatpush1.bf16.msra.mxu0 %v9189
      %9211 = vmatprep.subr.bf16.mxu0 0
      %9212 = vmatpush1.bf16.msra.mxu0 %v9190
      %9213 = vmatprep.subr.bf16.mxu0 0
      %9214 = vmatpush1.bf16.msra.mxu0 %v9191
      %9215 = vmatprep.subr.bf16.mxu0 0
      %9216 = vmatpush1.bf16.msra.mxu0 %v9192
      %9217 = vmatprep.subr.bf16.mxu0 0
      %9218 = vmatpush1.bf16.msra.mxu0 0
      %9219 = vmatprep.subr.bf16.mxu0 0
      %9220 = vmatpush1.bf16.msra.mxu0 0
      %9221 = vmatprep.subr.bf16.mxu0 0
      %9222 = vmatpush1.bf16.msra.mxu0 0
      %9223 = vmatprep.subr.bf16.mxu0 0
      %9224 = vmatpush1.bf16.msra.mxu0 0
      %9225 = vmatprep.subr.bf16.mxu0 0
      %9226 = vmatpush1.bf16.msra.mxu0 0
      %9227 = vmatprep.subr.bf16.mxu0 0
      %9228 = vmatpush1.bf16.msra.mxu0 0
      %9229 = vmatprep.subr.bf16.mxu0 0
      %9230 = vmatpush1.bf16.msra.mxu0 0
      %9231 = vmatprep.subr.bf16.mxu0 0
      %9232 = vmatpush1.bf16.msra.mxu0 0
      %9233 = vmatprep.mubr.bf16.mxu0 0
      %9234 = vmatmul.mubr.bf16.gmra.mrb[0].mxu0 %v9122
      %v9235 = vpop.f32.mrb[0].mxu0
      %v9236 = vadd.f32 %v9151, %v9235
      %v9237 = vpop.f32.mrb[0].mxu0
      %v9238 = vpop.f32.mrb[0].mxu0
      %v9239 = vadd.f32 %v9151, %v9238
      %v9240 = vpop.f32.mrb[0].mxu0
      %9241 = vmatprep.mubr.bf16.mxu0 0
      %9242 = vmatmul.mubr.bf16.gmra.mrb[0].mxu0 %v9123
      %v9243 = vpop.f32.mrb[0].mxu0
      %v9244 = vadd.f32 %v9151, %v9243
      %v9245 = vpop.f32.mrb[0].mxu0
      %v9246 = vpop.f32.mrb[0].mxu0
      %v9247 = vadd.f32 %v9151, %v9246
      %v9248 = vpop.f32.mrb[0].mxu0
      %9249 = vmatprep.mubr.bf16.mxu0 0
      %9250 = vmatmul.mubr.bf16.gmra.mrb[0].mxu0 %v9124
      %v9251 = vpop.f32.mrb[0].mxu0
      %v9252 = vadd.f32 %v9151, %v9251
      %v9253 = vpop.f32.mrb[0].mxu0
      %v9254 = vpop.f32.mrb[0].mxu0
      %v9255 = vadd.f32 %v9151, %v9254
      %v9256 = vpop.f32.mrb[0].mxu0
      %9257 = vmatprep.mubr.bf16.mxu0 0
      %9258 = vmatmul.mubr.bf16.gmra.mrb[0].mxu0 %v9125
      %v9259 = vpop.f32.mrb[0].mxu0
      %v9260 = vadd.f32 %v9151, %v9259
      %v9261 = vpop.f32.mrb[0].mxu0
      %v9262 = vpop.f32.mrb[0].mxu0
      %v9263 = vadd.f32 %v9151, %v9262
      %v9264 = vpop.f32.mrb[0].mxu0
      %9265 = vmatprep.mubr.bf16.mxu0 0
      %9266 = vmatmul.mubr.bf16.gmra.mrb[0].mxu0 %v9126
      %v9267 = vpop.f32.mrb[0].mxu0
      %v9268 = vadd.f32 %v9151, %v9267
      %v9269 = vpop.f32.mrb[0].mxu0
      %v9270 = vpop.f32.mrb[0].mxu0
      %v9271 = vadd.f32 %v9151, %v9270
      %v9272 = vpop.f32.mrb[0].mxu0
      %9273 = vmatprep.mubr.bf16.mxu0 0
      %9274 = vmatmul.mubr.bf16.gmra.mrb[0].mxu0 %v9127
      %v9275 = vpop.f32.mrb[0].mxu0
      %v9276 = vadd.f32 %v9151, %v9275
      %v9277 = vpop.f32.mrb[0].mxu0
      %v9278 = vpop.f32.mrb[0].mxu0
      %v9279 = vadd.f32 %v9151, %v9278
      %v9280 = vpop.f32.mrb[0].mxu0
      %9281 = vmatprep.mubr.bf16.mxu0 0
      %9282 = vmatmul.mubr.bf16.gmra.mrb[0].mxu0 %v9128
      %v9283 = vpop.f32.mrb[0].mxu0
      %v9284 = vadd.f32 %v9151, %v9283
      %v9285 = vpop.f32.mrb[0].mxu0
      %v9286 = vpop.f32.mrb[0].mxu0
      %v9287 = vadd.f32 %v9151, %v9286
      %v9288 = vpop.f32.mrb[0].mxu0
      %9289 = vmatprep.mubr.bf16.mxu0 0
      %9290 = vmatmul.mubr.bf16.gmra.mrb[0].mxu0 %v9129
      %v9291 = vpop.f32.mrb[0].mxu0
      %v9292 = vadd.f32 %v9151, %v9291
      %v9293 = vpop.f32.mrb[0].mxu0
      %v9294 = vpop.f32.mrb[0].mxu0
      %v9295 = vadd.f32 %v9151, %v9294
      %v9296 = vpop.f32.mrb[0].mxu0
      %9297 = vdwg.mxu0
      %v9298 = vadd.f32 %v9236, %v8938
      %v9299 = vadd.f32 %v9239, %v8939
      %v9300 = vadd.f32 %v9244, %v8940
      %v9301 = vadd.f32 %v9247, %v8941
      %v9302 = vadd.f32 %v9252, %v8942
      %v9303 = vadd.f32 %v9255, %v8943
      %v9304 = vadd.f32 %v9260, %v8944
      %v9305 = vadd.f32 %v9263, %v8945
      %v9306 = vadd.f32 %v9268, %v8946
      %v9307 = vadd.f32 %v9271, %v8947
      %v9308 = vadd.f32 %v9276, %v8948
      %v9309 = vadd.f32 %v9279, %v8949
      %v9310 = vadd.f32 %v9284, %v8950
      %v9311 = vadd.f32 %v9287, %v8951
      %v9312 = vadd.f32 %v9292, %v8952
      %v9313 = vadd.f32 %v9295, %v8953
      %v9314 = vld [vmem:[%s14] sm:$0x1]
      %v9315 = vld [vmem:[%s15] sm:$0x1]
      %v9316 = vsel %vm674, %v9298, 0.0
      %9317 = vadd.xlane.f32.xlu0 %v9316
      %v9318 = vpop.xlane.xlu0 %9317
      %v9319 = vsel %vm674, %v9299, 0.0
      %9320 = vadd.xlane.f32.xlu0 %v9319
      %v9321 = vpop.xlane.xlu0 %9320
      %v9322 = vsel %vm674, %v9300, 0.0
      %9323 = vadd.xlane.f32.xlu0 %v9322
      %v9324 = vpop.xlane.xlu0 %9323
      %v9325 = vsel %vm674, %v9301, 0.0
      %9326 = vadd.xlane.f32.xlu0 %v9325
      %v9327 = vpop.xlane.xlu0 %9326
      %v9328 = vsel %vm674, %v9302, 0.0
      %9329 = vadd.xlane.f32.xlu0 %v9328
      %v9330 = vpop.xlane.xlu0 %9329
      %v9331 = vsel %vm674, %v9303, 0.0
      %9332 = vadd.xlane.f32.xlu0 %v9331
      %v9333 = vpop.xlane.xlu0 %9332
      %v9334 = vsel %vm674, %v9304, 0.0
      %9335 = vadd.xlane.f32.xlu0 %v9334
      %v9336 = vpop.xlane.xlu0 %9335
      %v9337 = vsel %vm674, %v9305, 0.0
      %9338 = vadd.xlane.f32.xlu0 %v9337
      %v9339 = vpop.xlane.xlu0 %9338
      %v9340 = vsel %vm674, %v9306, 0.0
      %9341 = vadd.xlane.f32.xlu0 %v9340
      %v9342 = vpop.xlane.xlu0 %9341
      %v9343 = vsel %vm674, %v9307, 0.0
      %9344 = vadd.xlane.f32.xlu0 %v9343
      %v9345 = vpop.xlane.xlu0 %9344
      %v9346 = vsel %vm674, %v9308, 0.0
      %9347 = vadd.xlane.f32.xlu0 %v9346
      %v9348 = vpop.xlane.xlu0 %9347
      %v9349 = vsel %vm674, %v9309, 0.0
      %9350 = vadd.xlane.f32.xlu0 %v9349
      %v9351 = vpop.xlane.xlu0 %9350
      %v9352 = vsel %vm674, %v9310, 0.0
      %9353 = vadd.xlane.f32.xlu0 %v9352
      %v9354 = vpop.xlane.xlu0 %9353
      %v9355 = vsel %vm674, %v9311, 0.0
      %9356 = vadd.xlane.f32.xlu0 %v9355
      %v9357 = vpop.xlane.xlu0 %9356
      %v9358 = vsel %vm674, %v9312, 0.0
      %9359 = vadd.xlane.f32.xlu0 %v9358
      %v9360 = vpop.xlane.xlu0 %9359
      %v9361 = vsel %vm674, %v9313, 0.0
      %9362 = vadd.xlane.f32.xlu0 %v9361
      %v9363 = vpop.xlane.xlu0 %9362
      %v9364 = vmul.f32 %v9318, %v8749
      %v9365 = vmul.f32 %v9321, %v8749
      %v9366 = vmul.f32 %v9324, %v8749
      %v9367 = vmul.f32 %v9327, %v8749
      %v9368 = vmul.f32 %v9330, %v8749
      %v9369 = vmul.f32 %v9333, %v8749
      %v9370 = vmul.f32 %v9336, %v8749
      %v9371 = vmul.f32 %v9339, %v8749
      %v9372 = vmul.f32 %v9342, %v8749
      %v9373 = vmul.f32 %v9345, %v8749
      %v9374 = vmul.f32 %v9348, %v8749
      %v9375 = vmul.f32 %v9351, %v8749
      %v9376 = vmul.f32 %v9354, %v8749
      %v9377 = vmul.f32 %v9357, %v8749
      %v9378 = vmul.f32 %v9360, %v8749
      %v9379 = vmul.f32 %v9363, %v8749
      %v9380 = vsub.f32 %v9298, %v9364
      %v9381 = vsub.f32 %v9299, %v9365
      %v9382 = vsub.f32 %v9300, %v9366
      %v9383 = vsub.f32 %v9301, %v9367
      %v9384 = vsub.f32 %v9302, %v9368
      %v9385 = vsub.f32 %v9303, %v9369
      %v9386 = vsub.f32 %v9304, %v9370
      %v9387 = vsub.f32 %v9305, %v9371
      %v9388 = vsub.f32 %v9306, %v9372
      %v9389 = vsub.f32 %v9307, %v9373
      %v9390 = vsub.f32 %v9308, %v9374
      %v9391 = vsub.f32 %v9309, %v9375
      %v9392 = vsub.f32 %v9310, %v9376
      %v9393 = vsub.f32 %v9311, %v9377
      %v9394 = vsub.f32 %v9312, %v9378
      %v9395 = vsub.f32 %v9313, %v9379
      %v9396 = vmul.f32 %v9380, %v9380
      %v9397 = vmul.f32 %v9381, %v9381
      %v9398 = vmul.f32 %v9382, %v9382
      %v9399 = vmul.f32 %v9383, %v9383
      %v9400 = vmul.f32 %v9384, %v9384
      %v9401 = vmul.f32 %v9385, %v9385
      %v9402 = vmul.f32 %v9386, %v9386
      %v9403 = vmul.f32 %v9387, %v9387
      %v9404 = vmul.f32 %v9388, %v9388
      %v9405 = vmul.f32 %v9389, %v9389
      %v9406 = vmul.f32 %v9390, %v9390
      %v9407 = vmul.f32 %v9391, %v9391
      %v9408 = vmul.f32 %v9392, %v9392
      %v9409 = vmul.f32 %v9393, %v9393
      %v9410 = vmul.f32 %v9394, %v9394
      %v9411 = vmul.f32 %v9395, %v9395
      %v9412 = vsel %vm674, %v9396, 0.0
      %9413 = vadd.xlane.f32.xlu0 %v9412
      %v9414 = vpop.xlane.xlu0 %9413
      %v9415 = vsel %vm674, %v9397, 0.0
      %9416 = vadd.xlane.f32.xlu0 %v9415
      %v9417 = vpop.xlane.xlu0 %9416
      %v9418 = vsel %vm674, %v9398, 0.0
      %9419 = vadd.xlane.f32.xlu0 %v9418
      %v9420 = vpop.xlane.xlu0 %9419
      %v9421 = vsel %vm674, %v9399, 0.0
      %9422 = vadd.xlane.f32.xlu0 %v9421
      %v9423 = vpop.xlane.xlu0 %9422
      %v9424 = vsel %vm674, %v9400, 0.0
      %9425 = vadd.xlane.f32.xlu0 %v9424
      %v9426 = vpop.xlane.xlu0 %9425
      %v9427 = vsel %vm674, %v9401, 0.0
      %9428 = vadd.xlane.f32.xlu0 %v9427
      %v9429 = vpop.xlane.xlu0 %9428
      %v9430 = vsel %vm674, %v9402, 0.0
      %9431 = vadd.xlane.f32.xlu0 %v9430
      %v9432 = vpop.xlane.xlu0 %9431
      %v9433 = vsel %vm674, %v9403, 0.0
      %9434 = vadd.xlane.f32.xlu0 %v9433
      %v9435 = vpop.xlane.xlu0 %9434
      %v9436 = vsel %vm674, %v9404, 0.0
      %9437 = vadd.xlane.f32.xlu0 %v9436
      %v9438 = vpop.xlane.xlu0 %9437
      %v9439 = vsel %vm674, %v9405, 0.0
      %9440 = vadd.xlane.f32.xlu0 %v9439
      %v9441 = vpop.xlane.xlu0 %9440
      %v9442 = vsel %vm674, %v9406, 0.0
      %9443 = vadd.xlane.f32.xlu0 %v9442
      %v9444 = vpop.xlane.xlu0 %9443
      %v9445 = vsel %vm674, %v9407, 0.0
      %9446 = vadd.xlane.f32.xlu0 %v9445
      %v9447 = vpop.xlane.xlu0 %9446
      %v9448 = vsel %vm674, %v9408, 0.0
      %9449 = vadd.xlane.f32.xlu0 %v9448
      %v9450 = vpop.xlane.xlu0 %9449
      %v9451 = vsel %vm674, %v9409, 0.0
      %9452 = vadd.xlane.f32.xlu0 %v9451
      %v9453 = vpop.xlane.xlu0 %9452
      %v9454 = vsel %vm674, %v9410, 0.0
      %9455 = vadd.xlane.f32.xlu0 %v9454
      %v9456 = vpop.xlane.xlu0 %9455
      %v9457 = vsel %vm674, %v9411, 0.0
      %9458 = vadd.xlane.f32.xlu0 %v9457
      %v9459 = vpop.xlane.xlu0 %9458
      %v9460 = vmul.f32 %v9414, %v8749
      %v9461 = vmul.f32 %v9417, %v8749
      %v9462 = vmul.f32 %v9420, %v8749
      %v9463 = vmul.f32 %v9423, %v8749
      %v9464 = vmul.f32 %v9426, %v8749
      %v9465 = vmul.f32 %v9429, %v8749
      %v9466 = vmul.f32 %v9432, %v8749
      %v9467 = vmul.f32 %v9435, %v8749
      %v9468 = vmul.f32 %v9438, %v8749
      %v9469 = vmul.f32 %v9441, %v8749
      %v9470 = vmul.f32 %v9444, %v8749
      %v9471 = vmul.f32 %v9447, %v8749
      %v9472 = vmul.f32 %v9450, %v8749
      %v9473 = vmul.f32 %v9453, %v8749
      %v9474 = vmul.f32 %v9456, %v8749
      %v9475 = vmul.f32 %v9459, %v8749
      %v9476 = vadd.f32 %v9460, 1e-05
      %v9477 = vadd.f32 %v9461, 1e-05
      %v9478 = vadd.f32 %v9462, 1e-05
      %v9479 = vadd.f32 %v9463, 1e-05
      %v9480 = vadd.f32 %v9464, 1e-05
      %v9481 = vadd.f32 %v9465, 1e-05
      %v9482 = vadd.f32 %v9466, 1e-05
      %v9483 = vadd.f32 %v9467, 1e-05
      %v9484 = vadd.f32 %v9468, 1e-05
      %v9485 = vadd.f32 %v9469, 1e-05
      %v9486 = vadd.f32 %v9470, 1e-05
      %v9487 = vadd.f32 %v9471, 1e-05
      %v9488 = vadd.f32 %v9472, 1e-05
      %v9489 = vadd.f32 %v9473, 1e-05
      %v9490 = vadd.f32 %v9474, 1e-05
      %v9491 = vadd.f32 %v9475, 1e-05
      %v9492 = vrsqrt.pop %v9476
      %v9493 = vrsqrt.pop %v9477
      %v9494 = vrsqrt.pop %v9478
      %v9495 = vrsqrt.pop %v9479
      %v9496 = vrsqrt.pop %v9480
      %v9497 = vrsqrt.pop %v9481
      %v9498 = vrsqrt.pop %v9482
      %v9499 = vrsqrt.pop %v9483
      %v9500 = vrsqrt.pop %v9484
      %v9501 = vrsqrt.pop %v9485
      %v9502 = vrsqrt.pop %v9486
      %v9503 = vrsqrt.pop %v9487
      %v9504 = vrsqrt.pop %v9488
      %v9505 = vrsqrt.pop %v9489
      %v9506 = vrsqrt.pop %v9490
      %v9507 = vrsqrt.pop %v9491
      %v9508 = vmul.f32 %v9380, %v9492
      %v9509 = vmul.f32 %v9381, %v9493
      %v9510 = vmul.f32 %v9382, %v9494
      %v9511 = vmul.f32 %v9383, %v9495
      %v9512 = vmul.f32 %v9384, %v9496
      %v9513 = vmul.f32 %v9385, %v9497
      %v9514 = vmul.f32 %v9386, %v9498
      %v9515 = vmul.f32 %v9387, %v9499
      %v9516 = vmul.f32 %v9388, %v9500
      %v9517 = vmul.f32 %v9389, %v9501
      %v9518 = vmul.f32 %v9390, %v9502
      %v9519 = vmul.f32 %v9391, %v9503
      %v9520 = vmul.f32 %v9392, %v9504
      %v9521 = vmul.f32 %v9393, %v9505
      %v9522 = vmul.f32 %v9394, %v9506
      %v9523 = vmul.f32 %v9395, %v9507
      %v9525 = vlaneseq
      %v9526 = vshrl.u32 %v9525, 7
      %v9527 = vsub.s32 0, %v9526
      %v9528 = vrot.slane %v9314, %v9527
      %v9530 = vmul.f32 %v9508, %v9528
      %v9531 = vmul.f32 %v9509, %v9528
      %v9532 = vmul.f32 %v9510, %v9528
      %v9533 = vmul.f32 %v9511, %v9528
      %v9534 = vmul.f32 %v9512, %v9528
      %v9535 = vmul.f32 %v9513, %v9528
      %v9536 = vmul.f32 %v9514, %v9528
      %v9537 = vmul.f32 %v9515, %v9528
      %v9538 = vmul.f32 %v9516, %v9528
      %v9539 = vmul.f32 %v9517, %v9528
      %v9540 = vmul.f32 %v9518, %v9528
      %v9541 = vmul.f32 %v9519, %v9528
      %v9542 = vmul.f32 %v9520, %v9528
      %v9543 = vmul.f32 %v9521, %v9528
      %v9544 = vmul.f32 %v9522, %v9528
      %v9545 = vmul.f32 %v9523, %v9528
      %v9547 = vlaneseq
      %v9548 = vshrl.u32 %v9547, 7
      %v9549 = vsub.s32 0, %v9548
      %v9550 = vrot.slane %v9315, %v9549
      %v9552 = vadd.f32 %v9530, %v9550
      %v9553 = vadd.f32 %v9531, %v9550
      %v9554 = vadd.f32 %v9532, %v9550
      %v9555 = vadd.f32 %v9533, %v9550
      %v9556 = vadd.f32 %v9534, %v9550
      %v9557 = vadd.f32 %v9535, %v9550
      %v9558 = vadd.f32 %v9536, %v9550
      %v9559 = vadd.f32 %v9537, %v9550
      %v9560 = vadd.f32 %v9538, %v9550
      %v9561 = vadd.f32 %v9539, %v9550
      %v9562 = vadd.f32 %v9540, %v9550
      %v9563 = vadd.f32 %v9541, %v9550
      %v9564 = vadd.f32 %v9542, %v9550
      %v9565 = vadd.f32 %v9543, %v9550
      %v9566 = vadd.f32 %v9544, %v9550
      %v9567 = vadd.f32 %v9545, %v9550
      %9568 = vst.msk [vmem:[%s567] sm:$0xff] %vm674, %v9552
      %9569 = vst.msk [vmem:[%s567 + $0x8] sm:$0xff] %vm674, %v9553
      %9570 = vst.msk [vmem:[%s567 + $0x10] sm:$0xff] %vm674, %v9554
      %9571 = vst.msk [vmem:[%s567 + $0x18] sm:$0xff] %vm674, %v9555
      %9572 = vst.msk [vmem:[%s567 + $0x20] sm:$0xff] %vm674, %v9556
      %9573 = vst.msk [vmem:[%s567 + $0x28] sm:$0xff] %vm674, %v9557
      %9574 = vst.msk [vmem:[%s567 + $0x30] sm:$0xff] %vm674, %v9558
      %9575 = vst.msk [vmem:[%s567 + $0x38] sm:$0xff] %vm674, %v9559
      %9576 = vst.msk [vmem:[%s567 + $0x40] sm:$0xff] %vm674, %v9560
      %9577 = vst.msk [vmem:[%s567 + $0x48] sm:$0xff] %vm674, %v9561
      %9578 = vst.msk [vmem:[%s567 + $0x50] sm:$0xff] %vm674, %v9562
      %9579 = vst.msk [vmem:[%s567 + $0x58] sm:$0xff] %vm674, %v9563
      %9580 = vst.msk [vmem:[%s567 + $0x60] sm:$0xff] %vm674, %v9564
      %9581 = vst.msk [vmem:[%s567 + $0x68] sm:$0xff] %vm674, %v9565
      %9582 = vst.msk [vmem:[%s567 + $0x70] sm:$0xff] %vm674, %v9566
      %9583 = vst.msk [vmem:[%s567 + $0x78] sm:$0xff] %vm674, %v9567
      %s9584 = smul.u32 16, %s27
      %p9585 = scmp.lt.s32.totalorder %s9584, 63
      %s9586 = scalar_select %p9585, %s9584, 63
      %s9587 = smul.addr %s9586, 8
      %s9588 = scalar_lea.vmem %s16, %s9587
      // Predicated region
      $region85: #{tpu_custom_call.1} parent=83 // pred_check
        %p9589 = pneg %p396
      $region86: #{tpu_custom_call.1} parent=83 // pred_check_branch
        %9591 = sbr.rel (%p9589) target = $region88
      $region87: #{tpu_custom_call.1} parent=83 // pred_region
        %s9592 = smul.u32 16, %s27
      $region88: #{tpu_custom_call.1} parent=83 // pred_fallthru
        _
    $region84: #{tpu_custom_call.1} parent=5 // pred_fallthru
      _
    %p9593 = scmp.le.s32.totalorder 2, %s22
    // Predicated region
    $region89: #{tpu_custom_call.1} parent=5 // pred_check
      %p9594 = pneg %p9593
    $region90: #{tpu_custom_call.1} parent=5 // pred_check_branch
      %9596 = sbr.rel (%p9594) target = $region92
    $region91: #{tpu_custom_call.1} parent=5 // pred_region
      %s9597 = ssub.s32 %s22, 2
      // Predicated region
      $region93: #{tpu_custom_call.1} parent=91 // pred_check
        %p9598 = pneg %p402
      $region94: #{tpu_custom_call.1} parent=91 // pred_check_branch
        %9600 = sbr.rel (%p9598) target = $region96
      $region95: #{tpu_custom_call.1} parent=91 // pred_region
        %s9601 = smul.u32 16, %s28
        %p9602 = scmp.lt.s32.totalorder %s9601, 63
        %s9603 = scalar_select %p9602, %s9601, 63
        %s9604 = smul.addr %s9603, 8
        %s9605 = scalar_lea.vmem %s16, %s9604
      $region96: #{tpu_custom_call.1} parent=91 // pred_fallthru
        _
    $region92: #{tpu_custom_call.1} parent=5 // pred_fallthru
      _
  $region6: #{tpu_custom_call.1} parent=0 // loop_footer
    %s26 = sadd.s32 1, %s22
  $region7: #{tpu_custom_call.1} parent=0 // loop_footer_branch
    %21 = sbr.rel target = $region3
  $region8: #{tpu_custom_call.1} parent=0 // loop_exit
    _

</llo_original>
